<compile_context>
chip_gen: v7x
topology: tpu7x:2x2x1
jax: 0.10.0
libtpu: 0.0.40
codegen_flags: <defaults>
</compile_context>

<pallas_src>
import functools

import jax
import jax.numpy as jnp
from jax.experimental import pallas as pl
from jax.experimental.pallas import tpu as pltpu

LN_EPS = 1e-6
PAD = 0.0
NEG_INF = -1e9
BF16 = jnp.bfloat16


# ----------------------------- small helpers --------------------------------
def _layer_norm(x, gamma, beta):
    # x: (..., D); gamma/beta: (1, D).  Matches nn.LayerNorm(d_model, eps=1e-6).
    mu = jnp.mean(x, axis=-1, keepdims=True)
    var = jnp.mean((x - mu) ** 2, axis=-1, keepdims=True)
    return (x - mu) * jax.lax.rsqrt(var + LN_EPS) * gamma + beta


def _full_spec(a):
    # Whole-array block, constant index map (weights / LN params): DMA'd once per call.
    return pl.BlockSpec(a.shape, lambda *_: (0,) * a.ndim)


def _vmem_capacity_bytes():
    # Physical VMEM of the current generation (v5e/v6e 128 MiB, v7x 64 MiB per core).
    try:
        info = pltpu.get_tpu_info()
        cap = getattr(info, "vmem_capacity_bytes", None)
        if cap:
            return int(cap)
    except Exception:
        pass
    return 64 * 1024 * 1024  # conservative fallback (v7x per-TensorCore VMEM)


def _pick_block(n, target, align=1):
    """Largest divisor of n <= target, preferring multiples of `align` (sublane tiling)."""
    target = int(max(1, min(target, n)))
    if target >= n:
        return n
    best = None
    for t in range(target, 0, -1):
        if n % t == 0:
            if best is None:
                best = t
            if t % align == 0:
                return t
    return best


def _attn_group_tile(groups, S, D, H, dk, dv, attn_dtype, budget, target,
                     align, min_steps):
    """VMEM-budget + parallelism aware #groups per attention grid step."""
    ab = jnp.dtype(attn_dtype).itemsize
    const = 2 * 2 * (D * H * (2 * dk + dv) + H * dv * D)  # bf16 weights, double-buffered
    budget = max(budget - const, 1 << 20)
    per_group = (
        2 * 2 * S * D * 4                  # x + out blocks (f32, double-buffered)
        + 2 * H * S * S * ab               # attention-prob block (double-buffered)
        + H * S * S * 10                   # f32 scores + f32/bf16 probs live copies
        + 2 * S * H * (2 * dk + dv) * 2    # q/k/v bf16 (+ head-batched copies)
        + S * D * 16                       # LN / context / residual temporaries
        + S * S * 4                        # pad mask
    )
    cap = max(1, budget // max(per_group, 1))
    cap = min(cap, int(target))
    if min_steps > 1:
        cap = min(cap, max(1, groups // min_steps))  # keep >= min_steps grid steps (2 TCs)
    return _pick_block(groups, cap, align)


def _ffn_row_tile(N, D, d_inner, budget, target, min_steps):
    const = 2 * 2 * D * d_inner * 2        # w1 + w2 bf16, double-buffered
    budget = max(budget - const, 1 << 20)
    per_row = 2 * 2 * D * 4 + d_inner * 8 + D * 16
    cap = max(8, budget // max(per_row, 1))
    cap = min(cap, int(target))
    if min_steps > 1:
        cap = min(cap, max(8, N // min_steps))
    return _pick_block(N, cap, align=8)


def _heads_to_batch(t, G, S, H, d):
    """(G*S, H*d) row-packed -> (G*H, S, d) head-batched (static lane slices + stack)."""
    t3 = t.reshape(G, S, H * d)
    heads = [t3[:, :, h * d:(h + 1) * d] for h in range(H)]
    return jnp.stack(heads, axis=1).reshape(G * H, S, d)


def _batch_to_heads(t, G, S, H, d):
    """(G*H, S, d) head-batched -> (G*S, H*d) row-packed (concat along lanes)."""
    t4 = t.reshape(G, H, S, d)
    cat = jnp.concatenate([t4[:, h] for h in range(H)], axis=-1)   # (G, S, H*d)
    return cat.reshape(G * S, H * d)


# ---------------------------------------------------------------------------
# Kernel 1: pre-LN + multi-head self-attention + residual.
#   seq_leading=False (temporal): x block (Gt, S, D),     mask block (Gt, 1, S)
#   seq_leading=True  (type)    : x block (1, S, Gt, D),  mask block (1, Gt, 1, S)
#     (the 'b k l d -> b l k d' rearrange is a cheap in-VMEM block transpose, never
#      materialized in HBM; the output is written back in bkld layout)
# ---------------------------------------------------------------------------
def _ln_mha_kernel(n_head, d_k, d_v, seq_leading,
                   x_ref, m_ref, g_ref, b_ref,
                   wq_ref, bq_ref, wk_ref, bk_ref, wv_ref, bv_ref,
                   wo_ref, bo_ref,
                   out_ref, attn_ref):
    H, dk, dv = n_head, d_k, d_v
    if seq_leading:
        x = jnp.transpose(x_ref[0], (1, 0, 2))        # (G, S, D), groups first
    else:
        x = x_ref[...]                                # (G, S, D)
    G, S, D = x.shape
    m = m_ref[...].reshape(G, S)                      # non-pad values, 0.0 == PAD

    x2 = x.reshape(G * S, D)                          # pack all groups: big matmuls
    xn_b = _layer_norm(x2, g_ref[...], b_ref[...]).astype(BF16)

    scale = 1.0 / (dk ** 0.5)

    def proj(w_ref, bias_ref, s=1.0):
        y = jnp.dot(xn_b, w_ref[...], preferred_element_type=jnp.float32)
        return ((y + bias_ref[...]) * s).astype(BF16)

    # Fused Q/K/V projections over the packed rows (scale folded into Q), then
    # head-batched (G*H, S, d) tensors so scores / context are single batched matmuls.
    qb = _heads_to_batch(proj(wq_ref, bq_ref, scale), G, S, H, dk)
    kb = _heads_to_batch(proj(wk_ref, bk_ref), G, S, H, dk)
    vb = _heads_to_batch(proj(wv_ref, bv_ref), G, S, H, dv)

    s = jnp.einsum('bqe,bke->bqk', qb, kb,
                   preferred_element_type=jnp.float32)           # (G*H, S, S)
    s = s.reshape(G, H, S, S)
    # get_attn_key_pad_mask_K: outer product of the non-pad vector with itself == PAD.
    pad_pair = (m[:, :, None] * m[:, None, :]) == PAD            # (G, S, S) True==masked
    s = jnp.where(pad_pair[:, None, :, :], NEG_INF, s)
    p = jax.nn.softmax(s, axis=-1)                               # f32 (G, H, S, S)

    # One stacked attention-probability store per grid step (lane-dense, bf16 output).
    if seq_leading:
        attn_ref[0] = p.astype(attn_ref.dtype)
    else:
        attn_ref[...] = p.astype(attn_ref.dtype)

    ctx = jnp.einsum('bqk,bke->bqe', p.astype(BF16).reshape(G * H, S, S), vb,
                     preferred_element_type=jnp.float32)         # (G*H, S, dv)
    ctx = _batch_to_heads(ctx, G, S, H, dv).astype(BF16)         # (G*S, H*dv)

    out = jnp.dot(ctx, wo_ref[...], preferred_element_type=jnp.float32)
    out = (out + bo_ref[...] + x2).reshape(G, S, D)              # proj bias + residual
    if seq_leading:
        out_ref[0] = jnp.transpose(out, (1, 0, 2)).astype(out_ref.dtype)
    else:
        out_ref[...] = out.astype(out_ref.dtype)


def tem_attention_block(x, m, gamma, beta, mha_w, *, n_head, d_k, d_v,
                        group_tile, attn_dtype, vmem_limit):
    # x: (G, S, D) f32 with G = B*K, S = L;  m: (G, S) non-pad values (0 == PAD).
    G, S, D = x.shape
    gt = group_tile
    wq, bq, wk, bk, wv, bv, wo, bo = mha_w
    m3 = m.reshape(G, 1, S)   # unit middle dim keeps the mask block layout-friendly
    kern = functools.partial(_ln_mha_kernel, n_head, d_k, d_v, False)
    out, attn = pl.pallas_call(
        kern,
        out_shape=(jax.ShapeDtypeStruct((G, S, D), jnp.float32),
                   jax.ShapeDtypeStruct((G, n_head, S, S), attn_dtype)),
        grid=(G // gt,),
        in_specs=[
            pl.BlockSpec((gt, S, D), lambda i: (i, 0, 0)),        # x (Gt groups / step)
            pl.BlockSpec((gt, 1, S), lambda i: (i, 0, 0)),        # non-pad mask
            _full_spec(gamma), _full_spec(beta),
            _full_spec(wq), _full_spec(bq), _full_spec(wk), _full_spec(bk),
            _full_spec(wv), _full_spec(bv), _full_spec(wo), _full_spec(bo),
        ],
        out_specs=(
            pl.BlockSpec((gt, S, D), lambda i: (i, 0, 0)),
            pl.BlockSpec((gt, n_head, S, S), lambda i: (i, 0, 0, 0)),
        ),
        compiler_params=pltpu.CompilerParams(
            dimension_semantics=("parallel",),
            vmem_limit_bytes=vmem_limit),
    )(x, m3, gamma, beta, wq, bq, wk, bk, wv, bv, wo, bo)
    return out, attn


def type_attention_block(x4, m_t, gamma, beta, mha_w, *, n_head, d_k, d_v,
                         l_tile, attn_dtype, vmem_limit):
    # x4: (B, K, L, D) f32 -- groups are (b, l), sequence runs over K.
    # m_t: (B, L, K) non-pad values (only this tiny mask is pre-transposed; the big
    #      activation tensor is never transposed in HBM -- the rearrange lives in the
    #      BlockSpecs + a small in-VMEM block transpose).
    B, K, L, D = x4.shape
    lt = l_tile
    wq, bq, wk, bk, wv, bv, wo, bo = mha_w
    m4 = m_t.reshape(B, L, 1, K)
    kern = functools.partial(_ln_mha_kernel, n_head, d_k, d_v, True)
    out, attn = pl.pallas_call(
        kern,
        out_shape=(jax.ShapeDtypeStruct((B, K, L, D), jnp.float32),   # bkld layout
                   jax.ShapeDtypeStruct((B, L, n_head, K, K), attn_dtype)),
        grid=(B, L // lt),
        in_specs=[
            pl.BlockSpec((1, K, lt, D), lambda b, l: (b, 0, l, 0)),   # Lt groups / step
            pl.BlockSpec((1, lt, 1, K), lambda b, l: (b, l, 0, 0)),
            _full_spec(gamma), _full_spec(beta),
            _full_spec(wq), _full_spec(bq), _full_spec(wk), _full_spec(bk),
            _full_spec(wv), _full_spec(bv), _full_spec(wo), _full_spec(bo),
        ],
        out_specs=(
            pl.BlockSpec((1, K, lt, D), lambda b, l: (b, 0, l, 0)),
            pl.BlockSpec((1, lt, n_head, K, K), lambda b, l: (b, l, 0, 0, 0)),
        ),
        compiler_params=pltpu.CompilerParams(
            dimension_semantics=("parallel", "parallel"),
            vmem_limit_bytes=vmem_limit),
    )(x4, m4, gamma, beta, wq, bq, wk, bk, wv, bv, wo, bo)
    return out, attn


# ---------------------------------------------------------------------------
# Kernel 2: pre-LN + FFN (Linear -> ReLU -> Linear) + residual + final LayerNorm,
# tiled over rows so it pipelines / shards across cores and stays within VMEM.
# ---------------------------------------------------------------------------
def _ln_ffn_ln_kernel(x_ref, g_ref, b_ref, w1_ref, b1_ref, w2_ref, b2_ref, out_ref):
    x = x_ref[...]                                    # (Tn, D) f32
    gamma = g_ref[...]
    beta = b_ref[...]
    xn = _layer_norm(x, gamma, beta)
    h = jnp.dot(xn.astype(BF16), w1_ref[...],
                preferred_element_type=jnp.float32) + b1_ref[...]
    h = jnp.maximum(h, 0.0)
    y = jnp.dot(h.astype(BF16), w2_ref[...],
                preferred_element_type=jnp.float32) + b2_ref[...]
    y = y + x                                         # residual
    out_ref[...] = _layer_norm(y, gamma, beta).astype(out_ref.dtype)  # fused final LN


def ffn_final_ln_block(x, gamma, beta, ffn_w, *, row_tile, vmem_limit):
    N, D = x.shape
    w1, b1, w2, b2 = ffn_w
    tn = row_tile
    return pl.pallas_call(
        _ln_ffn_ln_kernel,
        out_shape=jax.ShapeDtypeStruct((N, D), jnp.float32),
        grid=(N // tn,),
        in_specs=[
            pl.BlockSpec((tn, D), lambda i: (i, 0)),
            _full_spec(gamma), _full_spec(beta),
            _full_spec(w1), _full_spec(b1), _full_spec(w2), _full_spec(b2),
        ],
        out_specs=pl.BlockSpec((tn, D), lambda i: (i, 0)),
        compiler_params=pltpu.CompilerParams(
            dimension_semantics=("parallel",),
            vmem_limit_bytes=vmem_limit),
    )(x, gamma, beta, w1, b1, w2, b2)


# ---------------------------------------------------------------------------
# Full EncoderLayer.forward (eval mode, dropout == identity)
# ---------------------------------------------------------------------------
def encoder_layer_forward(params, x, non_pad_mask, *, n_head, d_k, d_v,
                          group_tile=32, l_tile=32, row_tile=1024,
                          attn_dtype=jnp.bfloat16):
    B, K, L, D = x.shape
    gamma, beta = params["ln_g"], params["ln_b"]
    d_inner = params["ffn"][0].shape[1]

    # Generation-aware VMEM budget + tile/grid sizing (v5e/v6e 128 MiB, v7x 64 MiB).
    cap = _vmem_capacity_bytes()
    vmem_limit = min(int(cap * 3 // 4), 112 * 1024 * 1024)
    budget = int(cap * 0.45)

    gt = _attn_group_tile(B * K, L, D, n_head, d_k, d_v, attn_dtype,
                          budget, group_tile, align=1, min_steps=2)
    lt = _attn_group_tile(L, K, D, n_head, d_k, d_v, attn_dtype,
                          budget, l_tile, align=8, min_steps=1)
    tn = _ffn_row_tile(B * K * L, D, d_inner, budget, row_tile, min_steps=2)

    # --- temporal self-attention: pre-LN -> MHA over L (per (b,k)) -> + input ---
    x_tem = x.reshape(B * K, L, D)                    # contiguous reshape, free
    m_tem = non_pad_mask.reshape(B * K, L)
    tem_out, tem_attn = tem_attention_block(
        x_tem, m_tem, gamma, beta, params["tem"],
        n_head=n_head, d_k=d_k, d_v=d_v, group_tile=gt,
        attn_dtype=attn_dtype, vmem_limit=vmem_limit)
    enc_tem_attn = tem_attn.reshape(B, K, n_head, L, L)
    tem_out4 = tem_out.reshape(B, K, L, D)

    # --- type self-attention over K (per (b,l)): the 'b k l d -> b l k d' rearrange
    # is folded into the BlockSpecs; enc_output is produced directly in bkld layout ---
    m_type = jnp.transpose(non_pad_mask, (0, 2, 1))   # tiny (B, L, K) mask only
    enc_out4, enc_type_attn = type_attention_block(
        tem_out4, m_type, gamma, beta, params["type"],
        n_head=n_head, d_k=d_k, d_v=d_v, l_tile=lt,
        attn_dtype=attn_dtype, vmem_limit=vmem_limit)

    # --- pre-LN FFN + residual + final LN (all per-row over D, so they commute with
    # the final 'b l k d -> b k l d' rearrange and run directly on the bkld layout) ---
    out = ffn_final_ln_block(enc_out4.reshape(B * K * L, D), gamma, beta,
                             params["ffn"], row_tile=tn, vmem_limit=vmem_limit)
    return out.reshape(B, K, L, D), enc_tem_attn, enc_type_attn


def init_params(key, d_model, d_inner, n_head, d_k, d_v):
    ks = jax.random.split(key, 10)
    # Matmul weights are pre-cast to bf16 ONCE here (MXU input dtype); biases / LN stay
    # f32. This removes the per-forward f32->bf16 HBM round trip of every weight.
    w = lambda k, shp: (0.02 * jax.random.normal(k, shp, dtype=jnp.float32)).astype(BF16)
    zeros = lambda n: jnp.zeros((1, n), jnp.float32)

    def mha(k0, k1, k2, k3):
        return (w(k0, (d_model, n_head * d_k)), zeros(n_head * d_k),   # Wq, bq
                w(k1, (d_model, n_head * d_k)), zeros(n_head * d_k),   # Wk, bk
                w(k2, (d_model, n_head * d_v)), zeros(n_head * d_v),   # Wv, bv
                w(k3, (n_head * d_v, d_model)), zeros(d_model))        # Wo, bo

    return {
        # Single shared LayerNorm -- matches the reference (self.layer_norm reused).
        "ln_g": jnp.ones((1, d_model), jnp.float32),
        "ln_b": jnp.zeros((1, d_model), jnp.float32),
        "tem": mha(ks[0], ks[1], ks[2], ks[3]),
        "type": mha(ks[4], ks[5], ks[6], ks[7]),
        "ffn": (w(ks[8], (d_model, d_inner)), zeros(d_inner),
                w(ks[9], (d_inner, d_model)), zeros(d_model)),
    }


if __name__ == "__main__":
    B, K, L = 2, 4, 8                  # batch, event-types, seq-len
    d_model, d_inner, n_head, d_k, d_v = 32, 64, 4, 8, 8

    root = jax.random.PRNGKey(0)
    k_x, k_m, k_p = jax.random.split(root, 3)

    x = jax.random.normal(k_x, (B, K, L, d_model), dtype=jnp.float32)
    # non_pad_mask: 1.0 for real tokens, 0.0 (== Constants.PAD) for padding
    non_pad_mask = jax.random.bernoulli(k_m, 0.8, (B, K, L)).astype(jnp.float32)

    params = init_params(k_p, d_model, d_inner, n_head, d_k, d_v)

    fwd = jax.jit(functools.partial(encoder_layer_forward,
                                    n_head=n_head, d_k=d_k, d_v=d_v))
    out, attn_tem, attn_type = fwd(params, x, non_pad_mask)
    jax.block_until_ready((out, attn_tem, attn_type))

    assert out.shape == (B, K, L, d_model)
    assert attn_tem.shape == (B, K, n_head, L, L)
    assert attn_type.shape == (B, L, n_head, K, K)
    print("KERNEL_OK")
</pallas_src>

<mosaic_0001>
module attributes {stable_mosaic.version = 11 : i64} {
  func.func @_ln_mha_kernel(%arg0: i32, %arg1: i32, %arg2: memref<1x4x8x32xf32, #tpu.memory_space<vmem>>, %arg3: memref<1x8x1x4xf32, #tpu.memory_space<vmem>>, %arg4: memref<1x32xf32, #tpu.memory_space<vmem>>, %arg5: memref<1x32xf32, #tpu.memory_space<vmem>>, %arg6: memref<32x32xbf16, #tpu.memory_space<vmem>>, %arg7: memref<1x32xf32, #tpu.memory_space<vmem>>, %arg8: memref<32x32xbf16, #tpu.memory_space<vmem>>, %arg9: memref<1x32xf32, #tpu.memory_space<vmem>>, %arg10: memref<32x32xbf16, #tpu.memory_space<vmem>>, %arg11: memref<1x32xf32, #tpu.memory_space<vmem>>, %arg12: memref<32x32xbf16, #tpu.memory_space<vmem>>, %arg13: memref<1x32xf32, #tpu.memory_space<vmem>>, %arg14: memref<1x4x8x32xf32, #tpu.memory_space<vmem>>, %arg15: memref<1x8x4x4x4xbf16, #tpu.memory_space<vmem>>) attributes {dimension_semantics = [#tpu.dimension_semantics<parallel>, #tpu.dimension_semantics<parallel>], iteration_bounds = array<i64: 2, 1>, scalar_prefetch = 0 : i64, scratch_operands = 0 : i64, tpu.core_type = #tpu.core_type<tc>, window_params = [{transform_indices = @transform_0, window_bounds = array<i64: 1, 4, 8, 32>}, {transform_indices = @transform_1, window_bounds = array<i64: 1, 8, 1, 4>}, {pipeline_mode = #tpu.pipeline_mode<synchronous>, transform_indices = @transform_2, window_bounds = array<i64: 1, 32>}, {pipeline_mode = #tpu.pipeline_mode<synchronous>, transform_indices = @transform_3, window_bounds = array<i64: 1, 32>}, {pipeline_mode = #tpu.pipeline_mode<synchronous>, transform_indices = @transform_4, window_bounds = array<i64: 32, 32>}, {pipeline_mode = #tpu.pipeline_mode<synchronous>, transform_indices = @transform_5, window_bounds = array<i64: 1, 32>}, {pipeline_mode = #tpu.pipeline_mode<synchronous>, transform_indices = @transform_6, window_bounds = array<i64: 32, 32>}, {pipeline_mode = #tpu.pipeline_mode<synchronous>, transform_indices = @transform_7, window_bounds = array<i64: 1, 32>}, {pipeline_mode = #tpu.pipeline_mode<synchronous>, transform_indices = @transform_8, window_bounds = array<i64: 32, 32>}, {pipeline_mode = #tpu.pipeline_mode<synchronous>, transform_indices = @transform_9, window_bounds = array<i64: 1, 32>}, {pipeline_mode = #tpu.pipeline_mode<synchronous>, transform_indices = @transform_10, window_bounds = array<i64: 32, 32>}, {pipeline_mode = #tpu.pipeline_mode<synchronous>, transform_indices = @transform_11, window_bounds = array<i64: 1, 32>}, {transform_indices = @transform_12, window_bounds = array<i64: 1, 4, 8, 32>}, {transform_indices = @transform_13, window_bounds = array<i64: 1, 8, 4, 4, 4>}]} {
    %c0 = arith.constant 0 : index
    %c0_0 = arith.constant 0 : index
    %c0_1 = arith.constant 0 : index
    %c0_2 = arith.constant 0 : index
    %0 = vector.load %arg2[%c0, %c0_0, %c0_1, %c0_2] : memref<1x4x8x32xf32, #tpu.memory_space<vmem>>, vector<1x4x8x32xf32>
    %1 = vector.shape_cast %0 : vector<1x4x8x32xf32> to vector<4x8x32xf32>
    %2 = tpu.transpose %1, [1, 0, 2] : vector<4x8x32xf32> -> vector<8x4x32xf32>
    %c0_3 = arith.constant 0 : index
    %c0_4 = arith.constant 0 : index
    %c0_5 = arith.constant 0 : index
    %c0_6 = arith.constant 0 : index
    %3 = vector.load %arg3[%c0_3, %c0_4, %c0_5, %c0_6] : memref<1x8x1x4xf32, #tpu.memory_space<vmem>>, vector<1x8x1x4xf32>
    %4 = vector.shape_cast %3 : vector<1x8x1x4xf32> to vector<8x4xf32>
    %5 = vector.shape_cast %2 : vector<8x4x32xf32> to vector<32x32xf32>
    %c0_7 = arith.constant 0 : index
    %c0_8 = arith.constant 0 : index
    %6 = vector.load %arg4[%c0_7, %c0_8] : memref<1x32xf32, #tpu.memory_space<vmem>>, vector<1x32xf32>
    %c0_9 = arith.constant 0 : index
    %c0_10 = arith.constant 0 : index
    %7 = vector.load %arg5[%c0_9, %c0_10] : memref<1x32xf32, #tpu.memory_space<vmem>>, vector<1x32xf32>
    %cst = arith.constant dense<0.000000e+00> : vector<32xf32>
    %8 = vector.multi_reduction <add>, %5, %cst [1] : vector<32x32xf32> to vector<32xf32>
    %9 = vector.shape_cast %8 : vector<32xf32> to vector<32x1xf32>
    %cst_11 = arith.constant 3.200000e+01 : f32
    %10 = vector.broadcast %cst_11 : f32 to vector<32x1xf32>
    %11 = arith.divf %9, %10 : vector<32x1xf32>
    %12 = vector.broadcast %11 : vector<32x1xf32> to vector<32x32xf32>
    %13 = arith.subf %5, %12 : vector<32x32xf32>
    %14 = arith.mulf %13, %13 : vector<32x32xf32>
    %cst_12 = arith.constant dense<0.000000e+00> : vector<32xf32>
    %15 = vector.multi_reduction <add>, %14, %cst_12 [1] : vector<32x32xf32> to vector<32xf32>
    %16 = vector.shape_cast %15 : vector<32xf32> to vector<32x1xf32>
    %cst_13 = arith.constant 3.200000e+01 : f32
    %17 = vector.broadcast %cst_13 : f32 to vector<32x1xf32>
    %18 = arith.divf %16, %17 : vector<32x1xf32>
    %19 = vector.broadcast %11 : vector<32x1xf32> to vector<32x32xf32>
    %20 = arith.subf %5, %19 : vector<32x32xf32>
    %cst_14 = arith.constant 9.99999997E-7 : f32
    %21 = vector.broadcast %cst_14 : f32 to vector<32x1xf32>
    %22 = arith.addf %18, %21 : vector<32x1xf32>
    %23 = math.rsqrt %22 : vector<32x1xf32>
    %24 = vector.broadcast %23 : vector<32x1xf32> to vector<32x32xf32>
    %25 = arith.mulf %20, %24 : vector<32x32xf32>
    %26 = vector.broadcast %6 : vector<1x32xf32> to vector<32x32xf32>
    %27 = arith.mulf %25, %26 : vector<32x32xf32>
    %28 = vector.broadcast %7 : vector<1x32xf32> to vector<32x32xf32>
    %29 = arith.addf %27, %28 : vector<32x32xf32>
    %30 = arith.truncf %29 : vector<32x32xf32> to vector<32x32xbf16>
    %c0_15 = arith.constant 0 : index
    %c0_16 = arith.constant 0 : index
    %31 = vector.load %arg6[%c0_15, %c0_16] : memref<32x32xbf16, #tpu.memory_space<vmem>>, vector<32x32xbf16>
    %cst_17 = arith.constant dense<0.000000e+00> : vector<32x32xf32>
    %32 = tpu.matmul %30, %31, %cst_17 {dimension_numbers = #tpu.dot_dimension_numbers<[1], [0], [0], [1], [0, 0, 1, 1], [], []>} : vector<32x32xbf16>, vector<32x32xbf16>, vector<32x32xf32> -> vector<32x32xf32>
    %c0_18 = arith.constant 0 : index
    %c0_19 = arith.constant 0 : index
    %33 = vector.load %arg7[%c0_18, %c0_19] : memref<1x32xf32, #tpu.memory_space<vmem>>, vector<1x32xf32>
    %34 = vector.broadcast %33 : vector<1x32xf32> to vector<32x32xf32>
    %35 = arith.addf %32, %34 : vector<32x32xf32>
    %cst_20 = arith.constant 0.353553385 : f32
    %36 = vector.broadcast %cst_20 : f32 to vector<32x32xf32>
    %37 = arith.mulf %35, %36 : vector<32x32xf32>
    %38 = arith.truncf %37 : vector<32x32xf32> to vector<32x32xbf16>
    %39 = vector.shape_cast %38 : vector<32x32xbf16> to vector<8x4x32xbf16>
    %40 = vector.extract_strided_slice %39 {offsets = [0, 0, 0], sizes = [8, 4, 8], strides = [1, 1, 1]} : vector<8x4x32xbf16> to vector<8x4x8xbf16>
    %41 = vector.extract_strided_slice %39 {offsets = [0, 0, 8], sizes = [8, 4, 8], strides = [1, 1, 1]} : vector<8x4x32xbf16> to vector<8x4x8xbf16>
    %42 = vector.extract_strided_slice %39 {offsets = [0, 0, 16], sizes = [8, 4, 8], strides = [1, 1, 1]} : vector<8x4x32xbf16> to vector<8x4x8xbf16>
    %43 = vector.extract_strided_slice %39 {offsets = [0, 0, 24], sizes = [8, 4, 8], strides = [1, 1, 1]} : vector<8x4x32xbf16> to vector<8x4x8xbf16>
    %44 = vector.shape_cast %40 : vector<8x4x8xbf16> to vector<8x1x4x8xbf16>
    %45 = vector.shape_cast %41 : vector<8x4x8xbf16> to vector<8x1x4x8xbf16>
    %46 = vector.shape_cast %42 : vector<8x4x8xbf16> to vector<8x1x4x8xbf16>
    %47 = vector.shape_cast %43 : vector<8x4x8xbf16> to vector<8x1x4x8xbf16>
    %48 = tpu.concatenate %44, %45, %46, %47 in 1 : vector<8x1x4x8xbf16>, vector<8x1x4x8xbf16>, vector<8x1x4x8xbf16>, vector<8x1x4x8xbf16> -> vector<8x4x4x8xbf16>
    %49 = vector.shape_cast %48 : vector<8x4x4x8xbf16> to vector<32x4x8xbf16>
    %c0_21 = arith.constant 0 : index
    %c0_22 = arith.constant 0 : index
    %50 = vector.load %arg8[%c0_21, %c0_22] : memref<32x32xbf16, #tpu.memory_space<vmem>>, vector<32x32xbf16>
    %cst_23 = arith.constant dense<0.000000e+00> : vector<32x32xf32>
    %51 = tpu.matmul %30, %50, %cst_23 {dimension_numbers = #tpu.dot_dimension_numbers<[1], [0], [0], [1], [0, 0, 1, 1], [], []>} : vector<32x32xbf16>, vector<32x32xbf16>, vector<32x32xf32> -> vector<32x32xf32>
    %c0_24 = arith.constant 0 : index
    %c0_25 = arith.constant 0 : index
    %52 = vector.load %arg9[%c0_24, %c0_25] : memref<1x32xf32, #tpu.memory_space<vmem>>, vector<1x32xf32>
    %53 = vector.broadcast %52 : vector<1x32xf32> to vector<32x32xf32>
    %54 = arith.addf %51, %53 : vector<32x32xf32>
    %cst_26 = arith.constant 1.000000e+00 : f32
    %55 = vector.broadcast %cst_26 : f32 to vector<32x32xf32>
    %56 = arith.mulf %54, %55 : vector<32x32xf32>
    %57 = arith.truncf %56 : vector<32x32xf32> to vector<32x32xbf16>
    %58 = vector.shape_cast %57 : vector<32x32xbf16> to vector<8x4x32xbf16>
    %59 = vector.extract_strided_slice %58 {offsets = [0, 0, 0], sizes = [8, 4, 8], strides = [1, 1, 1]} : vector<8x4x32xbf16> to vector<8x4x8xbf16>
    %60 = vector.extract_strided_slice %58 {offsets = [0, 0, 8], sizes = [8, 4, 8], strides = [1, 1, 1]} : vector<8x4x32xbf16> to vector<8x4x8xbf16>
    %61 = vector.extract_strided_slice %58 {offsets = [0, 0, 16], sizes = [8, 4, 8], strides = [1, 1, 1]} : vector<8x4x32xbf16> to vector<8x4x8xbf16>
    %62 = vector.extract_strided_slice %58 {offsets = [0, 0, 24], sizes = [8, 4, 8], strides = [1, 1, 1]} : vector<8x4x32xbf16> to vector<8x4x8xbf16>
    %63 = vector.shape_cast %59 : vector<8x4x8xbf16> to vector<8x1x4x8xbf16>
    %64 = vector.shape_cast %60 : vector<8x4x8xbf16> to vector<8x1x4x8xbf16>
    %65 = vector.shape_cast %61 : vector<8x4x8xbf16> to vector<8x1x4x8xbf16>
    %66 = vector.shape_cast %62 : vector<8x4x8xbf16> to vector<8x1x4x8xbf16>
    %67 = tpu.concatenate %63, %64, %65, %66 in 1 : vector<8x1x4x8xbf16>, vector<8x1x4x8xbf16>, vector<8x1x4x8xbf16>, vector<8x1x4x8xbf16> -> vector<8x4x4x8xbf16>
    %68 = vector.shape_cast %67 : vector<8x4x4x8xbf16> to vector<32x4x8xbf16>
    %c0_27 = arith.constant 0 : index
    %c0_28 = arith.constant 0 : index
    %69 = vector.load %arg10[%c0_27, %c0_28] : memref<32x32xbf16, #tpu.memory_space<vmem>>, vector<32x32xbf16>
    %cst_29 = arith.constant dense<0.000000e+00> : vector<32x32xf32>
    %70 = tpu.matmul %30, %69, %cst_29 {dimension_numbers = #tpu.dot_dimension_numbers<[1], [0], [0], [1], [0, 0, 1, 1], [], []>} : vector<32x32xbf16>, vector<32x32xbf16>, vector<32x32xf32> -> vector<32x32xf32>
    %c0_30 = arith.constant 0 : index
    %c0_31 = arith.constant 0 : index
    %71 = vector.load %arg11[%c0_30, %c0_31] : memref<1x32xf32, #tpu.memory_space<vmem>>, vector<1x32xf32>
    %72 = vector.broadcast %71 : vector<1x32xf32> to vector<32x32xf32>
    %73 = arith.addf %70, %72 : vector<32x32xf32>
    %cst_32 = arith.constant 1.000000e+00 : f32
    %74 = vector.broadcast %cst_32 : f32 to vector<32x32xf32>
    %75 = arith.mulf %73, %74 : vector<32x32xf32>
    %76 = arith.truncf %75 : vector<32x32xf32> to vector<32x32xbf16>
    %77 = vector.shape_cast %76 : vector<32x32xbf16> to vector<8x4x32xbf16>
    %78 = vector.extract_strided_slice %77 {offsets = [0, 0, 0], sizes = [8, 4, 8], strides = [1, 1, 1]} : vector<8x4x32xbf16> to vector<8x4x8xbf16>
    %79 = vector.extract_strided_slice %77 {offsets = [0, 0, 8], sizes = [8, 4, 8], strides = [1, 1, 1]} : vector<8x4x32xbf16> to vector<8x4x8xbf16>
    %80 = vector.extract_strided_slice %77 {offsets = [0, 0, 16], sizes = [8, 4, 8], strides = [1, 1, 1]} : vector<8x4x32xbf16> to vector<8x4x8xbf16>
    %81 = vector.extract_strided_slice %77 {offsets = [0, 0, 24], sizes = [8, 4, 8], strides = [1, 1, 1]} : vector<8x4x32xbf16> to vector<8x4x8xbf16>
    %82 = vector.shape_cast %78 : vector<8x4x8xbf16> to vector<8x1x4x8xbf16>
    %83 = vector.shape_cast %79 : vector<8x4x8xbf16> to vector<8x1x4x8xbf16>
    %84 = vector.shape_cast %80 : vector<8x4x8xbf16> to vector<8x1x4x8xbf16>
    %85 = vector.shape_cast %81 : vector<8x4x8xbf16> to vector<8x1x4x8xbf16>
    %86 = tpu.concatenate %82, %83, %84, %85 in 1 : vector<8x1x4x8xbf16>, vector<8x1x4x8xbf16>, vector<8x1x4x8xbf16>, vector<8x1x4x8xbf16> -> vector<8x4x4x8xbf16>
    %87 = vector.shape_cast %86 : vector<8x4x4x8xbf16> to vector<32x4x8xbf16>
    "tpu.trace_start"() <{level = 10 : i32, message = "bqe,bke->bqk"}> : () -> ()
    %cst_33 = arith.constant dense<0.000000e+00> : vector<32x4x4xf32>
    %88 = tpu.matmul %49, %68, %cst_33 {dimension_numbers = #tpu.dot_dimension_numbers<[2], [2], [1], [1], [0, 0, 0, 1, 1, 1], [0], [0]>} : vector<32x4x8xbf16>, vector<32x4x8xbf16>, vector<32x4x4xf32> -> vector<32x4x4xf32>
    "tpu.trace_stop"() : () -> ()
    %89 = vector.shape_cast %88 : vector<32x4x4xf32> to vector<8x4x4x4xf32>
    %90 = vector.shape_cast %4 : vector<8x4xf32> to vector<8x4x1xf32>
    %91 = vector.shape_cast %4 : vector<8x4xf32> to vector<8x1x4xf32>
    %92 = vector.broadcast %90 : vector<8x4x1xf32> to vector<8x4x4xf32>
    %93 = vector.broadcast %91 : vector<8x1x4xf32> to vector<8x4x4xf32>
    %94 = arith.mulf %92, %93 : vector<8x4x4xf32>
    %cst_34 = arith.constant 0.000000e+00 : f32
    %95 = vector.broadcast %cst_34 : f32 to vector<8x4x4xf32>
    %96 = arith.cmpf oeq, %94, %95 : vector<8x4x4xf32>
    %97 = vector.shape_cast %96 : vector<8x4x4xi1> to vector<8x1x4x4xi1>
    %cst_35 = arith.constant -1.000000e+09 : f32
    %98 = vector.shape_cast %97 : vector<8x1x4x4xi1> to vector<8x1x4x4xi1>
    %99 = vector.broadcast %98 : vector<8x1x4x4xi1> to vector<8x4x4x4xi1>
    %100 = vector.broadcast %cst_35 : f32 to vector<8x4x4x4xf32>
    %101 = arith.select %99, %100, %89 : vector<8x4x4x4xi1>, vector<8x4x4x4xf32>
    %cst_36 = arith.constant dense<0xFF800000> : vector<8x4x4xf32>
    %102 = vector.multi_reduction <maximumf>, %101, %cst_36 [3] : vector<8x4x4x4xf32> to vector<8x4x4xf32>
    %cst_37 = arith.constant 0xFF800000 : f32
    %103 = vector.broadcast %cst_37 : f32 to vector<8x4x4xf32>
    %104 = arith.maximumf %103, %102 : vector<8x4x4xf32>
    %105 = vector.shape_cast %104 : vector<8x4x4xf32> to vector<8x4x4x1xf32>
    %106 = vector.broadcast %105 : vector<8x4x4x1xf32> to vector<8x4x4x4xf32>
    %107 = arith.subf %101, %106 : vector<8x4x4x4xf32>
    %108 = math.exp %107 : vector<8x4x4x4xf32>
    %cst_38 = arith.constant dense<0.000000e+00> : vector<8x4x4xf32>
    %109 = vector.multi_reduction <add>, %108, %cst_38 [3] : vector<8x4x4x4xf32> to vector<8x4x4xf32>
    %110 = vector.shape_cast %109 : vector<8x4x4xf32> to vector<8x4x4x1xf32>
    %111 = vector.broadcast %110 : vector<8x4x4x1xf32> to vector<8x4x4x4xf32>
    %112 = arith.divf %108, %111 : vector<8x4x4x4xf32>
    %113 = arith.truncf %112 : vector<8x4x4x4xf32> to vector<8x4x4x4xbf16>
    %c0_39 = arith.constant 0 : index
    %c0_40 = arith.constant 0 : index
    %c0_41 = arith.constant 0 : index
    %c0_42 = arith.constant 0 : index
    %c0_43 = arith.constant 0 : index
    %114 = vector.load %arg15[%c0_39, %c0_40, %c0_41, %c0_42, %c0_43] : memref<1x8x4x4x4xbf16, #tpu.memory_space<vmem>>, vector<1x8x4x4x4xbf16>
    %115 = vector.shape_cast %114 : vector<1x8x4x4x4xbf16> to vector<8x4x4x4xbf16>
    %116 = vector.shape_cast %113 : vector<8x4x4x4xbf16> to vector<1x8x4x4x4xbf16>
    tpu.vector_store %arg15[%c0_39, %c0_40, %c0_41, %c0_42, %c0_43], %116 {strides = array<i32>} : memref<1x8x4x4x4xbf16, #tpu.memory_space<vmem>>, vector<1x8x4x4x4xbf16>,
    %117 = arith.truncf %112 : vector<8x4x4x4xf32> to vector<8x4x4x4xbf16>
    %118 = vector.shape_cast %117 : vector<8x4x4x4xbf16> to vector<32x4x4xbf16>
    "tpu.trace_start"() <{level = 10 : i32, message = "bqk,bke->bqe"}> : () -> ()
    %cst_44 = arith.constant dense<0.000000e+00> : vector<32x4x8xf32>
    %119 = tpu.matmul %118, %87, %cst_44 {dimension_numbers = #tpu.dot_dimension_numbers<[2], [1], [1], [2], [0, 0, 0, 1, 1, 2], [0], [0]>} : vector<32x4x4xbf16>, vector<32x4x8xbf16>, vector<32x4x8xf32> -> vector<32x4x8xf32>
    "tpu.trace_stop"() : () -> ()
    %120 = vector.shape_cast %119 : vector<32x4x8xf32> to vector<8x4x4x8xf32>
    %121 = vector.extract_strided_slice %120 {offsets = [0, 0, 0, 0], sizes = [8, 1, 4, 8], strides = [1, 1, 1, 1]} : vector<8x4x4x8xf32> to vector<8x1x4x8xf32>
    %122 = vector.shape_cast %121 : vector<8x1x4x8xf32> to vector<8x4x8xf32>
    %123 = vector.extract_strided_slice %120 {offsets = [0, 1, 0, 0], sizes = [8, 1, 4, 8], strides = [1, 1, 1, 1]} : vector<8x4x4x8xf32> to vector<8x1x4x8xf32>
    %124 = vector.shape_cast %123 : vector<8x1x4x8xf32> to vector<8x4x8xf32>
    %125 = vector.extract_strided_slice %120 {offsets = [0, 2, 0, 0], sizes = [8, 1, 4, 8], strides = [1, 1, 1, 1]} : vector<8x4x4x8xf32> to vector<8x1x4x8xf32>
    %126 = vector.shape_cast %125 : vector<8x1x4x8xf32> to vector<8x4x8xf32>
    %127 = vector.extract_strided_slice %120 {offsets = [0, 3, 0, 0], sizes = [8, 1, 4, 8], strides = [1, 1, 1, 1]} : vector<8x4x4x8xf32> to vector<8x1x4x8xf32>
    %128 = vector.shape_cast %127 : vector<8x1x4x8xf32> to vector<8x4x8xf32>
    %129 = tpu.concatenate %122, %124, %126, %128 in 2 : vector<8x4x8xf32>, vector<8x4x8xf32>, vector<8x4x8xf32>, vector<8x4x8xf32> -> vector<8x4x32xf32>
    %130 = vector.shape_cast %129 : vector<8x4x32xf32> to vector<32x32xf32>
    %131 = arith.truncf %130 : vector<32x32xf32> to vector<32x32xbf16>
    %c0_45 = arith.constant 0 : index
    %c0_46 = arith.constant 0 : index
    %132 = vector.load %arg12[%c0_45, %c0_46] : memref<32x32xbf16, #tpu.memory_space<vmem>>, vector<32x32xbf16>
    %cst_47 = arith.constant dense<0.000000e+00> : vector<32x32xf32>
    %133 = tpu.matmul %131, %132, %cst_47 {dimension_numbers = #tpu.dot_dimension_numbers<[1], [0], [0], [1], [0, 0, 1, 1], [], []>} : vector<32x32xbf16>, vector<32x32xbf16>, vector<32x32xf32> -> vector<32x32xf32>
    %c0_48 = arith.constant 0 : index
    %c0_49 = arith.constant 0 : index
    %134 = vector.load %arg13[%c0_48, %c0_49] : memref<1x32xf32, #tpu.memory_space<vmem>>, vector<1x32xf32>
    %135 = vector.broadcast %134 : vector<1x32xf32> to vector<32x32xf32>
    %136 = arith.addf %133, %135 : vector<32x32xf32>
    %137 = arith.addf %136, %5 : vector<32x32xf32>
    %138 = vector.shape_cast %137 : vector<32x32xf32> to vector<8x4x32xf32>
    %139 = tpu.transpose %138, [1, 0, 2] : vector<8x4x32xf32> -> vector<4x8x32xf32>
    %c0_50 = arith.constant 0 : index
    %c0_51 = arith.constant 0 : index
    %c0_52 = arith.constant 0 : index
    %c0_53 = arith.constant 0 : index
    %140 = vector.load %arg14[%c0_50, %c0_51, %c0_52, %c0_53] : memref<1x4x8x32xf32, #tpu.memory_space<vmem>>, vector<1x4x8x32xf32>
    %141 = vector.shape_cast %140 : vector<1x4x8x32xf32> to vector<4x8x32xf32>
    %142 = vector.shape_cast %139 : vector<4x8x32xf32> to vector<1x4x8x32xf32>
    tpu.vector_store %arg14[%c0_50, %c0_51, %c0_52, %c0_53], %142 {strides = array<i32>} : memref<1x4x8x32xf32, #tpu.memory_space<vmem>>, vector<1x4x8x32xf32>,
    return
  }
  func.func @transform_0(%arg0: i32, %arg1: i32) -> (i32, i32, i32, i32) {
    %c0_i32 = arith.constant 0 : i32
    %c0_i32_0 = arith.constant 0 : i32
    %c0_i32_1 = arith.constant 0 : i32
    return %arg0, %c0_i32, %arg1, %c0_i32_0 : i32, i32, i32, i32
  }
  func.func @transform_1(%arg0: i32, %arg1: i32) -> (i32, i32, i32, i32) {
    %c0_i32 = arith.constant 0 : i32
    %c0_i32_0 = arith.constant 0 : i32
    %c0_i32_1 = arith.constant 0 : i32
    return %arg0, %arg1, %c0_i32, %c0_i32_0 : i32, i32, i32, i32
  }
  func.func @transform_2(%arg0: i32, %arg1: i32) -> (i32, i32) {
    %c0_i32 = arith.constant 0 : i32
    %c0_i32_0 = arith.constant 0 : i32
    %c0_i32_1 = arith.constant 0 : i32
    return %c0_i32, %c0_i32_0 : i32, i32
  }
  func.func @transform_3(%arg0: i32, %arg1: i32) -> (i32, i32) {
    %c0_i32 = arith.constant 0 : i32
    %c0_i32_0 = arith.constant 0 : i32
    %c0_i32_1 = arith.constant 0 : i32
    return %c0_i32, %c0_i32_0 : i32, i32
  }
  func.func @transform_4(%arg0: i32, %arg1: i32) -> (i32, i32) {
    %c0_i32 = arith.constant 0 : i32
    %c0_i32_0 = arith.constant 0 : i32
    %c0_i32_1 = arith.constant 0 : i32
    return %c0_i32, %c0_i32_0 : i32, i32
  }
  func.func @transform_5(%arg0: i32, %arg1: i32) -> (i32, i32) {
    %c0_i32 = arith.constant 0 : i32
    %c0_i32_0 = arith.constant 0 : i32
    %c0_i32_1 = arith.constant 0 : i32
    return %c0_i32, %c0_i32_0 : i32, i32
  }
  func.func @transform_6(%arg0: i32, %arg1: i32) -> (i32, i32) {
    %c0_i32 = arith.constant 0 : i32
    %c0_i32_0 = arith.constant 0 : i32
    %c0_i32_1 = arith.constant 0 : i32
    return %c0_i32, %c0_i32_0 : i32, i32
  }
  func.func @transform_7(%arg0: i32, %arg1: i32) -> (i32, i32) {
    %c0_i32 = arith.constant 0 : i32
    %c0_i32_0 = arith.constant 0 : i32
    %c0_i32_1 = arith.constant 0 : i32
    return %c0_i32, %c0_i32_0 : i32, i32
  }
  func.func @transform_8(%arg0: i32, %arg1: i32) -> (i32, i32) {
    %c0_i32 = arith.constant 0 : i32
    %c0_i32_0 = arith.constant 0 : i32
    %c0_i32_1 = arith.constant 0 : i32
    return %c0_i32, %c0_i32_0 : i32, i32
  }
  func.func @transform_9(%arg0: i32, %arg1: i32) -> (i32, i32) {
    %c0_i32 = arith.constant 0 : i32
    %c0_i32_0 = arith.constant 0 : i32
    %c0_i32_1 = arith.constant 0 : i32
    return %c0_i32, %c0_i32_0 : i32, i32
  }
  func.func @transform_10(%arg0: i32, %arg1: i32) -> (i32, i32) {
    %c0_i32 = arith.constant 0 : i32
    %c0_i32_0 = arith.constant 0 : i32
    %c0_i32_1 = arith.constant 0 : i32
    return %c0_i32, %c0_i32_0 : i32, i32
  }
  func.func @transform_11(%arg0: i32, %arg1: i32) -> (i32, i32) {
    %c0_i32 = arith.constant 0 : i32
    %c0_i32_0 = arith.constant 0 : i32
    %c0_i32_1 = arith.constant 0 : i32
    return %c0_i32, %c0_i32_0 : i32, i32
  }
  func.func @transform_12(%arg0: i32, %arg1: i32) -> (i32, i32, i32, i32) {
    %c0_i32 = arith.constant 0 : i32
    %c0_i32_0 = arith.constant 0 : i32
    %c0_i32_1 = arith.constant 0 : i32
    return %arg0, %c0_i32, %arg1, %c0_i32_0 : i32, i32, i32, i32
  }
  func.func @transform_13(%arg0: i32, %arg1: i32) -> (i32, i32, i32, i32, i32) {
    %c0_i32 = arith.constant 0 : i32
    %c0_i32_0 = arith.constant 0 : i32
    %c0_i32_1 = arith.constant 0 : i32
    %c0_i32_2 = arith.constant 0 : i32
    return %arg0, %arg1, %c0_i32, %c0_i32_0, %c0_i32_1 : i32, i32, i32, i32, i32
  }
}

module attributes {stable_mosaic.version = 11 : i64} {
  func.func @_ln_mha_kernel(%arg0: i32, %arg1: memref<4x8x32xf32, #tpu.memory_space<vmem>>, %arg2: memref<4x1x8xf32, #tpu.memory_space<vmem>>, %arg3: memref<1x32xf32, #tpu.memory_space<vmem>>, %arg4: memref<1x32xf32, #tpu.memory_space<vmem>>, %arg5: memref<32x32xbf16, #tpu.memory_space<vmem>>, %arg6: memref<1x32xf32, #tpu.memory_space<vmem>>, %arg7: memref<32x32xbf16, #tpu.memory_space<vmem>>, %arg8: memref<1x32xf32, #tpu.memory_space<vmem>>, %arg9: memref<32x32xbf16, #tpu.memory_space<vmem>>, %arg10: memref<1x32xf32, #tpu.memory_space<vmem>>, %arg11: memref<32x32xbf16, #tpu.memory_space<vmem>>, %arg12: memref<1x32xf32, #tpu.memory_space<vmem>>, %arg13: memref<4x8x32xf32, #tpu.memory_space<vmem>>, %arg14: memref<4x4x8x8xbf16, #tpu.memory_space<vmem>>) attributes {dimension_semantics = [#tpu.dimension_semantics<parallel>], iteration_bounds = array<i64: 2>, scalar_prefetch = 0 : i64, scratch_operands = 0 : i64, tpu.core_type = #tpu.core_type<tc>, window_params = [{transform_indices = @transform_0, window_bounds = array<i64: 4, 8, 32>}, {transform_indices = @transform_1, window_bounds = array<i64: 4, 1, 8>}, {pipeline_mode = #tpu.pipeline_mode<synchronous>, transform_indices = @transform_2, window_bounds = array<i64: 1, 32>}, {pipeline_mode = #tpu.pipeline_mode<synchronous>, transform_indices = @transform_3, window_bounds = array<i64: 1, 32>}, {pipeline_mode = #tpu.pipeline_mode<synchronous>, transform_indices = @transform_4, window_bounds = array<i64: 32, 32>}, {pipeline_mode = #tpu.pipeline_mode<synchronous>, transform_indices = @transform_5, window_bounds = array<i64: 1, 32>}, {pipeline_mode = #tpu.pipeline_mode<synchronous>, transform_indices = @transform_6, window_bounds = array<i64: 32, 32>}, {pipeline_mode = #tpu.pipeline_mode<synchronous>, transform_indices = @transform_7, window_bounds = array<i64: 1, 32>}, {pipeline_mode = #tpu.pipeline_mode<synchronous>, transform_indices = @transform_8, window_bounds = array<i64: 32, 32>}, {pipeline_mode = #tpu.pipeline_mode<synchronous>, transform_indices = @transform_9, window_bounds = array<i64: 1, 32>}, {pipeline_mode = #tpu.pipeline_mode<synchronous>, transform_indices = @transform_10, window_bounds = array<i64: 32, 32>}, {pipeline_mode = #tpu.pipeline_mode<synchronous>, transform_indices = @transform_11, window_bounds = array<i64: 1, 32>}, {transform_indices = @transform_12, window_bounds = array<i64: 4, 8, 32>}, {transform_indices = @transform_13, window_bounds = array<i64: 4, 4, 8, 8>}]} {
    %c0 = arith.constant 0 : index
    %c0_0 = arith.constant 0 : index
    %c0_1 = arith.constant 0 : index
    %0 = vector.load %arg1[%c0, %c0_0, %c0_1] : memref<4x8x32xf32, #tpu.memory_space<vmem>>, vector<4x8x32xf32>
    %c0_2 = arith.constant 0 : index
    %c0_3 = arith.constant 0 : index
    %c0_4 = arith.constant 0 : index
    %1 = vector.load %arg2[%c0_2, %c0_3, %c0_4] : memref<4x1x8xf32, #tpu.memory_space<vmem>>, vector<4x1x8xf32>
    %2 = vector.shape_cast %1 : vector<4x1x8xf32> to vector<4x8xf32>
    %3 = vector.shape_cast %0 : vector<4x8x32xf32> to vector<32x32xf32>
    %c0_5 = arith.constant 0 : index
    %c0_6 = arith.constant 0 : index
    %4 = vector.load %arg3[%c0_5, %c0_6] : memref<1x32xf32, #tpu.memory_space<vmem>>, vector<1x32xf32>
    %c0_7 = arith.constant 0 : index
    %c0_8 = arith.constant 0 : index
    %5 = vector.load %arg4[%c0_7, %c0_8] : memref<1x32xf32, #tpu.memory_space<vmem>>, vector<1x32xf32>
    %cst = arith.constant dense<0.000000e+00> : vector<32xf32>
    %6 = vector.multi_reduction <add>, %3, %cst [1] : vector<32x32xf32> to vector<32xf32>
    %7 = vector.shape_cast %6 : vector<32xf32> to vector<32x1xf32>
    %cst_9 = arith.constant 3.200000e+01 : f32
    %8 = vector.broadcast %cst_9 : f32 to vector<32x1xf32>
    %9 = arith.divf %7, %8 : vector<32x1xf32>
    %10 = vector.broadcast %9 : vector<32x1xf32> to vector<32x32xf32>
    %11 = arith.subf %3, %10 : vector<32x32xf32>
    %12 = arith.mulf %11, %11 : vector<32x32xf32>
    %cst_10 = arith.constant dense<0.000000e+00> : vector<32xf32>
    %13 = vector.multi_reduction <add>, %12, %cst_10 [1] : vector<32x32xf32> to vector<32xf32>
    %14 = vector.shape_cast %13 : vector<32xf32> to vector<32x1xf32>
    %cst_11 = arith.constant 3.200000e+01 : f32
    %15 = vector.broadcast %cst_11 : f32 to vector<32x1xf32>
    %16 = arith.divf %14, %15 : vector<32x1xf32>
    %17 = vector.broadcast %9 : vector<32x1xf32> to vector<32x32xf32>
    %18 = arith.subf %3, %17 : vector<32x32xf32>
    %cst_12 = arith.constant 9.99999997E-7 : f32
    %19 = vector.broadcast %cst_12 : f32 to vector<32x1xf32>
    %20 = arith.addf %16, %19 : vector<32x1xf32>
    %21 = math.rsqrt %20 : vector<32x1xf32>
    %22 = vector.broadcast %21 : vector<32x1xf32> to vector<32x32xf32>
    %23 = arith.mulf %18, %22 : vector<32x32xf32>
    %24 = vector.broadcast %4 : vector<1x32xf32> to vector<32x32xf32>
    %25 = arith.mulf %23, %24 : vector<32x32xf32>
    %26 = vector.broadcast %5 : vector<1x32xf32> to vector<32x32xf32>
    %27 = arith.addf %25, %26 : vector<32x32xf32>
    %28 = arith.truncf %27 : vector<32x32xf32> to vector<32x32xbf16>
    %c0_13 = arith.constant 0 : index
    %c0_14 = arith.constant 0 : index
    %29 = vector.load %arg5[%c0_13, %c0_14] : memref<32x32xbf16, #tpu.memory_space<vmem>>, vector<32x32xbf16>
    %cst_15 = arith.constant dense<0.000000e+00> : vector<32x32xf32>
    %30 = tpu.matmul %28, %29, %cst_15 {dimension_numbers = #tpu.dot_dimension_numbers<[1], [0], [0], [1], [0, 0, 1, 1], [], []>} : vector<32x32xbf16>, vector<32x32xbf16>, vector<32x32xf32> -> vector<32x32xf32>
    %c0_16 = arith.constant 0 : index
    %c0_17 = arith.constant 0 : index
    %31 = vector.load %arg6[%c0_16, %c0_17] : memref<1x32xf32, #tpu.memory_space<vmem>>, vector<1x32xf32>
    %32 = vector.broadcast %31 : vector<1x32xf32> to vector<32x32xf32>
    %33 = arith.addf %30, %32 : vector<32x32xf32>
    %cst_18 = arith.constant 0.353553385 : f32
    %34 = vector.broadcast %cst_18 : f32 to vector<32x32xf32>
    %35 = arith.mulf %33, %34 : vector<32x32xf32>
    %36 = arith.truncf %35 : vector<32x32xf32> to vector<32x32xbf16>
    %37 = vector.shape_cast %36 : vector<32x32xbf16> to vector<4x8x32xbf16>
    %38 = vector.extract_strided_slice %37 {offsets = [0, 0, 0], sizes = [4, 8, 8], strides = [1, 1, 1]} : vector<4x8x32xbf16> to vector<4x8x8xbf16>
    %39 = vector.extract_strided_slice %37 {offsets = [0, 0, 8], sizes = [4, 8, 8], strides = [1, 1, 1]} : vector<4x8x32xbf16> to vector<4x8x8xbf16>
    %40 = vector.extract_strided_slice %37 {offsets = [0, 0, 16], sizes = [4, 8, 8], strides = [1, 1, 1]} : vector<4x8x32xbf16> to vector<4x8x8xbf16>
    %41 = vector.extract_strided_slice %37 {offsets = [0, 0, 24], sizes = [4, 8, 8], strides = [1, 1, 1]} : vector<4x8x32xbf16> to vector<4x8x8xbf16>
    %42 = vector.shape_cast %38 : vector<4x8x8xbf16> to vector<4x1x8x8xbf16>
    %43 = vector.shape_cast %39 : vector<4x8x8xbf16> to vector<4x1x8x8xbf16>
    %44 = vector.shape_cast %40 : vector<4x8x8xbf16> to vector<4x1x8x8xbf16>
    %45 = vector.shape_cast %41 : vector<4x8x8xbf16> to vector<4x1x8x8xbf16>
    %46 = tpu.concatenate %42, %43, %44, %45 in 1 : vector<4x1x8x8xbf16>, vector<4x1x8x8xbf16>, vector<4x1x8x8xbf16>, vector<4x1x8x8xbf16> -> vector<4x4x8x8xbf16>
    %47 = vector.shape_cast %46 : vector<4x4x8x8xbf16> to vector<16x8x8xbf16>
    %c0_19 = arith.constant 0 : index
    %c0_20 = arith.constant 0 : index
    %48 = vector.load %arg7[%c0_19, %c0_20] : memref<32x32xbf16, #tpu.memory_space<vmem>>, vector<32x32xbf16>
    %cst_21 = arith.constant dense<0.000000e+00> : vector<32x32xf32>
    %49 = tpu.matmul %28, %48, %cst_21 {dimension_numbers = #tpu.dot_dimension_numbers<[1], [0], [0], [1], [0, 0, 1, 1], [], []>} : vector<32x32xbf16>, vector<32x32xbf16>, vector<32x32xf32> -> vector<32x32xf32>
    %c0_22 = arith.constant 0 : index
    %c0_23 = arith.constant 0 : index
    %50 = vector.load %arg8[%c0_22, %c0_23] : memref<1x32xf32, #tpu.memory_space<vmem>>, vector<1x32xf32>
    %51 = vector.broadcast %50 : vector<1x32xf32> to vector<32x32xf32>
    %52 = arith.addf %49, %51 : vector<32x32xf32>
    %cst_24 = arith.constant 1.000000e+00 : f32
    %53 = vector.broadcast %cst_24 : f32 to vector<32x32xf32>
    %54 = arith.mulf %52, %53 : vector<32x32xf32>
    %55 = arith.truncf %54 : vector<32x32xf32> to vector<32x32xbf16>
    %56 = vector.shape_cast %55 : vector<32x32xbf16> to vector<4x8x32xbf16>
    %57 = vector.extract_strided_slice %56 {offsets = [0, 0, 0], sizes = [4, 8, 8], strides = [1, 1, 1]} : vector<4x8x32xbf16> to vector<4x8x8xbf16>
    %58 = vector.extract_strided_slice %56 {offsets = [0, 0, 8], sizes = [4, 8, 8], strides = [1, 1, 1]} : vector<4x8x32xbf16> to vector<4x8x8xbf16>
    %59 = vector.extract_strided_slice %56 {offsets = [0, 0, 16], sizes = [4, 8, 8], strides = [1, 1, 1]} : vector<4x8x32xbf16> to vector<4x8x8xbf16>
    %60 = vector.extract_strided_slice %56 {offsets = [0, 0, 24], sizes = [4, 8, 8], strides = [1, 1, 1]} : vector<4x8x32xbf16> to vector<4x8x8xbf16>
    %61 = vector.shape_cast %57 : vector<4x8x8xbf16> to vector<4x1x8x8xbf16>
    %62 = vector.shape_cast %58 : vector<4x8x8xbf16> to vector<4x1x8x8xbf16>
    %63 = vector.shape_cast %59 : vector<4x8x8xbf16> to vector<4x1x8x8xbf16>
    %64 = vector.shape_cast %60 : vector<4x8x8xbf16> to vector<4x1x8x8xbf16>
    %65 = tpu.concatenate %61, %62, %63, %64 in 1 : vector<4x1x8x8xbf16>, vector<4x1x8x8xbf16>, vector<4x1x8x8xbf16>, vector<4x1x8x8xbf16> -> vector<4x4x8x8xbf16>
    %66 = vector.shape_cast %65 : vector<4x4x8x8xbf16> to vector<16x8x8xbf16>
    %c0_25 = arith.constant 0 : index
    %c0_26 = arith.constant 0 : index
    %67 = vector.load %arg9[%c0_25, %c0_26] : memref<32x32xbf16, #tpu.memory_space<vmem>>, vector<32x32xbf16>
    %cst_27 = arith.constant dense<0.000000e+00> : vector<32x32xf32>
    %68 = tpu.matmul %28, %67, %cst_27 {dimension_numbers = #tpu.dot_dimension_numbers<[1], [0], [0], [1], [0, 0, 1, 1], [], []>} : vector<32x32xbf16>, vector<32x32xbf16>, vector<32x32xf32> -> vector<32x32xf32>
    %c0_28 = arith.constant 0 : index
    %c0_29 = arith.constant 0 : index
    %69 = vector.load %arg10[%c0_28, %c0_29] : memref<1x32xf32, #tpu.memory_space<vmem>>, vector<1x32xf32>
    %70 = vector.broadcast %69 : vector<1x32xf32> to vector<32x32xf32>
    %71 = arith.addf %68, %70 : vector<32x32xf32>
    %cst_30 = arith.constant 1.000000e+00 : f32
    %72 = vector.broadcast %cst_30 : f32 to vector<32x32xf32>
    %73 = arith.mulf %71, %72 : vector<32x32xf32>
    %74 = arith.truncf %73 : vector<32x32xf32> to vector<32x32xbf16>
    %75 = vector.shape_cast %74 : vector<32x32xbf16> to vector<4x8x32xbf16>
    %76 = vector.extract_strided_slice %75 {offsets = [0, 0, 0], sizes = [4, 8, 8], strides = [1, 1, 1]} : vector<4x8x32xbf16> to vector<4x8x8xbf16>
    %77 = vector.extract_strided_slice %75 {offsets = [0, 0, 8], sizes = [4, 8, 8], strides = [1, 1, 1]} : vector<4x8x32xbf16> to vector<4x8x8xbf16>
    %78 = vector.extract_strided_slice %75 {offsets = [0, 0, 16], sizes = [4, 8, 8], strides = [1, 1, 1]} : vector<4x8x32xbf16> to vector<4x8x8xbf16>
    %79 = vector.extract_strided_slice %75 {offsets = [0, 0, 24], sizes = [4, 8, 8], strides = [1, 1, 1]} : vector<4x8x32xbf16> to vector<4x8x8xbf16>
    %80 = vector.shape_cast %76 : vector<4x8x8xbf16> to vector<4x1x8x8xbf16>
    %81 = vector.shape_cast %77 : vector<4x8x8xbf16> to vector<4x1x8x8xbf16>
    %82 = vector.shape_cast %78 : vector<4x8x8xbf16> to vector<4x1x8x8xbf16>
    %83 = vector.shape_cast %79 : vector<4x8x8xbf16> to vector<4x1x8x8xbf16>
    %84 = tpu.concatenate %80, %81, %82, %83 in 1 : vector<4x1x8x8xbf16>, vector<4x1x8x8xbf16>, vector<4x1x8x8xbf16>, vector<4x1x8x8xbf16> -> vector<4x4x8x8xbf16>
    %85 = vector.shape_cast %84 : vector<4x4x8x8xbf16> to vector<16x8x8xbf16>
    "tpu.trace_start"() <{level = 10 : i32, message = "bqe,bke->bqk"}> : () -> ()
    %cst_31 = arith.constant dense<0.000000e+00> : vector<16x8x8xf32>
    %86 = tpu.matmul %47, %66, %cst_31 {dimension_numbers = #tpu.dot_dimension_numbers<[2], [2], [1], [1], [0, 0, 0, 1, 1, 1], [0], [0]>} : vector<16x8x8xbf16>, vector<16x8x8xbf16>, vector<16x8x8xf32> -> vector<16x8x8xf32>
    "tpu.trace_stop"() : () -> ()
    %87 = vector.shape_cast %86 : vector<16x8x8xf32> to vector<4x4x8x8xf32>
    %88 = vector.shape_cast %2 : vector<4x8xf32> to vector<4x8x1xf32>
    %89 = vector.shape_cast %2 : vector<4x8xf32> to vector<4x1x8xf32>
    %90 = vector.broadcast %88 : vector<4x8x1xf32> to vector<4x8x8xf32>
    %91 = vector.broadcast %89 : vector<4x1x8xf32> to vector<4x8x8xf32>
    %92 = arith.mulf %90, %91 : vector<4x8x8xf32>
    %cst_32 = arith.constant 0.000000e+00 : f32
    %93 = vector.broadcast %cst_32 : f32 to vector<4x8x8xf32>
    %94 = arith.cmpf oeq, %92, %93 : vector<4x8x8xf32>
    %95 = vector.shape_cast %94 : vector<4x8x8xi1> to vector<4x1x8x8xi1>
    %cst_33 = arith.constant -1.000000e+09 : f32
    %96 = vector.shape_cast %95 : vector<4x1x8x8xi1> to vector<4x1x8x8xi1>
    %97 = vector.broadcast %96 : vector<4x1x8x8xi1> to vector<4x4x8x8xi1>
    %98 = vector.broadcast %cst_33 : f32 to vector<4x4x8x8xf32>
    %99 = arith.select %97, %98, %87 : vector<4x4x8x8xi1>, vector<4x4x8x8xf32>
    %cst_34 = arith.constant dense<0xFF800000> : vector<4x4x8xf32>
    %100 = vector.multi_reduction <maximumf>, %99, %cst_34 [3] : vector<4x4x8x8xf32> to vector<4x4x8xf32>
    %cst_35 = arith.constant 0xFF800000 : f32
    %101 = vector.broadcast %cst_35 : f32 to vector<4x4x8xf32>
    %102 = arith.maximumf %101, %100 : vector<4x4x8xf32>
    %103 = vector.shape_cast %102 : vector<4x4x8xf32> to vector<4x4x8x1xf32>
    %104 = vector.broadcast %103 : vector<4x4x8x1xf32> to vector<4x4x8x8xf32>
    %105 = arith.subf %99, %104 : vector<4x4x8x8xf32>
    %106 = math.exp %105 : vector<4x4x8x8xf32>
    %cst_36 = arith.constant dense<0.000000e+00> : vector<4x4x8xf32>
    %107 = vector.multi_reduction <add>, %106, %cst_36 [3] : vector<4x4x8x8xf32> to vector<4x4x8xf32>
    %108 = vector.shape_cast %107 : vector<4x4x8xf32> to vector<4x4x8x1xf32>
    %109 = vector.broadcast %108 : vector<4x4x8x1xf32> to vector<4x4x8x8xf32>
    %110 = arith.divf %106, %109 : vector<4x4x8x8xf32>
    %111 = arith.truncf %110 : vector<4x4x8x8xf32> to vector<4x4x8x8xbf16>
    %c0_37 = arith.constant 0 : index
    %c0_38 = arith.constant 0 : index
    %c0_39 = arith.constant 0 : index
    %c0_40 = arith.constant 0 : index
    %112 = vector.load %arg14[%c0_37, %c0_38, %c0_39, %c0_40] : memref<4x4x8x8xbf16, #tpu.memory_space<vmem>>, vector<4x4x8x8xbf16>
    tpu.vector_store %arg14[%c0_37, %c0_38, %c0_39, %c0_40], %111 {strides = array<i32>} : memref<4x4x8x8xbf16, #tpu.memory_space<vmem>>, vector<4x4x8x8xbf16>,
    %113 = arith.truncf %110 : vector<4x4x8x8xf32> to vector<4x4x8x8xbf16>
    %114 = vector.shape_cast %113 : vector<4x4x8x8xbf16> to vector<16x8x8xbf16>
    "tpu.trace_start"() <{level = 10 : i32, message = "bqk,bke->bqe"}> : () -> ()
    %cst_41 = arith.constant dense<0.000000e+00> : vector<16x8x8xf32>
    %115 = tpu.matmul %114, %85, %cst_41 {dimension_numbers = #tpu.dot_dimension_numbers<[2], [1], [1], [2], [0, 0, 0, 1, 1, 2], [0], [0]>} : vector<16x8x8xbf16>, vector<16x8x8xbf16>, vector<16x8x8xf32> -> vector<16x8x8xf32>
    "tpu.trace_stop"() : () -> ()
    %116 = vector.shape_cast %115 : vector<16x8x8xf32> to vector<4x4x8x8xf32>
    %117 = vector.extract_strided_slice %116 {offsets = [0, 0, 0, 0], sizes = [4, 1, 8, 8], strides = [1, 1, 1, 1]} : vector<4x4x8x8xf32> to vector<4x1x8x8xf32>
    %118 = vector.shape_cast %117 : vector<4x1x8x8xf32> to vector<4x8x8xf32>
    %119 = vector.extract_strided_slice %116 {offsets = [0, 1, 0, 0], sizes = [4, 1, 8, 8], strides = [1, 1, 1, 1]} : vector<4x4x8x8xf32> to vector<4x1x8x8xf32>
    %120 = vector.shape_cast %119 : vector<4x1x8x8xf32> to vector<4x8x8xf32>
    %121 = vector.extract_strided_slice %116 {offsets = [0, 2, 0, 0], sizes = [4, 1, 8, 8], strides = [1, 1, 1, 1]} : vector<4x4x8x8xf32> to vector<4x1x8x8xf32>
    %122 = vector.shape_cast %121 : vector<4x1x8x8xf32> to vector<4x8x8xf32>
    %123 = vector.extract_strided_slice %116 {offsets = [0, 3, 0, 0], sizes = [4, 1, 8, 8], strides = [1, 1, 1, 1]} : vector<4x4x8x8xf32> to vector<4x1x8x8xf32>
    %124 = vector.shape_cast %123 : vector<4x1x8x8xf32> to vector<4x8x8xf32>
    %125 = tpu.concatenate %118, %120, %122, %124 in 2 : vector<4x8x8xf32>, vector<4x8x8xf32>, vector<4x8x8xf32>, vector<4x8x8xf32> -> vector<4x8x32xf32>
    %126 = vector.shape_cast %125 : vector<4x8x32xf32> to vector<32x32xf32>
    %127 = arith.truncf %126 : vector<32x32xf32> to vector<32x32xbf16>
    %c0_42 = arith.constant 0 : index
    %c0_43 = arith.constant 0 : index
    %128 = vector.load %arg11[%c0_42, %c0_43] : memref<32x32xbf16, #tpu.memory_space<vmem>>, vector<32x32xbf16>
    %cst_44 = arith.constant dense<0.000000e+00> : vector<32x32xf32>
    %129 = tpu.matmul %127, %128, %cst_44 {dimension_numbers = #tpu.dot_dimension_numbers<[1], [0], [0], [1], [0, 0, 1, 1], [], []>} : vector<32x32xbf16>, vector<32x32xbf16>, vector<32x32xf32> -> vector<32x32xf32>
    %c0_45 = arith.constant 0 : index
    %c0_46 = arith.constant 0 : index
    %130 = vector.load %arg12[%c0_45, %c0_46] : memref<1x32xf32, #tpu.memory_space<vmem>>, vector<1x32xf32>
    %131 = vector.broadcast %130 : vector<1x32xf32> to vector<32x32xf32>
    %132 = arith.addf %129, %131 : vector<32x32xf32>
    %133 = arith.addf %132, %3 : vector<32x32xf32>
    %134 = vector.shape_cast %133 : vector<32x32xf32> to vector<4x8x32xf32>
    %c0_47 = arith.constant 0 : index
    %c0_48 = arith.constant 0 : index
    %c0_49 = arith.constant 0 : index
    %135 = vector.load %arg13[%c0_47, %c0_48, %c0_49] : memref<4x8x32xf32, #tpu.memory_space<vmem>>, vector<4x8x32xf32>
    tpu.vector_store %arg13[%c0_47, %c0_48, %c0_49], %134 {strides = array<i32>} : memref<4x8x32xf32, #tpu.memory_space<vmem>>, vector<4x8x32xf32>,
    return
  }
  func.func @transform_0(%arg0: i32) -> (i32, i32, i32) {
    %c0_i32 = arith.constant 0 : i32
    %c0_i32_0 = arith.constant 0 : i32
    %c0_i32_1 = arith.constant 0 : i32
    return %arg0, %c0_i32, %c0_i32_0 : i32, i32, i32
  }
  func.func @transform_1(%arg0: i32) -> (i32, i32, i32) {
    %c0_i32 = arith.constant 0 : i32
    %c0_i32_0 = arith.constant 0 : i32
    %c0_i32_1 = arith.constant 0 : i32
    return %arg0, %c0_i32, %c0_i32_0 : i32, i32, i32
  }
  func.func @transform_2(%arg0: i32) -> (i32, i32) {
    %c0_i32 = arith.constant 0 : i32
    %c0_i32_0 = arith.constant 0 : i32
    %c0_i32_1 = arith.constant 0 : i32
    return %c0_i32, %c0_i32_0 : i32, i32
  }
  func.func @transform_3(%arg0: i32) -> (i32, i32) {
    %c0_i32 = arith.constant 0 : i32
    %c0_i32_0 = arith.constant 0 : i32
    %c0_i32_1 = arith.constant 0 : i32
    return %c0_i32, %c0_i32_0 : i32, i32
  }
  func.func @transform_4(%arg0: i32) -> (i32, i32) {
    %c0_i32 = arith.constant 0 : i32
    %c0_i32_0 = arith.constant 0 : i32
    %c0_i32_1 = arith.constant 0 : i32
    return %c0_i32, %c0_i32_0 : i32, i32
  }
  func.func @transform_5(%arg0: i32) -> (i32, i32) {
    %c0_i32 = arith.constant 0 : i32
    %c0_i32_0 = arith.constant 0 : i32
    %c0_i32_1 = arith.constant 0 : i32
    return %c0_i32, %c0_i32_0 : i32, i32
  }
  func.func @transform_6(%arg0: i32) -> (i32, i32) {
    %c0_i32 = arith.constant 0 : i32
    %c0_i32_0 = arith.constant 0 : i32
    %c0_i32_1 = arith.constant 0 : i32
    return %c0_i32, %c0_i32_0 : i32, i32
  }
  func.func @transform_7(%arg0: i32) -> (i32, i32) {
    %c0_i32 = arith.constant 0 : i32
    %c0_i32_0 = arith.constant 0 : i32
    %c0_i32_1 = arith.constant 0 : i32
    return %c0_i32, %c0_i32_0 : i32, i32
  }
  func.func @transform_8(%arg0: i32) -> (i32, i32) {
    %c0_i32 = arith.constant 0 : i32
    %c0_i32_0 = arith.constant 0 : i32
    %c0_i32_1 = arith.constant 0 : i32
    return %c0_i32, %c0_i32_0 : i32, i32
  }
  func.func @transform_9(%arg0: i32) -> (i32, i32) {
    %c0_i32 = arith.constant 0 : i32
    %c0_i32_0 = arith.constant 0 : i32
    %c0_i32_1 = arith.constant 0 : i32
    return %c0_i32, %c0_i32_0 : i32, i32
  }
  func.func @transform_10(%arg0: i32) -> (i32, i32) {
    %c0_i32 = arith.constant 0 : i32
    %c0_i32_0 = arith.constant 0 : i32
    %c0_i32_1 = arith.constant 0 : i32
    return %c0_i32, %c0_i32_0 : i32, i32
  }
  func.func @transform_11(%arg0: i32) -> (i32, i32) {
    %c0_i32 = arith.constant 0 : i32
    %c0_i32_0 = arith.constant 0 : i32
    %c0_i32_1 = arith.constant 0 : i32
    return %c0_i32, %c0_i32_0 : i32, i32
  }
  func.func @transform_12(%arg0: i32) -> (i32, i32, i32) {
    %c0_i32 = arith.constant 0 : i32
    %c0_i32_0 = arith.constant 0 : i32
    %c0_i32_1 = arith.constant 0 : i32
    return %arg0, %c0_i32, %c0_i32_0 : i32, i32, i32
  }
  func.func @transform_13(%arg0: i32) -> (i32, i32, i32, i32) {
    %c0_i32 = arith.constant 0 : i32
    %c0_i32_0 = arith.constant 0 : i32
    %c0_i32_1 = arith.constant 0 : i32
    %c0_i32_2 = arith.constant 0 : i32
    return %arg0, %c0_i32, %c0_i32_0, %c0_i32_1 : i32, i32, i32, i32
  }
}

module attributes {stable_mosaic.version = 11 : i64} {
  func.func @_ln_ffn_ln_kernel(%arg0: i32, %arg1: memref<32x32xf32, #tpu.memory_space<vmem>>, %arg2: memref<1x32xf32, #tpu.memory_space<vmem>>, %arg3: memref<1x32xf32, #tpu.memory_space<vmem>>, %arg4: memref<32x64xbf16, #tpu.memory_space<vmem>>, %arg5: memref<1x64xf32, #tpu.memory_space<vmem>>, %arg6: memref<64x32xbf16, #tpu.memory_space<vmem>>, %arg7: memref<1x32xf32, #tpu.memory_space<vmem>>, %arg8: memref<32x32xf32, #tpu.memory_space<vmem>>) attributes {dimension_semantics = [#tpu.dimension_semantics<parallel>], iteration_bounds = array<i64: 2>, scalar_prefetch = 0 : i64, scratch_operands = 0 : i64, tpu.core_type = #tpu.core_type<tc>, window_params = [{transform_indices = @transform_0, window_bounds = array<i64: 32, 32>}, {pipeline_mode = #tpu.pipeline_mode<synchronous>, transform_indices = @transform_1, window_bounds = array<i64: 1, 32>}, {pipeline_mode = #tpu.pipeline_mode<synchronous>, transform_indices = @transform_2, window_bounds = array<i64: 1, 32>}, {pipeline_mode = #tpu.pipeline_mode<synchronous>, transform_indices = @transform_3, window_bounds = array<i64: 32, 64>}, {pipeline_mode = #tpu.pipeline_mode<synchronous>, transform_indices = @transform_4, window_bounds = array<i64: 1, 64>}, {pipeline_mode = #tpu.pipeline_mode<synchronous>, transform_indices = @transform_5, window_bounds = array<i64: 64, 32>}, {pipeline_mode = #tpu.pipeline_mode<synchronous>, transform_indices = @transform_6, window_bounds = array<i64: 1, 32>}, {transform_indices = @transform_7, window_bounds = array<i64: 32, 32>}]} {
    %c0 = arith.constant 0 : index
    %c0_0 = arith.constant 0 : index
    %0 = vector.load %arg1[%c0, %c0_0] : memref<32x32xf32, #tpu.memory_space<vmem>>, vector<32x32xf32>
    %c0_1 = arith.constant 0 : index
    %c0_2 = arith.constant 0 : index
    %1 = vector.load %arg2[%c0_1, %c0_2] : memref<1x32xf32, #tpu.memory_space<vmem>>, vector<1x32xf32>
    %c0_3 = arith.constant 0 : index
    %c0_4 = arith.constant 0 : index
    %2 = vector.load %arg3[%c0_3, %c0_4] : memref<1x32xf32, #tpu.memory_space<vmem>>, vector<1x32xf32>
    %cst = arith.constant dense<0.000000e+00> : vector<32xf32>
    %3 = vector.multi_reduction <add>, %0, %cst [1] : vector<32x32xf32> to vector<32xf32>
    %4 = vector.shape_cast %3 : vector<32xf32> to vector<32x1xf32>
    %cst_5 = arith.constant 3.200000e+01 : f32
    %5 = vector.broadcast %cst_5 : f32 to vector<32x1xf32>
    %6 = arith.divf %4, %5 : vector<32x1xf32>
    %7 = vector.broadcast %6 : vector<32x1xf32> to vector<32x32xf32>
    %8 = arith.subf %0, %7 : vector<32x32xf32>
    %9 = arith.mulf %8, %8 : vector<32x32xf32>
    %cst_6 = arith.constant dense<0.000000e+00> : vector<32xf32>
    %10 = vector.multi_reduction <add>, %9, %cst_6 [1] : vector<32x32xf32> to vector<32xf32>
    %11 = vector.shape_cast %10 : vector<32xf32> to vector<32x1xf32>
    %cst_7 = arith.constant 3.200000e+01 : f32
    %12 = vector.broadcast %cst_7 : f32 to vector<32x1xf32>
    %13 = arith.divf %11, %12 : vector<32x1xf32>
    %14 = vector.broadcast %6 : vector<32x1xf32> to vector<32x32xf32>
    %15 = arith.subf %0, %14 : vector<32x32xf32>
    %cst_8 = arith.constant 9.99999997E-7 : f32
    %16 = vector.broadcast %cst_8 : f32 to vector<32x1xf32>
    %17 = arith.addf %13, %16 : vector<32x1xf32>
    %18 = math.rsqrt %17 : vector<32x1xf32>
    %19 = vector.broadcast %18 : vector<32x1xf32> to vector<32x32xf32>
    %20 = arith.mulf %15, %19 : vector<32x32xf32>
    %21 = vector.broadcast %1 : vector<1x32xf32> to vector<32x32xf32>
    %22 = arith.mulf %20, %21 : vector<32x32xf32>
    %23 = vector.broadcast %2 : vector<1x32xf32> to vector<32x32xf32>
    %24 = arith.addf %22, %23 : vector<32x32xf32>
    %25 = arith.truncf %24 : vector<32x32xf32> to vector<32x32xbf16>
    %c0_9 = arith.constant 0 : index
    %c0_10 = arith.constant 0 : index
    %26 = vector.load %arg4[%c0_9, %c0_10] : memref<32x64xbf16, #tpu.memory_space<vmem>>, vector<32x64xbf16>
    %cst_11 = arith.constant dense<0.000000e+00> : vector<32x64xf32>
    %27 = tpu.matmul %25, %26, %cst_11 {dimension_numbers = #tpu.dot_dimension_numbers<[1], [0], [0], [1], [0, 0, 1, 1], [], []>} : vector<32x32xbf16>, vector<32x64xbf16>, vector<32x64xf32> -> vector<32x64xf32>
    %c0_12 = arith.constant 0 : index
    %c0_13 = arith.constant 0 : index
    %28 = vector.load %arg5[%c0_12, %c0_13] : memref<1x64xf32, #tpu.memory_space<vmem>>, vector<1x64xf32>
    %29 = vector.broadcast %28 : vector<1x64xf32> to vector<32x64xf32>
    %30 = arith.addf %27, %29 : vector<32x64xf32>
    %cst_14 = arith.constant 0.000000e+00 : f32
    %31 = vector.broadcast %cst_14 : f32 to vector<32x64xf32>
    %32 = arith.maximumf %30, %31 : vector<32x64xf32>
    %33 = arith.truncf %32 : vector<32x64xf32> to vector<32x64xbf16>
    %c0_15 = arith.constant 0 : index
    %c0_16 = arith.constant 0 : index
    %34 = vector.load %arg6[%c0_15, %c0_16] : memref<64x32xbf16, #tpu.memory_space<vmem>>, vector<64x32xbf16>
    %cst_17 = arith.constant dense<0.000000e+00> : vector<32x32xf32>
    %35 = tpu.matmul %33, %34, %cst_17 {dimension_numbers = #tpu.dot_dimension_numbers<[1], [0], [0], [1], [0, 0, 1, 1], [], []>} : vector<32x64xbf16>, vector<64x32xbf16>, vector<32x32xf32> -> vector<32x32xf32>
    %c0_18 = arith.constant 0 : index
    %c0_19 = arith.constant 0 : index
    %36 = vector.load %arg7[%c0_18, %c0_19] : memref<1x32xf32, #tpu.memory_space<vmem>>, vector<1x32xf32>
    %37 = vector.broadcast %36 : vector<1x32xf32> to vector<32x32xf32>
    %38 = arith.addf %35, %37 : vector<32x32xf32>
    %39 = arith.addf %38, %0 : vector<32x32xf32>
    %cst_20 = arith.constant dense<0.000000e+00> : vector<32xf32>
    %40 = vector.multi_reduction <add>, %39, %cst_20 [1] : vector<32x32xf32> to vector<32xf32>
    %41 = vector.shape_cast %40 : vector<32xf32> to vector<32x1xf32>
    %cst_21 = arith.constant 3.200000e+01 : f32
    %42 = vector.broadcast %cst_21 : f32 to vector<32x1xf32>
    %43 = arith.divf %41, %42 : vector<32x1xf32>
    %44 = vector.broadcast %43 : vector<32x1xf32> to vector<32x32xf32>
    %45 = arith.subf %39, %44 : vector<32x32xf32>
    %46 = arith.mulf %45, %45 : vector<32x32xf32>
    %cst_22 = arith.constant dense<0.000000e+00> : vector<32xf32>
    %47 = vector.multi_reduction <add>, %46, %cst_22 [1] : vector<32x32xf32> to vector<32xf32>
    %48 = vector.shape_cast %47 : vector<32xf32> to vector<32x1xf32>
    %cst_23 = arith.constant 3.200000e+01 : f32
    %49 = vector.broadcast %cst_23 : f32 to vector<32x1xf32>
    %50 = arith.divf %48, %49 : vector<32x1xf32>
    %51 = vector.broadcast %43 : vector<32x1xf32> to vector<32x32xf32>
    %52 = arith.subf %39, %51 : vector<32x32xf32>
    %cst_24 = arith.constant 9.99999997E-7 : f32
    %53 = vector.broadcast %cst_24 : f32 to vector<32x1xf32>
    %54 = arith.addf %50, %53 : vector<32x1xf32>
    %55 = math.rsqrt %54 : vector<32x1xf32>
    %56 = vector.broadcast %55 : vector<32x1xf32> to vector<32x32xf32>
    %57 = arith.mulf %52, %56 : vector<32x32xf32>
    %58 = vector.broadcast %1 : vector<1x32xf32> to vector<32x32xf32>
    %59 = arith.mulf %57, %58 : vector<32x32xf32>
    %60 = vector.broadcast %2 : vector<1x32xf32> to vector<32x32xf32>
    %61 = arith.addf %59, %60 : vector<32x32xf32>
    %c0_25 = arith.constant 0 : index
    %c0_26 = arith.constant 0 : index
    %62 = vector.load %arg8[%c0_25, %c0_26] : memref<32x32xf32, #tpu.memory_space<vmem>>, vector<32x32xf32>
    tpu.vector_store %arg8[%c0_25, %c0_26], %61 {strides = array<i32>} : memref<32x32xf32, #tpu.memory_space<vmem>>, vector<32x32xf32>,
    return
  }
  func.func @transform_0(%arg0: i32) -> (i32, i32) {
    %c0_i32 = arith.constant 0 : i32
    %c0_i32_0 = arith.constant 0 : i32
    return %arg0, %c0_i32 : i32, i32
  }
  func.func @transform_1(%arg0: i32) -> (i32, i32) {
    %c0_i32 = arith.constant 0 : i32
    %c0_i32_0 = arith.constant 0 : i32
    %c0_i32_1 = arith.constant 0 : i32
    return %c0_i32, %c0_i32_0 : i32, i32
  }
  func.func @transform_2(%arg0: i32) -> (i32, i32) {
    %c0_i32 = arith.constant 0 : i32
    %c0_i32_0 = arith.constant 0 : i32
    %c0_i32_1 = arith.constant 0 : i32
    return %c0_i32, %c0_i32_0 : i32, i32
  }
  func.func @transform_3(%arg0: i32) -> (i32, i32) {
    %c0_i32 = arith.constant 0 : i32
    %c0_i32_0 = arith.constant 0 : i32
    %c0_i32_1 = arith.constant 0 : i32
    return %c0_i32, %c0_i32_0 : i32, i32
  }
  func.func @transform_4(%arg0: i32) -> (i32, i32) {
    %c0_i32 = arith.constant 0 : i32
    %c0_i32_0 = arith.constant 0 : i32
    %c0_i32_1 = arith.constant 0 : i32
    return %c0_i32, %c0_i32_0 : i32, i32
  }
  func.func @transform_5(%arg0: i32) -> (i32, i32) {
    %c0_i32 = arith.constant 0 : i32
    %c0_i32_0 = arith.constant 0 : i32
    %c0_i32_1 = arith.constant 0 : i32
    return %c0_i32, %c0_i32_0 : i32, i32
  }
  func.func @transform_6(%arg0: i32) -> (i32, i32) {
    %c0_i32 = arith.constant 0 : i32
    %c0_i32_0 = arith.constant 0 : i32
    %c0_i32_1 = arith.constant 0 : i32
    return %c0_i32, %c0_i32_0 : i32, i32
  }
  func.func @transform_7(%arg0: i32) -> (i32, i32) {
    %c0_i32 = arith.constant 0 : i32
    %c0_i32_0 = arith.constant 0 : i32
    return %arg0, %c0_i32 : i32, i32
  }
}

</mosaic_0001>

<llo_original>
// kernel: encoder_layer_forward.5
$region0: #{encoder_layer_forward.5}
  #allocation0 [shape = 'u32[]', space=smem, size = 0x4, offset = 0x4, fixed_abs, tag = 'smem constant byte address 0x4 - core index']
  #allocation1 [shape = 'u32[144,128]{1,0:T(1,128)}', space=vmem, size = 0x12000, scoped, tag = 'internal scratch']
  %s0 = inlined_call_operand.vmem [shape: f32[64,32], index: 0, kind: input, shape index: {}]
  %s1 = inlined_call_operand.vmem [shape: f32[1,32], index: 1, kind: input, shape index: {}]
  %s2 = inlined_call_operand.vmem [shape: f32[1,32], index: 2, kind: input, shape index: {}]
  %s3 = inlined_call_operand.vmem [shape: bf16[32,64], index: 3, kind: input, shape index: {}]
  %s4 = inlined_call_operand.vmem [shape: f32[1,64], index: 4, kind: input, shape index: {}]
  %s5 = inlined_call_operand.vmem [shape: bf16[64,32], index: 5, kind: input, shape index: {}]
  %s6 = inlined_call_operand.vmem [shape: f32[1,32], index: 6, kind: input, shape index: {}]
  %s7 = inlined_call_operand.hbm [shape: f32[64,32], index: 7, kind: output, shape index: {}]
  %s8 = sld [smem:[#allocation0]]
  $region61: #{encoder_layer_forward.5} parent=0
    _
  %s10 = ssub.s32 1, %s8
  %s11 = scalar_select 0, %s10, %s8
  $region1: #{encoder_layer_forward.5} parent=0
    #allocation2 [shape = 'u8[32768]{0}', space=vmem, size = 0x8000, scoped, tag = 'output window, operand 0']
    #allocation3 [shape = 's32[2]{0}', space=sflag, size = 0x8, scoped, tag = 'scoped memory for encoder_layer_forward.5']
    %12 = vsyncpa [#allocation3], 0
    %s13 = scalar_lea.sflag [#allocation3], 1
    %14 = vsyncpa %s13, 0
    loop: start=0, step=1, limit=4
    $region2: #{encoder_layer_forward.5} parent=1 // loop_pre_header
      _
    $region3: #{encoder_layer_forward.5} parent=1 // loop_header
      %s16 = sphi 0, %s20
      %p17 = scmp.ge.s32.totalorder %s16, 4
      %s26 = sphi 0, %s28
      %s29 = sphi 0, %s26
      %s30 = sphi 0, %s29
      %s46 = sphi 0, %s30
      %s50 = sphi 0, %s50
      %s52 = sphi 0, %s50
      %s53 = sphi 0, %s52
      %s67 = sphi 0, %s53
      %s71 = sphi 0, %s71
      %s73 = sphi 0, %s71
      %s74 = sphi 0, %s73
      %s88 = sphi 0, %s74
      %s92 = sphi 0, %s92
      %s94 = sphi 0, %s92
      %s95 = sphi 0, %s94
      %s109 = sphi 0, %s95
      %s113 = sphi 0, %s113
      %s115 = sphi 0, %s113
      %s116 = sphi 0, %s115
      %s130 = sphi 0, %s116
      %s134 = sphi 0, %s134
      %s136 = sphi 0, %s134
      %s137 = sphi 0, %s136
      %s151 = sphi 0, %s137
      %s155 = sphi 0, %s155
      %s157 = sphi 0, %s155
      %s158 = sphi 0, %s157
      %s172 = sphi 0, %s158
      %s178 = sphi 0, %s180
      %s181 = sphi 0, %s178
      %s182 = sphi 0, %s181
      %s198 = sphi 0, %s182
    $region4: #{encoder_layer_forward.5} parent=1 // loop_header_branch
      %19 = sbr.rel (%p17) target = $region8
    $region5: #{encoder_layer_forward.5} parent=1 // loop_body
      %s21 = ssub.s32 %s16, 1
      %s22 = ssub.s32 %s16, 2
      %s23 = sadd.s32 %s16, 1
      %s24 = ssub.s32 %s16, %s23
      %p25 = scmp.eq.s32.totalorder %s24, 0
      %s27 = sadd.s32 %s26, 1
      %s28 = scalar_select %p25, %s26, %s27
      %p31 = pneg %p25
      %p32 = scmp.eq.s32.totalorder %s16, 1
      %p33 = por %p31, %p32
      %p34 = scmp.ne.s32.totalorder %s26, %s29
      %p35 = scmp.eq.s32.totalorder %s16, 0
      %p36 = por %p34, %p35
      %p37 = scmp.ne.s32.totalorder %s26, %s29
      %p38 = scmp.eq.s32.totalorder %s21, 1
      %p39 = por %p37, %p38
      %p40 = scmp.ne.s32.totalorder %s29, %s30
      %p41 = scmp.eq.s32.totalorder %s21, 0
      %p42 = por %p40, %p41
      %p43 = scmp.ne.s32.totalorder %s29, %s30
      %p44 = scmp.eq.s32.totalorder %s22, 1
      %p45 = por %p43, %p44
      %p47 = scmp.ne.s32.totalorder %s30, %s46
      %p48 = scmp.eq.s32.totalorder %s22, 0
      %p49 = por %p47, %p48
      %s51 = sadd.s32 %s50, 1
      %p54 = scmp.eq.s32.totalorder %s16, 1
      %p55 = scmp.ne.s32.totalorder %s50, %s52
      %p56 = scmp.eq.s32.totalorder %s16, 0
      %p57 = por %p55, %p56
      %p58 = scmp.ne.s32.totalorder %s50, %s52
      %p59 = scmp.eq.s32.totalorder %s21, 1
      %p60 = por %p58, %p59
      %p61 = scmp.ne.s32.totalorder %s52, %s53
      %p62 = scmp.eq.s32.totalorder %s21, 0
      %p63 = por %p61, %p62
      %p64 = scmp.ne.s32.totalorder %s52, %s53
      %p65 = scmp.eq.s32.totalorder %s22, 1
      %p66 = por %p64, %p65
      %p68 = scmp.ne.s32.totalorder %s53, %s67
      %p69 = scmp.eq.s32.totalorder %s22, 0
      %p70 = por %p68, %p69
      %s72 = sadd.s32 %s71, 1
      %p75 = scmp.eq.s32.totalorder %s16, 1
      %p76 = scmp.ne.s32.totalorder %s71, %s73
      %p77 = scmp.eq.s32.totalorder %s16, 0
      %p78 = por %p76, %p77
      %p79 = scmp.ne.s32.totalorder %s71, %s73
      %p80 = scmp.eq.s32.totalorder %s21, 1
      %p81 = por %p79, %p80
      %p82 = scmp.ne.s32.totalorder %s73, %s74
      %p83 = scmp.eq.s32.totalorder %s21, 0
      %p84 = por %p82, %p83
      %p85 = scmp.ne.s32.totalorder %s73, %s74
      %p86 = scmp.eq.s32.totalorder %s22, 1
      %p87 = por %p85, %p86
      %p89 = scmp.ne.s32.totalorder %s74, %s88
      %p90 = scmp.eq.s32.totalorder %s22, 0
      %p91 = por %p89, %p90
      %s93 = sadd.s32 %s92, 1
      %p96 = scmp.eq.s32.totalorder %s16, 1
      %p97 = scmp.ne.s32.totalorder %s92, %s94
      %p98 = scmp.eq.s32.totalorder %s16, 0
      %p99 = por %p97, %p98
      %p100 = scmp.ne.s32.totalorder %s92, %s94
      %p101 = scmp.eq.s32.totalorder %s21, 1
      %p102 = por %p100, %p101
      %p103 = scmp.ne.s32.totalorder %s94, %s95
      %p104 = scmp.eq.s32.totalorder %s21, 0
      %p105 = por %p103, %p104
      %p106 = scmp.ne.s32.totalorder %s94, %s95
      %p107 = scmp.eq.s32.totalorder %s22, 1
      %p108 = por %p106, %p107
      %p110 = scmp.ne.s32.totalorder %s95, %s109
      %p111 = scmp.eq.s32.totalorder %s22, 0
      %p112 = por %p110, %p111
      %s114 = sadd.s32 %s113, 1
      %p117 = scmp.eq.s32.totalorder %s16, 1
      %p118 = scmp.ne.s32.totalorder %s113, %s115
      %p119 = scmp.eq.s32.totalorder %s16, 0
      %p120 = por %p118, %p119
      %p121 = scmp.ne.s32.totalorder %s113, %s115
      %p122 = scmp.eq.s32.totalorder %s21, 1
      %p123 = por %p121, %p122
      %p124 = scmp.ne.s32.totalorder %s115, %s116
      %p125 = scmp.eq.s32.totalorder %s21, 0
      %p126 = por %p124, %p125
      %p127 = scmp.ne.s32.totalorder %s115, %s116
      %p128 = scmp.eq.s32.totalorder %s22, 1
      %p129 = por %p127, %p128
      %p131 = scmp.ne.s32.totalorder %s116, %s130
      %p132 = scmp.eq.s32.totalorder %s22, 0
      %p133 = por %p131, %p132
      %s135 = sadd.s32 %s134, 1
      %p138 = scmp.eq.s32.totalorder %s16, 1
      %p139 = scmp.ne.s32.totalorder %s134, %s136
      %p140 = scmp.eq.s32.totalorder %s16, 0
      %p141 = por %p139, %p140
      %p142 = scmp.ne.s32.totalorder %s134, %s136
      %p143 = scmp.eq.s32.totalorder %s21, 1
      %p144 = por %p142, %p143
      %p145 = scmp.ne.s32.totalorder %s136, %s137
      %p146 = scmp.eq.s32.totalorder %s21, 0
      %p147 = por %p145, %p146
      %p148 = scmp.ne.s32.totalorder %s136, %s137
      %p149 = scmp.eq.s32.totalorder %s22, 1
      %p150 = por %p148, %p149
      %p152 = scmp.ne.s32.totalorder %s137, %s151
      %p153 = scmp.eq.s32.totalorder %s22, 0
      %p154 = por %p152, %p153
      %s156 = sadd.s32 %s155, 1
      %p159 = scmp.eq.s32.totalorder %s16, 1
      %p160 = scmp.ne.s32.totalorder %s155, %s157
      %p161 = scmp.eq.s32.totalorder %s16, 0
      %p162 = por %p160, %p161
      %p163 = scmp.ne.s32.totalorder %s155, %s157
      %p164 = scmp.eq.s32.totalorder %s21, 1
      %p165 = por %p163, %p164
      %p166 = scmp.ne.s32.totalorder %s157, %s158
      %p167 = scmp.eq.s32.totalorder %s21, 0
      %p168 = por %p166, %p167
      %p169 = scmp.ne.s32.totalorder %s157, %s158
      %p170 = scmp.eq.s32.totalorder %s22, 1
      %p171 = por %p169, %p170
      %p173 = scmp.ne.s32.totalorder %s158, %s172
      %p174 = scmp.eq.s32.totalorder %s22, 0
      %p175 = por %p173, %p174
      %s176 = ssub.s32 %s16, %s23
      %p177 = scmp.eq.s32.totalorder %s176, 0
      %s179 = sadd.s32 %s178, 1
      %s180 = scalar_select %p177, %s178, %s179
      %p183 = pneg %p177
      %p184 = scmp.eq.s32.totalorder %s16, 1
      %p185 = por %p183, %p184
      %p186 = scmp.ne.s32.totalorder %s178, %s181
      %p187 = scmp.eq.s32.totalorder %s16, 0
      %p188 = por %p186, %p187
      %p189 = scmp.ne.s32.totalorder %s178, %s181
      %p190 = scmp.eq.s32.totalorder %s21, 1
      %p191 = por %p189, %p190
      %p192 = scmp.ne.s32.totalorder %s181, %s182
      %p193 = scmp.eq.s32.totalorder %s21, 0
      %p194 = por %p192, %p193
      %p195 = scmp.ne.s32.totalorder %s181, %s182
      %p196 = scmp.eq.s32.totalorder %s22, 1
      %p197 = por %p195, %p196
      %p199 = scmp.ne.s32.totalorder %s182, %s198
      %p200 = scmp.eq.s32.totalorder %s22, 0
      %p201 = por %p199, %p200
      %p202 = scmp.le.s32.totalorder 1, %s16
      %p203 = scmp.lt.s32.totalorder %s16, 3
      %p204 = pnand %p202, %p203
      %p205 = pneg %p204
      // Predicated region
      $region9: #{encoder_layer_forward.5} parent=5 // pred_check
        _
      $region10: #{encoder_layer_forward.5} parent=5 // pred_check_branch
        %207 = sbr.rel (%p204) target = $region12
      $region11: #{encoder_layer_forward.5} parent=5 // pred_region
        %s208 = ssub.s32 %s16, 1
        // Predicated region
        $region13: #{encoder_layer_forward.5} parent=11 // pred_check
          %p209 = pneg %p63
        $region14: #{encoder_layer_forward.5} parent=11 // pred_check_branch
          %211 = sbr.rel (%p209) target = $region16
        $region15: #{encoder_layer_forward.5} parent=11 // pred_region
          _
        $region16: #{encoder_layer_forward.5} parent=11 // pred_fallthru
          _
        // Predicated region
        $region17: #{encoder_layer_forward.5} parent=11 // pred_check
          %p212 = pneg %p84
        $region18: #{encoder_layer_forward.5} parent=11 // pred_check_branch
          %214 = sbr.rel (%p212) target = $region20
        $region19: #{encoder_layer_forward.5} parent=11 // pred_region
          _
        $region20: #{encoder_layer_forward.5} parent=11 // pred_fallthru
          _
        // Predicated region
        $region21: #{encoder_layer_forward.5} parent=11 // pred_check
          %p215 = pneg %p105
        $region22: #{encoder_layer_forward.5} parent=11 // pred_check_branch
          %217 = sbr.rel (%p215) target = $region24
        $region23: #{encoder_layer_forward.5} parent=11 // pred_region
          _
        $region24: #{encoder_layer_forward.5} parent=11 // pred_fallthru
          _
        // Predicated region
        $region25: #{encoder_layer_forward.5} parent=11 // pred_check
          %p218 = pneg %p126
        $region26: #{encoder_layer_forward.5} parent=11 // pred_check_branch
          %220 = sbr.rel (%p218) target = $region28
        $region27: #{encoder_layer_forward.5} parent=11 // pred_region
          _
        $region28: #{encoder_layer_forward.5} parent=11 // pred_fallthru
          _
        // Predicated region
        $region29: #{encoder_layer_forward.5} parent=11 // pred_check
          %p221 = pneg %p147
        $region30: #{encoder_layer_forward.5} parent=11 // pred_check_branch
          %223 = sbr.rel (%p221) target = $region32
        $region31: #{encoder_layer_forward.5} parent=11 // pred_region
          _
        $region32: #{encoder_layer_forward.5} parent=11 // pred_fallthru
          _
        // Predicated region
        $region33: #{encoder_layer_forward.5} parent=11 // pred_check
          %p224 = pneg %p168
        $region34: #{encoder_layer_forward.5} parent=11 // pred_check_branch
          %226 = sbr.rel (%p224) target = $region36
        $region35: #{encoder_layer_forward.5} parent=11 // pred_region
          _
        $region36: #{encoder_layer_forward.5} parent=11 // pred_fallthru
          _
      $region12: #{encoder_layer_forward.5} parent=5 // pred_fallthru
        _
      %p227 = scmp.lt.s32.totalorder %s16, 2
      // Predicated region
      $region37: #{encoder_layer_forward.5} parent=5 // pred_check
        %p228 = pneg %p227
      $region38: #{encoder_layer_forward.5} parent=5 // pred_check_branch
        %230 = sbr.rel (%p228) target = $region40
      $region39: #{encoder_layer_forward.5} parent=5 // pred_region
        // Predicated region
        $region41: #{encoder_layer_forward.5} parent=39 // pred_check
          %p231 = pneg %p36
        $region42: #{encoder_layer_forward.5} parent=39 // pred_check_branch
          %233 = sbr.rel (%p231) target = $region44
        $region43: #{encoder_layer_forward.5} parent=39 // pred_region
          %s234 = smul.u32 4, %s16
          %p235 = scmp.lt.s32.totalorder %s234, 7
          %s236 = scalar_select %p235, %s234, 7
          %s237 = smul.addr %s236, 8
          %s238 = scalar_lea.vmem %s0, %s237
          %s239 = smul.u32 4, %s16
        $region44: #{encoder_layer_forward.5} parent=39 // pred_fallthru
          _
      $region40: #{encoder_layer_forward.5} parent=5 // pred_fallthru
        _
      %p240 = scmp.le.s32.totalorder 1, %s16
      %p241 = scmp.lt.s32.totalorder %s16, 3
      %p242 = pnand %p240, %p241
      %p243 = pneg %p242
      // Predicated region
      $region45: #{encoder_layer_forward.5} parent=5 // pred_check
        _
      $region46: #{encoder_layer_forward.5} parent=5 // pred_check_branch
        %245 = sbr.rel (%p242) target = $region48
      $region47: #{encoder_layer_forward.5} parent=5 // pred_region
        %s246 = ssub.s32 %s16, 1
        %s247 = smul.u32 4, %s21
        %p248 = scmp.lt.s32.totalorder %s247, 7
        %s249 = scalar_select %p248, %s247, 7
        %s250 = smul.addr %s249, 8
        %s251 = scalar_lea.vmem %s0, %s250
        %p252 = pneg %p42
        %p253 = pneg %p39
        %p254 = pneg %p63
        %p255 = pneg %p60
        %p256 = pneg %p84
        %p257 = pneg %p81
        %p258 = pneg %p105
        %p259 = pneg %p102
        %p260 = pneg %p126
        %p261 = pneg %p123
        %p262 = pneg %p147
        %p263 = pneg %p144
        %p264 = pneg %p168
        %p265 = pneg %p165
        %p266 = pneg %p194
        %p267 = pneg %p191
        %s268 = sand.u32 %s181, 1
        %s269 = scalar_lea.sflag [#allocation3], %s268
        %s270 = sand.u32 %s181, 1
        %s271 = smul.addr %s270, 32
        %s272 = scalar_lea.vmem [#allocation2], %s271
        %s273 = smul.u32 4, %s21
        %p274 = scmp.lt.s32.totalorder %s273, 7
        %s275 = scalar_select %p274, %s273, 7
        %s276 = smul.addr %s275, 8
        %s277 = scalar_lea.vmem %s0, %s276
        %s278 = smul.u32 4, %s21
        %s279 = smul.u32 4, %s21
        %v281 = vld [vmem:[%s277] sm:$0xff]
        %v282 = vld [vmem:[%s277 + $0x8] sm:$0xff]
        %v283 = vld [vmem:[%s277 + $0x10] sm:$0xff]
        %v284 = vld [vmem:[%s277 + $0x18] sm:$0xff]
        %v285 = vld [vmem:[%s1] sm:$0x1]
        %v286 = vld [vmem:[%s2] sm:$0x1]
        %vm287 = vcmask 261120
        %v288 = vsel %vm287, %v281, 0.0
        %289 = vadd.xlane.f32.xlu0 %v288
        %v290 = vpop.xlane.xlu0 %289
        %v291 = vsel %vm287, %v282, 0.0
        %292 = vadd.xlane.f32.xlu0 %v291
        %v293 = vpop.xlane.xlu0 %292
        %v294 = vsel %vm287, %v283, 0.0
        %295 = vadd.xlane.f32.xlu0 %v294
        %v296 = vpop.xlane.xlu0 %295
        %v297 = vsel %vm287, %v284, 0.0
        %298 = vadd.xlane.f32.xlu0 %v297
        %v299 = vpop.xlane.xlu0 %298
        %v300 = vrcp.pop 32.0
        %v301 = vmul.f32 %v290, %v300
        %v302 = vmul.f32 %v293, %v300
        %v303 = vmul.f32 %v296, %v300
        %v304 = vmul.f32 %v299, %v300
        %v305 = vsub.f32 %v281, %v301
        %v306 = vsub.f32 %v282, %v302
        %v307 = vsub.f32 %v283, %v303
        %v308 = vsub.f32 %v284, %v304
        %v309 = vmul.f32 %v305, %v305
        %v310 = vmul.f32 %v306, %v306
        %v311 = vmul.f32 %v307, %v307
        %v312 = vmul.f32 %v308, %v308
        %v313 = vsel %vm287, %v309, 0.0
        %314 = vadd.xlane.f32.xlu0 %v313
        %v315 = vpop.xlane.xlu0 %314
        %v316 = vsel %vm287, %v310, 0.0
        %317 = vadd.xlane.f32.xlu0 %v316
        %v318 = vpop.xlane.xlu0 %317
        %v319 = vsel %vm287, %v311, 0.0
        %320 = vadd.xlane.f32.xlu0 %v319
        %v321 = vpop.xlane.xlu0 %320
        %v322 = vsel %vm287, %v312, 0.0
        %323 = vadd.xlane.f32.xlu0 %v322
        %v324 = vpop.xlane.xlu0 %323
        %v325 = vmul.f32 %v315, %v300
        %v326 = vmul.f32 %v318, %v300
        %v327 = vmul.f32 %v321, %v300
        %v328 = vmul.f32 %v324, %v300
        %v329 = vadd.f32 %v325, 1e-06
        %v330 = vadd.f32 %v326, 1e-06
        %v331 = vadd.f32 %v327, 1e-06
        %v332 = vadd.f32 %v328, 1e-06
        %v333 = vrsqrt.pop %v329
        %v334 = vrsqrt.pop %v330
        %v335 = vrsqrt.pop %v331
        %v336 = vrsqrt.pop %v332
        %v337 = vmul.f32 %v305, %v333
        %v338 = vmul.f32 %v306, %v334
        %v339 = vmul.f32 %v307, %v335
        %v340 = vmul.f32 %v308, %v336
        %v342 = vlaneseq
        %v343 = vshrl.u32 %v342, 7
        %v344 = vsub.s32 0, %v343
        %v345 = vrot.slane %v285, %v344
        %v347 = vmul.f32 %v337, %v345
        %v348 = vmul.f32 %v338, %v345
        %v349 = vmul.f32 %v339, %v345
        %v350 = vmul.f32 %v340, %v345
        %v352 = vlaneseq
        %v353 = vshrl.u32 %v352, 7
        %v354 = vsub.s32 0, %v353
        %v355 = vrot.slane %v286, %v354
        %v357 = vadd.f32 %v347, %v355
        %v358 = vadd.f32 %v348, %v355
        %v359 = vadd.f32 %v349, %v355
        %v360 = vadd.f32 %v350, %v355
        %v361 = vpack.c.bf16 %v358, %v357
        %v362 = vpack.c.bf16 %v360, %v359
        %v363 = vld [vmem:[%s3] sm:$0xf]
        %v364 = vld [vmem:[%s3 + $0x4] sm:$0xf]
        %v365 = vld [vmem:[%s3 + $0x8] sm:$0xf]
        %v366 = vld [vmem:[%s3 + $0xc] sm:$0xf]
        %v367 = vld [vmem:[%s4] sm:$0x1]
        %v369 = vlaneseq
        %v370 = vshrl.u32 %v369, 7
        %v371 = vsub.s32 0, %v370
        %v372 = vrot.slane %v367, %v371
        %v378 = vunpack.c.l.b16 %v363
        %v379 = vunpack.c.l.b16 %v364
        %v380 = vunpack.c.l.b16 %v365
        %v381 = vunpack.c.l.b16 %v366
        %v382 = vpack.c.b16 %v379, %v378
        %v383 = vpack.c.b16 %v381, %v380
        %v387 = vsel %vm287, %v361, 0
        %v390 = vsel %vm287, %v362, 0
        %392 = vmatprep.subr.bf16.mxu0 0
        %393 = vmatpush1.bf16.msra.mxu0 %v382
        %394 = vmatprep.subr.bf16.mxu0 0
        %395 = vmatpush1.bf16.msra.mxu0 %v383
        %396 = vmatprep.subr.bf16.mxu0 0
        %397 = vmatpush1.bf16.msra.mxu0 0
        %398 = vmatprep.subr.bf16.mxu0 0
        %399 = vmatpush1.bf16.msra.mxu0 0
        %400 = vmatprep.subr.bf16.mxu0 0
        %401 = vmatpush1.bf16.msra.mxu0 0
        %402 = vmatprep.subr.bf16.mxu0 0
        %403 = vmatpush1.bf16.msra.mxu0 0
        %404 = vmatprep.subr.bf16.mxu0 0
        %405 = vmatpush1.bf16.msra.mxu0 0
        %406 = vmatprep.subr.bf16.mxu0 0
        %407 = vmatpush1.bf16.msra.mxu0 0
        %408 = vmatprep.subr.bf16.mxu0 0
        %409 = vmatpush1.bf16.msra.mxu0 0
        %410 = vmatprep.subr.bf16.mxu0 0
        %411 = vmatpush1.bf16.msra.mxu0 0
        %412 = vmatprep.subr.bf16.mxu0 0
        %413 = vmatpush1.bf16.msra.mxu0 0
        %414 = vmatprep.subr.bf16.mxu0 0
        %415 = vmatpush1.bf16.msra.mxu0 0
        %416 = vmatprep.subr.bf16.mxu0 0
        %417 = vmatpush1.bf16.msra.mxu0 0
        %418 = vmatprep.subr.bf16.mxu0 0
        %419 = vmatpush1.bf16.msra.mxu0 0
        %420 = vmatprep.subr.bf16.mxu0 0
        %421 = vmatpush1.bf16.msra.mxu0 0
        %422 = vmatprep.subr.bf16.mxu0 0
        %423 = vmatpush1.bf16.msra.mxu0 0
        %424 = vmatprep.mubr.bf16.mxu0 0
        %425 = vmatmul.mubr.bf16.gmra.mrb[0].mxu0 %v387
        %v426 = vpop.f32.mrb[0].mxu0
        %v427 = vadd.f32 %v372, %v426
        %v428 = vpop.f32.mrb[0].mxu0
        %v429 = vpop.f32.mrb[0].mxu0
        %v430 = vadd.f32 %v372, %v429
        %v431 = vpop.f32.mrb[0].mxu0
        %432 = vmatprep.mubr.bf16.mxu0 0
        %433 = vmatmul.mubr.bf16.gmra.mrb[0].mxu0 %v390
        %v434 = vpop.f32.mrb[0].mxu0
        %v435 = vadd.f32 %v372, %v434
        %v436 = vpop.f32.mrb[0].mxu0
        %v437 = vpop.f32.mrb[0].mxu0
        %v438 = vadd.f32 %v372, %v437
        %v439 = vpop.f32.mrb[0].mxu0
        %440 = vdwg.mxu0
        %v441 = vmax.f32 %v427, 0.0
        %v442 = vmax.f32 %v430, 0.0
        %v443 = vmax.f32 %v435, 0.0
        %v444 = vmax.f32 %v438, 0.0
        %v445 = vpack.c.bf16 %v442, %v441
        %v446 = vpack.c.bf16 %v444, %v443
        %v447 = vld [vmem:[%s5] sm:$0xf]
        %v448 = vld [vmem:[%s5 + $0x4] sm:$0xf]
        %v449 = vld [vmem:[%s5 + $0x8] sm:$0xf]
        %v450 = vld [vmem:[%s5 + $0xc] sm:$0xf]
        %v451 = vld [vmem:[%s5 + $0x10] sm:$0xf]
        %v452 = vld [vmem:[%s5 + $0x14] sm:$0xf]
        %v453 = vld [vmem:[%s5 + $0x18] sm:$0xf]
        %v454 = vld [vmem:[%s5 + $0x1c] sm:$0xf]
        %v455 = vld [vmem:[%s6] sm:$0x1]
        %v457 = vlaneseq
        %v458 = vshrl.u32 %v457, 7
        %v459 = vsub.s32 0, %v458
        %v460 = vrot.slane %v455, %v459
        %v470 = vunpack.c.l.b16 %v447
        %v471 = vunpack.c.l.b16 %v448
        %v472 = vunpack.c.l.b16 %v449
        %v473 = vunpack.c.l.b16 %v450
        %v474 = vunpack.c.l.b16 %v451
        %v475 = vunpack.c.l.b16 %v452
        %v476 = vunpack.c.l.b16 %v453
        %v477 = vunpack.c.l.b16 %v454
        %v478 = vpack.c.b16 %v471, %v470
        %v479 = vpack.c.b16 %v473, %v472
        %v480 = vpack.c.b16 %v475, %v474
        %v481 = vpack.c.b16 %v477, %v476
        %vm486 = vcmask 523264
        %v488 = vsel %vm486, %v445, 0
        %v491 = vsel %vm486, %v446, 0
        %493 = vmatprep.subr.bf16.mxu0 0
        %494 = vmatpush1.bf16.msra.mxu0 %v478
        %495 = vmatprep.subr.bf16.mxu0 0
        %496 = vmatpush1.bf16.msra.mxu0 %v479
        %497 = vmatprep.subr.bf16.mxu0 0
        %498 = vmatpush1.bf16.msra.mxu0 %v480
        %499 = vmatprep.subr.bf16.mxu0 0
        %500 = vmatpush1.bf16.msra.mxu0 %v481
        %501 = vmatprep.subr.bf16.mxu0 0
        %502 = vmatpush1.bf16.msra.mxu0 0
        %503 = vmatprep.subr.bf16.mxu0 0
        %504 = vmatpush1.bf16.msra.mxu0 0
        %505 = vmatprep.subr.bf16.mxu0 0
        %506 = vmatpush1.bf16.msra.mxu0 0
        %507 = vmatprep.subr.bf16.mxu0 0
        %508 = vmatpush1.bf16.msra.mxu0 0
        %509 = vmatprep.subr.bf16.mxu0 0
        %510 = vmatpush1.bf16.msra.mxu0 0
        %511 = vmatprep.subr.bf16.mxu0 0
        %512 = vmatpush1.bf16.msra.mxu0 0
        %513 = vmatprep.subr.bf16.mxu0 0
        %514 = vmatpush1.bf16.msra.mxu0 0
        %515 = vmatprep.subr.bf16.mxu0 0
        %516 = vmatpush1.bf16.msra.mxu0 0
        %517 = vmatprep.subr.bf16.mxu0 0
        %518 = vmatpush1.bf16.msra.mxu0 0
        %519 = vmatprep.subr.bf16.mxu0 0
        %520 = vmatpush1.bf16.msra.mxu0 0
        %521 = vmatprep.subr.bf16.mxu0 0
        %522 = vmatpush1.bf16.msra.mxu0 0
        %523 = vmatprep.subr.bf16.mxu0 0
        %524 = vmatpush1.bf16.msra.mxu0 0
        %525 = vmatprep.mubr.bf16.mxu0 0
        %526 = vmatmul.mubr.bf16.gmra.mrb[0].mxu0 %v488
        %v527 = vpop.f32.mrb[0].mxu0
        %v528 = vadd.f32 %v460, %v527
        %v529 = vpop.f32.mrb[0].mxu0
        %v530 = vpop.f32.mrb[0].mxu0
        %v531 = vadd.f32 %v460, %v530
        %v532 = vpop.f32.mrb[0].mxu0
        %533 = vmatprep.mubr.bf16.mxu0 0
        %534 = vmatmul.mubr.bf16.gmra.mrb[0].mxu0 %v491
        %v535 = vpop.f32.mrb[0].mxu0
        %v536 = vadd.f32 %v460, %v535
        %v537 = vpop.f32.mrb[0].mxu0
        %v538 = vpop.f32.mrb[0].mxu0
        %v539 = vadd.f32 %v460, %v538
        %v540 = vpop.f32.mrb[0].mxu0
        %541 = vdwg.mxu0
        %v542 = vadd.f32 %v528, %v281
        %v543 = vadd.f32 %v531, %v282
        %v544 = vadd.f32 %v536, %v283
        %v545 = vadd.f32 %v539, %v284
        %v546 = vsel %vm287, %v542, 0.0
        %547 = vadd.xlane.f32.xlu0 %v546
        %v548 = vpop.xlane.xlu0 %547
        %v549 = vsel %vm287, %v543, 0.0
        %550 = vadd.xlane.f32.xlu0 %v549
        %v551 = vpop.xlane.xlu0 %550
        %v552 = vsel %vm287, %v544, 0.0
        %553 = vadd.xlane.f32.xlu0 %v552
        %v554 = vpop.xlane.xlu0 %553
        %v555 = vsel %vm287, %v545, 0.0
        %556 = vadd.xlane.f32.xlu0 %v555
        %v557 = vpop.xlane.xlu0 %556
        %v558 = vmul.f32 %v548, %v300
        %v559 = vmul.f32 %v551, %v300
        %v560 = vmul.f32 %v554, %v300
        %v561 = vmul.f32 %v557, %v300
        %v562 = vsub.f32 %v542, %v558
        %v563 = vsub.f32 %v543, %v559
        %v564 = vsub.f32 %v544, %v560
        %v565 = vsub.f32 %v545, %v561
        %v566 = vmul.f32 %v562, %v562
        %v567 = vmul.f32 %v563, %v563
        %v568 = vmul.f32 %v564, %v564
        %v569 = vmul.f32 %v565, %v565
        %v570 = vsel %vm287, %v566, 0.0
        %571 = vadd.xlane.f32.xlu0 %v570
        %v572 = vpop.xlane.xlu0 %571
        %v573 = vsel %vm287, %v567, 0.0
        %574 = vadd.xlane.f32.xlu0 %v573
        %v575 = vpop.xlane.xlu0 %574
        %v576 = vsel %vm287, %v568, 0.0
        %577 = vadd.xlane.f32.xlu0 %v576
        %v578 = vpop.xlane.xlu0 %577
        %v579 = vsel %vm287, %v569, 0.0
        %580 = vadd.xlane.f32.xlu0 %v579
        %v581 = vpop.xlane.xlu0 %580
        %v582 = vmul.f32 %v572, %v300
        %v583 = vmul.f32 %v575, %v300
        %v584 = vmul.f32 %v578, %v300
        %v585 = vmul.f32 %v581, %v300
        %v586 = vadd.f32 %v582, 1e-06
        %v587 = vadd.f32 %v583, 1e-06
        %v588 = vadd.f32 %v584, 1e-06
        %v589 = vadd.f32 %v585, 1e-06
        %v590 = vrsqrt.pop %v586
        %v591 = vrsqrt.pop %v587
        %v592 = vrsqrt.pop %v588
        %v593 = vrsqrt.pop %v589
        %v594 = vmul.f32 %v562, %v590
        %v595 = vmul.f32 %v563, %v591
        %v596 = vmul.f32 %v564, %v592
        %v597 = vmul.f32 %v565, %v593
        %v598 = vmul.f32 %v594, %v345
        %v599 = vmul.f32 %v595, %v345
        %v600 = vmul.f32 %v596, %v345
        %v601 = vmul.f32 %v597, %v345
        %v602 = vadd.f32 %v598, %v355
        %v603 = vadd.f32 %v599, %v355
        %v604 = vadd.f32 %v600, %v355
        %v605 = vadd.f32 %v601, %v355
        %606 = vst.msk [vmem:[%s272] sm:$0xff] %vm287, %v602
        %607 = vst.msk [vmem:[%s272 + $0x8] sm:$0xff] %vm287, %v603
        %608 = vst.msk [vmem:[%s272 + $0x10] sm:$0xff] %vm287, %v604
        %609 = vst.msk [vmem:[%s272 + $0x18] sm:$0xff] %vm287, %v605
        %s610 = sand.u32 %s181, 1
        %s611 = scalar_lea.sflag [#allocation3], %s610
        %s612 = sand.u32 %s181, 1
        %s613 = smul.addr %s612, 32
        %s614 = scalar_lea.vmem [#allocation2], %s613
        // Predicated region
        $region49: #{encoder_layer_forward.5} parent=47 // pred_check
          %p615 = pneg %p191
        $region50: #{encoder_layer_forward.5} parent=47 // pred_check_branch
          %617 = sbr.rel (%p615) target = $region52
        $region51: #{encoder_layer_forward.5} parent=47 // pred_region
          %s618 = smul.u32 4, %s21
          %s620 = ssub.s32 512, 512
          %621 = vsyncadd %s611, %s620
          %s622 = smul.addr %s618, 128
          %s623 = scalar_lea.hbm %s7, %s622
          %s624 = sshll.u32 %s614, 4
          %s625 = int_to_ptr.vmem [resolvable:$true] %s624
          %630 = dma.vmem_to_hbm [thread:$0]  %s625, 512, %s623, %s611, 128, 128, 8
        $region52: #{encoder_layer_forward.5} parent=47 // pred_fallthru
          _
      $region48: #{encoder_layer_forward.5} parent=5 // pred_fallthru
        _
      %p631 = scmp.le.s32.totalorder 2, %s16
      // Predicated region
      $region53: #{encoder_layer_forward.5} parent=5 // pred_check
        %p632 = pneg %p631
      $region54: #{encoder_layer_forward.5} parent=5 // pred_check_branch
        %634 = sbr.rel (%p632) target = $region56
      $region55: #{encoder_layer_forward.5} parent=5 // pred_region
        %s635 = ssub.s32 %s16, 2
        // Predicated region
        $region57: #{encoder_layer_forward.5} parent=55 // pred_check
          %p636 = pneg %p197
        $region58: #{encoder_layer_forward.5} parent=55 // pred_check_branch
          %638 = sbr.rel (%p636) target = $region60
        $region59: #{encoder_layer_forward.5} parent=55 // pred_region
          %s639 = sand.u32 %s182, 1
          %s640 = scalar_lea.sflag [#allocation3], %s639
          %s641 = sand.u32 %s182, 1
          %s642 = smul.addr %s641, 32
          %s643 = scalar_lea.vmem [#allocation2], %s642
          %644 = dma.done %s640, 512
        $region60: #{encoder_layer_forward.5} parent=55 // pred_fallthru
          _
      $region56: #{encoder_layer_forward.5} parent=5 // pred_fallthru
        _
    $region6: #{encoder_layer_forward.5} parent=1 // loop_footer
      %s20 = sadd.s32 1, %s16
    $region7: #{encoder_layer_forward.5} parent=1 // loop_footer_branch
      %15 = sbr.rel target = $region3
    $region8: #{encoder_layer_forward.5} parent=1 // loop_exit
      _
    %645 = vsyncpa [#allocation3], 1
    %s646 = scalar_lea.sflag [#allocation3], 1
    %647 = vsyncpa %s646, 1

// kernel: encoder_layer_forward.3
$region0: #{encoder_layer_forward.3}
  #allocation0 [shape = 'u32[]', space=smem, size = 0x4, offset = 0x4, fixed_abs, tag = 'smem constant byte address 0x4 - core index']
  #allocation1 [shape = 'u32[144,128]{1,0:T(1,128)}', space=vmem, size = 0x12000, scoped, tag = 'internal scratch']
  %s0 = inlined_call_operand.vmem [shape: f32[8,8,32], index: 0, kind: input, shape index: {}]
  %s1 = inlined_call_operand.vmem [shape: f32[8,1,8], index: 1, kind: input, shape index: {}]
  %s2 = inlined_call_operand.vmem [shape: f32[1,32], index: 2, kind: input, shape index: {}]
  %s3 = inlined_call_operand.vmem [shape: f32[1,32], index: 3, kind: input, shape index: {}]
  %s4 = inlined_call_operand.vmem [shape: bf16[32,32], index: 4, kind: input, shape index: {}]
  %s5 = inlined_call_operand.vmem [shape: f32[1,32], index: 5, kind: input, shape index: {}]
  %s6 = inlined_call_operand.hbm [shape: bf16[32,32], index: 6, kind: input, shape index: {}]
  %s7 = inlined_call_operand.vmem [shape: f32[1,32], index: 7, kind: input, shape index: {}]
  %s8 = inlined_call_operand.hbm [shape: bf16[32,32], index: 8, kind: input, shape index: {}]
  %s9 = inlined_call_operand.vmem [shape: f32[1,32], index: 9, kind: input, shape index: {}]
  %s10 = inlined_call_operand.hbm [shape: bf16[32,32], index: 10, kind: input, shape index: {}]
  %s11 = inlined_call_operand.vmem [shape: f32[1,32], index: 11, kind: input, shape index: {}]
  %s12 = inlined_call_operand.vmem [shape: f32[8,8,32], index: 12, kind: output, shape index: {0}]
  %s13 = inlined_call_operand.hbm [shape: bf16[8,4,8,8], index: 13, kind: output, shape index: {1}]
  %14 = xla_tuple %s12, %s13
  %s15 = sld [smem:[#allocation0]]
  $region101: #{encoder_layer_forward.3} parent=0
    _
  %s17 = ssub.s32 1, %s15
  %s18 = scalar_select 0, %s17, %s15
  $region1: #{encoder_layer_forward.3} parent=0
    #allocation2 [shape = 'u8[8192]{0}', space=vmem, size = 0x2000, scoped, tag = 'input window, operand 6, single buffered']
    #allocation3 [shape = 's32[2]{0}', space=sflag, size = 0x8, scoped, tag = 'scoped memory for encoder_layer_forward.3']
    #allocation4 [shape = 's32[2]{0}', space=sflag, size = 0x8, scoped, tag = 'scoped memory for encoder_layer_forward.3']
    #allocation5 [shape = 'u8[8192]{0}', space=vmem, size = 0x2000, scoped, tag = 'input window, operand 8, single buffered']
    #allocation6 [shape = 's32[1]{0}', space=sflag, size = 0x4, scoped, tag = 'scoped memory for encoder_layer_forward.3']
    #allocation7 [shape = 'u8[8192]{0}', space=vmem, size = 0x2000, scoped, tag = 'input window, operand 10, single buffered']
    #allocation8 [shape = 'u8[65536]{0}', space=vmem, size = 0x10000, scoped, tag = 'output window, operand 1']
    %19 = vsyncpa [#allocation3], 0
    %20 = vsyncpa [#allocation6], 0
    %21 = vsyncpa [#allocation4], 0
    %s22 = scalar_lea.sflag [#allocation4], 1
    %23 = vsyncpa %s22, 0
    loop: start=0, step=1, limit=4
    $region2: #{encoder_layer_forward.3} parent=1 // loop_pre_header
      _
    $region3: #{encoder_layer_forward.3} parent=1 // loop_header
      %s25 = sphi 0, %s29
      %p26 = scmp.ge.s32.totalorder %s25, 4
      %s35 = sphi 0, %s37
      %s38 = sphi 0, %s35
      %s39 = sphi 0, %s38
      %s55 = sphi 0, %s39
      %s61 = sphi 0, %s63
      %s64 = sphi 0, %s61
      %s65 = sphi 0, %s64
      %s81 = sphi 0, %s65
      %s85 = sphi 0, %s85
      %s87 = sphi 0, %s85
      %s88 = sphi 0, %s87
      %s102 = sphi 0, %s88
      %s106 = sphi 0, %s106
      %s108 = sphi 0, %s106
      %s109 = sphi 0, %s108
      %s123 = sphi 0, %s109
      %s127 = sphi 0, %s127
      %s129 = sphi 0, %s127
      %s130 = sphi 0, %s129
      %s144 = sphi 0, %s130
      %s148 = sphi 0, %s148
      %s150 = sphi 0, %s148
      %s151 = sphi 0, %s150
      %s165 = sphi 0, %s151
      %s169 = sphi 0, %s169
      %s171 = sphi 0, %s169
      %s172 = sphi 0, %s171
      %s186 = sphi 0, %s172
      %s190 = sphi 0, %s190
      %s192 = sphi 0, %s190
      %s193 = sphi 0, %s192
      %s207 = sphi 0, %s193
      %s211 = sphi 0, %s211
      %s213 = sphi 0, %s211
      %s214 = sphi 0, %s213
      %s228 = sphi 0, %s214
      %s232 = sphi 0, %s232
      %s234 = sphi 0, %s232
      %s235 = sphi 0, %s234
      %s249 = sphi 0, %s235
      %s253 = sphi 0, %s253
      %s255 = sphi 0, %s253
      %s256 = sphi 0, %s255
      %s270 = sphi 0, %s256
      %s274 = sphi 0, %s274
      %s276 = sphi 0, %s274
      %s277 = sphi 0, %s276
      %s291 = sphi 0, %s277
      %s297 = sphi 0, %s299
      %s300 = sphi 0, %s297
      %s301 = sphi 0, %s300
      %s317 = sphi 0, %s301
      %s323 = sphi 0, %s325
      %s326 = sphi 0, %s323
      %s327 = sphi 0, %s326
      %s343 = sphi 0, %s327
    $region4: #{encoder_layer_forward.3} parent=1 // loop_header_branch
      %28 = sbr.rel (%p26) target = $region8
    $region5: #{encoder_layer_forward.3} parent=1 // loop_body
      %s30 = ssub.s32 %s25, 1
      %s31 = ssub.s32 %s25, 2
      %s32 = sadd.s32 %s25, 1
      %s33 = ssub.s32 %s25, %s32
      %p34 = scmp.eq.s32.totalorder %s33, 0
      %s36 = sadd.s32 %s35, 1
      %s37 = scalar_select %p34, %s35, %s36
      %p40 = pneg %p34
      %p41 = scmp.eq.s32.totalorder %s25, 1
      %p42 = por %p40, %p41
      %p43 = scmp.ne.s32.totalorder %s35, %s38
      %p44 = scmp.eq.s32.totalorder %s25, 0
      %p45 = por %p43, %p44
      %p46 = scmp.ne.s32.totalorder %s35, %s38
      %p47 = scmp.eq.s32.totalorder %s30, 1
      %p48 = por %p46, %p47
      %p49 = scmp.ne.s32.totalorder %s38, %s39
      %p50 = scmp.eq.s32.totalorder %s30, 0
      %p51 = por %p49, %p50
      %p52 = scmp.ne.s32.totalorder %s38, %s39
      %p53 = scmp.eq.s32.totalorder %s31, 1
      %p54 = por %p52, %p53
      %p56 = scmp.ne.s32.totalorder %s39, %s55
      %p57 = scmp.eq.s32.totalorder %s31, 0
      %p58 = por %p56, %p57
      %s59 = ssub.s32 %s25, %s32
      %p60 = scmp.eq.s32.totalorder %s59, 0
      %s62 = sadd.s32 %s61, 1
      %s63 = scalar_select %p60, %s61, %s62
      %p66 = pneg %p60
      %p67 = scmp.eq.s32.totalorder %s25, 1
      %p68 = por %p66, %p67
      %p69 = scmp.ne.s32.totalorder %s61, %s64
      %p70 = scmp.eq.s32.totalorder %s25, 0
      %p71 = por %p69, %p70
      %p72 = scmp.ne.s32.totalorder %s61, %s64
      %p73 = scmp.eq.s32.totalorder %s30, 1
      %p74 = por %p72, %p73
      %p75 = scmp.ne.s32.totalorder %s64, %s65
      %p76 = scmp.eq.s32.totalorder %s30, 0
      %p77 = por %p75, %p76
      %p78 = scmp.ne.s32.totalorder %s64, %s65
      %p79 = scmp.eq.s32.totalorder %s31, 1
      %p80 = por %p78, %p79
      %p82 = scmp.ne.s32.totalorder %s65, %s81
      %p83 = scmp.eq.s32.totalorder %s31, 0
      %p84 = por %p82, %p83
      %s86 = sadd.s32 %s85, 1
      %p89 = scmp.eq.s32.totalorder %s25, 1
      %p90 = scmp.ne.s32.totalorder %s85, %s87
      %p91 = scmp.eq.s32.totalorder %s25, 0
      %p92 = por %p90, %p91
      %p93 = scmp.ne.s32.totalorder %s85, %s87
      %p94 = scmp.eq.s32.totalorder %s30, 1
      %p95 = por %p93, %p94
      %p96 = scmp.ne.s32.totalorder %s87, %s88
      %p97 = scmp.eq.s32.totalorder %s30, 0
      %p98 = por %p96, %p97
      %p99 = scmp.ne.s32.totalorder %s87, %s88
      %p100 = scmp.eq.s32.totalorder %s31, 1
      %p101 = por %p99, %p100
      %p103 = scmp.ne.s32.totalorder %s88, %s102
      %p104 = scmp.eq.s32.totalorder %s31, 0
      %p105 = por %p103, %p104
      %s107 = sadd.s32 %s106, 1
      %p110 = scmp.eq.s32.totalorder %s25, 1
      %p111 = scmp.ne.s32.totalorder %s106, %s108
      %p112 = scmp.eq.s32.totalorder %s25, 0
      %p113 = por %p111, %p112
      %p114 = scmp.ne.s32.totalorder %s106, %s108
      %p115 = scmp.eq.s32.totalorder %s30, 1
      %p116 = por %p114, %p115
      %p117 = scmp.ne.s32.totalorder %s108, %s109
      %p118 = scmp.eq.s32.totalorder %s30, 0
      %p119 = por %p117, %p118
      %p120 = scmp.ne.s32.totalorder %s108, %s109
      %p121 = scmp.eq.s32.totalorder %s31, 1
      %p122 = por %p120, %p121
      %p124 = scmp.ne.s32.totalorder %s109, %s123
      %p125 = scmp.eq.s32.totalorder %s31, 0
      %p126 = por %p124, %p125
      %s128 = sadd.s32 %s127, 1
      %p131 = scmp.eq.s32.totalorder %s25, 1
      %p132 = scmp.ne.s32.totalorder %s127, %s129
      %p133 = scmp.eq.s32.totalorder %s25, 0
      %p134 = por %p132, %p133
      %p135 = scmp.ne.s32.totalorder %s127, %s129
      %p136 = scmp.eq.s32.totalorder %s30, 1
      %p137 = por %p135, %p136
      %p138 = scmp.ne.s32.totalorder %s129, %s130
      %p139 = scmp.eq.s32.totalorder %s30, 0
      %p140 = por %p138, %p139
      %p141 = scmp.ne.s32.totalorder %s129, %s130
      %p142 = scmp.eq.s32.totalorder %s31, 1
      %p143 = por %p141, %p142
      %p145 = scmp.ne.s32.totalorder %s130, %s144
      %p146 = scmp.eq.s32.totalorder %s31, 0
      %p147 = por %p145, %p146
      %s149 = sadd.s32 %s148, 1
      %p152 = scmp.eq.s32.totalorder %s25, 1
      %p153 = scmp.ne.s32.totalorder %s148, %s150
      %p154 = scmp.eq.s32.totalorder %s25, 0
      %p155 = por %p153, %p154
      %p156 = scmp.ne.s32.totalorder %s148, %s150
      %p157 = scmp.eq.s32.totalorder %s30, 1
      %p158 = por %p156, %p157
      %p159 = scmp.ne.s32.totalorder %s150, %s151
      %p160 = scmp.eq.s32.totalorder %s30, 0
      %p161 = por %p159, %p160
      %p162 = scmp.ne.s32.totalorder %s150, %s151
      %p163 = scmp.eq.s32.totalorder %s31, 1
      %p164 = por %p162, %p163
      %p166 = scmp.ne.s32.totalorder %s151, %s165
      %p167 = scmp.eq.s32.totalorder %s31, 0
      %p168 = por %p166, %p167
      %s170 = sadd.s32 %s169, 1
      %p173 = scmp.eq.s32.totalorder %s25, 1
      %p174 = scmp.ne.s32.totalorder %s169, %s171
      %p175 = scmp.eq.s32.totalorder %s25, 0
      %p176 = por %p174, %p175
      %p177 = scmp.ne.s32.totalorder %s169, %s171
      %p178 = scmp.eq.s32.totalorder %s30, 1
      %p179 = por %p177, %p178
      %p180 = scmp.ne.s32.totalorder %s171, %s172
      %p181 = scmp.eq.s32.totalorder %s30, 0
      %p182 = por %p180, %p181
      %p183 = scmp.ne.s32.totalorder %s171, %s172
      %p184 = scmp.eq.s32.totalorder %s31, 1
      %p185 = por %p183, %p184
      %p187 = scmp.ne.s32.totalorder %s172, %s186
      %p188 = scmp.eq.s32.totalorder %s31, 0
      %p189 = por %p187, %p188
      %s191 = sadd.s32 %s190, 1
      %p194 = scmp.eq.s32.totalorder %s25, 1
      %p195 = scmp.ne.s32.totalorder %s190, %s192
      %p196 = scmp.eq.s32.totalorder %s25, 0
      %p197 = por %p195, %p196
      %p198 = scmp.ne.s32.totalorder %s190, %s192
      %p199 = scmp.eq.s32.totalorder %s30, 1
      %p200 = por %p198, %p199
      %p201 = scmp.ne.s32.totalorder %s192, %s193
      %p202 = scmp.eq.s32.totalorder %s30, 0
      %p203 = por %p201, %p202
      %p204 = scmp.ne.s32.totalorder %s192, %s193
      %p205 = scmp.eq.s32.totalorder %s31, 1
      %p206 = por %p204, %p205
      %p208 = scmp.ne.s32.totalorder %s193, %s207
      %p209 = scmp.eq.s32.totalorder %s31, 0
      %p210 = por %p208, %p209
      %s212 = sadd.s32 %s211, 1
      %p215 = scmp.eq.s32.totalorder %s25, 1
      %p216 = scmp.ne.s32.totalorder %s211, %s213
      %p217 = scmp.eq.s32.totalorder %s25, 0
      %p218 = por %p216, %p217
      %p219 = scmp.ne.s32.totalorder %s211, %s213
      %p220 = scmp.eq.s32.totalorder %s30, 1
      %p221 = por %p219, %p220
      %p222 = scmp.ne.s32.totalorder %s213, %s214
      %p223 = scmp.eq.s32.totalorder %s30, 0
      %p224 = por %p222, %p223
      %p225 = scmp.ne.s32.totalorder %s213, %s214
      %p226 = scmp.eq.s32.totalorder %s31, 1
      %p227 = por %p225, %p226
      %p229 = scmp.ne.s32.totalorder %s214, %s228
      %p230 = scmp.eq.s32.totalorder %s31, 0
      %p231 = por %p229, %p230
      %s233 = sadd.s32 %s232, 1
      %p236 = scmp.eq.s32.totalorder %s25, 1
      %p237 = scmp.ne.s32.totalorder %s232, %s234
      %p238 = scmp.eq.s32.totalorder %s25, 0
      %p239 = por %p237, %p238
      %p240 = scmp.ne.s32.totalorder %s232, %s234
      %p241 = scmp.eq.s32.totalorder %s30, 1
      %p242 = por %p240, %p241
      %p243 = scmp.ne.s32.totalorder %s234, %s235
      %p244 = scmp.eq.s32.totalorder %s30, 0
      %p245 = por %p243, %p244
      %p246 = scmp.ne.s32.totalorder %s234, %s235
      %p247 = scmp.eq.s32.totalorder %s31, 1
      %p248 = por %p246, %p247
      %p250 = scmp.ne.s32.totalorder %s235, %s249
      %p251 = scmp.eq.s32.totalorder %s31, 0
      %p252 = por %p250, %p251
      %s254 = sadd.s32 %s253, 1
      %p257 = scmp.eq.s32.totalorder %s25, 1
      %p258 = scmp.ne.s32.totalorder %s253, %s255
      %p259 = scmp.eq.s32.totalorder %s25, 0
      %p260 = por %p258, %p259
      %p261 = scmp.ne.s32.totalorder %s253, %s255
      %p262 = scmp.eq.s32.totalorder %s30, 1
      %p263 = por %p261, %p262
      %p264 = scmp.ne.s32.totalorder %s255, %s256
      %p265 = scmp.eq.s32.totalorder %s30, 0
      %p266 = por %p264, %p265
      %p267 = scmp.ne.s32.totalorder %s255, %s256
      %p268 = scmp.eq.s32.totalorder %s31, 1
      %p269 = por %p267, %p268
      %p271 = scmp.ne.s32.totalorder %s256, %s270
      %p272 = scmp.eq.s32.totalorder %s31, 0
      %p273 = por %p271, %p272
      %s275 = sadd.s32 %s274, 1
      %p278 = scmp.eq.s32.totalorder %s25, 1
      %p279 = scmp.ne.s32.totalorder %s274, %s276
      %p280 = scmp.eq.s32.totalorder %s25, 0
      %p281 = por %p279, %p280
      %p282 = scmp.ne.s32.totalorder %s274, %s276
      %p283 = scmp.eq.s32.totalorder %s30, 1
      %p284 = por %p282, %p283
      %p285 = scmp.ne.s32.totalorder %s276, %s277
      %p286 = scmp.eq.s32.totalorder %s30, 0
      %p287 = por %p285, %p286
      %p288 = scmp.ne.s32.totalorder %s276, %s277
      %p289 = scmp.eq.s32.totalorder %s31, 1
      %p290 = por %p288, %p289
      %p292 = scmp.ne.s32.totalorder %s277, %s291
      %p293 = scmp.eq.s32.totalorder %s31, 0
      %p294 = por %p292, %p293
      %s295 = ssub.s32 %s25, %s32
      %p296 = scmp.eq.s32.totalorder %s295, 0
      %s298 = sadd.s32 %s297, 1
      %s299 = scalar_select %p296, %s297, %s298
      %p302 = pneg %p296
      %p303 = scmp.eq.s32.totalorder %s25, 1
      %p304 = por %p302, %p303
      %p305 = scmp.ne.s32.totalorder %s297, %s300
      %p306 = scmp.eq.s32.totalorder %s25, 0
      %p307 = por %p305, %p306
      %p308 = scmp.ne.s32.totalorder %s297, %s300
      %p309 = scmp.eq.s32.totalorder %s30, 1
      %p310 = por %p308, %p309
      %p311 = scmp.ne.s32.totalorder %s300, %s301
      %p312 = scmp.eq.s32.totalorder %s30, 0
      %p313 = por %p311, %p312
      %p314 = scmp.ne.s32.totalorder %s300, %s301
      %p315 = scmp.eq.s32.totalorder %s31, 1
      %p316 = por %p314, %p315
      %p318 = scmp.ne.s32.totalorder %s301, %s317
      %p319 = scmp.eq.s32.totalorder %s31, 0
      %p320 = por %p318, %p319
      %s321 = ssub.s32 %s25, %s32
      %p322 = scmp.eq.s32.totalorder %s321, 0
      %s324 = sadd.s32 %s323, 1
      %s325 = scalar_select %p322, %s323, %s324
      %p328 = pneg %p322
      %p329 = scmp.eq.s32.totalorder %s25, 1
      %p330 = por %p328, %p329
      %p331 = scmp.ne.s32.totalorder %s323, %s326
      %p332 = scmp.eq.s32.totalorder %s25, 0
      %p333 = por %p331, %p332
      %p334 = scmp.ne.s32.totalorder %s323, %s326
      %p335 = scmp.eq.s32.totalorder %s30, 1
      %p336 = por %p334, %p335
      %p337 = scmp.ne.s32.totalorder %s326, %s327
      %p338 = scmp.eq.s32.totalorder %s30, 0
      %p339 = por %p337, %p338
      %p340 = scmp.ne.s32.totalorder %s326, %s327
      %p341 = scmp.eq.s32.totalorder %s31, 1
      %p342 = por %p340, %p341
      %p344 = scmp.ne.s32.totalorder %s327, %s343
      %p345 = scmp.eq.s32.totalorder %s31, 0
      %p346 = por %p344, %p345
      %p347 = scmp.le.s32.totalorder 1, %s25
      %p348 = scmp.lt.s32.totalorder %s25, 3
      %p349 = pnand %p347, %p348
      %p350 = pneg %p349
      // Predicated region
      $region9: #{encoder_layer_forward.3} parent=5 // pred_check
        _
      $region10: #{encoder_layer_forward.3} parent=5 // pred_check_branch
        %352 = sbr.rel (%p349) target = $region12
      $region11: #{encoder_layer_forward.3} parent=5 // pred_region
        %s353 = ssub.s32 %s25, 1
        // Predicated region
        $region13: #{encoder_layer_forward.3} parent=11 // pred_check
          %p354 = pneg %p98
        $region14: #{encoder_layer_forward.3} parent=11 // pred_check_branch
          %356 = sbr.rel (%p354) target = $region16
        $region15: #{encoder_layer_forward.3} parent=11 // pred_region
          _
        $region16: #{encoder_layer_forward.3} parent=11 // pred_fallthru
          _
        // Predicated region
        $region17: #{encoder_layer_forward.3} parent=11 // pred_check
          %p357 = pneg %p119
        $region18: #{encoder_layer_forward.3} parent=11 // pred_check_branch
          %359 = sbr.rel (%p357) target = $region20
        $region19: #{encoder_layer_forward.3} parent=11 // pred_region
          _
        $region20: #{encoder_layer_forward.3} parent=11 // pred_fallthru
          _
        // Predicated region
        $region21: #{encoder_layer_forward.3} parent=11 // pred_check
          %p360 = pneg %p140
        $region22: #{encoder_layer_forward.3} parent=11 // pred_check_branch
          %362 = sbr.rel (%p360) target = $region24
        $region23: #{encoder_layer_forward.3} parent=11 // pred_region
          _
        $region24: #{encoder_layer_forward.3} parent=11 // pred_fallthru
          _
        // Predicated region
        $region25: #{encoder_layer_forward.3} parent=11 // pred_check
          %p363 = pneg %p161
        $region26: #{encoder_layer_forward.3} parent=11 // pred_check_branch
          %365 = sbr.rel (%p363) target = $region28
        $region27: #{encoder_layer_forward.3} parent=11 // pred_region
          _
        $region28: #{encoder_layer_forward.3} parent=11 // pred_fallthru
          _
        // Predicated region
        $region29: #{encoder_layer_forward.3} parent=11 // pred_check
          %p366 = pneg %p182
        $region30: #{encoder_layer_forward.3} parent=11 // pred_check_branch
          %368 = sbr.rel (%p366) target = $region32
        $region31: #{encoder_layer_forward.3} parent=11 // pred_region
          %s370 = ssub.s32 256, 256
          %371 = vsyncadd [#allocation3], %s370
          %s372 = sshll.u32 [#allocation2], 4
          %s373 = int_to_ptr.vmem [resolvable:$true] %s372
          %378 = dma.hbm_to_vmem [thread:$0]  %s6, 256, %s373, [#allocation3], 64, 64, 4
        $region32: #{encoder_layer_forward.3} parent=11 // pred_fallthru
          _
        // Predicated region
        $region33: #{encoder_layer_forward.3} parent=11 // pred_check
          %p379 = pneg %p203
        $region34: #{encoder_layer_forward.3} parent=11 // pred_check_branch
          %381 = sbr.rel (%p379) target = $region36
        $region35: #{encoder_layer_forward.3} parent=11 // pred_region
          _
        $region36: #{encoder_layer_forward.3} parent=11 // pred_fallthru
          _
        // Predicated region
        $region37: #{encoder_layer_forward.3} parent=11 // pred_check
          %p382 = pneg %p224
        $region38: #{encoder_layer_forward.3} parent=11 // pred_check_branch
          %384 = sbr.rel (%p382) target = $region40
        $region39: #{encoder_layer_forward.3} parent=11 // pred_region
          %s386 = ssub.s32 256, 256
          %387 = vsyncadd [#allocation6], %s386
          %s388 = sshll.u32 [#allocation5], 4
          %s389 = int_to_ptr.vmem [resolvable:$true] %s388
          %394 = dma.hbm_to_vmem [thread:$0]  %s8, 256, %s389, [#allocation6], 64, 64, 4
        $region40: #{encoder_layer_forward.3} parent=11 // pred_fallthru
          _
        // Predicated region
        $region41: #{encoder_layer_forward.3} parent=11 // pred_check
          %p395 = pneg %p245
        $region42: #{encoder_layer_forward.3} parent=11 // pred_check_branch
          %397 = sbr.rel (%p395) target = $region44
        $region43: #{encoder_layer_forward.3} parent=11 // pred_region
          _
        $region44: #{encoder_layer_forward.3} parent=11 // pred_fallthru
          _
        // Predicated region
        $region45: #{encoder_layer_forward.3} parent=11 // pred_check
          %p398 = pneg %p266
        $region46: #{encoder_layer_forward.3} parent=11 // pred_check_branch
          %400 = sbr.rel (%p398) target = $region48
        $region47: #{encoder_layer_forward.3} parent=11 // pred_region
          %s402 = ssub.s32 256, 256
          %403 = vsyncadd [#allocation6], %s402
          %s404 = sshll.u32 [#allocation7], 4
          %s405 = int_to_ptr.vmem [resolvable:$true] %s404
          %410 = dma.hbm_to_vmem [thread:$0]  %s10, 256, %s405, [#allocation6], 64, 64, 4
        $region48: #{encoder_layer_forward.3} parent=11 // pred_fallthru
          _
        // Predicated region
        $region49: #{encoder_layer_forward.3} parent=11 // pred_check
          %p411 = pneg %p287
        $region50: #{encoder_layer_forward.3} parent=11 // pred_check_branch
          %413 = sbr.rel (%p411) target = $region52
        $region51: #{encoder_layer_forward.3} parent=11 // pred_region
          _
        $region52: #{encoder_layer_forward.3} parent=11 // pred_fallthru
          _
      $region12: #{encoder_layer_forward.3} parent=5 // pred_fallthru
        _
      %p414 = scmp.lt.s32.totalorder %s25, 2
      // Predicated region
      $region53: #{encoder_layer_forward.3} parent=5 // pred_check
        %p415 = pneg %p414
      $region54: #{encoder_layer_forward.3} parent=5 // pred_check_branch
        %417 = sbr.rel (%p415) target = $region56
      $region55: #{encoder_layer_forward.3} parent=5 // pred_region
        // Predicated region
        $region57: #{encoder_layer_forward.3} parent=55 // pred_check
          %p418 = pneg %p45
        $region58: #{encoder_layer_forward.3} parent=55 // pred_check_branch
          %420 = sbr.rel (%p418) target = $region60
        $region59: #{encoder_layer_forward.3} parent=55 // pred_region
          %s421 = smul.u32 4, %s25
          %p422 = scmp.lt.s32.totalorder %s421, 7
          %s423 = scalar_select %p422, %s421, 7
          %s424 = smul.addr %s423, 8
          %s425 = scalar_lea.vmem %s0, %s424
          %s426 = smul.u32 4, %s25
        $region60: #{encoder_layer_forward.3} parent=55 // pred_fallthru
          _
        // Predicated region
        $region61: #{encoder_layer_forward.3} parent=55 // pred_check
          %p427 = pneg %p71
        $region62: #{encoder_layer_forward.3} parent=55 // pred_check_branch
          %429 = sbr.rel (%p427) target = $region64
        $region63: #{encoder_layer_forward.3} parent=55 // pred_region
          %s430 = smul.u32 4, %s25
          %p431 = scmp.lt.s32.totalorder %s430, 7
          %s432 = scalar_select %p431, %s430, 7
          %s433 = scalar_lea.vmem %s1, %s432
          %s434 = smul.u32 4, %s25
        $region64: #{encoder_layer_forward.3} parent=55 // pred_fallthru
          _
      $region56: #{encoder_layer_forward.3} parent=5 // pred_fallthru
        _
      %p435 = scmp.le.s32.totalorder 1, %s25
      %p436 = scmp.lt.s32.totalorder %s25, 3
      %p437 = pnand %p435, %p436
      %p438 = pneg %p437
      // Predicated region
      $region65: #{encoder_layer_forward.3} parent=5 // pred_check
        _
      $region66: #{encoder_layer_forward.3} parent=5 // pred_check_branch
        %440 = sbr.rel (%p437) target = $region68
      $region67: #{encoder_layer_forward.3} parent=5 // pred_region
        %s441 = ssub.s32 %s25, 1
        // Predicated region
        $region69: #{encoder_layer_forward.3} parent=67 // pred_check
          %p442 = pneg %p182
        $region70: #{encoder_layer_forward.3} parent=67 // pred_check_branch
          %444 = sbr.rel (%p442) target = $region72
        $region71: #{encoder_layer_forward.3} parent=67 // pred_region
          %445 = dma.done [#allocation3], 256
        $region72: #{encoder_layer_forward.3} parent=67 // pred_fallthru
          _
        // Predicated region
        $region73: #{encoder_layer_forward.3} parent=67 // pred_check
          %p446 = pneg %p224
        $region74: #{encoder_layer_forward.3} parent=67 // pred_check_branch
          %448 = sbr.rel (%p446) target = $region76
        $region75: #{encoder_layer_forward.3} parent=67 // pred_region
          %449 = dma.done [#allocation6], 256
        $region76: #{encoder_layer_forward.3} parent=67 // pred_fallthru
          _
        // Predicated region
        $region77: #{encoder_layer_forward.3} parent=67 // pred_check
          %p450 = pneg %p266
        $region78: #{encoder_layer_forward.3} parent=67 // pred_check_branch
          %452 = sbr.rel (%p450) target = $region80
        $region79: #{encoder_layer_forward.3} parent=67 // pred_region
          %453 = dma.done [#allocation6], 256
        $region80: #{encoder_layer_forward.3} parent=67 // pred_fallthru
          _
        %s454 = smul.u32 4, %s30
        %p455 = scmp.lt.s32.totalorder %s454, 7
        %s456 = scalar_select %p455, %s454, 7
        %s457 = smul.addr %s456, 8
        %s458 = scalar_lea.vmem %s0, %s457
        %p459 = pneg %p51
        %p460 = pneg %p48
        %s461 = smul.u32 4, %s30
        %p462 = scmp.lt.s32.totalorder %s461, 7
        %s463 = scalar_select %p462, %s461, 7
        %s464 = scalar_lea.vmem %s1, %s463
        %p465 = pneg %p77
        %p466 = pneg %p74
        %p467 = pneg %p98
        %p468 = pneg %p95
        %p469 = pneg %p119
        %p470 = pneg %p116
        %p471 = pneg %p140
        %p472 = pneg %p137
        %p473 = pneg %p161
        %p474 = pneg %p158
        %p475 = pneg %p182
        %p476 = pneg %p179
        %p477 = pneg %p203
        %p478 = pneg %p200
        %p479 = pneg %p224
        %p480 = pneg %p221
        %p481 = pneg %p245
        %p482 = pneg %p242
        %p483 = pneg %p266
        %p484 = pneg %p263
        %p485 = pneg %p287
        %p486 = pneg %p284
        %p487 = pneg %p313
        %p488 = pneg %p310
        %s489 = smul.u32 4, %s30
        %p490 = scmp.lt.s32.totalorder %s489, 7
        %s491 = scalar_select %p490, %s489, 7
        %s492 = smul.addr %s491, 8
        %s493 = scalar_lea.vmem %s12, %s492
        %p494 = pneg %p339
        %p495 = pneg %p336
        %s496 = sand.u32 %s326, 1
        %s497 = scalar_lea.sflag [#allocation4], %s496
        %s498 = sand.u32 %s326, 1
        %s499 = smul.addr %s498, 64
        %s500 = scalar_lea.vmem [#allocation8], %s499
        %s501 = smul.u32 4, %s30
        %p502 = scmp.lt.s32.totalorder %s501, 7
        %s503 = scalar_select %p502, %s501, 7
        %s504 = smul.addr %s503, 8
        %s505 = scalar_lea.vmem %s0, %s504
        %s506 = smul.u32 4, %s30
        %s507 = smul.u32 4, %s30
        %p508 = scmp.lt.s32.totalorder %s507, 7
        %s509 = scalar_select %p508, %s507, 7
        %s510 = scalar_lea.vmem %s1, %s509
        %s511 = smul.u32 4, %s30
        %s512 = smul.u32 4, %s30
        %p513 = scmp.lt.s32.totalorder %s512, 7
        %s514 = scalar_select %p513, %s512, 7
        %s515 = smul.addr %s514, 8
        %s516 = scalar_lea.vmem %s12, %s515
        %s517 = smul.u32 4, %s30
        %s518 = smul.u32 4, %s30
        %v520 = vld [vmem:[%s505] sm:$0xff]
        %v521 = vld [vmem:[%s505 + $0x8] sm:$0xff]
        %v522 = vld [vmem:[%s505 + $0x10] sm:$0xff]
        %v523 = vld [vmem:[%s505 + $0x18] sm:$0xff]
        %v524 = vld [vmem:[%s510] sm:$0x1]
        %v525 = vld [vmem:[%s510 + $0x1] sm:$0x1]
        %v526 = vld [vmem:[%s510 + $0x2] sm:$0x1]
        %v527 = vld [vmem:[%s510 + $0x3] sm:$0x1]
        %v528 = vld [vmem:[%s2] sm:$0x1]
        %v529 = vld [vmem:[%s3] sm:$0x1]
        %vm530 = vcmask 261120
        %v531 = vsel %vm530, %v520, 0.0
        %532 = vadd.xlane.f32.xlu0 %v531
        %v533 = vpop.xlane.xlu0 %532
        %v534 = vsel %vm530, %v521, 0.0
        %535 = vadd.xlane.f32.xlu0 %v534
        %v536 = vpop.xlane.xlu0 %535
        %v537 = vsel %vm530, %v522, 0.0
        %538 = vadd.xlane.f32.xlu0 %v537
        %v539 = vpop.xlane.xlu0 %538
        %v540 = vsel %vm530, %v523, 0.0
        %541 = vadd.xlane.f32.xlu0 %v540
        %v542 = vpop.xlane.xlu0 %541
        %v543 = vrcp.pop 32.0
        %v544 = vmul.f32 %v533, %v543
        %v545 = vmul.f32 %v536, %v543
        %v546 = vmul.f32 %v539, %v543
        %v547 = vmul.f32 %v542, %v543
        %v548 = vsub.f32 %v520, %v544
        %v549 = vsub.f32 %v521, %v545
        %v550 = vsub.f32 %v522, %v546
        %v551 = vsub.f32 %v523, %v547
        %v552 = vmul.f32 %v548, %v548
        %v553 = vmul.f32 %v549, %v549
        %v554 = vmul.f32 %v550, %v550
        %v555 = vmul.f32 %v551, %v551
        %v556 = vsel %vm530, %v552, 0.0
        %557 = vadd.xlane.f32.xlu0 %v556
        %v558 = vpop.xlane.xlu0 %557
        %v559 = vsel %vm530, %v553, 0.0
        %560 = vadd.xlane.f32.xlu0 %v559
        %v561 = vpop.xlane.xlu0 %560
        %v562 = vsel %vm530, %v554, 0.0
        %563 = vadd.xlane.f32.xlu0 %v562
        %v564 = vpop.xlane.xlu0 %563
        %v565 = vsel %vm530, %v555, 0.0
        %566 = vadd.xlane.f32.xlu0 %v565
        %v567 = vpop.xlane.xlu0 %566
        %v568 = vmul.f32 %v558, %v543
        %v569 = vmul.f32 %v561, %v543
        %v570 = vmul.f32 %v564, %v543
        %v571 = vmul.f32 %v567, %v543
        %v572 = vadd.f32 %v568, 1e-06
        %v573 = vadd.f32 %v569, 1e-06
        %v574 = vadd.f32 %v570, 1e-06
        %v575 = vadd.f32 %v571, 1e-06
        %v576 = vrsqrt.pop %v572
        %v577 = vrsqrt.pop %v573
        %v578 = vrsqrt.pop %v574
        %v579 = vrsqrt.pop %v575
        %v580 = vmul.f32 %v548, %v576
        %v581 = vmul.f32 %v549, %v577
        %v582 = vmul.f32 %v550, %v578
        %v583 = vmul.f32 %v551, %v579
        %v585 = vlaneseq
        %v586 = vshrl.u32 %v585, 7
        %v587 = vsub.s32 0, %v586
        %v588 = vrot.slane %v528, %v587
        %v590 = vmul.f32 %v580, %v588
        %v591 = vmul.f32 %v581, %v588
        %v592 = vmul.f32 %v582, %v588
        %v593 = vmul.f32 %v583, %v588
        %v595 = vlaneseq
        %v596 = vshrl.u32 %v595, 7
        %v597 = vsub.s32 0, %v596
        %v598 = vrot.slane %v529, %v597
        %v600 = vadd.f32 %v590, %v598
        %v601 = vadd.f32 %v591, %v598
        %v602 = vadd.f32 %v592, %v598
        %v603 = vadd.f32 %v593, %v598
        %v604 = vpack.c.bf16 %v601, %v600
        %v605 = vpack.c.bf16 %v603, %v602
        %v606 = vld [vmem:[%s4] sm:$0xf]
        %v607 = vld [vmem:[%s4 + $0x4] sm:$0xf]
        %v608 = vld [vmem:[%s4 + $0x8] sm:$0xf]
        %v609 = vld [vmem:[%s4 + $0xc] sm:$0xf]
        %v610 = vld [vmem:[%s5] sm:$0x1]
        %v612 = vlaneseq
        %v613 = vshrl.u32 %v612, 7
        %v614 = vsub.s32 0, %v613
        %v615 = vrot.slane %v610, %v614
        %v621 = vunpack.c.l.b16 %v606
        %v622 = vunpack.c.l.b16 %v607
        %v623 = vunpack.c.l.b16 %v608
        %v624 = vunpack.c.l.b16 %v609
        %v625 = vpack.c.b16 %v622, %v621
        %v626 = vpack.c.b16 %v624, %v623
        %v630 = vsel %vm530, %v604, 0
        %v633 = vsel %vm530, %v605, 0
        %635 = vmatprep.subr.bf16.mxu0 0
        %636 = vmatpush1.bf16.msra.mxu0 %v625
        %637 = vmatprep.subr.bf16.mxu0 0
        %638 = vmatpush1.bf16.msra.mxu0 %v626
        %639 = vmatprep.subr.bf16.mxu0 0
        %640 = vmatpush1.bf16.msra.mxu0 0
        %641 = vmatprep.subr.bf16.mxu0 0
        %642 = vmatpush1.bf16.msra.mxu0 0
        %643 = vmatprep.subr.bf16.mxu0 0
        %644 = vmatpush1.bf16.msra.mxu0 0
        %645 = vmatprep.subr.bf16.mxu0 0
        %646 = vmatpush1.bf16.msra.mxu0 0
        %647 = vmatprep.subr.bf16.mxu0 0
        %648 = vmatpush1.bf16.msra.mxu0 0
        %649 = vmatprep.subr.bf16.mxu0 0
        %650 = vmatpush1.bf16.msra.mxu0 0
        %651 = vmatprep.subr.bf16.mxu0 0
        %652 = vmatpush1.bf16.msra.mxu0 0
        %653 = vmatprep.subr.bf16.mxu0 0
        %654 = vmatpush1.bf16.msra.mxu0 0
        %655 = vmatprep.subr.bf16.mxu0 0
        %656 = vmatpush1.bf16.msra.mxu0 0
        %657 = vmatprep.subr.bf16.mxu0 0
        %658 = vmatpush1.bf16.msra.mxu0 0
        %659 = vmatprep.subr.bf16.mxu0 0
        %660 = vmatpush1.bf16.msra.mxu0 0
        %661 = vmatprep.subr.bf16.mxu0 0
        %662 = vmatpush1.bf16.msra.mxu0 0
        %663 = vmatprep.subr.bf16.mxu0 0
        %664 = vmatpush1.bf16.msra.mxu0 0
        %665 = vmatprep.subr.bf16.mxu0 0
        %666 = vmatpush1.bf16.msra.mxu0 0
        %667 = vmatprep.mubr.bf16.mxu0 0
        %668 = vmatmul.mubr.bf16.gmra.mrb[0].mxu0 %v630
        %v669 = vpop.f32.mrb[0].mxu0
        %v670 = vadd.f32 %v615, %v669
        %v671 = vpop.f32.mrb[0].mxu0
        %v672 = vpop.f32.mrb[0].mxu0
        %v673 = vadd.f32 %v615, %v672
        %v674 = vpop.f32.mrb[0].mxu0
        %675 = vmatprep.mubr.bf16.mxu0 0
        %676 = vmatmul.mubr.bf16.gmra.mrb[0].mxu0 %v633
        %v677 = vpop.f32.mrb[0].mxu0
        %v678 = vadd.f32 %v615, %v677
        %v679 = vpop.f32.mrb[0].mxu0
        %v680 = vpop.f32.mrb[0].mxu0
        %v681 = vadd.f32 %v615, %v680
        %v682 = vpop.f32.mrb[0].mxu0
        %683 = vdwg.mxu0
        %v684 = vmul.f32 %v670, 0.35355338
        %v685 = vmul.f32 %v673, 0.35355338
        %v686 = vmul.f32 %v678, 0.35355338
        %v687 = vmul.f32 %v681, 0.35355338
        %v688 = vpack.c.bf16 %v685, %v684
        %v689 = vpack.c.bf16 %v687, %v686
        %v692 = vunpack.c.l.b16 %v688
        %v693 = vunpack.c.h.b16 %v688
        %v694 = vunpack.c.l.b16 %v689
        %v695 = vunpack.c.h.b16 %v689
        %v696 = vpack.c.b16 %v692, %v692
        %v697 = vpack.c.b16 %v693, %v693
        %v698 = vpack.c.b16 %v694, %v694
        %v699 = vpack.c.b16 %v695, %v695
        %700 = vrot.lane.b32.xlu0 %v696, 120
        %v701 = vpop.permute.xlu0 %700
        %702 = vrot.lane.b32.xlu0 %v697, 120
        %v703 = vpop.permute.xlu0 %702
        %704 = vrot.lane.b32.xlu0 %v698, 120
        %v705 = vpop.permute.xlu0 %704
        %706 = vrot.lane.b32.xlu0 %v699, 120
        %v707 = vpop.permute.xlu0 %706
        %708 = vrot.lane.b32.xlu0 %v696, 112
        %v709 = vpop.permute.xlu0 %708
        %710 = vrot.lane.b32.xlu0 %v697, 112
        %v711 = vpop.permute.xlu0 %710
        %712 = vrot.lane.b32.xlu0 %v698, 112
        %v713 = vpop.permute.xlu0 %712
        %714 = vrot.lane.b32.xlu0 %v699, 112
        %v715 = vpop.permute.xlu0 %714
        %716 = vrot.lane.b32.xlu0 %v696, 104
        %v717 = vpop.permute.xlu0 %716
        %718 = vrot.lane.b32.xlu0 %v697, 104
        %v719 = vpop.permute.xlu0 %718
        %720 = vrot.lane.b32.xlu0 %v698, 104
        %v721 = vpop.permute.xlu0 %720
        %722 = vrot.lane.b32.xlu0 %v699, 104
        %v723 = vpop.permute.xlu0 %722
        %v724 = vld [vmem:[#allocation2] sm:$0xf]
        %v725 = vld [vmem:[#allocation2 + $0x4] sm:$0xf]
        %v726 = vld [vmem:[#allocation2 + $0x8] sm:$0xf]
        %v727 = vld [vmem:[#allocation2 + $0xc] sm:$0xf]
        %v728 = vld [vmem:[%s7] sm:$0x1]
        %v730 = vlaneseq
        %v731 = vshrl.u32 %v730, 7
        %v732 = vsub.s32 0, %v731
        %v733 = vrot.slane %v728, %v732
        %v739 = vunpack.c.l.b16 %v724
        %v740 = vunpack.c.l.b16 %v725
        %v741 = vunpack.c.l.b16 %v726
        %v742 = vunpack.c.l.b16 %v727
        %v743 = vpack.c.b16 %v740, %v739
        %v744 = vpack.c.b16 %v742, %v741
        %747 = vmatprep.subr.bf16.mxu0 0
        %748 = vmatpush1.bf16.msra.mxu0 %v743
        %749 = vmatprep.subr.bf16.mxu0 0
        %750 = vmatpush1.bf16.msra.mxu0 %v744
        %751 = vmatprep.subr.bf16.mxu0 0
        %752 = vmatpush1.bf16.msra.mxu0 0
        %753 = vmatprep.subr.bf16.mxu0 0
        %754 = vmatpush1.bf16.msra.mxu0 0
        %755 = vmatprep.subr.bf16.mxu0 0
        %756 = vmatpush1.bf16.msra.mxu0 0
        %757 = vmatprep.subr.bf16.mxu0 0
        %758 = vmatpush1.bf16.msra.mxu0 0
        %759 = vmatprep.subr.bf16.mxu0 0
        %760 = vmatpush1.bf16.msra.mxu0 0
        %761 = vmatprep.subr.bf16.mxu0 0
        %762 = vmatpush1.bf16.msra.mxu0 0
        %763 = vmatprep.subr.bf16.mxu0 0
        %764 = vmatpush1.bf16.msra.mxu0 0
        %765 = vmatprep.subr.bf16.mxu0 0
        %766 = vmatpush1.bf16.msra.mxu0 0
        %767 = vmatprep.subr.bf16.mxu0 0
        %768 = vmatpush1.bf16.msra.mxu0 0
        %769 = vmatprep.subr.bf16.mxu0 0
        %770 = vmatpush1.bf16.msra.mxu0 0
        %771 = vmatprep.subr.bf16.mxu0 0
        %772 = vmatpush1.bf16.msra.mxu0 0
        %773 = vmatprep.subr.bf16.mxu0 0
        %774 = vmatpush1.bf16.msra.mxu0 0
        %775 = vmatprep.subr.bf16.mxu0 0
        %776 = vmatpush1.bf16.msra.mxu0 0
        %777 = vmatprep.subr.bf16.mxu0 0
        %778 = vmatpush1.bf16.msra.mxu0 0
        %779 = vmatprep.mubr.bf16.mxu0 0
        %780 = vmatmul.mubr.bf16.gmra.mrb[0].mxu0 %v630
        %v781 = vpop.f32.mrb[0].mxu0
        %v782 = vadd.f32 %v733, %v781
        %v783 = vpop.f32.mrb[0].mxu0
        %v784 = vpop.f32.mrb[0].mxu0
        %v785 = vadd.f32 %v733, %v784
        %v786 = vpop.f32.mrb[0].mxu0
        %787 = vmatprep.mubr.bf16.mxu0 0
        %788 = vmatmul.mubr.bf16.gmra.mrb[0].mxu0 %v633
        %v789 = vpop.f32.mrb[0].mxu0
        %v790 = vadd.f32 %v733, %v789
        %v791 = vpop.f32.mrb[0].mxu0
        %v792 = vpop.f32.mrb[0].mxu0
        %v793 = vadd.f32 %v733, %v792
        %v794 = vpop.f32.mrb[0].mxu0
        %795 = vdwg.mxu0
        %v796 = vpack.c.bf16 %v785, %v782
        %v797 = vpack.c.bf16 %v793, %v790
        %v800 = vunpack.c.l.b16 %v796
        %v801 = vunpack.c.h.b16 %v796
        %v802 = vunpack.c.l.b16 %v797
        %v803 = vunpack.c.h.b16 %v797
        %v804 = vpack.c.b16 %v800, %v800
        %v805 = vpack.c.b16 %v801, %v801
        %v806 = vpack.c.b16 %v802, %v802
        %v807 = vpack.c.b16 %v803, %v803
        %808 = vrot.lane.b32.xlu0 %v804, 120
        %v809 = vpop.permute.xlu0 %808
        %810 = vrot.lane.b32.xlu0 %v805, 120
        %v811 = vpop.permute.xlu0 %810
        %812 = vrot.lane.b32.xlu0 %v806, 120
        %v813 = vpop.permute.xlu0 %812
        %814 = vrot.lane.b32.xlu0 %v807, 120
        %v815 = vpop.permute.xlu0 %814
        %816 = vrot.lane.b32.xlu0 %v804, 112
        %v817 = vpop.permute.xlu0 %816
        %818 = vrot.lane.b32.xlu0 %v805, 112
        %v819 = vpop.permute.xlu0 %818
        %820 = vrot.lane.b32.xlu0 %v806, 112
        %v821 = vpop.permute.xlu0 %820
        %822 = vrot.lane.b32.xlu0 %v807, 112
        %v823 = vpop.permute.xlu0 %822
        %824 = vrot.lane.b32.xlu0 %v804, 104
        %v825 = vpop.permute.xlu0 %824
        %826 = vrot.lane.b32.xlu0 %v805, 104
        %v827 = vpop.permute.xlu0 %826
        %828 = vrot.lane.b32.xlu0 %v806, 104
        %v829 = vpop.permute.xlu0 %828
        %830 = vrot.lane.b32.xlu0 %v807, 104
        %v831 = vpop.permute.xlu0 %830
        %v832 = vld [vmem:[#allocation5] sm:$0xf]
        %v833 = vld [vmem:[#allocation5 + $0x4] sm:$0xf]
        %v834 = vld [vmem:[#allocation5 + $0x8] sm:$0xf]
        %v835 = vld [vmem:[#allocation5 + $0xc] sm:$0xf]
        %v836 = vld [vmem:[%s9] sm:$0x1]
        %v838 = vlaneseq
        %v839 = vshrl.u32 %v838, 7
        %v840 = vsub.s32 0, %v839
        %v841 = vrot.slane %v836, %v840
        %v847 = vunpack.c.l.b16 %v832
        %v848 = vunpack.c.l.b16 %v833
        %v849 = vunpack.c.l.b16 %v834
        %v850 = vunpack.c.l.b16 %v835
        %v851 = vpack.c.b16 %v848, %v847
        %v852 = vpack.c.b16 %v850, %v849
        %855 = vmatprep.subr.bf16.mxu0 0
        %856 = vmatpush1.bf16.msra.mxu0 %v851
        %857 = vmatprep.subr.bf16.mxu0 0
        %858 = vmatpush1.bf16.msra.mxu0 %v852
        %859 = vmatprep.subr.bf16.mxu0 0
        %860 = vmatpush1.bf16.msra.mxu0 0
        %861 = vmatprep.subr.bf16.mxu0 0
        %862 = vmatpush1.bf16.msra.mxu0 0
        %863 = vmatprep.subr.bf16.mxu0 0
        %864 = vmatpush1.bf16.msra.mxu0 0
        %865 = vmatprep.subr.bf16.mxu0 0
        %866 = vmatpush1.bf16.msra.mxu0 0
        %867 = vmatprep.subr.bf16.mxu0 0
        %868 = vmatpush1.bf16.msra.mxu0 0
        %869 = vmatprep.subr.bf16.mxu0 0
        %870 = vmatpush1.bf16.msra.mxu0 0
        %871 = vmatprep.subr.bf16.mxu0 0
        %872 = vmatpush1.bf16.msra.mxu0 0
        %873 = vmatprep.subr.bf16.mxu0 0
        %874 = vmatpush1.bf16.msra.mxu0 0
        %875 = vmatprep.subr.bf16.mxu0 0
        %876 = vmatpush1.bf16.msra.mxu0 0
        %877 = vmatprep.subr.bf16.mxu0 0
        %878 = vmatpush1.bf16.msra.mxu0 0
        %879 = vmatprep.subr.bf16.mxu0 0
        %880 = vmatpush1.bf16.msra.mxu0 0
        %881 = vmatprep.subr.bf16.mxu0 0
        %882 = vmatpush1.bf16.msra.mxu0 0
        %883 = vmatprep.subr.bf16.mxu0 0
        %884 = vmatpush1.bf16.msra.mxu0 0
        %885 = vmatprep.subr.bf16.mxu0 0
        %886 = vmatpush1.bf16.msra.mxu0 0
        %887 = vmatprep.mubr.bf16.mxu0 0
        %888 = vmatmul.mubr.bf16.gmra.mrb[0].mxu0 %v630
        %v889 = vpop.f32.mrb[0].mxu0
        %v890 = vadd.f32 %v841, %v889
        %v891 = vpop.f32.mrb[0].mxu0
        %v892 = vpop.f32.mrb[0].mxu0
        %v893 = vadd.f32 %v841, %v892
        %v894 = vpop.f32.mrb[0].mxu0
        %895 = vmatprep.mubr.bf16.mxu0 0
        %896 = vmatmul.mubr.bf16.gmra.mrb[0].mxu0 %v633
        %v897 = vpop.f32.mrb[0].mxu0
        %v898 = vadd.f32 %v841, %v897
        %v899 = vpop.f32.mrb[0].mxu0
        %v900 = vpop.f32.mrb[0].mxu0
        %v901 = vadd.f32 %v841, %v900
        %v902 = vpop.f32.mrb[0].mxu0
        %903 = vdwg.mxu0
        %v904 = vpack.c.bf16 %v893, %v890
        %v905 = vpack.c.bf16 %v901, %v898
        %v908 = vunpack.c.l.b16 %v904
        %v909 = vunpack.c.h.b16 %v904
        %v910 = vunpack.c.l.b16 %v905
        %v911 = vunpack.c.h.b16 %v905
        %v912 = vpack.c.b16 %v908, %v908
        %v913 = vpack.c.b16 %v909, %v909
        %v914 = vpack.c.b16 %v910, %v910
        %v915 = vpack.c.b16 %v911, %v911
        %916 = vrot.lane.b32.xlu0 %v912, 120
        %v917 = vpop.permute.xlu0 %916
        %918 = vrot.lane.b32.xlu0 %v913, 120
        %v919 = vpop.permute.xlu0 %918
        %920 = vrot.lane.b32.xlu0 %v914, 120
        %v921 = vpop.permute.xlu0 %920
        %922 = vrot.lane.b32.xlu0 %v915, 120
        %v923 = vpop.permute.xlu0 %922
        %924 = vrot.lane.b32.xlu0 %v912, 112
        %v925 = vpop.permute.xlu0 %924
        %926 = vrot.lane.b32.xlu0 %v913, 112
        %v927 = vpop.permute.xlu0 %926
        %928 = vrot.lane.b32.xlu0 %v914, 112
        %v929 = vpop.permute.xlu0 %928
        %930 = vrot.lane.b32.xlu0 %v915, 112
        %v931 = vpop.permute.xlu0 %930
        %932 = vrot.lane.b32.xlu0 %v912, 104
        %v933 = vpop.permute.xlu0 %932
        %934 = vrot.lane.b32.xlu0 %v913, 104
        %v935 = vpop.permute.xlu0 %934
        %936 = vrot.lane.b32.xlu0 %v914, 104
        %v937 = vpop.permute.xlu0 %936
        %938 = vrot.lane.b32.xlu0 %v915, 104
        %v939 = vpop.permute.xlu0 %938
        %vm940 = vcmask 64512
        %v942 = vsel %vm940, %v696, 0
        %v945 = vsel %vm940, %v804, 0
        %947 = vmatprep.subr.bf16.mxu0 0
        %948 = vmatpush1.bf16.xpose.msra.mxu0 %v945
        %949 = vmatprep.subr.bf16.mxu0 0
        %950 = vmatpush1.bf16.xpose.msra.mxu0 0
        %951 = vmatprep.subr.bf16.mxu0 0
        %952 = vmatpush1.bf16.xpose.msra.mxu0 0
        %953 = vmatprep.subr.bf16.mxu0 0
        %954 = vmatpush1.bf16.xpose.msra.mxu0 0
        %955 = vmatprep.subr.bf16.mxu0 0
        %956 = vmatpush1.bf16.xpose.msra.mxu0 0
        %957 = vmatprep.subr.bf16.mxu0 0
        %958 = vmatpush1.bf16.xpose.msra.mxu0 0
        %959 = vmatprep.subr.bf16.mxu0 0
        %960 = vmatpush1.bf16.xpose.msra.mxu0 0
        %961 = vmatprep.subr.bf16.mxu0 0
        %962 = vmatpush1.bf16.xpose.msra.mxu0 0
        %963 = vmatprep.subr.bf16.mxu0 0
        %964 = vmatpush1.bf16.xpose.msra.mxu0 0
        %965 = vmatprep.subr.bf16.mxu0 0
        %966 = vmatpush1.bf16.xpose.msra.mxu0 0
        %967 = vmatprep.subr.bf16.mxu0 0
        %968 = vmatpush1.bf16.xpose.msra.mxu0 0
        %969 = vmatprep.subr.bf16.mxu0 0
        %970 = vmatpush1.bf16.xpose.msra.mxu0 0
        %971 = vmatprep.subr.bf16.mxu0 0
        %972 = vmatpush1.bf16.xpose.msra.mxu0 0
        %973 = vmatprep.subr.bf16.mxu0 0
        %974 = vmatpush1.bf16.xpose.msra.mxu0 0
        %975 = vmatprep.subr.bf16.mxu0 0
        %976 = vmatpush1.bf16.xpose.msra.mxu0 0
        %977 = vmatprep.subr.bf16.mxu0 0
        %978 = vmatpush1.bf16.xpose.msra.mxu0 0
        %979 = vmatprep.mubr.bf16.mxu0 0
        %980 = vmatmul.mubr.bf16.gmra.mrb[0].mxu0 %v942
        %v981 = vpop.f32.mrb[0].mxu0
        %v982 = vadd.f32 0.0, %v981
        %v983 = vpop.f32.mrb[0].mxu0
        %v984 = vpop.f32.mrb[0].mxu0
        %v985 = vpop.f32.mrb[0].mxu0
        %986 = vdwg.mxu0
        %v988 = vsel %vm940, %v701, 0
        %v991 = vsel %vm940, %v809, 0
        %993 = vmatprep.subr.bf16.mxu0 0
        %994 = vmatpush1.bf16.xpose.msra.mxu0 %v991
        %995 = vmatprep.subr.bf16.mxu0 0
        %996 = vmatpush1.bf16.xpose.msra.mxu0 0
        %997 = vmatprep.subr.bf16.mxu0 0
        %998 = vmatpush1.bf16.xpose.msra.mxu0 0
        %999 = vmatprep.subr.bf16.mxu0 0
        %1000 = vmatpush1.bf16.xpose.msra.mxu0 0
        %1001 = vmatprep.subr.bf16.mxu0 0
        %1002 = vmatpush1.bf16.xpose.msra.mxu0 0
        %1003 = vmatprep.subr.bf16.mxu0 0
        %1004 = vmatpush1.bf16.xpose.msra.mxu0 0
        %1005 = vmatprep.subr.bf16.mxu0 0
        %1006 = vmatpush1.bf16.xpose.msra.mxu0 0
        %1007 = vmatprep.subr.bf16.mxu0 0
        %1008 = vmatpush1.bf16.xpose.msra.mxu0 0
        %1009 = vmatprep.subr.bf16.mxu0 0
        %1010 = vmatpush1.bf16.xpose.msra.mxu0 0
        %1011 = vmatprep.subr.bf16.mxu0 0
        %1012 = vmatpush1.bf16.xpose.msra.mxu0 0
        %1013 = vmatprep.subr.bf16.mxu0 0
        %1014 = vmatpush1.bf16.xpose.msra.mxu0 0
        %1015 = vmatprep.subr.bf16.mxu0 0
        %1016 = vmatpush1.bf16.xpose.msra.mxu0 0
        %1017 = vmatprep.subr.bf16.mxu0 0
        %1018 = vmatpush1.bf16.xpose.msra.mxu0 0
        %1019 = vmatprep.subr.bf16.mxu0 0
        %1020 = vmatpush1.bf16.xpose.msra.mxu0 0
        %1021 = vmatprep.subr.bf16.mxu0 0
        %1022 = vmatpush1.bf16.xpose.msra.mxu0 0
        %1023 = vmatprep.subr.bf16.mxu0 0
        %1024 = vmatpush1.bf16.xpose.msra.mxu0 0
        %1025 = vmatprep.mubr.bf16.mxu0 0
        %1026 = vmatmul.mubr.bf16.gmra.mrb[0].mxu0 %v988
        %v1027 = vpop.f32.mrb[0].mxu0
        %v1028 = vadd.f32 0.0, %v1027
        %v1029 = vpop.f32.mrb[0].mxu0
        %v1030 = vpop.f32.mrb[0].mxu0
        %v1031 = vpop.f32.mrb[0].mxu0
        %1032 = vdwg.mxu0
        %v1034 = vsel %vm940, %v709, 0
        %v1037 = vsel %vm940, %v817, 0
        %1039 = vmatprep.subr.bf16.mxu0 0
        %1040 = vmatpush1.bf16.xpose.msra.mxu0 %v1037
        %1041 = vmatprep.subr.bf16.mxu0 0
        %1042 = vmatpush1.bf16.xpose.msra.mxu0 0
        %1043 = vmatprep.subr.bf16.mxu0 0
        %1044 = vmatpush1.bf16.xpose.msra.mxu0 0
        %1045 = vmatprep.subr.bf16.mxu0 0
        %1046 = vmatpush1.bf16.xpose.msra.mxu0 0
        %1047 = vmatprep.subr.bf16.mxu0 0
        %1048 = vmatpush1.bf16.xpose.msra.mxu0 0
        %1049 = vmatprep.subr.bf16.mxu0 0
        %1050 = vmatpush1.bf16.xpose.msra.mxu0 0
        %1051 = vmatprep.subr.bf16.mxu0 0
        %1052 = vmatpush1.bf16.xpose.msra.mxu0 0
        %1053 = vmatprep.subr.bf16.mxu0 0
        %1054 = vmatpush1.bf16.xpose.msra.mxu0 0
        %1055 = vmatprep.subr.bf16.mxu0 0
        %1056 = vmatpush1.bf16.xpose.msra.mxu0 0
        %1057 = vmatprep.subr.bf16.mxu0 0
        %1058 = vmatpush1.bf16.xpose.msra.mxu0 0
        %1059 = vmatprep.subr.bf16.mxu0 0
        %1060 = vmatpush1.bf16.xpose.msra.mxu0 0
        %1061 = vmatprep.subr.bf16.mxu0 0
        %1062 = vmatpush1.bf16.xpose.msra.mxu0 0
        %1063 = vmatprep.subr.bf16.mxu0 0
        %1064 = vmatpush1.bf16.xpose.msra.mxu0 0
        %1065 = vmatprep.subr.bf16.mxu0 0
        %1066 = vmatpush1.bf16.xpose.msra.mxu0 0
        %1067 = vmatprep.subr.bf16.mxu0 0
        %1068 = vmatpush1.bf16.xpose.msra.mxu0 0
        %1069 = vmatprep.subr.bf16.mxu0 0
        %1070 = vmatpush1.bf16.xpose.msra.mxu0 0
        %1071 = vmatprep.mubr.bf16.mxu0 0
        %1072 = vmatmul.mubr.bf16.gmra.mrb[0].mxu0 %v1034
        %v1073 = vpop.f32.mrb[0].mxu0
        %v1074 = vadd.f32 0.0, %v1073
        %v1075 = vpop.f32.mrb[0].mxu0
        %v1076 = vpop.f32.mrb[0].mxu0
        %v1077 = vpop.f32.mrb[0].mxu0
        %1078 = vdwg.mxu0
        %v1080 = vsel %vm940, %v717, 0
        %v1083 = vsel %vm940, %v825, 0
        %1085 = vmatprep.subr.bf16.mxu0 0
        %1086 = vmatpush1.bf16.xpose.msra.mxu0 %v1083
        %1087 = vmatprep.subr.bf16.mxu0 0
        %1088 = vmatpush1.bf16.xpose.msra.mxu0 0
        %1089 = vmatprep.subr.bf16.mxu0 0
        %1090 = vmatpush1.bf16.xpose.msra.mxu0 0
        %1091 = vmatprep.subr.bf16.mxu0 0
        %1092 = vmatpush1.bf16.xpose.msra.mxu0 0
        %1093 = vmatprep.subr.bf16.mxu0 0
        %1094 = vmatpush1.bf16.xpose.msra.mxu0 0
        %1095 = vmatprep.subr.bf16.mxu0 0
        %1096 = vmatpush1.bf16.xpose.msra.mxu0 0
        %1097 = vmatprep.subr.bf16.mxu0 0
        %1098 = vmatpush1.bf16.xpose.msra.mxu0 0
        %1099 = vmatprep.subr.bf16.mxu0 0
        %1100 = vmatpush1.bf16.xpose.msra.mxu0 0
        %1101 = vmatprep.subr.bf16.mxu0 0
        %1102 = vmatpush1.bf16.xpose.msra.mxu0 0
        %1103 = vmatprep.subr.bf16.mxu0 0
        %1104 = vmatpush1.bf16.xpose.msra.mxu0 0
        %1105 = vmatprep.subr.bf16.mxu0 0
        %1106 = vmatpush1.bf16.xpose.msra.mxu0 0
        %1107 = vmatprep.subr.bf16.mxu0 0
        %1108 = vmatpush1.bf16.xpose.msra.mxu0 0
        %1109 = vmatprep.subr.bf16.mxu0 0
        %1110 = vmatpush1.bf16.xpose.msra.mxu0 0
        %1111 = vmatprep.subr.bf16.mxu0 0
        %1112 = vmatpush1.bf16.xpose.msra.mxu0 0
        %1113 = vmatprep.subr.bf16.mxu0 0
        %1114 = vmatpush1.bf16.xpose.msra.mxu0 0
        %1115 = vmatprep.subr.bf16.mxu0 0
        %1116 = vmatpush1.bf16.xpose.msra.mxu0 0
        %1117 = vmatprep.mubr.bf16.mxu0 0
        %1118 = vmatmul.mubr.bf16.gmra.mrb[0].mxu0 %v1080
        %v1119 = vpop.f32.mrb[0].mxu0
        %v1120 = vadd.f32 0.0, %v1119
        %v1121 = vpop.f32.mrb[0].mxu0
        %v1122 = vpop.f32.mrb[0].mxu0
        %v1123 = vpop.f32.mrb[0].mxu0
        %1124 = vdwg.mxu0
        %v1126 = vsel %vm940, %v697, 0
        %v1129 = vsel %vm940, %v805, 0
        %1131 = vmatprep.subr.bf16.mxu0 0
        %1132 = vmatpush1.bf16.xpose.msra.mxu0 %v1129
        %1133 = vmatprep.subr.bf16.mxu0 0
        %1134 = vmatpush1.bf16.xpose.msra.mxu0 0
        %1135 = vmatprep.subr.bf16.mxu0 0
        %1136 = vmatpush1.bf16.xpose.msra.mxu0 0
        %1137 = vmatprep.subr.bf16.mxu0 0
        %1138 = vmatpush1.bf16.xpose.msra.mxu0 0
        %1139 = vmatprep.subr.bf16.mxu0 0
        %1140 = vmatpush1.bf16.xpose.msra.mxu0 0
        %1141 = vmatprep.subr.bf16.mxu0 0
        %1142 = vmatpush1.bf16.xpose.msra.mxu0 0
        %1143 = vmatprep.subr.bf16.mxu0 0
        %1144 = vmatpush1.bf16.xpose.msra.mxu0 0
        %1145 = vmatprep.subr.bf16.mxu0 0
        %1146 = vmatpush1.bf16.xpose.msra.mxu0 0
        %1147 = vmatprep.subr.bf16.mxu0 0
        %1148 = vmatpush1.bf16.xpose.msra.mxu0 0
        %1149 = vmatprep.subr.bf16.mxu0 0
        %1150 = vmatpush1.bf16.xpose.msra.mxu0 0
        %1151 = vmatprep.subr.bf16.mxu0 0
        %1152 = vmatpush1.bf16.xpose.msra.mxu0 0
        %1153 = vmatprep.subr.bf16.mxu0 0
        %1154 = vmatpush1.bf16.xpose.msra.mxu0 0
        %1155 = vmatprep.subr.bf16.mxu0 0
        %1156 = vmatpush1.bf16.xpose.msra.mxu0 0
        %1157 = vmatprep.subr.bf16.mxu0 0
        %1158 = vmatpush1.bf16.xpose.msra.mxu0 0
        %1159 = vmatprep.subr.bf16.mxu0 0
        %1160 = vmatpush1.bf16.xpose.msra.mxu0 0
        %1161 = vmatprep.subr.bf16.mxu0 0
        %1162 = vmatpush1.bf16.xpose.msra.mxu0 0
        %1163 = vmatprep.mubr.bf16.mxu0 0
        %1164 = vmatmul.mubr.bf16.gmra.mrb[0].mxu0 %v1126
        %v1165 = vpop.f32.mrb[0].mxu0
        %v1166 = vadd.f32 0.0, %v1165
        %v1167 = vpop.f32.mrb[0].mxu0
        %v1168 = vpop.f32.mrb[0].mxu0
        %v1169 = vpop.f32.mrb[0].mxu0
        %1170 = vdwg.mxu0
        %v1172 = vsel %vm940, %v703, 0
        %v1175 = vsel %vm940, %v811, 0
        %1177 = vmatprep.subr.bf16.mxu0 0
        %1178 = vmatpush1.bf16.xpose.msra.mxu0 %v1175
        %1179 = vmatprep.subr.bf16.mxu0 0
        %1180 = vmatpush1.bf16.xpose.msra.mxu0 0
        %1181 = vmatprep.subr.bf16.mxu0 0
        %1182 = vmatpush1.bf16.xpose.msra.mxu0 0
        %1183 = vmatprep.subr.bf16.mxu0 0
        %1184 = vmatpush1.bf16.xpose.msra.mxu0 0
        %1185 = vmatprep.subr.bf16.mxu0 0
        %1186 = vmatpush1.bf16.xpose.msra.mxu0 0
        %1187 = vmatprep.subr.bf16.mxu0 0
        %1188 = vmatpush1.bf16.xpose.msra.mxu0 0
        %1189 = vmatprep.subr.bf16.mxu0 0
        %1190 = vmatpush1.bf16.xpose.msra.mxu0 0
        %1191 = vmatprep.subr.bf16.mxu0 0
        %1192 = vmatpush1.bf16.xpose.msra.mxu0 0
        %1193 = vmatprep.subr.bf16.mxu0 0
        %1194 = vmatpush1.bf16.xpose.msra.mxu0 0
        %1195 = vmatprep.subr.bf16.mxu0 0
        %1196 = vmatpush1.bf16.xpose.msra.mxu0 0
        %1197 = vmatprep.subr.bf16.mxu0 0
        %1198 = vmatpush1.bf16.xpose.msra.mxu0 0
        %1199 = vmatprep.subr.bf16.mxu0 0
        %1200 = vmatpush1.bf16.xpose.msra.mxu0 0
        %1201 = vmatprep.subr.bf16.mxu0 0
        %1202 = vmatpush1.bf16.xpose.msra.mxu0 0
        %1203 = vmatprep.subr.bf16.mxu0 0
        %1204 = vmatpush1.bf16.xpose.msra.mxu0 0
        %1205 = vmatprep.subr.bf16.mxu0 0
        %1206 = vmatpush1.bf16.xpose.msra.mxu0 0
        %1207 = vmatprep.subr.bf16.mxu0 0
        %1208 = vmatpush1.bf16.xpose.msra.mxu0 0
        %1209 = vmatprep.mubr.bf16.mxu0 0
        %1210 = vmatmul.mubr.bf16.gmra.mrb[0].mxu0 %v1172
        %v1211 = vpop.f32.mrb[0].mxu0
        %v1212 = vadd.f32 0.0, %v1211
        %v1213 = vpop.f32.mrb[0].mxu0
        %v1214 = vpop.f32.mrb[0].mxu0
        %v1215 = vpop.f32.mrb[0].mxu0
        %1216 = vdwg.mxu0
        %v1218 = vsel %vm940, %v711, 0
        %v1221 = vsel %vm940, %v819, 0
        %1223 = vmatprep.subr.bf16.mxu0 0
        %1224 = vmatpush1.bf16.xpose.msra.mxu0 %v1221
        %1225 = vmatprep.subr.bf16.mxu0 0
        %1226 = vmatpush1.bf16.xpose.msra.mxu0 0
        %1227 = vmatprep.subr.bf16.mxu0 0
        %1228 = vmatpush1.bf16.xpose.msra.mxu0 0
        %1229 = vmatprep.subr.bf16.mxu0 0
        %1230 = vmatpush1.bf16.xpose.msra.mxu0 0
        %1231 = vmatprep.subr.bf16.mxu0 0
        %1232 = vmatpush1.bf16.xpose.msra.mxu0 0
        %1233 = vmatprep.subr.bf16.mxu0 0
        %1234 = vmatpush1.bf16.xpose.msra.mxu0 0
        %1235 = vmatprep.subr.bf16.mxu0 0
        %1236 = vmatpush1.bf16.xpose.msra.mxu0 0
        %1237 = vmatprep.subr.bf16.mxu0 0
        %1238 = vmatpush1.bf16.xpose.msra.mxu0 0
        %1239 = vmatprep.subr.bf16.mxu0 0
        %1240 = vmatpush1.bf16.xpose.msra.mxu0 0
        %1241 = vmatprep.subr.bf16.mxu0 0
        %1242 = vmatpush1.bf16.xpose.msra.mxu0 0
        %1243 = vmatprep.subr.bf16.mxu0 0
        %1244 = vmatpush1.bf16.xpose.msra.mxu0 0
        %1245 = vmatprep.subr.bf16.mxu0 0
        %1246 = vmatpush1.bf16.xpose.msra.mxu0 0
        %1247 = vmatprep.subr.bf16.mxu0 0
        %1248 = vmatpush1.bf16.xpose.msra.mxu0 0
        %1249 = vmatprep.subr.bf16.mxu0 0
        %1250 = vmatpush1.bf16.xpose.msra.mxu0 0
        %1251 = vmatprep.subr.bf16.mxu0 0
        %1252 = vmatpush1.bf16.xpose.msra.mxu0 0
        %1253 = vmatprep.subr.bf16.mxu0 0
        %1254 = vmatpush1.bf16.xpose.msra.mxu0 0
        %1255 = vmatprep.mubr.bf16.mxu0 0
        %1256 = vmatmul.mubr.bf16.gmra.mrb[0].mxu0 %v1218
        %v1257 = vpop.f32.mrb[0].mxu0
        %v1258 = vadd.f32 0.0, %v1257
        %v1259 = vpop.f32.mrb[0].mxu0
        %v1260 = vpop.f32.mrb[0].mxu0
        %v1261 = vpop.f32.mrb[0].mxu0
        %1262 = vdwg.mxu0
        %v1264 = vsel %vm940, %v719, 0
        %v1267 = vsel %vm940, %v827, 0
        %1269 = vmatprep.subr.bf16.mxu0 0
        %1270 = vmatpush1.bf16.xpose.msra.mxu0 %v1267
        %1271 = vmatprep.subr.bf16.mxu0 0
        %1272 = vmatpush1.bf16.xpose.msra.mxu0 0
        %1273 = vmatprep.subr.bf16.mxu0 0
        %1274 = vmatpush1.bf16.xpose.msra.mxu0 0
        %1275 = vmatprep.subr.bf16.mxu0 0
        %1276 = vmatpush1.bf16.xpose.msra.mxu0 0
        %1277 = vmatprep.subr.bf16.mxu0 0
        %1278 = vmatpush1.bf16.xpose.msra.mxu0 0
        %1279 = vmatprep.subr.bf16.mxu0 0
        %1280 = vmatpush1.bf16.xpose.msra.mxu0 0
        %1281 = vmatprep.subr.bf16.mxu0 0
        %1282 = vmatpush1.bf16.xpose.msra.mxu0 0
        %1283 = vmatprep.subr.bf16.mxu0 0
        %1284 = vmatpush1.bf16.xpose.msra.mxu0 0
        %1285 = vmatprep.subr.bf16.mxu0 0
        %1286 = vmatpush1.bf16.xpose.msra.mxu0 0
        %1287 = vmatprep.subr.bf16.mxu0 0
        %1288 = vmatpush1.bf16.xpose.msra.mxu0 0
        %1289 = vmatprep.subr.bf16.mxu0 0
        %1290 = vmatpush1.bf16.xpose.msra.mxu0 0
        %1291 = vmatprep.subr.bf16.mxu0 0
        %1292 = vmatpush1.bf16.xpose.msra.mxu0 0
        %1293 = vmatprep.subr.bf16.mxu0 0
        %1294 = vmatpush1.bf16.xpose.msra.mxu0 0
        %1295 = vmatprep.subr.bf16.mxu0 0
        %1296 = vmatpush1.bf16.xpose.msra.mxu0 0
        %1297 = vmatprep.subr.bf16.mxu0 0
        %1298 = vmatpush1.bf16.xpose.msra.mxu0 0
        %1299 = vmatprep.subr.bf16.mxu0 0
        %1300 = vmatpush1.bf16.xpose.msra.mxu0 0
        %1301 = vmatprep.mubr.bf16.mxu0 0
        %1302 = vmatmul.mubr.bf16.gmra.mrb[0].mxu0 %v1264
        %v1303 = vpop.f32.mrb[0].mxu0
        %v1304 = vadd.f32 0.0, %v1303
        %v1305 = vpop.f32.mrb[0].mxu0
        %v1306 = vpop.f32.mrb[0].mxu0
        %v1307 = vpop.f32.mrb[0].mxu0
        %1308 = vdwg.mxu0
        %v1310 = vsel %vm940, %v698, 0
        %v1313 = vsel %vm940, %v806, 0
        %1315 = vmatprep.subr.bf16.mxu0 0
        %1316 = vmatpush1.bf16.xpose.msra.mxu0 %v1313
        %1317 = vmatprep.subr.bf16.mxu0 0
        %1318 = vmatpush1.bf16.xpose.msra.mxu0 0
        %1319 = vmatprep.subr.bf16.mxu0 0
        %1320 = vmatpush1.bf16.xpose.msra.mxu0 0
        %1321 = vmatprep.subr.bf16.mxu0 0
        %1322 = vmatpush1.bf16.xpose.msra.mxu0 0
        %1323 = vmatprep.subr.bf16.mxu0 0
        %1324 = vmatpush1.bf16.xpose.msra.mxu0 0
        %1325 = vmatprep.subr.bf16.mxu0 0
        %1326 = vmatpush1.bf16.xpose.msra.mxu0 0
        %1327 = vmatprep.subr.bf16.mxu0 0
        %1328 = vmatpush1.bf16.xpose.msra.mxu0 0
        %1329 = vmatprep.subr.bf16.mxu0 0
        %1330 = vmatpush1.bf16.xpose.msra.mxu0 0
        %1331 = vmatprep.subr.bf16.mxu0 0
        %1332 = vmatpush1.bf16.xpose.msra.mxu0 0
        %1333 = vmatprep.subr.bf16.mxu0 0
        %1334 = vmatpush1.bf16.xpose.msra.mxu0 0
        %1335 = vmatprep.subr.bf16.mxu0 0
        %1336 = vmatpush1.bf16.xpose.msra.mxu0 0
        %1337 = vmatprep.subr.bf16.mxu0 0
        %1338 = vmatpush1.bf16.xpose.msra.mxu0 0
        %1339 = vmatprep.subr.bf16.mxu0 0
        %1340 = vmatpush1.bf16.xpose.msra.mxu0 0
        %1341 = vmatprep.subr.bf16.mxu0 0
        %1342 = vmatpush1.bf16.xpose.msra.mxu0 0
        %1343 = vmatprep.subr.bf16.mxu0 0
        %1344 = vmatpush1.bf16.xpose.msra.mxu0 0
        %1345 = vmatprep.subr.bf16.mxu0 0
        %1346 = vmatpush1.bf16.xpose.msra.mxu0 0
        %1347 = vmatprep.mubr.bf16.mxu0 0
        %1348 = vmatmul.mubr.bf16.gmra.mrb[0].mxu0 %v1310
        %v1349 = vpop.f32.mrb[0].mxu0
        %v1350 = vadd.f32 0.0, %v1349
        %v1351 = vpop.f32.mrb[0].mxu0
        %v1352 = vpop.f32.mrb[0].mxu0
        %v1353 = vpop.f32.mrb[0].mxu0
        %1354 = vdwg.mxu0
        %v1356 = vsel %vm940, %v705, 0
        %v1359 = vsel %vm940, %v813, 0
        %1361 = vmatprep.subr.bf16.mxu0 0
        %1362 = vmatpush1.bf16.xpose.msra.mxu0 %v1359
        %1363 = vmatprep.subr.bf16.mxu0 0
        %1364 = vmatpush1.bf16.xpose.msra.mxu0 0
        %1365 = vmatprep.subr.bf16.mxu0 0
        %1366 = vmatpush1.bf16.xpose.msra.mxu0 0
        %1367 = vmatprep.subr.bf16.mxu0 0
        %1368 = vmatpush1.bf16.xpose.msra.mxu0 0
        %1369 = vmatprep.subr.bf16.mxu0 0
        %1370 = vmatpush1.bf16.xpose.msra.mxu0 0
        %1371 = vmatprep.subr.bf16.mxu0 0
        %1372 = vmatpush1.bf16.xpose.msra.mxu0 0
        %1373 = vmatprep.subr.bf16.mxu0 0
        %1374 = vmatpush1.bf16.xpose.msra.mxu0 0
        %1375 = vmatprep.subr.bf16.mxu0 0
        %1376 = vmatpush1.bf16.xpose.msra.mxu0 0
        %1377 = vmatprep.subr.bf16.mxu0 0
        %1378 = vmatpush1.bf16.xpose.msra.mxu0 0
        %1379 = vmatprep.subr.bf16.mxu0 0
        %1380 = vmatpush1.bf16.xpose.msra.mxu0 0
        %1381 = vmatprep.subr.bf16.mxu0 0
        %1382 = vmatpush1.bf16.xpose.msra.mxu0 0
        %1383 = vmatprep.subr.bf16.mxu0 0
        %1384 = vmatpush1.bf16.xpose.msra.mxu0 0
        %1385 = vmatprep.subr.bf16.mxu0 0
        %1386 = vmatpush1.bf16.xpose.msra.mxu0 0
        %1387 = vmatprep.subr.bf16.mxu0 0
        %1388 = vmatpush1.bf16.xpose.msra.mxu0 0
        %1389 = vmatprep.subr.bf16.mxu0 0
        %1390 = vmatpush1.bf16.xpose.msra.mxu0 0
        %1391 = vmatprep.subr.bf16.mxu0 0
        %1392 = vmatpush1.bf16.xpose.msra.mxu0 0
        %1393 = vmatprep.mubr.bf16.mxu0 0
        %1394 = vmatmul.mubr.bf16.gmra.mrb[0].mxu0 %v1356
        %v1395 = vpop.f32.mrb[0].mxu0
        %v1396 = vadd.f32 0.0, %v1395
        %v1397 = vpop.f32.mrb[0].mxu0
        %v1398 = vpop.f32.mrb[0].mxu0
        %v1399 = vpop.f32.mrb[0].mxu0
        %1400 = vdwg.mxu0
        %v1402 = vsel %vm940, %v713, 0
        %v1405 = vsel %vm940, %v821, 0
        %1407 = vmatprep.subr.bf16.mxu0 0
        %1408 = vmatpush1.bf16.xpose.msra.mxu0 %v1405
        %1409 = vmatprep.subr.bf16.mxu0 0
        %1410 = vmatpush1.bf16.xpose.msra.mxu0 0
        %1411 = vmatprep.subr.bf16.mxu0 0
        %1412 = vmatpush1.bf16.xpose.msra.mxu0 0
        %1413 = vmatprep.subr.bf16.mxu0 0
        %1414 = vmatpush1.bf16.xpose.msra.mxu0 0
        %1415 = vmatprep.subr.bf16.mxu0 0
        %1416 = vmatpush1.bf16.xpose.msra.mxu0 0
        %1417 = vmatprep.subr.bf16.mxu0 0
        %1418 = vmatpush1.bf16.xpose.msra.mxu0 0
        %1419 = vmatprep.subr.bf16.mxu0 0
        %1420 = vmatpush1.bf16.xpose.msra.mxu0 0
        %1421 = vmatprep.subr.bf16.mxu0 0
        %1422 = vmatpush1.bf16.xpose.msra.mxu0 0
        %1423 = vmatprep.subr.bf16.mxu0 0
        %1424 = vmatpush1.bf16.xpose.msra.mxu0 0
        %1425 = vmatprep.subr.bf16.mxu0 0
        %1426 = vmatpush1.bf16.xpose.msra.mxu0 0
        %1427 = vmatprep.subr.bf16.mxu0 0
        %1428 = vmatpush1.bf16.xpose.msra.mxu0 0
        %1429 = vmatprep.subr.bf16.mxu0 0
        %1430 = vmatpush1.bf16.xpose.msra.mxu0 0
        %1431 = vmatprep.subr.bf16.mxu0 0
        %1432 = vmatpush1.bf16.xpose.msra.mxu0 0
        %1433 = vmatprep.subr.bf16.mxu0 0
        %1434 = vmatpush1.bf16.xpose.msra.mxu0 0
        %1435 = vmatprep.subr.bf16.mxu0 0
        %1436 = vmatpush1.bf16.xpose.msra.mxu0 0
        %1437 = vmatprep.subr.bf16.mxu0 0
        %1438 = vmatpush1.bf16.xpose.msra.mxu0 0
        %1439 = vmatprep.mubr.bf16.mxu0 0
        %1440 = vmatmul.mubr.bf16.gmra.mrb[0].mxu0 %v1402
        %v1441 = vpop.f32.mrb[0].mxu0
        %v1442 = vadd.f32 0.0, %v1441
        %v1443 = vpop.f32.mrb[0].mxu0
        %v1444 = vpop.f32.mrb[0].mxu0
        %v1445 = vpop.f32.mrb[0].mxu0
        %1446 = vdwg.mxu0
        %v1448 = vsel %vm940, %v721, 0
        %v1451 = vsel %vm940, %v829, 0
        %1453 = vmatprep.subr.bf16.mxu0 0
        %1454 = vmatpush1.bf16.xpose.msra.mxu0 %v1451
        %1455 = vmatprep.subr.bf16.mxu0 0
        %1456 = vmatpush1.bf16.xpose.msra.mxu0 0
        %1457 = vmatprep.subr.bf16.mxu0 0
        %1458 = vmatpush1.bf16.xpose.msra.mxu0 0
        %1459 = vmatprep.subr.bf16.mxu0 0
        %1460 = vmatpush1.bf16.xpose.msra.mxu0 0
        %1461 = vmatprep.subr.bf16.mxu0 0
        %1462 = vmatpush1.bf16.xpose.msra.mxu0 0
        %1463 = vmatprep.subr.bf16.mxu0 0
        %1464 = vmatpush1.bf16.xpose.msra.mxu0 0
        %1465 = vmatprep.subr.bf16.mxu0 0
        %1466 = vmatpush1.bf16.xpose.msra.mxu0 0
        %1467 = vmatprep.subr.bf16.mxu0 0
        %1468 = vmatpush1.bf16.xpose.msra.mxu0 0
        %1469 = vmatprep.subr.bf16.mxu0 0
        %1470 = vmatpush1.bf16.xpose.msra.mxu0 0
        %1471 = vmatprep.subr.bf16.mxu0 0
        %1472 = vmatpush1.bf16.xpose.msra.mxu0 0
        %1473 = vmatprep.subr.bf16.mxu0 0
        %1474 = vmatpush1.bf16.xpose.msra.mxu0 0
        %1475 = vmatprep.subr.bf16.mxu0 0
        %1476 = vmatpush1.bf16.xpose.msra.mxu0 0
        %1477 = vmatprep.subr.bf16.mxu0 0
        %1478 = vmatpush1.bf16.xpose.msra.mxu0 0
        %1479 = vmatprep.subr.bf16.mxu0 0
        %1480 = vmatpush1.bf16.xpose.msra.mxu0 0
        %1481 = vmatprep.subr.bf16.mxu0 0
        %1482 = vmatpush1.bf16.xpose.msra.mxu0 0
        %1483 = vmatprep.subr.bf16.mxu0 0
        %1484 = vmatpush1.bf16.xpose.msra.mxu0 0
        %1485 = vmatprep.mubr.bf16.mxu0 0
        %1486 = vmatmul.mubr.bf16.gmra.mrb[0].mxu0 %v1448
        %v1487 = vpop.f32.mrb[0].mxu0
        %v1488 = vadd.f32 0.0, %v1487
        %v1489 = vpop.f32.mrb[0].mxu0
        %v1490 = vpop.f32.mrb[0].mxu0
        %v1491 = vpop.f32.mrb[0].mxu0
        %1492 = vdwg.mxu0
        %v1494 = vsel %vm940, %v699, 0
        %v1497 = vsel %vm940, %v807, 0
        %1499 = vmatprep.subr.bf16.mxu0 0
        %1500 = vmatpush1.bf16.xpose.msra.mxu0 %v1497
        %1501 = vmatprep.subr.bf16.mxu0 0
        %1502 = vmatpush1.bf16.xpose.msra.mxu0 0
        %1503 = vmatprep.subr.bf16.mxu0 0
        %1504 = vmatpush1.bf16.xpose.msra.mxu0 0
        %1505 = vmatprep.subr.bf16.mxu0 0
        %1506 = vmatpush1.bf16.xpose.msra.mxu0 0
        %1507 = vmatprep.subr.bf16.mxu0 0
        %1508 = vmatpush1.bf16.xpose.msra.mxu0 0
        %1509 = vmatprep.subr.bf16.mxu0 0
        %1510 = vmatpush1.bf16.xpose.msra.mxu0 0
        %1511 = vmatprep.subr.bf16.mxu0 0
        %1512 = vmatpush1.bf16.xpose.msra.mxu0 0
        %1513 = vmatprep.subr.bf16.mxu0 0
        %1514 = vmatpush1.bf16.xpose.msra.mxu0 0
        %1515 = vmatprep.subr.bf16.mxu0 0
        %1516 = vmatpush1.bf16.xpose.msra.mxu0 0
        %1517 = vmatprep.subr.bf16.mxu0 0
        %1518 = vmatpush1.bf16.xpose.msra.mxu0 0
        %1519 = vmatprep.subr.bf16.mxu0 0
        %1520 = vmatpush1.bf16.xpose.msra.mxu0 0
        %1521 = vmatprep.subr.bf16.mxu0 0
        %1522 = vmatpush1.bf16.xpose.msra.mxu0 0
        %1523 = vmatprep.subr.bf16.mxu0 0
        %1524 = vmatpush1.bf16.xpose.msra.mxu0 0
        %1525 = vmatprep.subr.bf16.mxu0 0
        %1526 = vmatpush1.bf16.xpose.msra.mxu0 0
        %1527 = vmatprep.subr.bf16.mxu0 0
        %1528 = vmatpush1.bf16.xpose.msra.mxu0 0
        %1529 = vmatprep.subr.bf16.mxu0 0
        %1530 = vmatpush1.bf16.xpose.msra.mxu0 0
        %1531 = vmatprep.mubr.bf16.mxu0 0
        %1532 = vmatmul.mubr.bf16.gmra.mrb[0].mxu0 %v1494
        %v1533 = vpop.f32.mrb[0].mxu0
        %v1534 = vadd.f32 0.0, %v1533
        %v1535 = vpop.f32.mrb[0].mxu0
        %v1536 = vpop.f32.mrb[0].mxu0
        %v1537 = vpop.f32.mrb[0].mxu0
        %1538 = vdwg.mxu0
        %v1540 = vsel %vm940, %v707, 0
        %v1543 = vsel %vm940, %v815, 0
        %1545 = vmatprep.subr.bf16.mxu0 0
        %1546 = vmatpush1.bf16.xpose.msra.mxu0 %v1543
        %1547 = vmatprep.subr.bf16.mxu0 0
        %1548 = vmatpush1.bf16.xpose.msra.mxu0 0
        %1549 = vmatprep.subr.bf16.mxu0 0
        %1550 = vmatpush1.bf16.xpose.msra.mxu0 0
        %1551 = vmatprep.subr.bf16.mxu0 0
        %1552 = vmatpush1.bf16.xpose.msra.mxu0 0
        %1553 = vmatprep.subr.bf16.mxu0 0
        %1554 = vmatpush1.bf16.xpose.msra.mxu0 0
        %1555 = vmatprep.subr.bf16.mxu0 0
        %1556 = vmatpush1.bf16.xpose.msra.mxu0 0
        %1557 = vmatprep.subr.bf16.mxu0 0
        %1558 = vmatpush1.bf16.xpose.msra.mxu0 0
        %1559 = vmatprep.subr.bf16.mxu0 0
        %1560 = vmatpush1.bf16.xpose.msra.mxu0 0
        %1561 = vmatprep.subr.bf16.mxu0 0
        %1562 = vmatpush1.bf16.xpose.msra.mxu0 0
        %1563 = vmatprep.subr.bf16.mxu0 0
        %1564 = vmatpush1.bf16.xpose.msra.mxu0 0
        %1565 = vmatprep.subr.bf16.mxu0 0
        %1566 = vmatpush1.bf16.xpose.msra.mxu0 0
        %1567 = vmatprep.subr.bf16.mxu0 0
        %1568 = vmatpush1.bf16.xpose.msra.mxu0 0
        %1569 = vmatprep.subr.bf16.mxu0 0
        %1570 = vmatpush1.bf16.xpose.msra.mxu0 0
        %1571 = vmatprep.subr.bf16.mxu0 0
        %1572 = vmatpush1.bf16.xpose.msra.mxu0 0
        %1573 = vmatprep.subr.bf16.mxu0 0
        %1574 = vmatpush1.bf16.xpose.msra.mxu0 0
        %1575 = vmatprep.subr.bf16.mxu0 0
        %1576 = vmatpush1.bf16.xpose.msra.mxu0 0
        %1577 = vmatprep.mubr.bf16.mxu0 0
        %1578 = vmatmul.mubr.bf16.gmra.mrb[0].mxu0 %v1540
        %v1579 = vpop.f32.mrb[0].mxu0
        %v1580 = vadd.f32 0.0, %v1579
        %v1581 = vpop.f32.mrb[0].mxu0
        %v1582 = vpop.f32.mrb[0].mxu0
        %v1583 = vpop.f32.mrb[0].mxu0
        %1584 = vdwg.mxu0
        %v1586 = vsel %vm940, %v715, 0
        %v1589 = vsel %vm940, %v823, 0
        %1591 = vmatprep.subr.bf16.mxu0 0
        %1592 = vmatpush1.bf16.xpose.msra.mxu0 %v1589
        %1593 = vmatprep.subr.bf16.mxu0 0
        %1594 = vmatpush1.bf16.xpose.msra.mxu0 0
        %1595 = vmatprep.subr.bf16.mxu0 0
        %1596 = vmatpush1.bf16.xpose.msra.mxu0 0
        %1597 = vmatprep.subr.bf16.mxu0 0
        %1598 = vmatpush1.bf16.xpose.msra.mxu0 0
        %1599 = vmatprep.subr.bf16.mxu0 0
        %1600 = vmatpush1.bf16.xpose.msra.mxu0 0
        %1601 = vmatprep.subr.bf16.mxu0 0
        %1602 = vmatpush1.bf16.xpose.msra.mxu0 0
        %1603 = vmatprep.subr.bf16.mxu0 0
        %1604 = vmatpush1.bf16.xpose.msra.mxu0 0
        %1605 = vmatprep.subr.bf16.mxu0 0
        %1606 = vmatpush1.bf16.xpose.msra.mxu0 0
        %1607 = vmatprep.subr.bf16.mxu0 0
        %1608 = vmatpush1.bf16.xpose.msra.mxu0 0
        %1609 = vmatprep.subr.bf16.mxu0 0
        %1610 = vmatpush1.bf16.xpose.msra.mxu0 0
        %1611 = vmatprep.subr.bf16.mxu0 0
        %1612 = vmatpush1.bf16.xpose.msra.mxu0 0
        %1613 = vmatprep.subr.bf16.mxu0 0
        %1614 = vmatpush1.bf16.xpose.msra.mxu0 0
        %1615 = vmatprep.subr.bf16.mxu0 0
        %1616 = vmatpush1.bf16.xpose.msra.mxu0 0
        %1617 = vmatprep.subr.bf16.mxu0 0
        %1618 = vmatpush1.bf16.xpose.msra.mxu0 0
        %1619 = vmatprep.subr.bf16.mxu0 0
        %1620 = vmatpush1.bf16.xpose.msra.mxu0 0
        %1621 = vmatprep.subr.bf16.mxu0 0
        %1622 = vmatpush1.bf16.xpose.msra.mxu0 0
        %1623 = vmatprep.mubr.bf16.mxu0 0
        %1624 = vmatmul.mubr.bf16.gmra.mrb[0].mxu0 %v1586
        %v1625 = vpop.f32.mrb[0].mxu0
        %v1626 = vadd.f32 0.0, %v1625
        %v1627 = vpop.f32.mrb[0].mxu0
        %v1628 = vpop.f32.mrb[0].mxu0
        %v1629 = vpop.f32.mrb[0].mxu0
        %1630 = vdwg.mxu0
        %v1632 = vsel %vm940, %v723, 0
        %v1635 = vsel %vm940, %v831, 0
        %1637 = vmatprep.subr.bf16.mxu0 0
        %1638 = vmatpush1.bf16.xpose.msra.mxu0 %v1635
        %1639 = vmatprep.subr.bf16.mxu0 0
        %1640 = vmatpush1.bf16.xpose.msra.mxu0 0
        %1641 = vmatprep.subr.bf16.mxu0 0
        %1642 = vmatpush1.bf16.xpose.msra.mxu0 0
        %1643 = vmatprep.subr.bf16.mxu0 0
        %1644 = vmatpush1.bf16.xpose.msra.mxu0 0
        %1645 = vmatprep.subr.bf16.mxu0 0
        %1646 = vmatpush1.bf16.xpose.msra.mxu0 0
        %1647 = vmatprep.subr.bf16.mxu0 0
        %1648 = vmatpush1.bf16.xpose.msra.mxu0 0
        %1649 = vmatprep.subr.bf16.mxu0 0
        %1650 = vmatpush1.bf16.xpose.msra.mxu0 0
        %1651 = vmatprep.subr.bf16.mxu0 0
        %1652 = vmatpush1.bf16.xpose.msra.mxu0 0
        %1653 = vmatprep.subr.bf16.mxu0 0
        %1654 = vmatpush1.bf16.xpose.msra.mxu0 0
        %1655 = vmatprep.subr.bf16.mxu0 0
        %1656 = vmatpush1.bf16.xpose.msra.mxu0 0
        %1657 = vmatprep.subr.bf16.mxu0 0
        %1658 = vmatpush1.bf16.xpose.msra.mxu0 0
        %1659 = vmatprep.subr.bf16.mxu0 0
        %1660 = vmatpush1.bf16.xpose.msra.mxu0 0
        %1661 = vmatprep.subr.bf16.mxu0 0
        %1662 = vmatpush1.bf16.xpose.msra.mxu0 0
        %1663 = vmatprep.subr.bf16.mxu0 0
        %1664 = vmatpush1.bf16.xpose.msra.mxu0 0
        %1665 = vmatprep.subr.bf16.mxu0 0
        %1666 = vmatpush1.bf16.xpose.msra.mxu0 0
        %1667 = vmatprep.subr.bf16.mxu0 0
        %1668 = vmatpush1.bf16.xpose.msra.mxu0 0
        %1669 = vmatprep.mubr.bf16.mxu0 0
        %1670 = vmatmul.mubr.bf16.gmra.mrb[0].mxu0 %v1632
        %v1671 = vpop.f32.mrb[0].mxu0
        %v1672 = vadd.f32 0.0, %v1671
        %v1673 = vpop.f32.mrb[0].mxu0
        %v1674 = vpop.f32.mrb[0].mxu0
        %v1675 = vpop.f32.mrb[0].mxu0
        %1676 = vdwg.mxu0
        %v1677 = vlaneseq
        %v1678 = vshrl.u32 %v1677, 7
        %v1679 = vsub.s32 0, %v1678
        %v1680 = vrot.slane %v524, %v1679
        %1682 = vbcast.lane.b32.xlu0 %v1680, 256
        %v1683 = vpop.permute.xlu0 %1682
        %v1684 = vlaneseq
        %v1685 = vshrl.u32 %v1684, 7
        %v1686 = vsub.s32 0, %v1685
        %v1687 = vrot.slane %v525, %v1686
        %1689 = vbcast.lane.b32.xlu0 %v1687, 256
        %v1690 = vpop.permute.xlu0 %1689
        %v1691 = vlaneseq
        %v1692 = vshrl.u32 %v1691, 7
        %v1693 = vsub.s32 0, %v1692
        %v1694 = vrot.slane %v526, %v1693
        %1696 = vbcast.lane.b32.xlu0 %v1694, 256
        %v1697 = vpop.permute.xlu0 %1696
        %v1698 = vlaneseq
        %v1699 = vshrl.u32 %v1698, 7
        %v1700 = vsub.s32 0, %v1699
        %v1701 = vrot.slane %v527, %v1700
        %1703 = vbcast.lane.b32.xlu0 %v1701, 256
        %v1704 = vpop.permute.xlu0 %1703
        %v1709 = vlaneseq
        %v1710 = vshrl.u32 %v1709, 7
        %v1711 = vsub.s32 0, %v1710
        %v1712 = vrot.slane %v524, %v1711
        %v1713 = vlaneseq
        %v1714 = vshrl.u32 %v1713, 7
        %v1715 = vsub.s32 0, %v1714
        %v1716 = vrot.slane %v525, %v1715
        %v1717 = vlaneseq
        %v1718 = vshrl.u32 %v1717, 7
        %v1719 = vsub.s32 0, %v1718
        %v1720 = vrot.slane %v526, %v1719
        %v1721 = vlaneseq
        %v1722 = vshrl.u32 %v1721, 7
        %v1723 = vsub.s32 0, %v1722
        %v1724 = vrot.slane %v527, %v1723
        %v1729 = vmul.f32 %v1683, %v1712
        %v1730 = vmul.f32 %v1690, %v1716
        %v1731 = vmul.f32 %v1697, %v1720
        %v1732 = vmul.f32 %v1704, %v1724
        %vm1733 = vcmp.eq.f32.partialorder %v1729, 0.0
        %vm1734 = vcmp.eq.f32.partialorder %v1730, 0.0
        %vm1735 = vcmp.eq.f32.partialorder %v1731, 0.0
        %vm1736 = vcmp.eq.f32.partialorder %v1732, 0.0
        %v1737 = vsel %vm1733, 1, 0
        %v1738 = vsel %vm1734, 1, 0
        %v1739 = vsel %vm1735, 1, 0
        %v1740 = vsel %vm1736, 1, 0
        %vm1741 = vcmp.eq.s32.totalorder %v1737, 1
        %vm1742 = vcmp.eq.s32.totalorder %v1738, 1
        %vm1743 = vcmp.eq.s32.totalorder %v1739, 1
        %vm1744 = vcmp.eq.s32.totalorder %v1740, 1
        %v1745 = vsel %vm1741, -1e+09, %v982
        %v1746 = vsel %vm1741, -1e+09, %v1028
        %v1747 = vsel %vm1741, -1e+09, %v1074
        %v1748 = vsel %vm1741, -1e+09, %v1120
        %v1749 = vsel %vm1742, -1e+09, %v1166
        %v1750 = vsel %vm1742, -1e+09, %v1212
        %v1751 = vsel %vm1742, -1e+09, %v1258
        %v1752 = vsel %vm1742, -1e+09, %v1304
        %v1753 = vsel %vm1743, -1e+09, %v1350
        %v1754 = vsel %vm1743, -1e+09, %v1396
        %v1755 = vsel %vm1743, -1e+09, %v1442
        %v1756 = vsel %vm1743, -1e+09, %v1488
        %v1757 = vsel %vm1744, -1e+09, %v1534
        %v1758 = vsel %vm1744, -1e+09, %v1580
        %v1759 = vsel %vm1744, -1e+09, %v1626
        %v1760 = vsel %vm1744, -1e+09, %v1672
        %v1761 = vsel %vm940, %v1745, -inf
        %1762 = vmax.xlane.f32.xlu0 %v1761
        %v1763 = vpop.xlane.xlu0 %1762
        %v1764 = vsel %vm940, %v1746, -inf
        %1765 = vmax.xlane.f32.xlu0 %v1764
        %v1766 = vpop.xlane.xlu0 %1765
        %v1767 = vsel %vm940, %v1747, -inf
        %1768 = vmax.xlane.f32.xlu0 %v1767
        %v1769 = vpop.xlane.xlu0 %1768
        %v1770 = vsel %vm940, %v1748, -inf
        %1771 = vmax.xlane.f32.xlu0 %v1770
        %v1772 = vpop.xlane.xlu0 %1771
        %v1773 = vsel %vm940, %v1749, -inf
        %1774 = vmax.xlane.f32.xlu0 %v1773
        %v1775 = vpop.xlane.xlu0 %1774
        %v1776 = vsel %vm940, %v1750, -inf
        %1777 = vmax.xlane.f32.xlu0 %v1776
        %v1778 = vpop.xlane.xlu0 %1777
        %v1779 = vsel %vm940, %v1751, -inf
        %1780 = vmax.xlane.f32.xlu0 %v1779
        %v1781 = vpop.xlane.xlu0 %1780
        %v1782 = vsel %vm940, %v1752, -inf
        %1783 = vmax.xlane.f32.xlu0 %v1782
        %v1784 = vpop.xlane.xlu0 %1783
        %v1785 = vsel %vm940, %v1753, -inf
        %1786 = vmax.xlane.f32.xlu0 %v1785
        %v1787 = vpop.xlane.xlu0 %1786
        %v1788 = vsel %vm940, %v1754, -inf
        %1789 = vmax.xlane.f32.xlu0 %v1788
        %v1790 = vpop.xlane.xlu0 %1789
        %v1791 = vsel %vm940, %v1755, -inf
        %1792 = vmax.xlane.f32.xlu0 %v1791
        %v1793 = vpop.xlane.xlu0 %1792
        %v1794 = vsel %vm940, %v1756, -inf
        %1795 = vmax.xlane.f32.xlu0 %v1794
        %v1796 = vpop.xlane.xlu0 %1795
        %v1797 = vsel %vm940, %v1757, -inf
        %1798 = vmax.xlane.f32.xlu0 %v1797
        %v1799 = vpop.xlane.xlu0 %1798
        %v1800 = vsel %vm940, %v1758, -inf
        %1801 = vmax.xlane.f32.xlu0 %v1800
        %v1802 = vpop.xlane.xlu0 %1801
        %v1803 = vsel %vm940, %v1759, -inf
        %1804 = vmax.xlane.f32.xlu0 %v1803
        %v1805 = vpop.xlane.xlu0 %1804
        %v1806 = vsel %vm940, %v1760, -inf
        %1807 = vmax.xlane.f32.xlu0 %v1806
        %v1808 = vpop.xlane.xlu0 %1807
        %v1809 = vsub.f32 %v1745, %v1763
        %v1810 = vsub.f32 %v1746, %v1766
        %v1811 = vsub.f32 %v1747, %v1769
        %v1812 = vsub.f32 %v1748, %v1772
        %v1813 = vsub.f32 %v1749, %v1775
        %v1814 = vsub.f32 %v1750, %v1778
        %v1815 = vsub.f32 %v1751, %v1781
        %v1816 = vsub.f32 %v1752, %v1784
        %v1817 = vsub.f32 %v1753, %v1787
        %v1818 = vsub.f32 %v1754, %v1790
        %v1819 = vsub.f32 %v1755, %v1793
        %v1820 = vsub.f32 %v1756, %v1796
        %v1821 = vsub.f32 %v1757, %v1799
        %v1822 = vsub.f32 %v1758, %v1802
        %v1823 = vsub.f32 %v1759, %v1805
        %v1824 = vsub.f32 %v1760, %v1808
        %v1825 = vmul.f32 %v1809, 1.442695
        %v1826 = vpow.pop %v1825
        %v1827 = vmul.f32 %v1810, 1.442695
        %v1828 = vpow.pop %v1827
        %v1829 = vmul.f32 %v1811, 1.442695
        %v1830 = vpow.pop %v1829
        %v1831 = vmul.f32 %v1812, 1.442695
        %v1832 = vpow.pop %v1831
        %v1833 = vmul.f32 %v1813, 1.442695
        %v1834 = vpow.pop %v1833
        %v1835 = vmul.f32 %v1814, 1.442695
        %v1836 = vpow.pop %v1835
        %v1837 = vmul.f32 %v1815, 1.442695
        %v1838 = vpow.pop %v1837
        %v1839 = vmul.f32 %v1816, 1.442695
        %v1840 = vpow.pop %v1839
        %v1841 = vmul.f32 %v1817, 1.442695
        %v1842 = vpow.pop %v1841
        %v1843 = vmul.f32 %v1818, 1.442695
        %v1844 = vpow.pop %v1843
        %v1845 = vmul.f32 %v1819, 1.442695
        %v1846 = vpow.pop %v1845
        %v1847 = vmul.f32 %v1820, 1.442695
        %v1848 = vpow.pop %v1847
        %v1849 = vmul.f32 %v1821, 1.442695
        %v1850 = vpow.pop %v1849
        %v1851 = vmul.f32 %v1822, 1.442695
        %v1852 = vpow.pop %v1851
        %v1853 = vmul.f32 %v1823, 1.442695
        %v1854 = vpow.pop %v1853
        %v1855 = vmul.f32 %v1824, 1.442695
        %v1856 = vpow.pop %v1855
        %v1857 = vsel %vm940, %v1826, 0.0
        %1858 = vadd.xlane.f32.xlu0 %v1857
        %v1859 = vpop.xlane.xlu0 %1858
        %v1860 = vsel %vm940, %v1828, 0.0
        %1861 = vadd.xlane.f32.xlu0 %v1860
        %v1862 = vpop.xlane.xlu0 %1861
        %v1863 = vsel %vm940, %v1830, 0.0
        %1864 = vadd.xlane.f32.xlu0 %v1863
        %v1865 = vpop.xlane.xlu0 %1864
        %v1866 = vsel %vm940, %v1832, 0.0
        %1867 = vadd.xlane.f32.xlu0 %v1866
        %v1868 = vpop.xlane.xlu0 %1867
        %v1869 = vsel %vm940, %v1834, 0.0
        %1870 = vadd.xlane.f32.xlu0 %v1869
        %v1871 = vpop.xlane.xlu0 %1870
        %v1872 = vsel %vm940, %v1836, 0.0
        %1873 = vadd.xlane.f32.xlu0 %v1872
        %v1874 = vpop.xlane.xlu0 %1873
        %v1875 = vsel %vm940, %v1838, 0.0
        %1876 = vadd.xlane.f32.xlu0 %v1875
        %v1877 = vpop.xlane.xlu0 %1876
        %v1878 = vsel %vm940, %v1840, 0.0
        %1879 = vadd.xlane.f32.xlu0 %v1878
        %v1880 = vpop.xlane.xlu0 %1879
        %v1881 = vsel %vm940, %v1842, 0.0
        %1882 = vadd.xlane.f32.xlu0 %v1881
        %v1883 = vpop.xlane.xlu0 %1882
        %v1884 = vsel %vm940, %v1844, 0.0
        %1885 = vadd.xlane.f32.xlu0 %v1884
        %v1886 = vpop.xlane.xlu0 %1885
        %v1887 = vsel %vm940, %v1846, 0.0
        %1888 = vadd.xlane.f32.xlu0 %v1887
        %v1889 = vpop.xlane.xlu0 %1888
        %v1890 = vsel %vm940, %v1848, 0.0
        %1891 = vadd.xlane.f32.xlu0 %v1890
        %v1892 = vpop.xlane.xlu0 %1891
        %v1893 = vsel %vm940, %v1850, 0.0
        %1894 = vadd.xlane.f32.xlu0 %v1893
        %v1895 = vpop.xlane.xlu0 %1894
        %v1896 = vsel %vm940, %v1852, 0.0
        %1897 = vadd.xlane.f32.xlu0 %v1896
        %v1898 = vpop.xlane.xlu0 %1897
        %v1899 = vsel %vm940, %v1854, 0.0
        %1900 = vadd.xlane.f32.xlu0 %v1899
        %v1901 = vpop.xlane.xlu0 %1900
        %v1902 = vsel %vm940, %v1856, 0.0
        %1903 = vadd.xlane.f32.xlu0 %v1902
        %v1904 = vpop.xlane.xlu0 %1903
        %v1905 = vrcp.pop %v1859
        %v1906 = vmul.f32 %v1826, %v1905
        %v1907 = vrcp.pop %v1862
        %v1908 = vmul.f32 %v1828, %v1907
        %v1909 = vrcp.pop %v1865
        %v1910 = vmul.f32 %v1830, %v1909
        %v1911 = vrcp.pop %v1868
        %v1912 = vmul.f32 %v1832, %v1911
        %v1913 = vrcp.pop %v1871
        %v1914 = vmul.f32 %v1834, %v1913
        %v1915 = vrcp.pop %v1874
        %v1916 = vmul.f32 %v1836, %v1915
        %v1917 = vrcp.pop %v1877
        %v1918 = vmul.f32 %v1838, %v1917
        %v1919 = vrcp.pop %v1880
        %v1920 = vmul.f32 %v1840, %v1919
        %v1921 = vrcp.pop %v1883
        %v1922 = vmul.f32 %v1842, %v1921
        %v1923 = vrcp.pop %v1886
        %v1924 = vmul.f32 %v1844, %v1923
        %v1925 = vrcp.pop %v1889
        %v1926 = vmul.f32 %v1846, %v1925
        %v1927 = vrcp.pop %v1892
        %v1928 = vmul.f32 %v1848, %v1927
        %v1929 = vrcp.pop %v1895
        %v1930 = vmul.f32 %v1850, %v1929
        %v1931 = vrcp.pop %v1898
        %v1932 = vmul.f32 %v1852, %v1931
        %v1933 = vrcp.pop %v1901
        %v1934 = vmul.f32 %v1854, %v1933
        %v1935 = vrcp.pop %v1904
        %v1936 = vmul.f32 %v1856, %v1935
        %v1937 = vpack.c.bf16 %v1906, %v1906
        %v1938 = vpack.c.bf16 %v1908, %v1908
        %v1939 = vpack.c.bf16 %v1910, %v1910
        %v1940 = vpack.c.bf16 %v1912, %v1912
        %v1941 = vpack.c.bf16 %v1914, %v1914
        %v1942 = vpack.c.bf16 %v1916, %v1916
        %v1943 = vpack.c.bf16 %v1918, %v1918
        %v1944 = vpack.c.bf16 %v1920, %v1920
        %v1945 = vpack.c.bf16 %v1922, %v1922
        %v1946 = vpack.c.bf16 %v1924, %v1924
        %v1947 = vpack.c.bf16 %v1926, %v1926
        %v1948 = vpack.c.bf16 %v1928, %v1928
        %v1949 = vpack.c.bf16 %v1930, %v1930
        %v1950 = vpack.c.bf16 %v1932, %v1932
        %v1951 = vpack.c.bf16 %v1934, %v1934
        %v1952 = vpack.c.bf16 %v1936, %v1936
        %vm1953 = vcmask 60416
        %1954 = vst.msk [vmem:[%s500] sm:$0xf] %vm1953, %v1937
        %1955 = vst.msk [vmem:[%s500 + $0x4] sm:$0xf] %vm1953, %v1938
        %1956 = vst.msk [vmem:[%s500 + $0x8] sm:$0xf] %vm1953, %v1939
        %1957 = vst.msk [vmem:[%s500 + $0xc] sm:$0xf] %vm1953, %v1940
        %1958 = vst.msk [vmem:[%s500 + $0x10] sm:$0xf] %vm1953, %v1941
        %1959 = vst.msk [vmem:[%s500 + $0x14] sm:$0xf] %vm1953, %v1942
        %1960 = vst.msk [vmem:[%s500 + $0x18] sm:$0xf] %vm1953, %v1943
        %1961 = vst.msk [vmem:[%s500 + $0x1c] sm:$0xf] %vm1953, %v1944
        %1962 = vst.msk [vmem:[%s500 + $0x20] sm:$0xf] %vm1953, %v1945
        %1963 = vst.msk [vmem:[%s500 + $0x24] sm:$0xf] %vm1953, %v1946
        %1964 = vst.msk [vmem:[%s500 + $0x28] sm:$0xf] %vm1953, %v1947
        %1965 = vst.msk [vmem:[%s500 + $0x2c] sm:$0xf] %vm1953, %v1948
        %1966 = vst.msk [vmem:[%s500 + $0x30] sm:$0xf] %vm1953, %v1949
        %1967 = vst.msk [vmem:[%s500 + $0x34] sm:$0xf] %vm1953, %v1950
        %1968 = vst.msk [vmem:[%s500 + $0x38] sm:$0xf] %vm1953, %v1951
        %1969 = vst.msk [vmem:[%s500 + $0x3c] sm:$0xf] %vm1953, %v1952
        %v1971 = vsel %vm940, %v1937, 0
        %vm1973 = vcmask 1043456
        %v1975 = vsel %vm1973, %v912, 0
        %1977 = vmatprep.subr.bf16.mxu0 0
        %1978 = vmatpush1.bf16.msra.mxu0 %v1975
        %1979 = vmatprep.subr.bf16.mxu0 0
        %1980 = vmatpush1.bf16.msra.mxu0 0
        %1981 = vmatprep.subr.bf16.mxu0 0
        %1982 = vmatpush1.bf16.msra.mxu0 0
        %1983 = vmatprep.subr.bf16.mxu0 0
        %1984 = vmatpush1.bf16.msra.mxu0 0
        %1985 = vmatprep.subr.bf16.mxu0 0
        %1986 = vmatpush1.bf16.msra.mxu0 0
        %1987 = vmatprep.subr.bf16.mxu0 0
        %1988 = vmatpush1.bf16.msra.mxu0 0
        %1989 = vmatprep.subr.bf16.mxu0 0
        %1990 = vmatpush1.bf16.msra.mxu0 0
        %1991 = vmatprep.subr.bf16.mxu0 0
        %1992 = vmatpush1.bf16.msra.mxu0 0
        %1993 = vmatprep.subr.bf16.mxu0 0
        %1994 = vmatpush1.bf16.msra.mxu0 0
        %1995 = vmatprep.subr.bf16.mxu0 0
        %1996 = vmatpush1.bf16.msra.mxu0 0
        %1997 = vmatprep.subr.bf16.mxu0 0
        %1998 = vmatpush1.bf16.msra.mxu0 0
        %1999 = vmatprep.subr.bf16.mxu0 0
        %2000 = vmatpush1.bf16.msra.mxu0 0
        %2001 = vmatprep.subr.bf16.mxu0 0
        %2002 = vmatpush1.bf16.msra.mxu0 0
        %2003 = vmatprep.subr.bf16.mxu0 0
        %2004 = vmatpush1.bf16.msra.mxu0 0
        %2005 = vmatprep.subr.bf16.mxu0 0
        %2006 = vmatpush1.bf16.msra.mxu0 0
        %2007 = vmatprep.subr.bf16.mxu0 0
        %2008 = vmatpush1.bf16.msra.mxu0 0
        %2009 = vmatprep.mubr.bf16.mxu0 0
        %2010 = vmatmul.mubr.bf16.gmra.mrb[0].mxu0 %v1971
        %v2011 = vpop.f32.mrb[0].mxu0
        %v2012 = vadd.f32 0.0, %v2011
        %v2013 = vpop.f32.mrb[0].mxu0
        %v2014 = vpop.f32.mrb[0].mxu0
        %v2015 = vpop.f32.mrb[0].mxu0
        %2016 = vdwg.mxu0
        %v2018 = vsel %vm940, %v1938, 0
        %v2021 = vsel %vm1973, %v917, 0
        %2023 = vmatprep.subr.bf16.mxu0 0
        %2024 = vmatpush1.bf16.msra.mxu0 %v2021
        %2025 = vmatprep.subr.bf16.mxu0 0
        %2026 = vmatpush1.bf16.msra.mxu0 0
        %2027 = vmatprep.subr.bf16.mxu0 0
        %2028 = vmatpush1.bf16.msra.mxu0 0
        %2029 = vmatprep.subr.bf16.mxu0 0
        %2030 = vmatpush1.bf16.msra.mxu0 0
        %2031 = vmatprep.subr.bf16.mxu0 0
        %2032 = vmatpush1.bf16.msra.mxu0 0
        %2033 = vmatprep.subr.bf16.mxu0 0
        %2034 = vmatpush1.bf16.msra.mxu0 0
        %2035 = vmatprep.subr.bf16.mxu0 0
        %2036 = vmatpush1.bf16.msra.mxu0 0
        %2037 = vmatprep.subr.bf16.mxu0 0
        %2038 = vmatpush1.bf16.msra.mxu0 0
        %2039 = vmatprep.subr.bf16.mxu0 0
        %2040 = vmatpush1.bf16.msra.mxu0 0
        %2041 = vmatprep.subr.bf16.mxu0 0
        %2042 = vmatpush1.bf16.msra.mxu0 0
        %2043 = vmatprep.subr.bf16.mxu0 0
        %2044 = vmatpush1.bf16.msra.mxu0 0
        %2045 = vmatprep.subr.bf16.mxu0 0
        %2046 = vmatpush1.bf16.msra.mxu0 0
        %2047 = vmatprep.subr.bf16.mxu0 0
        %2048 = vmatpush1.bf16.msra.mxu0 0
        %2049 = vmatprep.subr.bf16.mxu0 0
        %2050 = vmatpush1.bf16.msra.mxu0 0
        %2051 = vmatprep.subr.bf16.mxu0 0
        %2052 = vmatpush1.bf16.msra.mxu0 0
        %2053 = vmatprep.subr.bf16.mxu0 0
        %2054 = vmatpush1.bf16.msra.mxu0 0
        %2055 = vmatprep.mubr.bf16.mxu0 0
        %2056 = vmatmul.mubr.bf16.gmra.mrb[0].mxu0 %v2018
        %v2057 = vpop.f32.mrb[0].mxu0
        %v2058 = vadd.f32 0.0, %v2057
        %v2059 = vpop.f32.mrb[0].mxu0
        %v2060 = vpop.f32.mrb[0].mxu0
        %v2061 = vpop.f32.mrb[0].mxu0
        %2062 = vdwg.mxu0
        %v2064 = vsel %vm940, %v1939, 0
        %v2067 = vsel %vm1973, %v925, 0
        %2069 = vmatprep.subr.bf16.mxu0 0
        %2070 = vmatpush1.bf16.msra.mxu0 %v2067
        %2071 = vmatprep.subr.bf16.mxu0 0
        %2072 = vmatpush1.bf16.msra.mxu0 0
        %2073 = vmatprep.subr.bf16.mxu0 0
        %2074 = vmatpush1.bf16.msra.mxu0 0
        %2075 = vmatprep.subr.bf16.mxu0 0
        %2076 = vmatpush1.bf16.msra.mxu0 0
        %2077 = vmatprep.subr.bf16.mxu0 0
        %2078 = vmatpush1.bf16.msra.mxu0 0
        %2079 = vmatprep.subr.bf16.mxu0 0
        %2080 = vmatpush1.bf16.msra.mxu0 0
        %2081 = vmatprep.subr.bf16.mxu0 0
        %2082 = vmatpush1.bf16.msra.mxu0 0
        %2083 = vmatprep.subr.bf16.mxu0 0
        %2084 = vmatpush1.bf16.msra.mxu0 0
        %2085 = vmatprep.subr.bf16.mxu0 0
        %2086 = vmatpush1.bf16.msra.mxu0 0
        %2087 = vmatprep.subr.bf16.mxu0 0
        %2088 = vmatpush1.bf16.msra.mxu0 0
        %2089 = vmatprep.subr.bf16.mxu0 0
        %2090 = vmatpush1.bf16.msra.mxu0 0
        %2091 = vmatprep.subr.bf16.mxu0 0
        %2092 = vmatpush1.bf16.msra.mxu0 0
        %2093 = vmatprep.subr.bf16.mxu0 0
        %2094 = vmatpush1.bf16.msra.mxu0 0
        %2095 = vmatprep.subr.bf16.mxu0 0
        %2096 = vmatpush1.bf16.msra.mxu0 0
        %2097 = vmatprep.subr.bf16.mxu0 0
        %2098 = vmatpush1.bf16.msra.mxu0 0
        %2099 = vmatprep.subr.bf16.mxu0 0
        %2100 = vmatpush1.bf16.msra.mxu0 0
        %2101 = vmatprep.mubr.bf16.mxu0 0
        %2102 = vmatmul.mubr.bf16.gmra.mrb[0].mxu0 %v2064
        %v2103 = vpop.f32.mrb[0].mxu0
        %v2104 = vadd.f32 0.0, %v2103
        %v2105 = vpop.f32.mrb[0].mxu0
        %v2106 = vpop.f32.mrb[0].mxu0
        %v2107 = vpop.f32.mrb[0].mxu0
        %2108 = vdwg.mxu0
        %v2110 = vsel %vm940, %v1940, 0
        %v2113 = vsel %vm1973, %v933, 0
        %2115 = vmatprep.subr.bf16.mxu0 0
        %2116 = vmatpush1.bf16.msra.mxu0 %v2113
        %2117 = vmatprep.subr.bf16.mxu0 0
        %2118 = vmatpush1.bf16.msra.mxu0 0
        %2119 = vmatprep.subr.bf16.mxu0 0
        %2120 = vmatpush1.bf16.msra.mxu0 0
        %2121 = vmatprep.subr.bf16.mxu0 0
        %2122 = vmatpush1.bf16.msra.mxu0 0
        %2123 = vmatprep.subr.bf16.mxu0 0
        %2124 = vmatpush1.bf16.msra.mxu0 0
        %2125 = vmatprep.subr.bf16.mxu0 0
        %2126 = vmatpush1.bf16.msra.mxu0 0
        %2127 = vmatprep.subr.bf16.mxu0 0
        %2128 = vmatpush1.bf16.msra.mxu0 0
        %2129 = vmatprep.subr.bf16.mxu0 0
        %2130 = vmatpush1.bf16.msra.mxu0 0
        %2131 = vmatprep.subr.bf16.mxu0 0
        %2132 = vmatpush1.bf16.msra.mxu0 0
        %2133 = vmatprep.subr.bf16.mxu0 0
        %2134 = vmatpush1.bf16.msra.mxu0 0
        %2135 = vmatprep.subr.bf16.mxu0 0
        %2136 = vmatpush1.bf16.msra.mxu0 0
        %2137 = vmatprep.subr.bf16.mxu0 0
        %2138 = vmatpush1.bf16.msra.mxu0 0
        %2139 = vmatprep.subr.bf16.mxu0 0
        %2140 = vmatpush1.bf16.msra.mxu0 0
        %2141 = vmatprep.subr.bf16.mxu0 0
        %2142 = vmatpush1.bf16.msra.mxu0 0
        %2143 = vmatprep.subr.bf16.mxu0 0
        %2144 = vmatpush1.bf16.msra.mxu0 0
        %2145 = vmatprep.subr.bf16.mxu0 0
        %2146 = vmatpush1.bf16.msra.mxu0 0
        %2147 = vmatprep.mubr.bf16.mxu0 0
        %2148 = vmatmul.mubr.bf16.gmra.mrb[0].mxu0 %v2110
        %v2149 = vpop.f32.mrb[0].mxu0
        %v2150 = vadd.f32 0.0, %v2149
        %v2151 = vpop.f32.mrb[0].mxu0
        %v2152 = vpop.f32.mrb[0].mxu0
        %v2153 = vpop.f32.mrb[0].mxu0
        %2154 = vdwg.mxu0
        %v2156 = vsel %vm940, %v1941, 0
        %v2159 = vsel %vm1973, %v913, 0
        %2161 = vmatprep.subr.bf16.mxu0 0
        %2162 = vmatpush1.bf16.msra.mxu0 %v2159
        %2163 = vmatprep.subr.bf16.mxu0 0
        %2164 = vmatpush1.bf16.msra.mxu0 0
        %2165 = vmatprep.subr.bf16.mxu0 0
        %2166 = vmatpush1.bf16.msra.mxu0 0
        %2167 = vmatprep.subr.bf16.mxu0 0
        %2168 = vmatpush1.bf16.msra.mxu0 0
        %2169 = vmatprep.subr.bf16.mxu0 0
        %2170 = vmatpush1.bf16.msra.mxu0 0
        %2171 = vmatprep.subr.bf16.mxu0 0
        %2172 = vmatpush1.bf16.msra.mxu0 0
        %2173 = vmatprep.subr.bf16.mxu0 0
        %2174 = vmatpush1.bf16.msra.mxu0 0
        %2175 = vmatprep.subr.bf16.mxu0 0
        %2176 = vmatpush1.bf16.msra.mxu0 0
        %2177 = vmatprep.subr.bf16.mxu0 0
        %2178 = vmatpush1.bf16.msra.mxu0 0
        %2179 = vmatprep.subr.bf16.mxu0 0
        %2180 = vmatpush1.bf16.msra.mxu0 0
        %2181 = vmatprep.subr.bf16.mxu0 0
        %2182 = vmatpush1.bf16.msra.mxu0 0
        %2183 = vmatprep.subr.bf16.mxu0 0
        %2184 = vmatpush1.bf16.msra.mxu0 0
        %2185 = vmatprep.subr.bf16.mxu0 0
        %2186 = vmatpush1.bf16.msra.mxu0 0
        %2187 = vmatprep.subr.bf16.mxu0 0
        %2188 = vmatpush1.bf16.msra.mxu0 0
        %2189 = vmatprep.subr.bf16.mxu0 0
        %2190 = vmatpush1.bf16.msra.mxu0 0
        %2191 = vmatprep.subr.bf16.mxu0 0
        %2192 = vmatpush1.bf16.msra.mxu0 0
        %2193 = vmatprep.mubr.bf16.mxu0 0
        %2194 = vmatmul.mubr.bf16.gmra.mrb[0].mxu0 %v2156
        %v2195 = vpop.f32.mrb[0].mxu0
        %v2196 = vadd.f32 0.0, %v2195
        %v2197 = vpop.f32.mrb[0].mxu0
        %v2198 = vpop.f32.mrb[0].mxu0
        %v2199 = vpop.f32.mrb[0].mxu0
        %2200 = vdwg.mxu0
        %v2202 = vsel %vm940, %v1942, 0
        %v2205 = vsel %vm1973, %v919, 0
        %2207 = vmatprep.subr.bf16.mxu0 0
        %2208 = vmatpush1.bf16.msra.mxu0 %v2205
        %2209 = vmatprep.subr.bf16.mxu0 0
        %2210 = vmatpush1.bf16.msra.mxu0 0
        %2211 = vmatprep.subr.bf16.mxu0 0
        %2212 = vmatpush1.bf16.msra.mxu0 0
        %2213 = vmatprep.subr.bf16.mxu0 0
        %2214 = vmatpush1.bf16.msra.mxu0 0
        %2215 = vmatprep.subr.bf16.mxu0 0
        %2216 = vmatpush1.bf16.msra.mxu0 0
        %2217 = vmatprep.subr.bf16.mxu0 0
        %2218 = vmatpush1.bf16.msra.mxu0 0
        %2219 = vmatprep.subr.bf16.mxu0 0
        %2220 = vmatpush1.bf16.msra.mxu0 0
        %2221 = vmatprep.subr.bf16.mxu0 0
        %2222 = vmatpush1.bf16.msra.mxu0 0
        %2223 = vmatprep.subr.bf16.mxu0 0
        %2224 = vmatpush1.bf16.msra.mxu0 0
        %2225 = vmatprep.subr.bf16.mxu0 0
        %2226 = vmatpush1.bf16.msra.mxu0 0
        %2227 = vmatprep.subr.bf16.mxu0 0
        %2228 = vmatpush1.bf16.msra.mxu0 0
        %2229 = vmatprep.subr.bf16.mxu0 0
        %2230 = vmatpush1.bf16.msra.mxu0 0
        %2231 = vmatprep.subr.bf16.mxu0 0
        %2232 = vmatpush1.bf16.msra.mxu0 0
        %2233 = vmatprep.subr.bf16.mxu0 0
        %2234 = vmatpush1.bf16.msra.mxu0 0
        %2235 = vmatprep.subr.bf16.mxu0 0
        %2236 = vmatpush1.bf16.msra.mxu0 0
        %2237 = vmatprep.subr.bf16.mxu0 0
        %2238 = vmatpush1.bf16.msra.mxu0 0
        %2239 = vmatprep.mubr.bf16.mxu0 0
        %2240 = vmatmul.mubr.bf16.gmra.mrb[0].mxu0 %v2202
        %v2241 = vpop.f32.mrb[0].mxu0
        %v2242 = vadd.f32 0.0, %v2241
        %v2243 = vpop.f32.mrb[0].mxu0
        %v2244 = vpop.f32.mrb[0].mxu0
        %v2245 = vpop.f32.mrb[0].mxu0
        %2246 = vdwg.mxu0
        %v2248 = vsel %vm940, %v1943, 0
        %v2251 = vsel %vm1973, %v927, 0
        %2253 = vmatprep.subr.bf16.mxu0 0
        %2254 = vmatpush1.bf16.msra.mxu0 %v2251
        %2255 = vmatprep.subr.bf16.mxu0 0
        %2256 = vmatpush1.bf16.msra.mxu0 0
        %2257 = vmatprep.subr.bf16.mxu0 0
        %2258 = vmatpush1.bf16.msra.mxu0 0
        %2259 = vmatprep.subr.bf16.mxu0 0
        %2260 = vmatpush1.bf16.msra.mxu0 0
        %2261 = vmatprep.subr.bf16.mxu0 0
        %2262 = vmatpush1.bf16.msra.mxu0 0
        %2263 = vmatprep.subr.bf16.mxu0 0
        %2264 = vmatpush1.bf16.msra.mxu0 0
        %2265 = vmatprep.subr.bf16.mxu0 0
        %2266 = vmatpush1.bf16.msra.mxu0 0
        %2267 = vmatprep.subr.bf16.mxu0 0
        %2268 = vmatpush1.bf16.msra.mxu0 0
        %2269 = vmatprep.subr.bf16.mxu0 0
        %2270 = vmatpush1.bf16.msra.mxu0 0
        %2271 = vmatprep.subr.bf16.mxu0 0
        %2272 = vmatpush1.bf16.msra.mxu0 0
        %2273 = vmatprep.subr.bf16.mxu0 0
        %2274 = vmatpush1.bf16.msra.mxu0 0
        %2275 = vmatprep.subr.bf16.mxu0 0
        %2276 = vmatpush1.bf16.msra.mxu0 0
        %2277 = vmatprep.subr.bf16.mxu0 0
        %2278 = vmatpush1.bf16.msra.mxu0 0
        %2279 = vmatprep.subr.bf16.mxu0 0
        %2280 = vmatpush1.bf16.msra.mxu0 0
        %2281 = vmatprep.subr.bf16.mxu0 0
        %2282 = vmatpush1.bf16.msra.mxu0 0
        %2283 = vmatprep.subr.bf16.mxu0 0
        %2284 = vmatpush1.bf16.msra.mxu0 0
        %2285 = vmatprep.mubr.bf16.mxu0 0
        %2286 = vmatmul.mubr.bf16.gmra.mrb[0].mxu0 %v2248
        %v2287 = vpop.f32.mrb[0].mxu0
        %v2288 = vadd.f32 0.0, %v2287
        %v2289 = vpop.f32.mrb[0].mxu0
        %v2290 = vpop.f32.mrb[0].mxu0
        %v2291 = vpop.f32.mrb[0].mxu0
        %2292 = vdwg.mxu0
        %v2294 = vsel %vm940, %v1944, 0
        %v2297 = vsel %vm1973, %v935, 0
        %2299 = vmatprep.subr.bf16.mxu0 0
        %2300 = vmatpush1.bf16.msra.mxu0 %v2297
        %2301 = vmatprep.subr.bf16.mxu0 0
        %2302 = vmatpush1.bf16.msra.mxu0 0
        %2303 = vmatprep.subr.bf16.mxu0 0
        %2304 = vmatpush1.bf16.msra.mxu0 0
        %2305 = vmatprep.subr.bf16.mxu0 0
        %2306 = vmatpush1.bf16.msra.mxu0 0
        %2307 = vmatprep.subr.bf16.mxu0 0
        %2308 = vmatpush1.bf16.msra.mxu0 0
        %2309 = vmatprep.subr.bf16.mxu0 0
        %2310 = vmatpush1.bf16.msra.mxu0 0
        %2311 = vmatprep.subr.bf16.mxu0 0
        %2312 = vmatpush1.bf16.msra.mxu0 0
        %2313 = vmatprep.subr.bf16.mxu0 0
        %2314 = vmatpush1.bf16.msra.mxu0 0
        %2315 = vmatprep.subr.bf16.mxu0 0
        %2316 = vmatpush1.bf16.msra.mxu0 0
        %2317 = vmatprep.subr.bf16.mxu0 0
        %2318 = vmatpush1.bf16.msra.mxu0 0
        %2319 = vmatprep.subr.bf16.mxu0 0
        %2320 = vmatpush1.bf16.msra.mxu0 0
        %2321 = vmatprep.subr.bf16.mxu0 0
        %2322 = vmatpush1.bf16.msra.mxu0 0
        %2323 = vmatprep.subr.bf16.mxu0 0
        %2324 = vmatpush1.bf16.msra.mxu0 0
        %2325 = vmatprep.subr.bf16.mxu0 0
        %2326 = vmatpush1.bf16.msra.mxu0 0
        %2327 = vmatprep.subr.bf16.mxu0 0
        %2328 = vmatpush1.bf16.msra.mxu0 0
        %2329 = vmatprep.subr.bf16.mxu0 0
        %2330 = vmatpush1.bf16.msra.mxu0 0
        %2331 = vmatprep.mubr.bf16.mxu0 0
        %2332 = vmatmul.mubr.bf16.gmra.mrb[0].mxu0 %v2294
        %v2333 = vpop.f32.mrb[0].mxu0
        %v2334 = vadd.f32 0.0, %v2333
        %v2335 = vpop.f32.mrb[0].mxu0
        %v2336 = vpop.f32.mrb[0].mxu0
        %v2337 = vpop.f32.mrb[0].mxu0
        %2338 = vdwg.mxu0
        %v2340 = vsel %vm940, %v1945, 0
        %v2343 = vsel %vm1973, %v914, 0
        %2345 = vmatprep.subr.bf16.mxu0 0
        %2346 = vmatpush1.bf16.msra.mxu0 %v2343
        %2347 = vmatprep.subr.bf16.mxu0 0
        %2348 = vmatpush1.bf16.msra.mxu0 0
        %2349 = vmatprep.subr.bf16.mxu0 0
        %2350 = vmatpush1.bf16.msra.mxu0 0
        %2351 = vmatprep.subr.bf16.mxu0 0
        %2352 = vmatpush1.bf16.msra.mxu0 0
        %2353 = vmatprep.subr.bf16.mxu0 0
        %2354 = vmatpush1.bf16.msra.mxu0 0
        %2355 = vmatprep.subr.bf16.mxu0 0
        %2356 = vmatpush1.bf16.msra.mxu0 0
        %2357 = vmatprep.subr.bf16.mxu0 0
        %2358 = vmatpush1.bf16.msra.mxu0 0
        %2359 = vmatprep.subr.bf16.mxu0 0
        %2360 = vmatpush1.bf16.msra.mxu0 0
        %2361 = vmatprep.subr.bf16.mxu0 0
        %2362 = vmatpush1.bf16.msra.mxu0 0
        %2363 = vmatprep.subr.bf16.mxu0 0
        %2364 = vmatpush1.bf16.msra.mxu0 0
        %2365 = vmatprep.subr.bf16.mxu0 0
        %2366 = vmatpush1.bf16.msra.mxu0 0
        %2367 = vmatprep.subr.bf16.mxu0 0
        %2368 = vmatpush1.bf16.msra.mxu0 0
        %2369 = vmatprep.subr.bf16.mxu0 0
        %2370 = vmatpush1.bf16.msra.mxu0 0
        %2371 = vmatprep.subr.bf16.mxu0 0
        %2372 = vmatpush1.bf16.msra.mxu0 0
        %2373 = vmatprep.subr.bf16.mxu0 0
        %2374 = vmatpush1.bf16.msra.mxu0 0
        %2375 = vmatprep.subr.bf16.mxu0 0
        %2376 = vmatpush1.bf16.msra.mxu0 0
        %2377 = vmatprep.mubr.bf16.mxu0 0
        %2378 = vmatmul.mubr.bf16.gmra.mrb[0].mxu0 %v2340
        %v2379 = vpop.f32.mrb[0].mxu0
        %v2380 = vadd.f32 0.0, %v2379
        %v2381 = vpop.f32.mrb[0].mxu0
        %v2382 = vpop.f32.mrb[0].mxu0
        %v2383 = vpop.f32.mrb[0].mxu0
        %2384 = vdwg.mxu0
        %v2386 = vsel %vm940, %v1946, 0
        %v2389 = vsel %vm1973, %v921, 0
        %2391 = vmatprep.subr.bf16.mxu0 0
        %2392 = vmatpush1.bf16.msra.mxu0 %v2389
        %2393 = vmatprep.subr.bf16.mxu0 0
        %2394 = vmatpush1.bf16.msra.mxu0 0
        %2395 = vmatprep.subr.bf16.mxu0 0
        %2396 = vmatpush1.bf16.msra.mxu0 0
        %2397 = vmatprep.subr.bf16.mxu0 0
        %2398 = vmatpush1.bf16.msra.mxu0 0
        %2399 = vmatprep.subr.bf16.mxu0 0
        %2400 = vmatpush1.bf16.msra.mxu0 0
        %2401 = vmatprep.subr.bf16.mxu0 0
        %2402 = vmatpush1.bf16.msra.mxu0 0
        %2403 = vmatprep.subr.bf16.mxu0 0
        %2404 = vmatpush1.bf16.msra.mxu0 0
        %2405 = vmatprep.subr.bf16.mxu0 0
        %2406 = vmatpush1.bf16.msra.mxu0 0
        %2407 = vmatprep.subr.bf16.mxu0 0
        %2408 = vmatpush1.bf16.msra.mxu0 0
        %2409 = vmatprep.subr.bf16.mxu0 0
        %2410 = vmatpush1.bf16.msra.mxu0 0
        %2411 = vmatprep.subr.bf16.mxu0 0
        %2412 = vmatpush1.bf16.msra.mxu0 0
        %2413 = vmatprep.subr.bf16.mxu0 0
        %2414 = vmatpush1.bf16.msra.mxu0 0
        %2415 = vmatprep.subr.bf16.mxu0 0
        %2416 = vmatpush1.bf16.msra.mxu0 0
        %2417 = vmatprep.subr.bf16.mxu0 0
        %2418 = vmatpush1.bf16.msra.mxu0 0
        %2419 = vmatprep.subr.bf16.mxu0 0
        %2420 = vmatpush1.bf16.msra.mxu0 0
        %2421 = vmatprep.subr.bf16.mxu0 0
        %2422 = vmatpush1.bf16.msra.mxu0 0
        %2423 = vmatprep.mubr.bf16.mxu0 0
        %2424 = vmatmul.mubr.bf16.gmra.mrb[0].mxu0 %v2386
        %v2425 = vpop.f32.mrb[0].mxu0
        %v2426 = vadd.f32 0.0, %v2425
        %v2427 = vpop.f32.mrb[0].mxu0
        %v2428 = vpop.f32.mrb[0].mxu0
        %v2429 = vpop.f32.mrb[0].mxu0
        %2430 = vdwg.mxu0
        %v2432 = vsel %vm940, %v1947, 0
        %v2435 = vsel %vm1973, %v929, 0
        %2437 = vmatprep.subr.bf16.mxu0 0
        %2438 = vmatpush1.bf16.msra.mxu0 %v2435
        %2439 = vmatprep.subr.bf16.mxu0 0
        %2440 = vmatpush1.bf16.msra.mxu0 0
        %2441 = vmatprep.subr.bf16.mxu0 0
        %2442 = vmatpush1.bf16.msra.mxu0 0
        %2443 = vmatprep.subr.bf16.mxu0 0
        %2444 = vmatpush1.bf16.msra.mxu0 0
        %2445 = vmatprep.subr.bf16.mxu0 0
        %2446 = vmatpush1.bf16.msra.mxu0 0
        %2447 = vmatprep.subr.bf16.mxu0 0
        %2448 = vmatpush1.bf16.msra.mxu0 0
        %2449 = vmatprep.subr.bf16.mxu0 0
        %2450 = vmatpush1.bf16.msra.mxu0 0
        %2451 = vmatprep.subr.bf16.mxu0 0
        %2452 = vmatpush1.bf16.msra.mxu0 0
        %2453 = vmatprep.subr.bf16.mxu0 0
        %2454 = vmatpush1.bf16.msra.mxu0 0
        %2455 = vmatprep.subr.bf16.mxu0 0
        %2456 = vmatpush1.bf16.msra.mxu0 0
        %2457 = vmatprep.subr.bf16.mxu0 0
        %2458 = vmatpush1.bf16.msra.mxu0 0
        %2459 = vmatprep.subr.bf16.mxu0 0
        %2460 = vmatpush1.bf16.msra.mxu0 0
        %2461 = vmatprep.subr.bf16.mxu0 0
        %2462 = vmatpush1.bf16.msra.mxu0 0
        %2463 = vmatprep.subr.bf16.mxu0 0
        %2464 = vmatpush1.bf16.msra.mxu0 0
        %2465 = vmatprep.subr.bf16.mxu0 0
        %2466 = vmatpush1.bf16.msra.mxu0 0
        %2467 = vmatprep.subr.bf16.mxu0 0
        %2468 = vmatpush1.bf16.msra.mxu0 0
        %2469 = vmatprep.mubr.bf16.mxu0 0
        %2470 = vmatmul.mubr.bf16.gmra.mrb[0].mxu0 %v2432
        %v2471 = vpop.f32.mrb[0].mxu0
        %v2472 = vadd.f32 0.0, %v2471
        %v2473 = vpop.f32.mrb[0].mxu0
        %v2474 = vpop.f32.mrb[0].mxu0
        %v2475 = vpop.f32.mrb[0].mxu0
        %2476 = vdwg.mxu0
        %v2478 = vsel %vm940, %v1948, 0
        %v2481 = vsel %vm1973, %v937, 0
        %2483 = vmatprep.subr.bf16.mxu0 0
        %2484 = vmatpush1.bf16.msra.mxu0 %v2481
        %2485 = vmatprep.subr.bf16.mxu0 0
        %2486 = vmatpush1.bf16.msra.mxu0 0
        %2487 = vmatprep.subr.bf16.mxu0 0
        %2488 = vmatpush1.bf16.msra.mxu0 0
        %2489 = vmatprep.subr.bf16.mxu0 0
        %2490 = vmatpush1.bf16.msra.mxu0 0
        %2491 = vmatprep.subr.bf16.mxu0 0
        %2492 = vmatpush1.bf16.msra.mxu0 0
        %2493 = vmatprep.subr.bf16.mxu0 0
        %2494 = vmatpush1.bf16.msra.mxu0 0
        %2495 = vmatprep.subr.bf16.mxu0 0
        %2496 = vmatpush1.bf16.msra.mxu0 0
        %2497 = vmatprep.subr.bf16.mxu0 0
        %2498 = vmatpush1.bf16.msra.mxu0 0
        %2499 = vmatprep.subr.bf16.mxu0 0
        %2500 = vmatpush1.bf16.msra.mxu0 0
        %2501 = vmatprep.subr.bf16.mxu0 0
        %2502 = vmatpush1.bf16.msra.mxu0 0
        %2503 = vmatprep.subr.bf16.mxu0 0
        %2504 = vmatpush1.bf16.msra.mxu0 0
        %2505 = vmatprep.subr.bf16.mxu0 0
        %2506 = vmatpush1.bf16.msra.mxu0 0
        %2507 = vmatprep.subr.bf16.mxu0 0
        %2508 = vmatpush1.bf16.msra.mxu0 0
        %2509 = vmatprep.subr.bf16.mxu0 0
        %2510 = vmatpush1.bf16.msra.mxu0 0
        %2511 = vmatprep.subr.bf16.mxu0 0
        %2512 = vmatpush1.bf16.msra.mxu0 0
        %2513 = vmatprep.subr.bf16.mxu0 0
        %2514 = vmatpush1.bf16.msra.mxu0 0
        %2515 = vmatprep.mubr.bf16.mxu0 0
        %2516 = vmatmul.mubr.bf16.gmra.mrb[0].mxu0 %v2478
        %v2517 = vpop.f32.mrb[0].mxu0
        %v2518 = vadd.f32 0.0, %v2517
        %v2519 = vpop.f32.mrb[0].mxu0
        %v2520 = vpop.f32.mrb[0].mxu0
        %v2521 = vpop.f32.mrb[0].mxu0
        %2522 = vdwg.mxu0
        %v2524 = vsel %vm940, %v1949, 0
        %v2527 = vsel %vm1973, %v915, 0
        %2529 = vmatprep.subr.bf16.mxu0 0
        %2530 = vmatpush1.bf16.msra.mxu0 %v2527
        %2531 = vmatprep.subr.bf16.mxu0 0
        %2532 = vmatpush1.bf16.msra.mxu0 0
        %2533 = vmatprep.subr.bf16.mxu0 0
        %2534 = vmatpush1.bf16.msra.mxu0 0
        %2535 = vmatprep.subr.bf16.mxu0 0
        %2536 = vmatpush1.bf16.msra.mxu0 0
        %2537 = vmatprep.subr.bf16.mxu0 0
        %2538 = vmatpush1.bf16.msra.mxu0 0
        %2539 = vmatprep.subr.bf16.mxu0 0
        %2540 = vmatpush1.bf16.msra.mxu0 0
        %2541 = vmatprep.subr.bf16.mxu0 0
        %2542 = vmatpush1.bf16.msra.mxu0 0
        %2543 = vmatprep.subr.bf16.mxu0 0
        %2544 = vmatpush1.bf16.msra.mxu0 0
        %2545 = vmatprep.subr.bf16.mxu0 0
        %2546 = vmatpush1.bf16.msra.mxu0 0
        %2547 = vmatprep.subr.bf16.mxu0 0
        %2548 = vmatpush1.bf16.msra.mxu0 0
        %2549 = vmatprep.subr.bf16.mxu0 0
        %2550 = vmatpush1.bf16.msra.mxu0 0
        %2551 = vmatprep.subr.bf16.mxu0 0
        %2552 = vmatpush1.bf16.msra.mxu0 0
        %2553 = vmatprep.subr.bf16.mxu0 0
        %2554 = vmatpush1.bf16.msra.mxu0 0
        %2555 = vmatprep.subr.bf16.mxu0 0
        %2556 = vmatpush1.bf16.msra.mxu0 0
        %2557 = vmatprep.subr.bf16.mxu0 0
        %2558 = vmatpush1.bf16.msra.mxu0 0
        %2559 = vmatprep.subr.bf16.mxu0 0
        %2560 = vmatpush1.bf16.msra.mxu0 0
        %2561 = vmatprep.mubr.bf16.mxu0 0
        %2562 = vmatmul.mubr.bf16.gmra.mrb[0].mxu0 %v2524
        %v2563 = vpop.f32.mrb[0].mxu0
        %v2564 = vadd.f32 0.0, %v2563
        %v2565 = vpop.f32.mrb[0].mxu0
        %v2566 = vpop.f32.mrb[0].mxu0
        %v2567 = vpop.f32.mrb[0].mxu0
        %2568 = vdwg.mxu0
        %v2570 = vsel %vm940, %v1950, 0
        %v2573 = vsel %vm1973, %v923, 0
        %2575 = vmatprep.subr.bf16.mxu0 0
        %2576 = vmatpush1.bf16.msra.mxu0 %v2573
        %2577 = vmatprep.subr.bf16.mxu0 0
        %2578 = vmatpush1.bf16.msra.mxu0 0
        %2579 = vmatprep.subr.bf16.mxu0 0
        %2580 = vmatpush1.bf16.msra.mxu0 0
        %2581 = vmatprep.subr.bf16.mxu0 0
        %2582 = vmatpush1.bf16.msra.mxu0 0
        %2583 = vmatprep.subr.bf16.mxu0 0
        %2584 = vmatpush1.bf16.msra.mxu0 0
        %2585 = vmatprep.subr.bf16.mxu0 0
        %2586 = vmatpush1.bf16.msra.mxu0 0
        %2587 = vmatprep.subr.bf16.mxu0 0
        %2588 = vmatpush1.bf16.msra.mxu0 0
        %2589 = vmatprep.subr.bf16.mxu0 0
        %2590 = vmatpush1.bf16.msra.mxu0 0
        %2591 = vmatprep.subr.bf16.mxu0 0
        %2592 = vmatpush1.bf16.msra.mxu0 0
        %2593 = vmatprep.subr.bf16.mxu0 0
        %2594 = vmatpush1.bf16.msra.mxu0 0
        %2595 = vmatprep.subr.bf16.mxu0 0
        %2596 = vmatpush1.bf16.msra.mxu0 0
        %2597 = vmatprep.subr.bf16.mxu0 0
        %2598 = vmatpush1.bf16.msra.mxu0 0
        %2599 = vmatprep.subr.bf16.mxu0 0
        %2600 = vmatpush1.bf16.msra.mxu0 0
        %2601 = vmatprep.subr.bf16.mxu0 0
        %2602 = vmatpush1.bf16.msra.mxu0 0
        %2603 = vmatprep.subr.bf16.mxu0 0
        %2604 = vmatpush1.bf16.msra.mxu0 0
        %2605 = vmatprep.subr.bf16.mxu0 0
        %2606 = vmatpush1.bf16.msra.mxu0 0
        %2607 = vmatprep.mubr.bf16.mxu0 0
        %2608 = vmatmul.mubr.bf16.gmra.mrb[0].mxu0 %v2570
        %v2609 = vpop.f32.mrb[0].mxu0
        %v2610 = vadd.f32 0.0, %v2609
        %v2611 = vpop.f32.mrb[0].mxu0
        %v2612 = vpop.f32.mrb[0].mxu0
        %v2613 = vpop.f32.mrb[0].mxu0
        %2614 = vdwg.mxu0
        %v2616 = vsel %vm940, %v1951, 0
        %v2619 = vsel %vm1973, %v931, 0
        %2621 = vmatprep.subr.bf16.mxu0 0
        %2622 = vmatpush1.bf16.msra.mxu0 %v2619
        %2623 = vmatprep.subr.bf16.mxu0 0
        %2624 = vmatpush1.bf16.msra.mxu0 0
        %2625 = vmatprep.subr.bf16.mxu0 0
        %2626 = vmatpush1.bf16.msra.mxu0 0
        %2627 = vmatprep.subr.bf16.mxu0 0
        %2628 = vmatpush1.bf16.msra.mxu0 0
        %2629 = vmatprep.subr.bf16.mxu0 0
        %2630 = vmatpush1.bf16.msra.mxu0 0
        %2631 = vmatprep.subr.bf16.mxu0 0
        %2632 = vmatpush1.bf16.msra.mxu0 0
        %2633 = vmatprep.subr.bf16.mxu0 0
        %2634 = vmatpush1.bf16.msra.mxu0 0
        %2635 = vmatprep.subr.bf16.mxu0 0
        %2636 = vmatpush1.bf16.msra.mxu0 0
        %2637 = vmatprep.subr.bf16.mxu0 0
        %2638 = vmatpush1.bf16.msra.mxu0 0
        %2639 = vmatprep.subr.bf16.mxu0 0
        %2640 = vmatpush1.bf16.msra.mxu0 0
        %2641 = vmatprep.subr.bf16.mxu0 0
        %2642 = vmatpush1.bf16.msra.mxu0 0
        %2643 = vmatprep.subr.bf16.mxu0 0
        %2644 = vmatpush1.bf16.msra.mxu0 0
        %2645 = vmatprep.subr.bf16.mxu0 0
        %2646 = vmatpush1.bf16.msra.mxu0 0
        %2647 = vmatprep.subr.bf16.mxu0 0
        %2648 = vmatpush1.bf16.msra.mxu0 0
        %2649 = vmatprep.subr.bf16.mxu0 0
        %2650 = vmatpush1.bf16.msra.mxu0 0
        %2651 = vmatprep.subr.bf16.mxu0 0
        %2652 = vmatpush1.bf16.msra.mxu0 0
        %2653 = vmatprep.mubr.bf16.mxu0 0
        %2654 = vmatmul.mubr.bf16.gmra.mrb[0].mxu0 %v2616
        %v2655 = vpop.f32.mrb[0].mxu0
        %v2656 = vadd.f32 0.0, %v2655
        %v2657 = vpop.f32.mrb[0].mxu0
        %v2658 = vpop.f32.mrb[0].mxu0
        %v2659 = vpop.f32.mrb[0].mxu0
        %2660 = vdwg.mxu0
        %v2662 = vsel %vm940, %v1952, 0
        %v2665 = vsel %vm1973, %v939, 0
        %2667 = vmatprep.subr.bf16.mxu0 0
        %2668 = vmatpush1.bf16.msra.mxu0 %v2665
        %2669 = vmatprep.subr.bf16.mxu0 0
        %2670 = vmatpush1.bf16.msra.mxu0 0
        %2671 = vmatprep.subr.bf16.mxu0 0
        %2672 = vmatpush1.bf16.msra.mxu0 0
        %2673 = vmatprep.subr.bf16.mxu0 0
        %2674 = vmatpush1.bf16.msra.mxu0 0
        %2675 = vmatprep.subr.bf16.mxu0 0
        %2676 = vmatpush1.bf16.msra.mxu0 0
        %2677 = vmatprep.subr.bf16.mxu0 0
        %2678 = vmatpush1.bf16.msra.mxu0 0
        %2679 = vmatprep.subr.bf16.mxu0 0
        %2680 = vmatpush1.bf16.msra.mxu0 0
        %2681 = vmatprep.subr.bf16.mxu0 0
        %2682 = vmatpush1.bf16.msra.mxu0 0
        %2683 = vmatprep.subr.bf16.mxu0 0
        %2684 = vmatpush1.bf16.msra.mxu0 0
        %2685 = vmatprep.subr.bf16.mxu0 0
        %2686 = vmatpush1.bf16.msra.mxu0 0
        %2687 = vmatprep.subr.bf16.mxu0 0
        %2688 = vmatpush1.bf16.msra.mxu0 0
        %2689 = vmatprep.subr.bf16.mxu0 0
        %2690 = vmatpush1.bf16.msra.mxu0 0
        %2691 = vmatprep.subr.bf16.mxu0 0
        %2692 = vmatpush1.bf16.msra.mxu0 0
        %2693 = vmatprep.subr.bf16.mxu0 0
        %2694 = vmatpush1.bf16.msra.mxu0 0
        %2695 = vmatprep.subr.bf16.mxu0 0
        %2696 = vmatpush1.bf16.msra.mxu0 0
        %2697 = vmatprep.subr.bf16.mxu0 0
        %2698 = vmatpush1.bf16.msra.mxu0 0
        %2699 = vmatprep.mubr.bf16.mxu0 0
        %2700 = vmatmul.mubr.bf16.gmra.mrb[0].mxu0 %v2662
        %v2701 = vpop.f32.mrb[0].mxu0
        %v2702 = vadd.f32 0.0, %v2701
        %v2703 = vpop.f32.mrb[0].mxu0
        %v2704 = vpop.f32.mrb[0].mxu0
        %v2705 = vpop.f32.mrb[0].mxu0
        %2706 = vdwg.mxu0
        %2711 = vrot.lane.b32.xlu0 %v2058, 8
        %v2712 = vpop.permute.xlu0 %2711
        %2713 = vrot.lane.b32.xlu0 %v2242, 8
        %v2714 = vpop.permute.xlu0 %2713
        %2715 = vrot.lane.b32.xlu0 %v2426, 8
        %v2716 = vpop.permute.xlu0 %2715
        %2717 = vrot.lane.b32.xlu0 %v2610, 8
        %v2718 = vpop.permute.xlu0 %2717
        %2727 = vrot.lane.b32.xlu0 %v2104, 16
        %v2728 = vpop.permute.xlu0 %2727
        %2729 = vrot.lane.b32.xlu0 %v2288, 16
        %v2730 = vpop.permute.xlu0 %2729
        %2731 = vrot.lane.b32.xlu0 %v2472, 16
        %v2732 = vpop.permute.xlu0 %2731
        %2733 = vrot.lane.b32.xlu0 %v2656, 16
        %v2734 = vpop.permute.xlu0 %2733
        %2743 = vrot.lane.b32.xlu0 %v2150, 24
        %v2744 = vpop.permute.xlu0 %2743
        %2745 = vrot.lane.b32.xlu0 %v2334, 24
        %v2746 = vpop.permute.xlu0 %2745
        %2747 = vrot.lane.b32.xlu0 %v2518, 24
        %v2748 = vpop.permute.xlu0 %2747
        %2749 = vrot.lane.b32.xlu0 %v2702, 24
        %v2750 = vpop.permute.xlu0 %2749
        %v2755 = vsel %vm940, %v2012, %v2712
        %v2756 = vsel %vm940, %v2196, %v2714
        %v2757 = vsel %vm940, %v2380, %v2716
        %v2758 = vsel %vm940, %v2564, %v2718
        %vm2759 = vcmask 130048
        %v2760 = vsel %vm2759, %v2755, %v2728
        %v2761 = vsel %vm2759, %v2756, %v2730
        %v2762 = vsel %vm2759, %v2757, %v2732
        %v2763 = vsel %vm2759, %v2758, %v2734
        %vm2764 = vcmask 195584
        %v2765 = vsel %vm2764, %v2760, %v2744
        %v2766 = vsel %vm2764, %v2761, %v2746
        %v2767 = vsel %vm2764, %v2762, %v2748
        %v2768 = vsel %vm2764, %v2763, %v2750
        %v2769 = vpack.c.bf16 %v2766, %v2765
        %v2770 = vpack.c.bf16 %v2768, %v2767
        %v2771 = vld [vmem:[#allocation7] sm:$0xf]
        %v2772 = vld [vmem:[#allocation7 + $0x4] sm:$0xf]
        %v2773 = vld [vmem:[#allocation7 + $0x8] sm:$0xf]
        %v2774 = vld [vmem:[#allocation7 + $0xc] sm:$0xf]
        %v2775 = vld [vmem:[%s11] sm:$0x1]
        %v2777 = vlaneseq
        %v2778 = vshrl.u32 %v2777, 7
        %v2779 = vsub.s32 0, %v2778
        %v2780 = vrot.slane %v2775, %v2779
        %v2786 = vunpack.c.l.b16 %v2771
        %v2787 = vunpack.c.l.b16 %v2772
        %v2788 = vunpack.c.l.b16 %v2773
        %v2789 = vunpack.c.l.b16 %v2774
        %v2790 = vpack.c.b16 %v2787, %v2786
        %v2791 = vpack.c.b16 %v2789, %v2788
        %v2795 = vsel %vm530, %v2769, 0
        %v2798 = vsel %vm530, %v2770, 0
        %2800 = vmatprep.subr.bf16.mxu0 0
        %2801 = vmatpush1.bf16.msra.mxu0 %v2790
        %2802 = vmatprep.subr.bf16.mxu0 0
        %2803 = vmatpush1.bf16.msra.mxu0 %v2791
        %2804 = vmatprep.subr.bf16.mxu0 0
        %2805 = vmatpush1.bf16.msra.mxu0 0
        %2806 = vmatprep.subr.bf16.mxu0 0
        %2807 = vmatpush1.bf16.msra.mxu0 0
        %2808 = vmatprep.subr.bf16.mxu0 0
        %2809 = vmatpush1.bf16.msra.mxu0 0
        %2810 = vmatprep.subr.bf16.mxu0 0
        %2811 = vmatpush1.bf16.msra.mxu0 0
        %2812 = vmatprep.subr.bf16.mxu0 0
        %2813 = vmatpush1.bf16.msra.mxu0 0
        %2814 = vmatprep.subr.bf16.mxu0 0
        %2815 = vmatpush1.bf16.msra.mxu0 0
        %2816 = vmatprep.subr.bf16.mxu0 0
        %2817 = vmatpush1.bf16.msra.mxu0 0
        %2818 = vmatprep.subr.bf16.mxu0 0
        %2819 = vmatpush1.bf16.msra.mxu0 0
        %2820 = vmatprep.subr.bf16.mxu0 0
        %2821 = vmatpush1.bf16.msra.mxu0 0
        %2822 = vmatprep.subr.bf16.mxu0 0
        %2823 = vmatpush1.bf16.msra.mxu0 0
        %2824 = vmatprep.subr.bf16.mxu0 0
        %2825 = vmatpush1.bf16.msra.mxu0 0
        %2826 = vmatprep.subr.bf16.mxu0 0
        %2827 = vmatpush1.bf16.msra.mxu0 0
        %2828 = vmatprep.subr.bf16.mxu0 0
        %2829 = vmatpush1.bf16.msra.mxu0 0
        %2830 = vmatprep.subr.bf16.mxu0 0
        %2831 = vmatpush1.bf16.msra.mxu0 0
        %2832 = vmatprep.mubr.bf16.mxu0 0
        %2833 = vmatmul.mubr.bf16.gmra.mrb[0].mxu0 %v2795
        %v2834 = vpop.f32.mrb[0].mxu0
        %v2835 = vadd.f32 %v2780, %v2834
        %v2836 = vpop.f32.mrb[0].mxu0
        %v2837 = vpop.f32.mrb[0].mxu0
        %v2838 = vadd.f32 %v2780, %v2837
        %v2839 = vpop.f32.mrb[0].mxu0
        %2840 = vmatprep.mubr.bf16.mxu0 0
        %2841 = vmatmul.mubr.bf16.gmra.mrb[0].mxu0 %v2798
        %v2842 = vpop.f32.mrb[0].mxu0
        %v2843 = vadd.f32 %v2780, %v2842
        %v2844 = vpop.f32.mrb[0].mxu0
        %v2845 = vpop.f32.mrb[0].mxu0
        %v2846 = vadd.f32 %v2780, %v2845
        %v2847 = vpop.f32.mrb[0].mxu0
        %2848 = vdwg.mxu0
        %v2849 = vadd.f32 %v2835, %v520
        %v2850 = vadd.f32 %v2838, %v521
        %v2851 = vadd.f32 %v2843, %v522
        %v2852 = vadd.f32 %v2846, %v523
        %2853 = vst.msk [vmem:[%s516] sm:$0xff] %vm530, %v2849
        %2854 = vst.msk [vmem:[%s516 + $0x8] sm:$0xff] %vm530, %v2850
        %2855 = vst.msk [vmem:[%s516 + $0x10] sm:$0xff] %vm530, %v2851
        %2856 = vst.msk [vmem:[%s516 + $0x18] sm:$0xff] %vm530, %v2852
        %s2857 = smul.u32 4, %s30
        %p2858 = scmp.lt.s32.totalorder %s2857, 7
        %s2859 = scalar_select %p2858, %s2857, 7
        %s2860 = smul.addr %s2859, 8
        %s2861 = scalar_lea.vmem %s12, %s2860
        %s2862 = sand.u32 %s326, 1
        %s2863 = scalar_lea.sflag [#allocation4], %s2862
        %s2864 = sand.u32 %s326, 1
        %s2865 = smul.addr %s2864, 64
        %s2866 = scalar_lea.vmem [#allocation8], %s2865
        // Predicated region
        $region81: #{encoder_layer_forward.3} parent=67 // pred_check
          %p2867 = pneg %p310
        $region82: #{encoder_layer_forward.3} parent=67 // pred_check_branch
          %2869 = sbr.rel (%p2867) target = $region84
        $region83: #{encoder_layer_forward.3} parent=67 // pred_region
          %s2870 = smul.u32 4, %s30
        $region84: #{encoder_layer_forward.3} parent=67 // pred_fallthru
          _
        // Predicated region
        $region85: #{encoder_layer_forward.3} parent=67 // pred_check
          %p2871 = pneg %p336
        $region86: #{encoder_layer_forward.3} parent=67 // pred_check_branch
          %2873 = sbr.rel (%p2871) target = $region88
        $region87: #{encoder_layer_forward.3} parent=67 // pred_region
          %s2874 = smul.u32 4, %s30
          %s2876 = ssub.s32 1024, 1024
          %2877 = vsyncadd %s2863, %s2876
          %s2878 = smul.addr %s2874, 4
          %s2879 = smul.addr %s2878, 64
          %s2880 = scalar_lea.hbm %s13, %s2879
          %s2881 = sshll.u32 %s2866, 4
          %s2882 = int_to_ptr.vmem [resolvable:$true] %s2881
          %2887 = dma.vmem_to_hbm [thread:$0]  %s2882, 1024, %s2880, %s2863, 64, 64, 4
        $region88: #{encoder_layer_forward.3} parent=67 // pred_fallthru
          _
      $region68: #{encoder_layer_forward.3} parent=5 // pred_fallthru
        _
      %p2888 = scmp.le.s32.totalorder 2, %s25
      // Predicated region
      $region89: #{encoder_layer_forward.3} parent=5 // pred_check
        %p2889 = pneg %p2888
      $region90: #{encoder_layer_forward.3} parent=5 // pred_check_branch
        %2891 = sbr.rel (%p2889) target = $region92
      $region91: #{encoder_layer_forward.3} parent=5 // pred_region
        %s2892 = ssub.s32 %s25, 2
        // Predicated region
        $region93: #{encoder_layer_forward.3} parent=91 // pred_check
          %p2893 = pneg %p316
        $region94: #{encoder_layer_forward.3} parent=91 // pred_check_branch
          %2895 = sbr.rel (%p2893) target = $region96
        $region95: #{encoder_layer_forward.3} parent=91 // pred_region
          %s2896 = smul.u32 4, %s31
          %p2897 = scmp.lt.s32.totalorder %s2896, 7
          %s2898 = scalar_select %p2897, %s2896, 7
          %s2899 = smul.addr %s2898, 8
          %s2900 = scalar_lea.vmem %s12, %s2899
        $region96: #{encoder_layer_forward.3} parent=91 // pred_fallthru
          _
        // Predicated region
        $region97: #{encoder_layer_forward.3} parent=91 // pred_check
          %p2901 = pneg %p342
        $region98: #{encoder_layer_forward.3} parent=91 // pred_check_branch
          %2903 = sbr.rel (%p2901) target = $region100
        $region99: #{encoder_layer_forward.3} parent=91 // pred_region
          %s2904 = sand.u32 %s327, 1
          %s2905 = scalar_lea.sflag [#allocation4], %s2904
          %s2906 = sand.u32 %s327, 1
          %s2907 = smul.addr %s2906, 64
          %s2908 = scalar_lea.vmem [#allocation8], %s2907
          %2909 = dma.done %s2905, 1024
        $region100: #{encoder_layer_forward.3} parent=91 // pred_fallthru
          _
      $region92: #{encoder_layer_forward.3} parent=5 // pred_fallthru
        _
    $region6: #{encoder_layer_forward.3} parent=1 // loop_footer
      %s29 = sadd.s32 1, %s25
    $region7: #{encoder_layer_forward.3} parent=1 // loop_footer_branch
      %24 = sbr.rel target = $region3
    $region8: #{encoder_layer_forward.3} parent=1 // loop_exit
      _
    %2910 = vsyncpa [#allocation3], 1
    %s2911 = scalar_lea.sflag [#allocation3], 1
    %2912 = vsyncpa %s2911, 1
    %2913 = vsyncpa [#allocation6], 1
    %2914 = vsyncpa [#allocation4], 1
    %s2915 = scalar_lea.sflag [#allocation4], 1
    %2916 = vsyncpa %s2915, 1

// kernel: encoder_layer_forward.4
$region0: #{encoder_layer_forward.4}
  #allocation0 [shape = 'u32[]', space=smem, size = 0x4, offset = 0x4, fixed_abs, tag = 'smem constant byte address 0x4 - core index']
  #allocation1 [shape = 'u32[144,128]{1,0:T(1,128)}', space=vmem, size = 0x12000, scoped, tag = 'internal scratch']
  %s0 = inlined_call_operand.vmem [shape: f32[2,4,8,32], index: 0, kind: input, shape index: {}]
  %s1 = inlined_call_operand.vmem [shape: f32[2,8,1,4], index: 1, kind: input, shape index: {}]
  %s2 = inlined_call_operand.vmem [shape: f32[1,32], index: 2, kind: input, shape index: {}]
  %s3 = inlined_call_operand.vmem [shape: f32[1,32], index: 3, kind: input, shape index: {}]
  %s4 = inlined_call_operand.vmem [shape: bf16[32,32], index: 4, kind: input, shape index: {}]
  %s5 = inlined_call_operand.vmem [shape: f32[1,32], index: 5, kind: input, shape index: {}]
  %s6 = inlined_call_operand.vmem [shape: bf16[32,32], index: 6, kind: input, shape index: {}]
  %s7 = inlined_call_operand.vmem [shape: f32[1,32], index: 7, kind: input, shape index: {}]
  %s8 = inlined_call_operand.vmem [shape: bf16[32,32], index: 8, kind: input, shape index: {}]
  %s9 = inlined_call_operand.vmem [shape: f32[1,32], index: 9, kind: input, shape index: {}]
  %s10 = inlined_call_operand.vmem [shape: bf16[32,32], index: 10, kind: input, shape index: {}]
  %s11 = inlined_call_operand.vmem [shape: f32[1,32], index: 11, kind: input, shape index: {}]
  %s12 = inlined_call_operand.vmem [shape: f32[2,4,8,32], index: 12, kind: output, shape index: {0}]
  %s13 = inlined_call_operand.vmem [shape: bf16[2,8,4,4,4], index: 13, kind: output, shape index: {1}]
  %14 = xla_tuple %s12, %s13
  %s15 = sld [smem:[#allocation0]]
  $region89: #{encoder_layer_forward.4} parent=0
    _
  %s17 = ssub.s32 1, %s15
  %s18 = scalar_select 0, %s17, %s15
  loop: start=0, step=1, limit=4
  $region2: #{encoder_layer_forward.4} parent=0 // loop_pre_header
    _
  $region3: #{encoder_layer_forward.4} parent=0 // loop_header
    %s20 = sphi 0, %s24
    %p21 = scmp.ge.s32.totalorder %s20, 4
    %s27 = sphi 0, %s39
    %s28 = sphi 0, %s35
    %s29 = sphi 0, %s27
    %s30 = sphi 0, %s28
    %s31 = sphi 0, %s29
    %s32 = sphi 0, %s30
    %s44 = sphi 0, %s46
    %s47 = sphi 0, %s44
    %s48 = sphi 0, %s47
    %s64 = sphi 0, %s48
    %s72 = sphi 0, %s74
    %s75 = sphi 0, %s72
    %s76 = sphi 0, %s75
    %s92 = sphi 0, %s76
    %s96 = sphi 0, %s96
    %s98 = sphi 0, %s96
    %s99 = sphi 0, %s98
    %s113 = sphi 0, %s99
    %s117 = sphi 0, %s117
    %s119 = sphi 0, %s117
    %s120 = sphi 0, %s119
    %s134 = sphi 0, %s120
    %s138 = sphi 0, %s138
    %s140 = sphi 0, %s138
    %s141 = sphi 0, %s140
    %s155 = sphi 0, %s141
    %s159 = sphi 0, %s159
    %s161 = sphi 0, %s159
    %s162 = sphi 0, %s161
    %s176 = sphi 0, %s162
    %s180 = sphi 0, %s180
    %s182 = sphi 0, %s180
    %s183 = sphi 0, %s182
    %s197 = sphi 0, %s183
    %s201 = sphi 0, %s201
    %s203 = sphi 0, %s201
    %s204 = sphi 0, %s203
    %s218 = sphi 0, %s204
    %s222 = sphi 0, %s222
    %s224 = sphi 0, %s222
    %s225 = sphi 0, %s224
    %s239 = sphi 0, %s225
    %s243 = sphi 0, %s243
    %s245 = sphi 0, %s243
    %s246 = sphi 0, %s245
    %s260 = sphi 0, %s246
    %s264 = sphi 0, %s264
    %s266 = sphi 0, %s264
    %s267 = sphi 0, %s266
    %s281 = sphi 0, %s267
    %s285 = sphi 0, %s285
    %s287 = sphi 0, %s285
    %s288 = sphi 0, %s287
    %s302 = sphi 0, %s288
    %s310 = sphi 0, %s312
    %s313 = sphi 0, %s310
    %s314 = sphi 0, %s313
    %s330 = sphi 0, %s314
    %s338 = sphi 0, %s340
    %s341 = sphi 0, %s338
    %s342 = sphi 0, %s341
    %s358 = sphi 0, %s342
  $region4: #{encoder_layer_forward.4} parent=0 // loop_header_branch
    %23 = sbr.rel (%p21) target = $region8
  $region5: #{encoder_layer_forward.4} parent=0 // loop_body
    %s25 = ssub.s32 %s20, 1
    %s26 = ssub.s32 %s20, 2
    %s33 = sadd.s32 1, %s28
    %p34 = scmp.ge.s32.totalorder %s33, 1
    %s35 = scalar_select %p34, 0, %s33
    %s36 = sadd.s32 1, %s27
    %s37 = scalar_select %p34, %s36, %s27
    %p38 = scmp.ge.s32.totalorder %s37, 2
    %s39 = scalar_select %p38, 0, %s37
    %s40 = ssub.s32 %s27, %s39
    %s41 = ssub.s32 %s28, %s35
    %s42 = sor.u32 %s40, %s41
    %p43 = scmp.eq.s32.totalorder %s42, 0
    %s45 = sadd.s32 %s44, 1
    %s46 = scalar_select %p43, %s44, %s45
    %p49 = pneg %p43
    %p50 = scmp.eq.s32.totalorder %s20, 1
    %p51 = por %p49, %p50
    %p52 = scmp.ne.s32.totalorder %s44, %s47
    %p53 = scmp.eq.s32.totalorder %s20, 0
    %p54 = por %p52, %p53
    %p55 = scmp.ne.s32.totalorder %s44, %s47
    %p56 = scmp.eq.s32.totalorder %s25, 1
    %p57 = por %p55, %p56
    %p58 = scmp.ne.s32.totalorder %s47, %s48
    %p59 = scmp.eq.s32.totalorder %s25, 0
    %p60 = por %p58, %p59
    %p61 = scmp.ne.s32.totalorder %s47, %s48
    %p62 = scmp.eq.s32.totalorder %s26, 1
    %p63 = por %p61, %p62
    %p65 = scmp.ne.s32.totalorder %s48, %s64
    %p66 = scmp.eq.s32.totalorder %s26, 0
    %p67 = por %p65, %p66
    %s68 = ssub.s32 %s27, %s39
    %s69 = ssub.s32 %s28, %s35
    %s70 = sor.u32 %s68, %s69
    %p71 = scmp.eq.s32.totalorder %s70, 0
    %s73 = sadd.s32 %s72, 1
    %s74 = scalar_select %p71, %s72, %s73
    %p77 = pneg %p71
    %p78 = scmp.eq.s32.totalorder %s20, 1
    %p79 = por %p77, %p78
    %p80 = scmp.ne.s32.totalorder %s72, %s75
    %p81 = scmp.eq.s32.totalorder %s20, 0
    %p82 = por %p80, %p81
    %p83 = scmp.ne.s32.totalorder %s72, %s75
    %p84 = scmp.eq.s32.totalorder %s25, 1
    %p85 = por %p83, %p84
    %p86 = scmp.ne.s32.totalorder %s75, %s76
    %p87 = scmp.eq.s32.totalorder %s25, 0
    %p88 = por %p86, %p87
    %p89 = scmp.ne.s32.totalorder %s75, %s76
    %p90 = scmp.eq.s32.totalorder %s26, 1
    %p91 = por %p89, %p90
    %p93 = scmp.ne.s32.totalorder %s76, %s92
    %p94 = scmp.eq.s32.totalorder %s26, 0
    %p95 = por %p93, %p94
    %s97 = sadd.s32 %s96, 1
    %p100 = scmp.eq.s32.totalorder %s20, 1
    %p101 = scmp.ne.s32.totalorder %s96, %s98
    %p102 = scmp.eq.s32.totalorder %s20, 0
    %p103 = por %p101, %p102
    %p104 = scmp.ne.s32.totalorder %s96, %s98
    %p105 = scmp.eq.s32.totalorder %s25, 1
    %p106 = por %p104, %p105
    %p107 = scmp.ne.s32.totalorder %s98, %s99
    %p108 = scmp.eq.s32.totalorder %s25, 0
    %p109 = por %p107, %p108
    %p110 = scmp.ne.s32.totalorder %s98, %s99
    %p111 = scmp.eq.s32.totalorder %s26, 1
    %p112 = por %p110, %p111
    %p114 = scmp.ne.s32.totalorder %s99, %s113
    %p115 = scmp.eq.s32.totalorder %s26, 0
    %p116 = por %p114, %p115
    %s118 = sadd.s32 %s117, 1
    %p121 = scmp.eq.s32.totalorder %s20, 1
    %p122 = scmp.ne.s32.totalorder %s117, %s119
    %p123 = scmp.eq.s32.totalorder %s20, 0
    %p124 = por %p122, %p123
    %p125 = scmp.ne.s32.totalorder %s117, %s119
    %p126 = scmp.eq.s32.totalorder %s25, 1
    %p127 = por %p125, %p126
    %p128 = scmp.ne.s32.totalorder %s119, %s120
    %p129 = scmp.eq.s32.totalorder %s25, 0
    %p130 = por %p128, %p129
    %p131 = scmp.ne.s32.totalorder %s119, %s120
    %p132 = scmp.eq.s32.totalorder %s26, 1
    %p133 = por %p131, %p132
    %p135 = scmp.ne.s32.totalorder %s120, %s134
    %p136 = scmp.eq.s32.totalorder %s26, 0
    %p137 = por %p135, %p136
    %s139 = sadd.s32 %s138, 1
    %p142 = scmp.eq.s32.totalorder %s20, 1
    %p143 = scmp.ne.s32.totalorder %s138, %s140
    %p144 = scmp.eq.s32.totalorder %s20, 0
    %p145 = por %p143, %p144
    %p146 = scmp.ne.s32.totalorder %s138, %s140
    %p147 = scmp.eq.s32.totalorder %s25, 1
    %p148 = por %p146, %p147
    %p149 = scmp.ne.s32.totalorder %s140, %s141
    %p150 = scmp.eq.s32.totalorder %s25, 0
    %p151 = por %p149, %p150
    %p152 = scmp.ne.s32.totalorder %s140, %s141
    %p153 = scmp.eq.s32.totalorder %s26, 1
    %p154 = por %p152, %p153
    %p156 = scmp.ne.s32.totalorder %s141, %s155
    %p157 = scmp.eq.s32.totalorder %s26, 0
    %p158 = por %p156, %p157
    %s160 = sadd.s32 %s159, 1
    %p163 = scmp.eq.s32.totalorder %s20, 1
    %p164 = scmp.ne.s32.totalorder %s159, %s161
    %p165 = scmp.eq.s32.totalorder %s20, 0
    %p166 = por %p164, %p165
    %p167 = scmp.ne.s32.totalorder %s159, %s161
    %p168 = scmp.eq.s32.totalorder %s25, 1
    %p169 = por %p167, %p168
    %p170 = scmp.ne.s32.totalorder %s161, %s162
    %p171 = scmp.eq.s32.totalorder %s25, 0
    %p172 = por %p170, %p171
    %p173 = scmp.ne.s32.totalorder %s161, %s162
    %p174 = scmp.eq.s32.totalorder %s26, 1
    %p175 = por %p173, %p174
    %p177 = scmp.ne.s32.totalorder %s162, %s176
    %p178 = scmp.eq.s32.totalorder %s26, 0
    %p179 = por %p177, %p178
    %s181 = sadd.s32 %s180, 1
    %p184 = scmp.eq.s32.totalorder %s20, 1
    %p185 = scmp.ne.s32.totalorder %s180, %s182
    %p186 = scmp.eq.s32.totalorder %s20, 0
    %p187 = por %p185, %p186
    %p188 = scmp.ne.s32.totalorder %s180, %s182
    %p189 = scmp.eq.s32.totalorder %s25, 1
    %p190 = por %p188, %p189
    %p191 = scmp.ne.s32.totalorder %s182, %s183
    %p192 = scmp.eq.s32.totalorder %s25, 0
    %p193 = por %p191, %p192
    %p194 = scmp.ne.s32.totalorder %s182, %s183
    %p195 = scmp.eq.s32.totalorder %s26, 1
    %p196 = por %p194, %p195
    %p198 = scmp.ne.s32.totalorder %s183, %s197
    %p199 = scmp.eq.s32.totalorder %s26, 0
    %p200 = por %p198, %p199
    %s202 = sadd.s32 %s201, 1
    %p205 = scmp.eq.s32.totalorder %s20, 1
    %p206 = scmp.ne.s32.totalorder %s201, %s203
    %p207 = scmp.eq.s32.totalorder %s20, 0
    %p208 = por %p206, %p207
    %p209 = scmp.ne.s32.totalorder %s201, %s203
    %p210 = scmp.eq.s32.totalorder %s25, 1
    %p211 = por %p209, %p210
    %p212 = scmp.ne.s32.totalorder %s203, %s204
    %p213 = scmp.eq.s32.totalorder %s25, 0
    %p214 = por %p212, %p213
    %p215 = scmp.ne.s32.totalorder %s203, %s204
    %p216 = scmp.eq.s32.totalorder %s26, 1
    %p217 = por %p215, %p216
    %p219 = scmp.ne.s32.totalorder %s204, %s218
    %p220 = scmp.eq.s32.totalorder %s26, 0
    %p221 = por %p219, %p220
    %s223 = sadd.s32 %s222, 1
    %p226 = scmp.eq.s32.totalorder %s20, 1
    %p227 = scmp.ne.s32.totalorder %s222, %s224
    %p228 = scmp.eq.s32.totalorder %s20, 0
    %p229 = por %p227, %p228
    %p230 = scmp.ne.s32.totalorder %s222, %s224
    %p231 = scmp.eq.s32.totalorder %s25, 1
    %p232 = por %p230, %p231
    %p233 = scmp.ne.s32.totalorder %s224, %s225
    %p234 = scmp.eq.s32.totalorder %s25, 0
    %p235 = por %p233, %p234
    %p236 = scmp.ne.s32.totalorder %s224, %s225
    %p237 = scmp.eq.s32.totalorder %s26, 1
    %p238 = por %p236, %p237
    %p240 = scmp.ne.s32.totalorder %s225, %s239
    %p241 = scmp.eq.s32.totalorder %s26, 0
    %p242 = por %p240, %p241
    %s244 = sadd.s32 %s243, 1
    %p247 = scmp.eq.s32.totalorder %s20, 1
    %p248 = scmp.ne.s32.totalorder %s243, %s245
    %p249 = scmp.eq.s32.totalorder %s20, 0
    %p250 = por %p248, %p249
    %p251 = scmp.ne.s32.totalorder %s243, %s245
    %p252 = scmp.eq.s32.totalorder %s25, 1
    %p253 = por %p251, %p252
    %p254 = scmp.ne.s32.totalorder %s245, %s246
    %p255 = scmp.eq.s32.totalorder %s25, 0
    %p256 = por %p254, %p255
    %p257 = scmp.ne.s32.totalorder %s245, %s246
    %p258 = scmp.eq.s32.totalorder %s26, 1
    %p259 = por %p257, %p258
    %p261 = scmp.ne.s32.totalorder %s246, %s260
    %p262 = scmp.eq.s32.totalorder %s26, 0
    %p263 = por %p261, %p262
    %s265 = sadd.s32 %s264, 1
    %p268 = scmp.eq.s32.totalorder %s20, 1
    %p269 = scmp.ne.s32.totalorder %s264, %s266
    %p270 = scmp.eq.s32.totalorder %s20, 0
    %p271 = por %p269, %p270
    %p272 = scmp.ne.s32.totalorder %s264, %s266
    %p273 = scmp.eq.s32.totalorder %s25, 1
    %p274 = por %p272, %p273
    %p275 = scmp.ne.s32.totalorder %s266, %s267
    %p276 = scmp.eq.s32.totalorder %s25, 0
    %p277 = por %p275, %p276
    %p278 = scmp.ne.s32.totalorder %s266, %s267
    %p279 = scmp.eq.s32.totalorder %s26, 1
    %p280 = por %p278, %p279
    %p282 = scmp.ne.s32.totalorder %s267, %s281
    %p283 = scmp.eq.s32.totalorder %s26, 0
    %p284 = por %p282, %p283
    %s286 = sadd.s32 %s285, 1
    %p289 = scmp.eq.s32.totalorder %s20, 1
    %p290 = scmp.ne.s32.totalorder %s285, %s287
    %p291 = scmp.eq.s32.totalorder %s20, 0
    %p292 = por %p290, %p291
    %p293 = scmp.ne.s32.totalorder %s285, %s287
    %p294 = scmp.eq.s32.totalorder %s25, 1
    %p295 = por %p293, %p294
    %p296 = scmp.ne.s32.totalorder %s287, %s288
    %p297 = scmp.eq.s32.totalorder %s25, 0
    %p298 = por %p296, %p297
    %p299 = scmp.ne.s32.totalorder %s287, %s288
    %p300 = scmp.eq.s32.totalorder %s26, 1
    %p301 = por %p299, %p300
    %p303 = scmp.ne.s32.totalorder %s288, %s302
    %p304 = scmp.eq.s32.totalorder %s26, 0
    %p305 = por %p303, %p304
    %s306 = ssub.s32 %s27, %s39
    %s307 = ssub.s32 %s28, %s35
    %s308 = sor.u32 %s306, %s307
    %p309 = scmp.eq.s32.totalorder %s308, 0
    %s311 = sadd.s32 %s310, 1
    %s312 = scalar_select %p309, %s310, %s311
    %p315 = pneg %p309
    %p316 = scmp.eq.s32.totalorder %s20, 1
    %p317 = por %p315, %p316
    %p318 = scmp.ne.s32.totalorder %s310, %s313
    %p319 = scmp.eq.s32.totalorder %s20, 0
    %p320 = por %p318, %p319
    %p321 = scmp.ne.s32.totalorder %s310, %s313
    %p322 = scmp.eq.s32.totalorder %s25, 1
    %p323 = por %p321, %p322
    %p324 = scmp.ne.s32.totalorder %s313, %s314
    %p325 = scmp.eq.s32.totalorder %s25, 0
    %p326 = por %p324, %p325
    %p327 = scmp.ne.s32.totalorder %s313, %s314
    %p328 = scmp.eq.s32.totalorder %s26, 1
    %p329 = por %p327, %p328
    %p331 = scmp.ne.s32.totalorder %s314, %s330
    %p332 = scmp.eq.s32.totalorder %s26, 0
    %p333 = por %p331, %p332
    %s334 = ssub.s32 %s27, %s39
    %s335 = ssub.s32 %s28, %s35
    %s336 = sor.u32 %s334, %s335
    %p337 = scmp.eq.s32.totalorder %s336, 0
    %s339 = sadd.s32 %s338, 1
    %s340 = scalar_select %p337, %s338, %s339
    %p343 = pneg %p337
    %p344 = scmp.eq.s32.totalorder %s20, 1
    %p345 = por %p343, %p344
    %p346 = scmp.ne.s32.totalorder %s338, %s341
    %p347 = scmp.eq.s32.totalorder %s20, 0
    %p348 = por %p346, %p347
    %p349 = scmp.ne.s32.totalorder %s338, %s341
    %p350 = scmp.eq.s32.totalorder %s25, 1
    %p351 = por %p349, %p350
    %p352 = scmp.ne.s32.totalorder %s341, %s342
    %p353 = scmp.eq.s32.totalorder %s25, 0
    %p354 = por %p352, %p353
    %p355 = scmp.ne.s32.totalorder %s341, %s342
    %p356 = scmp.eq.s32.totalorder %s26, 1
    %p357 = por %p355, %p356
    %p359 = scmp.ne.s32.totalorder %s342, %s358
    %p360 = scmp.eq.s32.totalorder %s26, 0
    %p361 = por %p359, %p360
    %p362 = scmp.le.s32.totalorder 1, %s20
    %p363 = scmp.lt.s32.totalorder %s20, 3
    %p364 = pnand %p362, %p363
    %p365 = pneg %p364
    // Predicated region
    $region9: #{encoder_layer_forward.4} parent=5 // pred_check
      _
    $region10: #{encoder_layer_forward.4} parent=5 // pred_check_branch
      %367 = sbr.rel (%p364) target = $region12
    $region11: #{encoder_layer_forward.4} parent=5 // pred_region
      %s368 = ssub.s32 %s20, 1
      // Predicated region
      $region13: #{encoder_layer_forward.4} parent=11 // pred_check
        %p369 = pneg %p109
      $region14: #{encoder_layer_forward.4} parent=11 // pred_check_branch
        %371 = sbr.rel (%p369) target = $region16
      $region15: #{encoder_layer_forward.4} parent=11 // pred_region
        _
      $region16: #{encoder_layer_forward.4} parent=11 // pred_fallthru
        _
      // Predicated region
      $region17: #{encoder_layer_forward.4} parent=11 // pred_check
        %p372 = pneg %p130
      $region18: #{encoder_layer_forward.4} parent=11 // pred_check_branch
        %374 = sbr.rel (%p372) target = $region20
      $region19: #{encoder_layer_forward.4} parent=11 // pred_region
        _
      $region20: #{encoder_layer_forward.4} parent=11 // pred_fallthru
        _
      // Predicated region
      $region21: #{encoder_layer_forward.4} parent=11 // pred_check
        %p375 = pneg %p151
      $region22: #{encoder_layer_forward.4} parent=11 // pred_check_branch
        %377 = sbr.rel (%p375) target = $region24
      $region23: #{encoder_layer_forward.4} parent=11 // pred_region
        _
      $region24: #{encoder_layer_forward.4} parent=11 // pred_fallthru
        _
      // Predicated region
      $region25: #{encoder_layer_forward.4} parent=11 // pred_check
        %p378 = pneg %p172
      $region26: #{encoder_layer_forward.4} parent=11 // pred_check_branch
        %380 = sbr.rel (%p378) target = $region28
      $region27: #{encoder_layer_forward.4} parent=11 // pred_region
        _
      $region28: #{encoder_layer_forward.4} parent=11 // pred_fallthru
        _
      // Predicated region
      $region29: #{encoder_layer_forward.4} parent=11 // pred_check
        %p381 = pneg %p193
      $region30: #{encoder_layer_forward.4} parent=11 // pred_check_branch
        %383 = sbr.rel (%p381) target = $region32
      $region31: #{encoder_layer_forward.4} parent=11 // pred_region
        _
      $region32: #{encoder_layer_forward.4} parent=11 // pred_fallthru
        _
      // Predicated region
      $region33: #{encoder_layer_forward.4} parent=11 // pred_check
        %p384 = pneg %p214
      $region34: #{encoder_layer_forward.4} parent=11 // pred_check_branch
        %386 = sbr.rel (%p384) target = $region36
      $region35: #{encoder_layer_forward.4} parent=11 // pred_region
        _
      $region36: #{encoder_layer_forward.4} parent=11 // pred_fallthru
        _
      // Predicated region
      $region37: #{encoder_layer_forward.4} parent=11 // pred_check
        %p387 = pneg %p235
      $region38: #{encoder_layer_forward.4} parent=11 // pred_check_branch
        %389 = sbr.rel (%p387) target = $region40
      $region39: #{encoder_layer_forward.4} parent=11 // pred_region
        _
      $region40: #{encoder_layer_forward.4} parent=11 // pred_fallthru
        _
      // Predicated region
      $region41: #{encoder_layer_forward.4} parent=11 // pred_check
        %p390 = pneg %p256
      $region42: #{encoder_layer_forward.4} parent=11 // pred_check_branch
        %392 = sbr.rel (%p390) target = $region44
      $region43: #{encoder_layer_forward.4} parent=11 // pred_region
        _
      $region44: #{encoder_layer_forward.4} parent=11 // pred_fallthru
        _
      // Predicated region
      $region45: #{encoder_layer_forward.4} parent=11 // pred_check
        %p393 = pneg %p277
      $region46: #{encoder_layer_forward.4} parent=11 // pred_check_branch
        %395 = sbr.rel (%p393) target = $region48
      $region47: #{encoder_layer_forward.4} parent=11 // pred_region
        _
      $region48: #{encoder_layer_forward.4} parent=11 // pred_fallthru
        _
      // Predicated region
      $region49: #{encoder_layer_forward.4} parent=11 // pred_check
        %p396 = pneg %p298
      $region50: #{encoder_layer_forward.4} parent=11 // pred_check_branch
        %398 = sbr.rel (%p396) target = $region52
      $region51: #{encoder_layer_forward.4} parent=11 // pred_region
        _
      $region52: #{encoder_layer_forward.4} parent=11 // pred_fallthru
        _
    $region12: #{encoder_layer_forward.4} parent=5 // pred_fallthru
      _
    %p399 = scmp.lt.s32.totalorder %s20, 2
    // Predicated region
    $region53: #{encoder_layer_forward.4} parent=5 // pred_check
      %p400 = pneg %p399
    $region54: #{encoder_layer_forward.4} parent=5 // pred_check_branch
      %402 = sbr.rel (%p400) target = $region56
    $region55: #{encoder_layer_forward.4} parent=5 // pred_region
      // Predicated region
      $region57: #{encoder_layer_forward.4} parent=55 // pred_check
        %p403 = pneg %p54
      $region58: #{encoder_layer_forward.4} parent=55 // pred_check_branch
        %405 = sbr.rel (%p403) target = $region60
      $region59: #{encoder_layer_forward.4} parent=55 // pred_region
        %p406 = scmp.lt.s32.totalorder %s27, 1
        %s407 = scalar_select %p406, %s27, 1
        %p408 = scmp.lt.s32.totalorder %s28, 0
        %s409 = scalar_select %p408, %s28, 0
        %s410 = smul.addr %s407, 4
        %s411 = sadd.s32 %s409, %s410
        %s412 = smul.addr %s411, 8
        %s413 = scalar_lea.vmem %s0, %s412
      $region60: #{encoder_layer_forward.4} parent=55 // pred_fallthru
        _
      // Predicated region
      $region61: #{encoder_layer_forward.4} parent=55 // pred_check
        %p414 = pneg %p82
      $region62: #{encoder_layer_forward.4} parent=55 // pred_check_branch
        %416 = sbr.rel (%p414) target = $region64
      $region63: #{encoder_layer_forward.4} parent=55 // pred_region
        %s417 = smul.u32 8, %s28
        %p418 = scmp.lt.s32.totalorder %s27, 1
        %s419 = scalar_select %p418, %s27, 1
        %p420 = scmp.lt.s32.totalorder %s417, 7
        %s421 = scalar_select %p420, %s417, 7
        %s422 = smul.addr %s419, 8
        %s423 = sadd.s32 %s421, %s422
        %s424 = scalar_lea.vmem %s1, %s423
        %s425 = smul.u32 8, %s28
      $region64: #{encoder_layer_forward.4} parent=55 // pred_fallthru
        _
    $region56: #{encoder_layer_forward.4} parent=5 // pred_fallthru
      _
    %p426 = scmp.le.s32.totalorder 1, %s20
    %p427 = scmp.lt.s32.totalorder %s20, 3
    %p428 = pnand %p426, %p427
    %p429 = pneg %p428
    // Predicated region
    $region65: #{encoder_layer_forward.4} parent=5 // pred_check
      _
    $region66: #{encoder_layer_forward.4} parent=5 // pred_check_branch
      %431 = sbr.rel (%p428) target = $region68
    $region67: #{encoder_layer_forward.4} parent=5 // pred_region
      %s432 = ssub.s32 %s20, 1
      %p433 = scmp.lt.s32.totalorder %s29, 1
      %s434 = scalar_select %p433, %s29, 1
      %p435 = scmp.lt.s32.totalorder %s30, 0
      %s436 = scalar_select %p435, %s30, 0
      %s437 = smul.addr %s434, 4
      %s438 = sadd.s32 %s436, %s437
      %s439 = smul.addr %s438, 8
      %s440 = scalar_lea.vmem %s0, %s439
      %p441 = pneg %p60
      %p442 = pneg %p57
      %s443 = smul.u32 8, %s30
      %p444 = scmp.lt.s32.totalorder %s29, 1
      %s445 = scalar_select %p444, %s29, 1
      %p446 = scmp.lt.s32.totalorder %s443, 7
      %s447 = scalar_select %p446, %s443, 7
      %s448 = smul.addr %s445, 8
      %s449 = sadd.s32 %s447, %s448
      %s450 = scalar_lea.vmem %s1, %s449
      %p451 = pneg %p88
      %p452 = pneg %p85
      %p453 = pneg %p109
      %p454 = pneg %p106
      %p455 = pneg %p130
      %p456 = pneg %p127
      %p457 = pneg %p151
      %p458 = pneg %p148
      %p459 = pneg %p172
      %p460 = pneg %p169
      %p461 = pneg %p193
      %p462 = pneg %p190
      %p463 = pneg %p214
      %p464 = pneg %p211
      %p465 = pneg %p235
      %p466 = pneg %p232
      %p467 = pneg %p256
      %p468 = pneg %p253
      %p469 = pneg %p277
      %p470 = pneg %p274
      %p471 = pneg %p298
      %p472 = pneg %p295
      %p473 = pneg %p326
      %p474 = pneg %p323
      %p475 = scmp.lt.s32.totalorder %s29, 1
      %s476 = scalar_select %p475, %s29, 1
      %p477 = scmp.lt.s32.totalorder %s30, 0
      %s478 = scalar_select %p477, %s30, 0
      %s479 = smul.addr %s476, 4
      %s480 = sadd.s32 %s478, %s479
      %s481 = smul.addr %s480, 8
      %s482 = scalar_lea.vmem %s12, %s481
      %p483 = pneg %p354
      %p484 = pneg %p351
      %s485 = smul.u32 8, %s30
      %p486 = scmp.lt.s32.totalorder %s29, 1
      %s487 = scalar_select %p486, %s29, 1
      %p488 = scmp.lt.s32.totalorder %s485, 7
      %s489 = scalar_select %p488, %s485, 7
      %s490 = smul.addr %s489, 4
      %s491 = smul.addr %s487, 32
      %s492 = sadd.s32 %s490, %s491
      %s493 = smul.addr %s492, 2
      %s494 = scalar_lea.vmem %s13, %s493
      %p495 = scmp.lt.s32.totalorder %s29, 1
      %s496 = scalar_select %p495, %s29, 1
      %p497 = scmp.lt.s32.totalorder %s30, 0
      %s498 = scalar_select %p497, %s30, 0
      %s499 = smul.addr %s496, 4
      %s500 = sadd.s32 %s498, %s499
      %s501 = smul.addr %s500, 8
      %s502 = scalar_lea.vmem %s0, %s501
      %s503 = smul.u32 8, %s30
      %p504 = scmp.lt.s32.totalorder %s29, 1
      %s505 = scalar_select %p504, %s29, 1
      %p506 = scmp.lt.s32.totalorder %s503, 7
      %s507 = scalar_select %p506, %s503, 7
      %s508 = smul.addr %s505, 8
      %s509 = sadd.s32 %s507, %s508
      %s510 = scalar_lea.vmem %s1, %s509
      %s511 = smul.u32 8, %s30
      %p512 = scmp.lt.s32.totalorder %s29, 1
      %s513 = scalar_select %p512, %s29, 1
      %p514 = scmp.lt.s32.totalorder %s30, 0
      %s515 = scalar_select %p514, %s30, 0
      %s516 = smul.addr %s513, 4
      %s517 = sadd.s32 %s515, %s516
      %s518 = smul.addr %s517, 8
      %s519 = scalar_lea.vmem %s12, %s518
      %s520 = smul.u32 8, %s30
      %p521 = scmp.lt.s32.totalorder %s29, 1
      %s522 = scalar_select %p521, %s29, 1
      %p523 = scmp.lt.s32.totalorder %s520, 7
      %s524 = scalar_select %p523, %s520, 7
      %s525 = smul.addr %s524, 4
      %s526 = smul.addr %s522, 32
      %s527 = sadd.s32 %s525, %s526
      %s528 = smul.addr %s527, 2
      %s529 = scalar_lea.vmem %s13, %s528
      %s530 = smul.u32 8, %s30
      %v532 = vld [vmem:[%s502] sm:$0xff]
      %v533 = vld [vmem:[%s502 + $0x8] sm:$0xff]
      %v534 = vld [vmem:[%s502 + $0x10] sm:$0xff]
      %v535 = vld [vmem:[%s502 + $0x18] sm:$0xff]
      %v536 = vcombine.low %v532, %v534
      %v537 = vcombine.high %v532, %v534
      %v539 = vunpack.c.l.s4 1983009808
      %v540 = vunpack.c.0.s8 %v539
      %v541 = vlaneseq
      %v542 = vshrl.u32 %v541, 7
      %v543 = vsub.s32 %v540, %v542
      %v544 = vrot.slane %v536, %v543
      %v546 = vunpack.c.l.s4 1983009808
      %v547 = vunpack.c.0.s8 %v546
      %v548 = vlaneseq
      %v549 = vshrl.u32 %v548, 7
      %v550 = vsub.s32 %v547, %v549
      %v551 = vrot.slane %v537, %v550
      %v552 = vcombine.low %v533, %v535
      %v553 = vcombine.high %v533, %v535
      %v555 = vunpack.c.l.s4 1983009808
      %v556 = vunpack.c.0.s8 %v555
      %v557 = vlaneseq
      %v558 = vshrl.u32 %v557, 7
      %v559 = vsub.s32 %v556, %v558
      %v560 = vrot.slane %v552, %v559
      %v562 = vunpack.c.l.s4 1983009808
      %v563 = vunpack.c.0.s8 %v562
      %v564 = vlaneseq
      %v565 = vshrl.u32 %v564, 7
      %v566 = vsub.s32 %v563, %v565
      %v567 = vrot.slane %v553, %v566
      %v568 = vcombine.low %v544, %v560
      %v569 = vcombine.high %v544, %v560
      %v571 = vunpack.c.l.s4 1934713408
      %v572 = vunpack.c.0.s8 %v571
      %v573 = vlaneseq
      %v574 = vshrl.u32 %v573, 7
      %v575 = vsub.s32 %v572, %v574
      %v576 = vrot.slane %v568, %v575
      %v578 = vunpack.c.l.s4 1934713408
      %v579 = vunpack.c.0.s8 %v578
      %v580 = vlaneseq
      %v581 = vshrl.u32 %v580, 7
      %v582 = vsub.s32 %v579, %v581
      %v583 = vrot.slane %v569, %v582
      %v584 = vcombine.low %v551, %v567
      %v585 = vcombine.high %v551, %v567
      %v587 = vunpack.c.l.s4 1934713408
      %v588 = vunpack.c.0.s8 %v587
      %v589 = vlaneseq
      %v590 = vshrl.u32 %v589, 7
      %v591 = vsub.s32 %v588, %v590
      %v592 = vrot.slane %v584, %v591
      %v594 = vunpack.c.l.s4 1934713408
      %v595 = vunpack.c.0.s8 %v594
      %v596 = vlaneseq
      %v597 = vshrl.u32 %v596, 7
      %v598 = vsub.s32 %v595, %v597
      %v599 = vrot.slane %v585, %v598
      %v600 = vcombine.high %v576, 0.0
      %v601 = vcombine.high %v583, 0.0
      %v602 = vcombine.high %v592, 0.0
      %v603 = vcombine.high %v599, 0.0
      %v604 = vld [vmem:[%s510] sm:$0x1]
      %v605 = vld [vmem:[%s510 + $0x1] sm:$0x1]
      %v606 = vld [vmem:[%s510 + $0x2] sm:$0x1]
      %v607 = vld [vmem:[%s510 + $0x3] sm:$0x1]
      %v608 = vld [vmem:[%s510 + $0x4] sm:$0x1]
      %v609 = vld [vmem:[%s510 + $0x5] sm:$0x1]
      %v610 = vld [vmem:[%s510 + $0x6] sm:$0x1]
      %v611 = vld [vmem:[%s510 + $0x7] sm:$0x1]
      %v612 = vld [vmem:[%s2] sm:$0x1]
      %v613 = vld [vmem:[%s3] sm:$0x1]
      %v622 = vcombine.low %v576, %v600
      %v623 = vcombine.low %v583, %v601
      %v624 = vcombine.low %v592, %v602
      %v625 = vcombine.low %v599, %v603
      %vm630 = vcmask 261120
      %v631 = vsel %vm630, %v622, 0.0
      %632 = vadd.xlane.f32.xlu0 %v631
      %v633 = vpop.xlane.xlu0 %632
      %v634 = vsel %vm630, %v623, 0.0
      %635 = vadd.xlane.f32.xlu0 %v634
      %v636 = vpop.xlane.xlu0 %635
      %v637 = vsel %vm630, %v624, 0.0
      %638 = vadd.xlane.f32.xlu0 %v637
      %v639 = vpop.xlane.xlu0 %638
      %v640 = vsel %vm630, %v625, 0.0
      %641 = vadd.xlane.f32.xlu0 %v640
      %v642 = vpop.xlane.xlu0 %641
      %v643 = vrcp.pop 32.0
      %v644 = vmul.f32 %v633, %v643
      %v645 = vmul.f32 %v636, %v643
      %v646 = vmul.f32 %v639, %v643
      %v647 = vmul.f32 %v642, %v643
      %v653 = vunpack.c.l.s4 839922192
      %v654 = vunpack.c.0.s8 %v653
      %v655 = vlaneseq
      %v656 = vshrl.u32 %v655, 7
      %v657 = vsub.s32 %v654, %v656
      %v658 = vrot.slane %v644, %v657
      %v660 = vunpack.c.l.s4 1985246804
      %v661 = vunpack.c.0.s8 %v660
      %v662 = vlaneseq
      %v663 = vshrl.u32 %v662, 7
      %v664 = vsub.s32 %v661, %v663
      %v665 = vrot.slane %v644, %v664
      %v667 = vunpack.c.l.s4 839922192
      %v668 = vunpack.c.0.s8 %v667
      %v669 = vlaneseq
      %v670 = vshrl.u32 %v669, 7
      %v671 = vsub.s32 %v668, %v670
      %v672 = vrot.slane %v645, %v671
      %v674 = vunpack.c.l.s4 1985246804
      %v675 = vunpack.c.0.s8 %v674
      %v676 = vlaneseq
      %v677 = vshrl.u32 %v676, 7
      %v678 = vsub.s32 %v675, %v677
      %v679 = vrot.slane %v645, %v678
      %v681 = vunpack.c.l.s4 839922192
      %v682 = vunpack.c.0.s8 %v681
      %v683 = vlaneseq
      %v684 = vshrl.u32 %v683, 7
      %v685 = vsub.s32 %v682, %v684
      %v686 = vrot.slane %v646, %v685
      %v688 = vunpack.c.l.s4 1985246804
      %v689 = vunpack.c.0.s8 %v688
      %v690 = vlaneseq
      %v691 = vshrl.u32 %v690, 7
      %v692 = vsub.s32 %v689, %v691
      %v693 = vrot.slane %v646, %v692
      %v695 = vunpack.c.l.s4 839922192
      %v696 = vunpack.c.0.s8 %v695
      %v697 = vlaneseq
      %v698 = vshrl.u32 %v697, 7
      %v699 = vsub.s32 %v696, %v698
      %v700 = vrot.slane %v647, %v699
      %v702 = vunpack.c.l.s4 1985246804
      %v703 = vunpack.c.0.s8 %v702
      %v704 = vlaneseq
      %v705 = vshrl.u32 %v704, 7
      %v706 = vsub.s32 %v703, %v705
      %v707 = vrot.slane %v647, %v706
      %v716 = vsub.f32 %v576, %v658
      %v717 = vsub.f32 %v600, %v665
      %v718 = vsub.f32 %v583, %v672
      %v719 = vsub.f32 %v601, %v679
      %v720 = vsub.f32 %v592, %v686
      %v721 = vsub.f32 %v602, %v693
      %v722 = vsub.f32 %v599, %v700
      %v723 = vsub.f32 %v603, %v707
      %v724 = vmul.f32 %v716, %v716
      %v725 = vmul.f32 %v717, %v717
      %v726 = vmul.f32 %v718, %v718
      %v727 = vmul.f32 %v719, %v719
      %v728 = vmul.f32 %v720, %v720
      %v729 = vmul.f32 %v721, %v721
      %v730 = vmul.f32 %v722, %v722
      %v731 = vmul.f32 %v723, %v723
      %v740 = vcombine.low %v724, %v725
      %v741 = vcombine.low %v726, %v727
      %v742 = vcombine.low %v728, %v729
      %v743 = vcombine.low %v730, %v731
      %v748 = vsel %vm630, %v740, 0.0
      %749 = vadd.xlane.f32.xlu0 %v748
      %v750 = vpop.xlane.xlu0 %749
      %v751 = vsel %vm630, %v741, 0.0
      %752 = vadd.xlane.f32.xlu0 %v751
      %v753 = vpop.xlane.xlu0 %752
      %v754 = vsel %vm630, %v742, 0.0
      %755 = vadd.xlane.f32.xlu0 %v754
      %v756 = vpop.xlane.xlu0 %755
      %v757 = vsel %vm630, %v743, 0.0
      %758 = vadd.xlane.f32.xlu0 %v757
      %v759 = vpop.xlane.xlu0 %758
      %v760 = vmul.f32 %v750, %v643
      %v761 = vmul.f32 %v753, %v643
      %v762 = vmul.f32 %v756, %v643
      %v763 = vmul.f32 %v759, %v643
      %v764 = vadd.f32 %v760, 1e-06
      %v765 = vadd.f32 %v761, 1e-06
      %v766 = vadd.f32 %v762, 1e-06
      %v767 = vadd.f32 %v763, 1e-06
      %v768 = vrsqrt.pop %v764
      %v769 = vrsqrt.pop %v765
      %v770 = vrsqrt.pop %v766
      %v771 = vrsqrt.pop %v767
      %v777 = vunpack.c.l.s4 839922192
      %v778 = vunpack.c.0.s8 %v777
      %v779 = vlaneseq
      %v780 = vshrl.u32 %v779, 7
      %v781 = vsub.s32 %v778, %v780
      %v782 = vrot.slane %v768, %v781
      %v784 = vunpack.c.l.s4 1985246804
      %v785 = vunpack.c.0.s8 %v784
      %v786 = vlaneseq
      %v787 = vshrl.u32 %v786, 7
      %v788 = vsub.s32 %v785, %v787
      %v789 = vrot.slane %v768, %v788
      %v791 = vunpack.c.l.s4 839922192
      %v792 = vunpack.c.0.s8 %v791
      %v793 = vlaneseq
      %v794 = vshrl.u32 %v793, 7
      %v795 = vsub.s32 %v792, %v794
      %v796 = vrot.slane %v769, %v795
      %v798 = vunpack.c.l.s4 1985246804
      %v799 = vunpack.c.0.s8 %v798
      %v800 = vlaneseq
      %v801 = vshrl.u32 %v800, 7
      %v802 = vsub.s32 %v799, %v801
      %v803 = vrot.slane %v769, %v802
      %v805 = vunpack.c.l.s4 839922192
      %v806 = vunpack.c.0.s8 %v805
      %v807 = vlaneseq
      %v808 = vshrl.u32 %v807, 7
      %v809 = vsub.s32 %v806, %v808
      %v810 = vrot.slane %v770, %v809
      %v812 = vunpack.c.l.s4 1985246804
      %v813 = vunpack.c.0.s8 %v812
      %v814 = vlaneseq
      %v815 = vshrl.u32 %v814, 7
      %v816 = vsub.s32 %v813, %v815
      %v817 = vrot.slane %v770, %v816
      %v819 = vunpack.c.l.s4 839922192
      %v820 = vunpack.c.0.s8 %v819
      %v821 = vlaneseq
      %v822 = vshrl.u32 %v821, 7
      %v823 = vsub.s32 %v820, %v822
      %v824 = vrot.slane %v771, %v823
      %v826 = vunpack.c.l.s4 1985246804
      %v827 = vunpack.c.0.s8 %v826
      %v828 = vlaneseq
      %v829 = vshrl.u32 %v828, 7
      %v830 = vsub.s32 %v827, %v829
      %v831 = vrot.slane %v771, %v830
      %v840 = vmul.f32 %v716, %v782
      %v841 = vmul.f32 %v717, %v789
      %v842 = vmul.f32 %v718, %v796
      %v843 = vmul.f32 %v719, %v803
      %v844 = vmul.f32 %v720, %v810
      %v845 = vmul.f32 %v721, %v817
      %v846 = vmul.f32 %v722, %v824
      %v847 = vmul.f32 %v723, %v831
      %v849 = vlaneseq
      %v850 = vshrl.u32 %v849, 7
      %v851 = vsub.s32 0, %v850
      %v852 = vrot.slane %v612, %v851
      %v854 = vcombine.high %v852, %v852
      %v856 = vmul.f32 %v840, %v852
      %v857 = vmul.f32 %v841, %v854
      %v858 = vmul.f32 %v842, %v852
      %v859 = vmul.f32 %v843, %v854
      %v860 = vmul.f32 %v844, %v852
      %v861 = vmul.f32 %v845, %v854
      %v862 = vmul.f32 %v846, %v852
      %v863 = vmul.f32 %v847, %v854
      %v865 = vlaneseq
      %v866 = vshrl.u32 %v865, 7
      %v867 = vsub.s32 0, %v866
      %v868 = vrot.slane %v613, %v867
      %v870 = vcombine.high %v868, %v868
      %v872 = vadd.f32 %v856, %v868
      %v873 = vadd.f32 %v857, %v870
      %v874 = vadd.f32 %v858, %v868
      %v875 = vadd.f32 %v859, %v870
      %v876 = vadd.f32 %v860, %v868
      %v877 = vadd.f32 %v861, %v870
      %v878 = vadd.f32 %v862, %v868
      %v879 = vadd.f32 %v863, %v870
      %v888 = vcombine.low %v872, %v873
      %v889 = vcombine.low %v874, %v875
      %v890 = vcombine.low %v876, %v877
      %v891 = vcombine.low %v878, %v879
      %v896 = vpack.c.bf16 %v889, %v888
      %v897 = vpack.c.bf16 %v891, %v890
      %v898 = vld [vmem:[%s4] sm:$0xf]
      %v899 = vld [vmem:[%s4 + $0x4] sm:$0xf]
      %v900 = vld [vmem:[%s4 + $0x8] sm:$0xf]
      %v901 = vld [vmem:[%s4 + $0xc] sm:$0xf]
      %v902 = vld [vmem:[%s5] sm:$0x1]
      %v904 = vlaneseq
      %v905 = vshrl.u32 %v904, 7
      %v906 = vsub.s32 0, %v905
      %v907 = vrot.slane %v902, %v906
      %v913 = vunpack.c.l.b16 %v898
      %v914 = vunpack.c.l.b16 %v899
      %v915 = vunpack.c.l.b16 %v900
      %v916 = vunpack.c.l.b16 %v901
      %v917 = vpack.c.b16 %v914, %v913
      %v918 = vpack.c.b16 %v916, %v915
      %v922 = vsel %vm630, %v896, 0
      %v925 = vsel %vm630, %v897, 0
      %927 = vmatprep.subr.bf16.mxu0 0
      %928 = vmatpush1.bf16.msra.mxu0 %v917
      %929 = vmatprep.subr.bf16.mxu0 0
      %930 = vmatpush1.bf16.msra.mxu0 %v918
      %931 = vmatprep.subr.bf16.mxu0 0
      %932 = vmatpush1.bf16.msra.mxu0 0
      %933 = vmatprep.subr.bf16.mxu0 0
      %934 = vmatpush1.bf16.msra.mxu0 0
      %935 = vmatprep.subr.bf16.mxu0 0
      %936 = vmatpush1.bf16.msra.mxu0 0
      %937 = vmatprep.subr.bf16.mxu0 0
      %938 = vmatpush1.bf16.msra.mxu0 0
      %939 = vmatprep.subr.bf16.mxu0 0
      %940 = vmatpush1.bf16.msra.mxu0 0
      %941 = vmatprep.subr.bf16.mxu0 0
      %942 = vmatpush1.bf16.msra.mxu0 0
      %943 = vmatprep.subr.bf16.mxu0 0
      %944 = vmatpush1.bf16.msra.mxu0 0
      %945 = vmatprep.subr.bf16.mxu0 0
      %946 = vmatpush1.bf16.msra.mxu0 0
      %947 = vmatprep.subr.bf16.mxu0 0
      %948 = vmatpush1.bf16.msra.mxu0 0
      %949 = vmatprep.subr.bf16.mxu0 0
      %950 = vmatpush1.bf16.msra.mxu0 0
      %951 = vmatprep.subr.bf16.mxu0 0
      %952 = vmatpush1.bf16.msra.mxu0 0
      %953 = vmatprep.subr.bf16.mxu0 0
      %954 = vmatpush1.bf16.msra.mxu0 0
      %955 = vmatprep.subr.bf16.mxu0 0
      %956 = vmatpush1.bf16.msra.mxu0 0
      %957 = vmatprep.subr.bf16.mxu0 0
      %958 = vmatpush1.bf16.msra.mxu0 0
      %959 = vmatprep.mubr.bf16.mxu0 0
      %960 = vmatmul.mubr.bf16.gmra.mrb[0].mxu0 %v922
      %v961 = vpop.f32.mrb[0].mxu0
      %v962 = vadd.f32 %v907, %v961
      %v963 = vpop.f32.mrb[0].mxu0
      %v964 = vpop.f32.mrb[0].mxu0
      %v965 = vadd.f32 %v907, %v964
      %v966 = vpop.f32.mrb[0].mxu0
      %967 = vmatprep.mubr.bf16.mxu0 0
      %968 = vmatmul.mubr.bf16.gmra.mrb[0].mxu0 %v925
      %v969 = vpop.f32.mrb[0].mxu0
      %v970 = vadd.f32 %v907, %v969
      %v971 = vpop.f32.mrb[0].mxu0
      %v972 = vpop.f32.mrb[0].mxu0
      %v973 = vadd.f32 %v907, %v972
      %v974 = vpop.f32.mrb[0].mxu0
      %975 = vdwg.mxu0
      %v976 = vmul.f32 %v962, 0.35355338
      %v977 = vmul.f32 %v965, 0.35355338
      %v978 = vmul.f32 %v970, 0.35355338
      %v979 = vmul.f32 %v973, 0.35355338
      %v980 = vpack.c.bf16 %v977, %v976
      %v981 = vpack.c.bf16 %v979, %v978
      %v984 = vcombine.high %v980, %v980
      %v986 = vunpack.c.l.s4 1983009808
      %v987 = vunpack.c.0.s8 %v986
      %v988 = vlaneseq
      %v989 = vshrl.u32 %v988, 7
      %v990 = vsub.s32 %v987, %v989
      %v991 = vrot.slane %v980, %v990
      %v993 = vunpack.c.l.s4 1983009808
      %v994 = vunpack.c.0.s8 %v993
      %v995 = vlaneseq
      %v996 = vshrl.u32 %v995, 7
      %v997 = vsub.s32 %v994, %v996
      %v998 = vrot.slane %v984, %v997
      %v999 = vcombine.high %v991, %v991
      %v1000 = vcombine.high %v998, %v998
      %v1001 = vcombine.high %v981, %v981
      %v1003 = vunpack.c.l.s4 1983009808
      %v1004 = vunpack.c.0.s8 %v1003
      %v1005 = vlaneseq
      %v1006 = vshrl.u32 %v1005, 7
      %v1007 = vsub.s32 %v1004, %v1006
      %v1008 = vrot.slane %v981, %v1007
      %v1010 = vunpack.c.l.s4 1983009808
      %v1011 = vunpack.c.0.s8 %v1010
      %v1012 = vlaneseq
      %v1013 = vshrl.u32 %v1012, 7
      %v1014 = vsub.s32 %v1011, %v1013
      %v1015 = vrot.slane %v1001, %v1014
      %v1016 = vcombine.high %v1008, %v1008
      %v1017 = vcombine.high %v1015, %v1015
      %1018 = vrot.lane.b32.xlu0 %v991, 120
      %v1019 = vpop.permute.xlu0 %1018
      %1020 = vrot.lane.b32.xlu0 %v999, 120
      %v1021 = vpop.permute.xlu0 %1020
      %1022 = vrot.lane.b32.xlu0 %v998, 120
      %v1023 = vpop.permute.xlu0 %1022
      %1024 = vrot.lane.b32.xlu0 %v1000, 120
      %v1025 = vpop.permute.xlu0 %1024
      %1026 = vrot.lane.b32.xlu0 %v1008, 120
      %v1027 = vpop.permute.xlu0 %1026
      %1028 = vrot.lane.b32.xlu0 %v1016, 120
      %v1029 = vpop.permute.xlu0 %1028
      %1030 = vrot.lane.b32.xlu0 %v1015, 120
      %v1031 = vpop.permute.xlu0 %1030
      %1032 = vrot.lane.b32.xlu0 %v1017, 120
      %v1033 = vpop.permute.xlu0 %1032
      %1034 = vrot.lane.b32.xlu0 %v991, 112
      %v1035 = vpop.permute.xlu0 %1034
      %1036 = vrot.lane.b32.xlu0 %v999, 112
      %v1037 = vpop.permute.xlu0 %1036
      %1038 = vrot.lane.b32.xlu0 %v998, 112
      %v1039 = vpop.permute.xlu0 %1038
      %1040 = vrot.lane.b32.xlu0 %v1000, 112
      %v1041 = vpop.permute.xlu0 %1040
      %1042 = vrot.lane.b32.xlu0 %v1008, 112
      %v1043 = vpop.permute.xlu0 %1042
      %1044 = vrot.lane.b32.xlu0 %v1016, 112
      %v1045 = vpop.permute.xlu0 %1044
      %1046 = vrot.lane.b32.xlu0 %v1015, 112
      %v1047 = vpop.permute.xlu0 %1046
      %1048 = vrot.lane.b32.xlu0 %v1017, 112
      %v1049 = vpop.permute.xlu0 %1048
      %1050 = vrot.lane.b32.xlu0 %v991, 104
      %v1051 = vpop.permute.xlu0 %1050
      %1052 = vrot.lane.b32.xlu0 %v999, 104
      %v1053 = vpop.permute.xlu0 %1052
      %1054 = vrot.lane.b32.xlu0 %v998, 104
      %v1055 = vpop.permute.xlu0 %1054
      %1056 = vrot.lane.b32.xlu0 %v1000, 104
      %v1057 = vpop.permute.xlu0 %1056
      %1058 = vrot.lane.b32.xlu0 %v1008, 104
      %v1059 = vpop.permute.xlu0 %1058
      %1060 = vrot.lane.b32.xlu0 %v1016, 104
      %v1061 = vpop.permute.xlu0 %1060
      %1062 = vrot.lane.b32.xlu0 %v1015, 104
      %v1063 = vpop.permute.xlu0 %1062
      %1064 = vrot.lane.b32.xlu0 %v1017, 104
      %v1065 = vpop.permute.xlu0 %1064
      %v1066 = vld [vmem:[%s6] sm:$0xf]
      %v1067 = vld [vmem:[%s6 + $0x4] sm:$0xf]
      %v1068 = vld [vmem:[%s6 + $0x8] sm:$0xf]
      %v1069 = vld [vmem:[%s6 + $0xc] sm:$0xf]
      %v1070 = vld [vmem:[%s7] sm:$0x1]
      %v1072 = vlaneseq
      %v1073 = vshrl.u32 %v1072, 7
      %v1074 = vsub.s32 0, %v1073
      %v1075 = vrot.slane %v1070, %v1074
      %v1081 = vunpack.c.l.b16 %v1066
      %v1082 = vunpack.c.l.b16 %v1067
      %v1083 = vunpack.c.l.b16 %v1068
      %v1084 = vunpack.c.l.b16 %v1069
      %v1085 = vpack.c.b16 %v1082, %v1081
      %v1086 = vpack.c.b16 %v1084, %v1083
      %1089 = vmatprep.subr.bf16.mxu0 0
      %1090 = vmatpush1.bf16.msra.mxu0 %v1085
      %1091 = vmatprep.subr.bf16.mxu0 0
      %1092 = vmatpush1.bf16.msra.mxu0 %v1086
      %1093 = vmatprep.subr.bf16.mxu0 0
      %1094 = vmatpush1.bf16.msra.mxu0 0
      %1095 = vmatprep.subr.bf16.mxu0 0
      %1096 = vmatpush1.bf16.msra.mxu0 0
      %1097 = vmatprep.subr.bf16.mxu0 0
      %1098 = vmatpush1.bf16.msra.mxu0 0
      %1099 = vmatprep.subr.bf16.mxu0 0
      %1100 = vmatpush1.bf16.msra.mxu0 0
      %1101 = vmatprep.subr.bf16.mxu0 0
      %1102 = vmatpush1.bf16.msra.mxu0 0
      %1103 = vmatprep.subr.bf16.mxu0 0
      %1104 = vmatpush1.bf16.msra.mxu0 0
      %1105 = vmatprep.subr.bf16.mxu0 0
      %1106 = vmatpush1.bf16.msra.mxu0 0
      %1107 = vmatprep.subr.bf16.mxu0 0
      %1108 = vmatpush1.bf16.msra.mxu0 0
      %1109 = vmatprep.subr.bf16.mxu0 0
      %1110 = vmatpush1.bf16.msra.mxu0 0
      %1111 = vmatprep.subr.bf16.mxu0 0
      %1112 = vmatpush1.bf16.msra.mxu0 0
      %1113 = vmatprep.subr.bf16.mxu0 0
      %1114 = vmatpush1.bf16.msra.mxu0 0
      %1115 = vmatprep.subr.bf16.mxu0 0
      %1116 = vmatpush1.bf16.msra.mxu0 0
      %1117 = vmatprep.subr.bf16.mxu0 0
      %1118 = vmatpush1.bf16.msra.mxu0 0
      %1119 = vmatprep.subr.bf16.mxu0 0
      %1120 = vmatpush1.bf16.msra.mxu0 0
      %1121 = vmatprep.mubr.bf16.mxu0 0
      %1122 = vmatmul.mubr.bf16.gmra.mrb[0].mxu0 %v922
      %v1123 = vpop.f32.mrb[0].mxu0
      %v1124 = vadd.f32 %v1075, %v1123
      %v1125 = vpop.f32.mrb[0].mxu0
      %v1126 = vpop.f32.mrb[0].mxu0
      %v1127 = vadd.f32 %v1075, %v1126
      %v1128 = vpop.f32.mrb[0].mxu0
      %1129 = vmatprep.mubr.bf16.mxu0 0
      %1130 = vmatmul.mubr.bf16.gmra.mrb[0].mxu0 %v925
      %v1131 = vpop.f32.mrb[0].mxu0
      %v1132 = vadd.f32 %v1075, %v1131
      %v1133 = vpop.f32.mrb[0].mxu0
      %v1134 = vpop.f32.mrb[0].mxu0
      %v1135 = vadd.f32 %v1075, %v1134
      %v1136 = vpop.f32.mrb[0].mxu0
      %1137 = vdwg.mxu0
      %v1138 = vpack.c.bf16 %v1127, %v1124
      %v1139 = vpack.c.bf16 %v1135, %v1132
      %v1142 = vcombine.high %v1138, %v1138
      %v1144 = vunpack.c.l.s4 1983009808
      %v1145 = vunpack.c.0.s8 %v1144
      %v1146 = vlaneseq
      %v1147 = vshrl.u32 %v1146, 7
      %v1148 = vsub.s32 %v1145, %v1147
      %v1149 = vrot.slane %v1138, %v1148
      %v1151 = vunpack.c.l.s4 1983009808
      %v1152 = vunpack.c.0.s8 %v1151
      %v1153 = vlaneseq
      %v1154 = vshrl.u32 %v1153, 7
      %v1155 = vsub.s32 %v1152, %v1154
      %v1156 = vrot.slane %v1142, %v1155
      %v1157 = vcombine.high %v1149, %v1149
      %v1158 = vcombine.high %v1156, %v1156
      %v1159 = vcombine.high %v1139, %v1139
      %v1161 = vunpack.c.l.s4 1983009808
      %v1162 = vunpack.c.0.s8 %v1161
      %v1163 = vlaneseq
      %v1164 = vshrl.u32 %v1163, 7
      %v1165 = vsub.s32 %v1162, %v1164
      %v1166 = vrot.slane %v1139, %v1165
      %v1168 = vunpack.c.l.s4 1983009808
      %v1169 = vunpack.c.0.s8 %v1168
      %v1170 = vlaneseq
      %v1171 = vshrl.u32 %v1170, 7
      %v1172 = vsub.s32 %v1169, %v1171
      %v1173 = vrot.slane %v1159, %v1172
      %v1174 = vcombine.high %v1166, %v1166
      %v1175 = vcombine.high %v1173, %v1173
      %1176 = vrot.lane.b32.xlu0 %v1149, 120
      %v1177 = vpop.permute.xlu0 %1176
      %1178 = vrot.lane.b32.xlu0 %v1157, 120
      %v1179 = vpop.permute.xlu0 %1178
      %1180 = vrot.lane.b32.xlu0 %v1156, 120
      %v1181 = vpop.permute.xlu0 %1180
      %1182 = vrot.lane.b32.xlu0 %v1158, 120
      %v1183 = vpop.permute.xlu0 %1182
      %1184 = vrot.lane.b32.xlu0 %v1166, 120
      %v1185 = vpop.permute.xlu0 %1184
      %1186 = vrot.lane.b32.xlu0 %v1174, 120
      %v1187 = vpop.permute.xlu0 %1186
      %1188 = vrot.lane.b32.xlu0 %v1173, 120
      %v1189 = vpop.permute.xlu0 %1188
      %1190 = vrot.lane.b32.xlu0 %v1175, 120
      %v1191 = vpop.permute.xlu0 %1190
      %1192 = vrot.lane.b32.xlu0 %v1149, 112
      %v1193 = vpop.permute.xlu0 %1192
      %1194 = vrot.lane.b32.xlu0 %v1157, 112
      %v1195 = vpop.permute.xlu0 %1194
      %1196 = vrot.lane.b32.xlu0 %v1156, 112
      %v1197 = vpop.permute.xlu0 %1196
      %1198 = vrot.lane.b32.xlu0 %v1158, 112
      %v1199 = vpop.permute.xlu0 %1198
      %1200 = vrot.lane.b32.xlu0 %v1166, 112
      %v1201 = vpop.permute.xlu0 %1200
      %1202 = vrot.lane.b32.xlu0 %v1174, 112
      %v1203 = vpop.permute.xlu0 %1202
      %1204 = vrot.lane.b32.xlu0 %v1173, 112
      %v1205 = vpop.permute.xlu0 %1204
      %1206 = vrot.lane.b32.xlu0 %v1175, 112
      %v1207 = vpop.permute.xlu0 %1206
      %1208 = vrot.lane.b32.xlu0 %v1149, 104
      %v1209 = vpop.permute.xlu0 %1208
      %1210 = vrot.lane.b32.xlu0 %v1157, 104
      %v1211 = vpop.permute.xlu0 %1210
      %1212 = vrot.lane.b32.xlu0 %v1156, 104
      %v1213 = vpop.permute.xlu0 %1212
      %1214 = vrot.lane.b32.xlu0 %v1158, 104
      %v1215 = vpop.permute.xlu0 %1214
      %1216 = vrot.lane.b32.xlu0 %v1166, 104
      %v1217 = vpop.permute.xlu0 %1216
      %1218 = vrot.lane.b32.xlu0 %v1174, 104
      %v1219 = vpop.permute.xlu0 %1218
      %1220 = vrot.lane.b32.xlu0 %v1173, 104
      %v1221 = vpop.permute.xlu0 %1220
      %1222 = vrot.lane.b32.xlu0 %v1175, 104
      %v1223 = vpop.permute.xlu0 %1222
      %v1224 = vld [vmem:[%s8] sm:$0xf]
      %v1225 = vld [vmem:[%s8 + $0x4] sm:$0xf]
      %v1226 = vld [vmem:[%s8 + $0x8] sm:$0xf]
      %v1227 = vld [vmem:[%s8 + $0xc] sm:$0xf]
      %v1228 = vld [vmem:[%s9] sm:$0x1]
      %v1230 = vlaneseq
      %v1231 = vshrl.u32 %v1230, 7
      %v1232 = vsub.s32 0, %v1231
      %v1233 = vrot.slane %v1228, %v1232
      %v1239 = vunpack.c.l.b16 %v1224
      %v1240 = vunpack.c.l.b16 %v1225
      %v1241 = vunpack.c.l.b16 %v1226
      %v1242 = vunpack.c.l.b16 %v1227
      %v1243 = vpack.c.b16 %v1240, %v1239
      %v1244 = vpack.c.b16 %v1242, %v1241
      %1247 = vmatprep.subr.bf16.mxu0 0
      %1248 = vmatpush1.bf16.msra.mxu0 %v1243
      %1249 = vmatprep.subr.bf16.mxu0 0
      %1250 = vmatpush1.bf16.msra.mxu0 %v1244
      %1251 = vmatprep.subr.bf16.mxu0 0
      %1252 = vmatpush1.bf16.msra.mxu0 0
      %1253 = vmatprep.subr.bf16.mxu0 0
      %1254 = vmatpush1.bf16.msra.mxu0 0
      %1255 = vmatprep.subr.bf16.mxu0 0
      %1256 = vmatpush1.bf16.msra.mxu0 0
      %1257 = vmatprep.subr.bf16.mxu0 0
      %1258 = vmatpush1.bf16.msra.mxu0 0
      %1259 = vmatprep.subr.bf16.mxu0 0
      %1260 = vmatpush1.bf16.msra.mxu0 0
      %1261 = vmatprep.subr.bf16.mxu0 0
      %1262 = vmatpush1.bf16.msra.mxu0 0
      %1263 = vmatprep.subr.bf16.mxu0 0
      %1264 = vmatpush1.bf16.msra.mxu0 0
      %1265 = vmatprep.subr.bf16.mxu0 0
      %1266 = vmatpush1.bf16.msra.mxu0 0
      %1267 = vmatprep.subr.bf16.mxu0 0
      %1268 = vmatpush1.bf16.msra.mxu0 0
      %1269 = vmatprep.subr.bf16.mxu0 0
      %1270 = vmatpush1.bf16.msra.mxu0 0
      %1271 = vmatprep.subr.bf16.mxu0 0
      %1272 = vmatpush1.bf16.msra.mxu0 0
      %1273 = vmatprep.subr.bf16.mxu0 0
      %1274 = vmatpush1.bf16.msra.mxu0 0
      %1275 = vmatprep.subr.bf16.mxu0 0
      %1276 = vmatpush1.bf16.msra.mxu0 0
      %1277 = vmatprep.subr.bf16.mxu0 0
      %1278 = vmatpush1.bf16.msra.mxu0 0
      %1279 = vmatprep.mubr.bf16.mxu0 0
      %1280 = vmatmul.mubr.bf16.gmra.mrb[0].mxu0 %v922
      %v1281 = vpop.f32.mrb[0].mxu0
      %v1282 = vadd.f32 %v1233, %v1281
      %v1283 = vpop.f32.mrb[0].mxu0
      %v1284 = vpop.f32.mrb[0].mxu0
      %v1285 = vadd.f32 %v1233, %v1284
      %v1286 = vpop.f32.mrb[0].mxu0
      %1287 = vmatprep.mubr.bf16.mxu0 0
      %1288 = vmatmul.mubr.bf16.gmra.mrb[0].mxu0 %v925
      %v1289 = vpop.f32.mrb[0].mxu0
      %v1290 = vadd.f32 %v1233, %v1289
      %v1291 = vpop.f32.mrb[0].mxu0
      %v1292 = vpop.f32.mrb[0].mxu0
      %v1293 = vadd.f32 %v1233, %v1292
      %v1294 = vpop.f32.mrb[0].mxu0
      %1295 = vdwg.mxu0
      %v1296 = vpack.c.bf16 %v1285, %v1282
      %v1297 = vpack.c.bf16 %v1293, %v1290
      %v1300 = vcombine.high %v1296, %v1296
      %v1302 = vunpack.c.l.s4 1983009808
      %v1303 = vunpack.c.0.s8 %v1302
      %v1304 = vlaneseq
      %v1305 = vshrl.u32 %v1304, 7
      %v1306 = vsub.s32 %v1303, %v1305
      %v1307 = vrot.slane %v1296, %v1306
      %v1309 = vunpack.c.l.s4 1983009808
      %v1310 = vunpack.c.0.s8 %v1309
      %v1311 = vlaneseq
      %v1312 = vshrl.u32 %v1311, 7
      %v1313 = vsub.s32 %v1310, %v1312
      %v1314 = vrot.slane %v1300, %v1313
      %v1315 = vcombine.high %v1307, %v1307
      %v1316 = vcombine.high %v1314, %v1314
      %v1317 = vcombine.high %v1297, %v1297
      %v1319 = vunpack.c.l.s4 1983009808
      %v1320 = vunpack.c.0.s8 %v1319
      %v1321 = vlaneseq
      %v1322 = vshrl.u32 %v1321, 7
      %v1323 = vsub.s32 %v1320, %v1322
      %v1324 = vrot.slane %v1297, %v1323
      %v1326 = vunpack.c.l.s4 1983009808
      %v1327 = vunpack.c.0.s8 %v1326
      %v1328 = vlaneseq
      %v1329 = vshrl.u32 %v1328, 7
      %v1330 = vsub.s32 %v1327, %v1329
      %v1331 = vrot.slane %v1317, %v1330
      %v1332 = vcombine.high %v1324, %v1324
      %v1333 = vcombine.high %v1331, %v1331
      %1334 = vrot.lane.b32.xlu0 %v1307, 120
      %v1335 = vpop.permute.xlu0 %1334
      %1336 = vrot.lane.b32.xlu0 %v1315, 120
      %v1337 = vpop.permute.xlu0 %1336
      %1338 = vrot.lane.b32.xlu0 %v1314, 120
      %v1339 = vpop.permute.xlu0 %1338
      %1340 = vrot.lane.b32.xlu0 %v1316, 120
      %v1341 = vpop.permute.xlu0 %1340
      %1342 = vrot.lane.b32.xlu0 %v1324, 120
      %v1343 = vpop.permute.xlu0 %1342
      %1344 = vrot.lane.b32.xlu0 %v1332, 120
      %v1345 = vpop.permute.xlu0 %1344
      %1346 = vrot.lane.b32.xlu0 %v1331, 120
      %v1347 = vpop.permute.xlu0 %1346
      %1348 = vrot.lane.b32.xlu0 %v1333, 120
      %v1349 = vpop.permute.xlu0 %1348
      %1350 = vrot.lane.b32.xlu0 %v1307, 112
      %v1351 = vpop.permute.xlu0 %1350
      %1352 = vrot.lane.b32.xlu0 %v1315, 112
      %v1353 = vpop.permute.xlu0 %1352
      %1354 = vrot.lane.b32.xlu0 %v1314, 112
      %v1355 = vpop.permute.xlu0 %1354
      %1356 = vrot.lane.b32.xlu0 %v1316, 112
      %v1357 = vpop.permute.xlu0 %1356
      %1358 = vrot.lane.b32.xlu0 %v1324, 112
      %v1359 = vpop.permute.xlu0 %1358
      %1360 = vrot.lane.b32.xlu0 %v1332, 112
      %v1361 = vpop.permute.xlu0 %1360
      %1362 = vrot.lane.b32.xlu0 %v1331, 112
      %v1363 = vpop.permute.xlu0 %1362
      %1364 = vrot.lane.b32.xlu0 %v1333, 112
      %v1365 = vpop.permute.xlu0 %1364
      %1366 = vrot.lane.b32.xlu0 %v1307, 104
      %v1367 = vpop.permute.xlu0 %1366
      %1368 = vrot.lane.b32.xlu0 %v1315, 104
      %v1369 = vpop.permute.xlu0 %1368
      %1370 = vrot.lane.b32.xlu0 %v1314, 104
      %v1371 = vpop.permute.xlu0 %1370
      %1372 = vrot.lane.b32.xlu0 %v1316, 104
      %v1373 = vpop.permute.xlu0 %1372
      %1374 = vrot.lane.b32.xlu0 %v1324, 104
      %v1375 = vpop.permute.xlu0 %1374
      %1376 = vrot.lane.b32.xlu0 %v1332, 104
      %v1377 = vpop.permute.xlu0 %1376
      %1378 = vrot.lane.b32.xlu0 %v1331, 104
      %v1379 = vpop.permute.xlu0 %1378
      %1380 = vrot.lane.b32.xlu0 %v1333, 104
      %v1381 = vpop.permute.xlu0 %1380
      %vm1382 = vcmask 64512
      %v1384 = vsel %vm1382, %v991, 0
      %v1387 = vsel %vm1382, %v1149, 0
      %1389 = vmatprep.subr.bf16.mxu0 0
      %1390 = vmatpush1.bf16.xpose.msra.mxu0 %v1387
      %1391 = vmatprep.subr.bf16.mxu0 0
      %1392 = vmatpush1.bf16.xpose.msra.mxu0 0
      %1393 = vmatprep.subr.bf16.mxu0 0
      %1394 = vmatpush1.bf16.xpose.msra.mxu0 0
      %1395 = vmatprep.subr.bf16.mxu0 0
      %1396 = vmatpush1.bf16.xpose.msra.mxu0 0
      %1397 = vmatprep.subr.bf16.mxu0 0
      %1398 = vmatpush1.bf16.xpose.msra.mxu0 0
      %1399 = vmatprep.subr.bf16.mxu0 0
      %1400 = vmatpush1.bf16.xpose.msra.mxu0 0
      %1401 = vmatprep.subr.bf16.mxu0 0
      %1402 = vmatpush1.bf16.xpose.msra.mxu0 0
      %1403 = vmatprep.subr.bf16.mxu0 0
      %1404 = vmatpush1.bf16.xpose.msra.mxu0 0
      %1405 = vmatprep.subr.bf16.mxu0 0
      %1406 = vmatpush1.bf16.xpose.msra.mxu0 0
      %1407 = vmatprep.subr.bf16.mxu0 0
      %1408 = vmatpush1.bf16.xpose.msra.mxu0 0
      %1409 = vmatprep.subr.bf16.mxu0 0
      %1410 = vmatpush1.bf16.xpose.msra.mxu0 0
      %1411 = vmatprep.subr.bf16.mxu0 0
      %1412 = vmatpush1.bf16.xpose.msra.mxu0 0
      %1413 = vmatprep.subr.bf16.mxu0 0
      %1414 = vmatpush1.bf16.xpose.msra.mxu0 0
      %1415 = vmatprep.subr.bf16.mxu0 0
      %1416 = vmatpush1.bf16.xpose.msra.mxu0 0
      %1417 = vmatprep.subr.bf16.mxu0 0
      %1418 = vmatpush1.bf16.xpose.msra.mxu0 0
      %1419 = vmatprep.subr.bf16.mxu0 0
      %1420 = vmatpush1.bf16.xpose.msra.mxu0 0
      %1421 = vmatprep.mubr.bf16.mxu0 0
      %1422 = vmatmul.mubr.bf16.gmra.mrb[0].mxu0 %v1384
      %v1423 = vpop.f32.mrb[0].mxu0
      %v1424 = vadd.f32 0.0, %v1423
      %v1425 = vpop.f32.mrb[0].mxu0
      %v1426 = vpop.f32.mrb[0].mxu0
      %v1427 = vpop.f32.mrb[0].mxu0
      %1428 = vdwg.mxu0
      %v1430 = vsel %vm1382, %v1019, 0
      %v1433 = vsel %vm1382, %v1177, 0
      %1435 = vmatprep.subr.bf16.mxu0 0
      %1436 = vmatpush1.bf16.xpose.msra.mxu0 %v1433
      %1437 = vmatprep.subr.bf16.mxu0 0
      %1438 = vmatpush1.bf16.xpose.msra.mxu0 0
      %1439 = vmatprep.subr.bf16.mxu0 0
      %1440 = vmatpush1.bf16.xpose.msra.mxu0 0
      %1441 = vmatprep.subr.bf16.mxu0 0
      %1442 = vmatpush1.bf16.xpose.msra.mxu0 0
      %1443 = vmatprep.subr.bf16.mxu0 0
      %1444 = vmatpush1.bf16.xpose.msra.mxu0 0
      %1445 = vmatprep.subr.bf16.mxu0 0
      %1446 = vmatpush1.bf16.xpose.msra.mxu0 0
      %1447 = vmatprep.subr.bf16.mxu0 0
      %1448 = vmatpush1.bf16.xpose.msra.mxu0 0
      %1449 = vmatprep.subr.bf16.mxu0 0
      %1450 = vmatpush1.bf16.xpose.msra.mxu0 0
      %1451 = vmatprep.subr.bf16.mxu0 0
      %1452 = vmatpush1.bf16.xpose.msra.mxu0 0
      %1453 = vmatprep.subr.bf16.mxu0 0
      %1454 = vmatpush1.bf16.xpose.msra.mxu0 0
      %1455 = vmatprep.subr.bf16.mxu0 0
      %1456 = vmatpush1.bf16.xpose.msra.mxu0 0
      %1457 = vmatprep.subr.bf16.mxu0 0
      %1458 = vmatpush1.bf16.xpose.msra.mxu0 0
      %1459 = vmatprep.subr.bf16.mxu0 0
      %1460 = vmatpush1.bf16.xpose.msra.mxu0 0
      %1461 = vmatprep.subr.bf16.mxu0 0
      %1462 = vmatpush1.bf16.xpose.msra.mxu0 0
      %1463 = vmatprep.subr.bf16.mxu0 0
      %1464 = vmatpush1.bf16.xpose.msra.mxu0 0
      %1465 = vmatprep.subr.bf16.mxu0 0
      %1466 = vmatpush1.bf16.xpose.msra.mxu0 0
      %1467 = vmatprep.mubr.bf16.mxu0 0
      %1468 = vmatmul.mubr.bf16.gmra.mrb[0].mxu0 %v1430
      %v1469 = vpop.f32.mrb[0].mxu0
      %v1470 = vadd.f32 0.0, %v1469
      %v1471 = vpop.f32.mrb[0].mxu0
      %v1472 = vpop.f32.mrb[0].mxu0
      %v1473 = vpop.f32.mrb[0].mxu0
      %1474 = vdwg.mxu0
      %v1476 = vsel %vm1382, %v1035, 0
      %v1479 = vsel %vm1382, %v1193, 0
      %1481 = vmatprep.subr.bf16.mxu0 0
      %1482 = vmatpush1.bf16.xpose.msra.mxu0 %v1479
      %1483 = vmatprep.subr.bf16.mxu0 0
      %1484 = vmatpush1.bf16.xpose.msra.mxu0 0
      %1485 = vmatprep.subr.bf16.mxu0 0
      %1486 = vmatpush1.bf16.xpose.msra.mxu0 0
      %1487 = vmatprep.subr.bf16.mxu0 0
      %1488 = vmatpush1.bf16.xpose.msra.mxu0 0
      %1489 = vmatprep.subr.bf16.mxu0 0
      %1490 = vmatpush1.bf16.xpose.msra.mxu0 0
      %1491 = vmatprep.subr.bf16.mxu0 0
      %1492 = vmatpush1.bf16.xpose.msra.mxu0 0
      %1493 = vmatprep.subr.bf16.mxu0 0
      %1494 = vmatpush1.bf16.xpose.msra.mxu0 0
      %1495 = vmatprep.subr.bf16.mxu0 0
      %1496 = vmatpush1.bf16.xpose.msra.mxu0 0
      %1497 = vmatprep.subr.bf16.mxu0 0
      %1498 = vmatpush1.bf16.xpose.msra.mxu0 0
      %1499 = vmatprep.subr.bf16.mxu0 0
      %1500 = vmatpush1.bf16.xpose.msra.mxu0 0
      %1501 = vmatprep.subr.bf16.mxu0 0
      %1502 = vmatpush1.bf16.xpose.msra.mxu0 0
      %1503 = vmatprep.subr.bf16.mxu0 0
      %1504 = vmatpush1.bf16.xpose.msra.mxu0 0
      %1505 = vmatprep.subr.bf16.mxu0 0
      %1506 = vmatpush1.bf16.xpose.msra.mxu0 0
      %1507 = vmatprep.subr.bf16.mxu0 0
      %1508 = vmatpush1.bf16.xpose.msra.mxu0 0
      %1509 = vmatprep.subr.bf16.mxu0 0
      %1510 = vmatpush1.bf16.xpose.msra.mxu0 0
      %1511 = vmatprep.subr.bf16.mxu0 0
      %1512 = vmatpush1.bf16.xpose.msra.mxu0 0
      %1513 = vmatprep.mubr.bf16.mxu0 0
      %1514 = vmatmul.mubr.bf16.gmra.mrb[0].mxu0 %v1476
      %v1515 = vpop.f32.mrb[0].mxu0
      %v1516 = vadd.f32 0.0, %v1515
      %v1517 = vpop.f32.mrb[0].mxu0
      %v1518 = vpop.f32.mrb[0].mxu0
      %v1519 = vpop.f32.mrb[0].mxu0
      %1520 = vdwg.mxu0
      %v1522 = vsel %vm1382, %v1051, 0
      %v1525 = vsel %vm1382, %v1209, 0
      %1527 = vmatprep.subr.bf16.mxu0 0
      %1528 = vmatpush1.bf16.xpose.msra.mxu0 %v1525
      %1529 = vmatprep.subr.bf16.mxu0 0
      %1530 = vmatpush1.bf16.xpose.msra.mxu0 0
      %1531 = vmatprep.subr.bf16.mxu0 0
      %1532 = vmatpush1.bf16.xpose.msra.mxu0 0
      %1533 = vmatprep.subr.bf16.mxu0 0
      %1534 = vmatpush1.bf16.xpose.msra.mxu0 0
      %1535 = vmatprep.subr.bf16.mxu0 0
      %1536 = vmatpush1.bf16.xpose.msra.mxu0 0
      %1537 = vmatprep.subr.bf16.mxu0 0
      %1538 = vmatpush1.bf16.xpose.msra.mxu0 0
      %1539 = vmatprep.subr.bf16.mxu0 0
      %1540 = vmatpush1.bf16.xpose.msra.mxu0 0
      %1541 = vmatprep.subr.bf16.mxu0 0
      %1542 = vmatpush1.bf16.xpose.msra.mxu0 0
      %1543 = vmatprep.subr.bf16.mxu0 0
      %1544 = vmatpush1.bf16.xpose.msra.mxu0 0
      %1545 = vmatprep.subr.bf16.mxu0 0
      %1546 = vmatpush1.bf16.xpose.msra.mxu0 0
      %1547 = vmatprep.subr.bf16.mxu0 0
      %1548 = vmatpush1.bf16.xpose.msra.mxu0 0
      %1549 = vmatprep.subr.bf16.mxu0 0
      %1550 = vmatpush1.bf16.xpose.msra.mxu0 0
      %1551 = vmatprep.subr.bf16.mxu0 0
      %1552 = vmatpush1.bf16.xpose.msra.mxu0 0
      %1553 = vmatprep.subr.bf16.mxu0 0
      %1554 = vmatpush1.bf16.xpose.msra.mxu0 0
      %1555 = vmatprep.subr.bf16.mxu0 0
      %1556 = vmatpush1.bf16.xpose.msra.mxu0 0
      %1557 = vmatprep.subr.bf16.mxu0 0
      %1558 = vmatpush1.bf16.xpose.msra.mxu0 0
      %1559 = vmatprep.mubr.bf16.mxu0 0
      %1560 = vmatmul.mubr.bf16.gmra.mrb[0].mxu0 %v1522
      %v1561 = vpop.f32.mrb[0].mxu0
      %v1562 = vadd.f32 0.0, %v1561
      %v1563 = vpop.f32.mrb[0].mxu0
      %v1564 = vpop.f32.mrb[0].mxu0
      %v1565 = vpop.f32.mrb[0].mxu0
      %1566 = vdwg.mxu0
      %v1568 = vsel %vm1382, %v999, 0
      %v1571 = vsel %vm1382, %v1157, 0
      %1573 = vmatprep.subr.bf16.mxu0 0
      %1574 = vmatpush1.bf16.xpose.msra.mxu0 %v1571
      %1575 = vmatprep.subr.bf16.mxu0 0
      %1576 = vmatpush1.bf16.xpose.msra.mxu0 0
      %1577 = vmatprep.subr.bf16.mxu0 0
      %1578 = vmatpush1.bf16.xpose.msra.mxu0 0
      %1579 = vmatprep.subr.bf16.mxu0 0
      %1580 = vmatpush1.bf16.xpose.msra.mxu0 0
      %1581 = vmatprep.subr.bf16.mxu0 0
      %1582 = vmatpush1.bf16.xpose.msra.mxu0 0
      %1583 = vmatprep.subr.bf16.mxu0 0
      %1584 = vmatpush1.bf16.xpose.msra.mxu0 0
      %1585 = vmatprep.subr.bf16.mxu0 0
      %1586 = vmatpush1.bf16.xpose.msra.mxu0 0
      %1587 = vmatprep.subr.bf16.mxu0 0
      %1588 = vmatpush1.bf16.xpose.msra.mxu0 0
      %1589 = vmatprep.subr.bf16.mxu0 0
      %1590 = vmatpush1.bf16.xpose.msra.mxu0 0
      %1591 = vmatprep.subr.bf16.mxu0 0
      %1592 = vmatpush1.bf16.xpose.msra.mxu0 0
      %1593 = vmatprep.subr.bf16.mxu0 0
      %1594 = vmatpush1.bf16.xpose.msra.mxu0 0
      %1595 = vmatprep.subr.bf16.mxu0 0
      %1596 = vmatpush1.bf16.xpose.msra.mxu0 0
      %1597 = vmatprep.subr.bf16.mxu0 0
      %1598 = vmatpush1.bf16.xpose.msra.mxu0 0
      %1599 = vmatprep.subr.bf16.mxu0 0
      %1600 = vmatpush1.bf16.xpose.msra.mxu0 0
      %1601 = vmatprep.subr.bf16.mxu0 0
      %1602 = vmatpush1.bf16.xpose.msra.mxu0 0
      %1603 = vmatprep.subr.bf16.mxu0 0
      %1604 = vmatpush1.bf16.xpose.msra.mxu0 0
      %1605 = vmatprep.mubr.bf16.mxu0 0
      %1606 = vmatmul.mubr.bf16.gmra.mrb[0].mxu0 %v1568
      %v1607 = vpop.f32.mrb[0].mxu0
      %v1608 = vadd.f32 0.0, %v1607
      %v1609 = vpop.f32.mrb[0].mxu0
      %v1610 = vpop.f32.mrb[0].mxu0
      %v1611 = vpop.f32.mrb[0].mxu0
      %1612 = vdwg.mxu0
      %v1614 = vsel %vm1382, %v1021, 0
      %v1617 = vsel %vm1382, %v1179, 0
      %1619 = vmatprep.subr.bf16.mxu0 0
      %1620 = vmatpush1.bf16.xpose.msra.mxu0 %v1617
      %1621 = vmatprep.subr.bf16.mxu0 0
      %1622 = vmatpush1.bf16.xpose.msra.mxu0 0
      %1623 = vmatprep.subr.bf16.mxu0 0
      %1624 = vmatpush1.bf16.xpose.msra.mxu0 0
      %1625 = vmatprep.subr.bf16.mxu0 0
      %1626 = vmatpush1.bf16.xpose.msra.mxu0 0
      %1627 = vmatprep.subr.bf16.mxu0 0
      %1628 = vmatpush1.bf16.xpose.msra.mxu0 0
      %1629 = vmatprep.subr.bf16.mxu0 0
      %1630 = vmatpush1.bf16.xpose.msra.mxu0 0
      %1631 = vmatprep.subr.bf16.mxu0 0
      %1632 = vmatpush1.bf16.xpose.msra.mxu0 0
      %1633 = vmatprep.subr.bf16.mxu0 0
      %1634 = vmatpush1.bf16.xpose.msra.mxu0 0
      %1635 = vmatprep.subr.bf16.mxu0 0
      %1636 = vmatpush1.bf16.xpose.msra.mxu0 0
      %1637 = vmatprep.subr.bf16.mxu0 0
      %1638 = vmatpush1.bf16.xpose.msra.mxu0 0
      %1639 = vmatprep.subr.bf16.mxu0 0
      %1640 = vmatpush1.bf16.xpose.msra.mxu0 0
      %1641 = vmatprep.subr.bf16.mxu0 0
      %1642 = vmatpush1.bf16.xpose.msra.mxu0 0
      %1643 = vmatprep.subr.bf16.mxu0 0
      %1644 = vmatpush1.bf16.xpose.msra.mxu0 0
      %1645 = vmatprep.subr.bf16.mxu0 0
      %1646 = vmatpush1.bf16.xpose.msra.mxu0 0
      %1647 = vmatprep.subr.bf16.mxu0 0
      %1648 = vmatpush1.bf16.xpose.msra.mxu0 0
      %1649 = vmatprep.subr.bf16.mxu0 0
      %1650 = vmatpush1.bf16.xpose.msra.mxu0 0
      %1651 = vmatprep.mubr.bf16.mxu0 0
      %1652 = vmatmul.mubr.bf16.gmra.mrb[0].mxu0 %v1614
      %v1653 = vpop.f32.mrb[0].mxu0
      %v1654 = vadd.f32 0.0, %v1653
      %v1655 = vpop.f32.mrb[0].mxu0
      %v1656 = vpop.f32.mrb[0].mxu0
      %v1657 = vpop.f32.mrb[0].mxu0
      %1658 = vdwg.mxu0
      %v1660 = vsel %vm1382, %v1037, 0
      %v1663 = vsel %vm1382, %v1195, 0
      %1665 = vmatprep.subr.bf16.mxu0 0
      %1666 = vmatpush1.bf16.xpose.msra.mxu0 %v1663
      %1667 = vmatprep.subr.bf16.mxu0 0
      %1668 = vmatpush1.bf16.xpose.msra.mxu0 0
      %1669 = vmatprep.subr.bf16.mxu0 0
      %1670 = vmatpush1.bf16.xpose.msra.mxu0 0
      %1671 = vmatprep.subr.bf16.mxu0 0
      %1672 = vmatpush1.bf16.xpose.msra.mxu0 0
      %1673 = vmatprep.subr.bf16.mxu0 0
      %1674 = vmatpush1.bf16.xpose.msra.mxu0 0
      %1675 = vmatprep.subr.bf16.mxu0 0
      %1676 = vmatpush1.bf16.xpose.msra.mxu0 0
      %1677 = vmatprep.subr.bf16.mxu0 0
      %1678 = vmatpush1.bf16.xpose.msra.mxu0 0
      %1679 = vmatprep.subr.bf16.mxu0 0
      %1680 = vmatpush1.bf16.xpose.msra.mxu0 0
      %1681 = vmatprep.subr.bf16.mxu0 0
      %1682 = vmatpush1.bf16.xpose.msra.mxu0 0
      %1683 = vmatprep.subr.bf16.mxu0 0
      %1684 = vmatpush1.bf16.xpose.msra.mxu0 0
      %1685 = vmatprep.subr.bf16.mxu0 0
      %1686 = vmatpush1.bf16.xpose.msra.mxu0 0
      %1687 = vmatprep.subr.bf16.mxu0 0
      %1688 = vmatpush1.bf16.xpose.msra.mxu0 0
      %1689 = vmatprep.subr.bf16.mxu0 0
      %1690 = vmatpush1.bf16.xpose.msra.mxu0 0
      %1691 = vmatprep.subr.bf16.mxu0 0
      %1692 = vmatpush1.bf16.xpose.msra.mxu0 0
      %1693 = vmatprep.subr.bf16.mxu0 0
      %1694 = vmatpush1.bf16.xpose.msra.mxu0 0
      %1695 = vmatprep.subr.bf16.mxu0 0
      %1696 = vmatpush1.bf16.xpose.msra.mxu0 0
      %1697 = vmatprep.mubr.bf16.mxu0 0
      %1698 = vmatmul.mubr.bf16.gmra.mrb[0].mxu0 %v1660
      %v1699 = vpop.f32.mrb[0].mxu0
      %v1700 = vadd.f32 0.0, %v1699
      %v1701 = vpop.f32.mrb[0].mxu0
      %v1702 = vpop.f32.mrb[0].mxu0
      %v1703 = vpop.f32.mrb[0].mxu0
      %1704 = vdwg.mxu0
      %v1706 = vsel %vm1382, %v1053, 0
      %v1709 = vsel %vm1382, %v1211, 0
      %1711 = vmatprep.subr.bf16.mxu0 0
      %1712 = vmatpush1.bf16.xpose.msra.mxu0 %v1709
      %1713 = vmatprep.subr.bf16.mxu0 0
      %1714 = vmatpush1.bf16.xpose.msra.mxu0 0
      %1715 = vmatprep.subr.bf16.mxu0 0
      %1716 = vmatpush1.bf16.xpose.msra.mxu0 0
      %1717 = vmatprep.subr.bf16.mxu0 0
      %1718 = vmatpush1.bf16.xpose.msra.mxu0 0
      %1719 = vmatprep.subr.bf16.mxu0 0
      %1720 = vmatpush1.bf16.xpose.msra.mxu0 0
      %1721 = vmatprep.subr.bf16.mxu0 0
      %1722 = vmatpush1.bf16.xpose.msra.mxu0 0
      %1723 = vmatprep.subr.bf16.mxu0 0
      %1724 = vmatpush1.bf16.xpose.msra.mxu0 0
      %1725 = vmatprep.subr.bf16.mxu0 0
      %1726 = vmatpush1.bf16.xpose.msra.mxu0 0
      %1727 = vmatprep.subr.bf16.mxu0 0
      %1728 = vmatpush1.bf16.xpose.msra.mxu0 0
      %1729 = vmatprep.subr.bf16.mxu0 0
      %1730 = vmatpush1.bf16.xpose.msra.mxu0 0
      %1731 = vmatprep.subr.bf16.mxu0 0
      %1732 = vmatpush1.bf16.xpose.msra.mxu0 0
      %1733 = vmatprep.subr.bf16.mxu0 0
      %1734 = vmatpush1.bf16.xpose.msra.mxu0 0
      %1735 = vmatprep.subr.bf16.mxu0 0
      %1736 = vmatpush1.bf16.xpose.msra.mxu0 0
      %1737 = vmatprep.subr.bf16.mxu0 0
      %1738 = vmatpush1.bf16.xpose.msra.mxu0 0
      %1739 = vmatprep.subr.bf16.mxu0 0
      %1740 = vmatpush1.bf16.xpose.msra.mxu0 0
      %1741 = vmatprep.subr.bf16.mxu0 0
      %1742 = vmatpush1.bf16.xpose.msra.mxu0 0
      %1743 = vmatprep.mubr.bf16.mxu0 0
      %1744 = vmatmul.mubr.bf16.gmra.mrb[0].mxu0 %v1706
      %v1745 = vpop.f32.mrb[0].mxu0
      %v1746 = vadd.f32 0.0, %v1745
      %v1747 = vpop.f32.mrb[0].mxu0
      %v1748 = vpop.f32.mrb[0].mxu0
      %v1749 = vpop.f32.mrb[0].mxu0
      %1750 = vdwg.mxu0
      %v1752 = vsel %vm1382, %v998, 0
      %v1755 = vsel %vm1382, %v1156, 0
      %1757 = vmatprep.subr.bf16.mxu0 0
      %1758 = vmatpush1.bf16.xpose.msra.mxu0 %v1755
      %1759 = vmatprep.subr.bf16.mxu0 0
      %1760 = vmatpush1.bf16.xpose.msra.mxu0 0
      %1761 = vmatprep.subr.bf16.mxu0 0
      %1762 = vmatpush1.bf16.xpose.msra.mxu0 0
      %1763 = vmatprep.subr.bf16.mxu0 0
      %1764 = vmatpush1.bf16.xpose.msra.mxu0 0
      %1765 = vmatprep.subr.bf16.mxu0 0
      %1766 = vmatpush1.bf16.xpose.msra.mxu0 0
      %1767 = vmatprep.subr.bf16.mxu0 0
      %1768 = vmatpush1.bf16.xpose.msra.mxu0 0
      %1769 = vmatprep.subr.bf16.mxu0 0
      %1770 = vmatpush1.bf16.xpose.msra.mxu0 0
      %1771 = vmatprep.subr.bf16.mxu0 0
      %1772 = vmatpush1.bf16.xpose.msra.mxu0 0
      %1773 = vmatprep.subr.bf16.mxu0 0
      %1774 = vmatpush1.bf16.xpose.msra.mxu0 0
      %1775 = vmatprep.subr.bf16.mxu0 0
      %1776 = vmatpush1.bf16.xpose.msra.mxu0 0
      %1777 = vmatprep.subr.bf16.mxu0 0
      %1778 = vmatpush1.bf16.xpose.msra.mxu0 0
      %1779 = vmatprep.subr.bf16.mxu0 0
      %1780 = vmatpush1.bf16.xpose.msra.mxu0 0
      %1781 = vmatprep.subr.bf16.mxu0 0
      %1782 = vmatpush1.bf16.xpose.msra.mxu0 0
      %1783 = vmatprep.subr.bf16.mxu0 0
      %1784 = vmatpush1.bf16.xpose.msra.mxu0 0
      %1785 = vmatprep.subr.bf16.mxu0 0
      %1786 = vmatpush1.bf16.xpose.msra.mxu0 0
      %1787 = vmatprep.subr.bf16.mxu0 0
      %1788 = vmatpush1.bf16.xpose.msra.mxu0 0
      %1789 = vmatprep.mubr.bf16.mxu0 0
      %1790 = vmatmul.mubr.bf16.gmra.mrb[0].mxu0 %v1752
      %v1791 = vpop.f32.mrb[0].mxu0
      %v1792 = vadd.f32 0.0, %v1791
      %v1793 = vpop.f32.mrb[0].mxu0
      %v1794 = vpop.f32.mrb[0].mxu0
      %v1795 = vpop.f32.mrb[0].mxu0
      %1796 = vdwg.mxu0
      %v1798 = vsel %vm1382, %v1023, 0
      %v1801 = vsel %vm1382, %v1181, 0
      %1803 = vmatprep.subr.bf16.mxu0 0
      %1804 = vmatpush1.bf16.xpose.msra.mxu0 %v1801
      %1805 = vmatprep.subr.bf16.mxu0 0
      %1806 = vmatpush1.bf16.xpose.msra.mxu0 0
      %1807 = vmatprep.subr.bf16.mxu0 0
      %1808 = vmatpush1.bf16.xpose.msra.mxu0 0
      %1809 = vmatprep.subr.bf16.mxu0 0
      %1810 = vmatpush1.bf16.xpose.msra.mxu0 0
      %1811 = vmatprep.subr.bf16.mxu0 0
      %1812 = vmatpush1.bf16.xpose.msra.mxu0 0
      %1813 = vmatprep.subr.bf16.mxu0 0
      %1814 = vmatpush1.bf16.xpose.msra.mxu0 0
      %1815 = vmatprep.subr.bf16.mxu0 0
      %1816 = vmatpush1.bf16.xpose.msra.mxu0 0
      %1817 = vmatprep.subr.bf16.mxu0 0
      %1818 = vmatpush1.bf16.xpose.msra.mxu0 0
      %1819 = vmatprep.subr.bf16.mxu0 0
      %1820 = vmatpush1.bf16.xpose.msra.mxu0 0
      %1821 = vmatprep.subr.bf16.mxu0 0
      %1822 = vmatpush1.bf16.xpose.msra.mxu0 0
      %1823 = vmatprep.subr.bf16.mxu0 0
      %1824 = vmatpush1.bf16.xpose.msra.mxu0 0
      %1825 = vmatprep.subr.bf16.mxu0 0
      %1826 = vmatpush1.bf16.xpose.msra.mxu0 0
      %1827 = vmatprep.subr.bf16.mxu0 0
      %1828 = vmatpush1.bf16.xpose.msra.mxu0 0
      %1829 = vmatprep.subr.bf16.mxu0 0
      %1830 = vmatpush1.bf16.xpose.msra.mxu0 0
      %1831 = vmatprep.subr.bf16.mxu0 0
      %1832 = vmatpush1.bf16.xpose.msra.mxu0 0
      %1833 = vmatprep.subr.bf16.mxu0 0
      %1834 = vmatpush1.bf16.xpose.msra.mxu0 0
      %1835 = vmatprep.mubr.bf16.mxu0 0
      %1836 = vmatmul.mubr.bf16.gmra.mrb[0].mxu0 %v1798
      %v1837 = vpop.f32.mrb[0].mxu0
      %v1838 = vadd.f32 0.0, %v1837
      %v1839 = vpop.f32.mrb[0].mxu0
      %v1840 = vpop.f32.mrb[0].mxu0
      %v1841 = vpop.f32.mrb[0].mxu0
      %1842 = vdwg.mxu0
      %v1844 = vsel %vm1382, %v1039, 0
      %v1847 = vsel %vm1382, %v1197, 0
      %1849 = vmatprep.subr.bf16.mxu0 0
      %1850 = vmatpush1.bf16.xpose.msra.mxu0 %v1847
      %1851 = vmatprep.subr.bf16.mxu0 0
      %1852 = vmatpush1.bf16.xpose.msra.mxu0 0
      %1853 = vmatprep.subr.bf16.mxu0 0
      %1854 = vmatpush1.bf16.xpose.msra.mxu0 0
      %1855 = vmatprep.subr.bf16.mxu0 0
      %1856 = vmatpush1.bf16.xpose.msra.mxu0 0
      %1857 = vmatprep.subr.bf16.mxu0 0
      %1858 = vmatpush1.bf16.xpose.msra.mxu0 0
      %1859 = vmatprep.subr.bf16.mxu0 0
      %1860 = vmatpush1.bf16.xpose.msra.mxu0 0
      %1861 = vmatprep.subr.bf16.mxu0 0
      %1862 = vmatpush1.bf16.xpose.msra.mxu0 0
      %1863 = vmatprep.subr.bf16.mxu0 0
      %1864 = vmatpush1.bf16.xpose.msra.mxu0 0
      %1865 = vmatprep.subr.bf16.mxu0 0
      %1866 = vmatpush1.bf16.xpose.msra.mxu0 0
      %1867 = vmatprep.subr.bf16.mxu0 0
      %1868 = vmatpush1.bf16.xpose.msra.mxu0 0
      %1869 = vmatprep.subr.bf16.mxu0 0
      %1870 = vmatpush1.bf16.xpose.msra.mxu0 0
      %1871 = vmatprep.subr.bf16.mxu0 0
      %1872 = vmatpush1.bf16.xpose.msra.mxu0 0
      %1873 = vmatprep.subr.bf16.mxu0 0
      %1874 = vmatpush1.bf16.xpose.msra.mxu0 0
      %1875 = vmatprep.subr.bf16.mxu0 0
      %1876 = vmatpush1.bf16.xpose.msra.mxu0 0
      %1877 = vmatprep.subr.bf16.mxu0 0
      %1878 = vmatpush1.bf16.xpose.msra.mxu0 0
      %1879 = vmatprep.subr.bf16.mxu0 0
      %1880 = vmatpush1.bf16.xpose.msra.mxu0 0
      %1881 = vmatprep.mubr.bf16.mxu0 0
      %1882 = vmatmul.mubr.bf16.gmra.mrb[0].mxu0 %v1844
      %v1883 = vpop.f32.mrb[0].mxu0
      %v1884 = vadd.f32 0.0, %v1883
      %v1885 = vpop.f32.mrb[0].mxu0
      %v1886 = vpop.f32.mrb[0].mxu0
      %v1887 = vpop.f32.mrb[0].mxu0
      %1888 = vdwg.mxu0
      %v1890 = vsel %vm1382, %v1055, 0
      %v1893 = vsel %vm1382, %v1213, 0
      %1895 = vmatprep.subr.bf16.mxu0 0
      %1896 = vmatpush1.bf16.xpose.msra.mxu0 %v1893
      %1897 = vmatprep.subr.bf16.mxu0 0
      %1898 = vmatpush1.bf16.xpose.msra.mxu0 0
      %1899 = vmatprep.subr.bf16.mxu0 0
      %1900 = vmatpush1.bf16.xpose.msra.mxu0 0
      %1901 = vmatprep.subr.bf16.mxu0 0
      %1902 = vmatpush1.bf16.xpose.msra.mxu0 0
      %1903 = vmatprep.subr.bf16.mxu0 0
      %1904 = vmatpush1.bf16.xpose.msra.mxu0 0
      %1905 = vmatprep.subr.bf16.mxu0 0
      %1906 = vmatpush1.bf16.xpose.msra.mxu0 0
      %1907 = vmatprep.subr.bf16.mxu0 0
      %1908 = vmatpush1.bf16.xpose.msra.mxu0 0
      %1909 = vmatprep.subr.bf16.mxu0 0
      %1910 = vmatpush1.bf16.xpose.msra.mxu0 0
      %1911 = vmatprep.subr.bf16.mxu0 0
      %1912 = vmatpush1.bf16.xpose.msra.mxu0 0
      %1913 = vmatprep.subr.bf16.mxu0 0
      %1914 = vmatpush1.bf16.xpose.msra.mxu0 0
      %1915 = vmatprep.subr.bf16.mxu0 0
      %1916 = vmatpush1.bf16.xpose.msra.mxu0 0
      %1917 = vmatprep.subr.bf16.mxu0 0
      %1918 = vmatpush1.bf16.xpose.msra.mxu0 0
      %1919 = vmatprep.subr.bf16.mxu0 0
      %1920 = vmatpush1.bf16.xpose.msra.mxu0 0
      %1921 = vmatprep.subr.bf16.mxu0 0
      %1922 = vmatpush1.bf16.xpose.msra.mxu0 0
      %1923 = vmatprep.subr.bf16.mxu0 0
      %1924 = vmatpush1.bf16.xpose.msra.mxu0 0
      %1925 = vmatprep.subr.bf16.mxu0 0
      %1926 = vmatpush1.bf16.xpose.msra.mxu0 0
      %1927 = vmatprep.mubr.bf16.mxu0 0
      %1928 = vmatmul.mubr.bf16.gmra.mrb[0].mxu0 %v1890
      %v1929 = vpop.f32.mrb[0].mxu0
      %v1930 = vadd.f32 0.0, %v1929
      %v1931 = vpop.f32.mrb[0].mxu0
      %v1932 = vpop.f32.mrb[0].mxu0
      %v1933 = vpop.f32.mrb[0].mxu0
      %1934 = vdwg.mxu0
      %v1936 = vsel %vm1382, %v1000, 0
      %v1939 = vsel %vm1382, %v1158, 0
      %1941 = vmatprep.subr.bf16.mxu0 0
      %1942 = vmatpush1.bf16.xpose.msra.mxu0 %v1939
      %1943 = vmatprep.subr.bf16.mxu0 0
      %1944 = vmatpush1.bf16.xpose.msra.mxu0 0
      %1945 = vmatprep.subr.bf16.mxu0 0
      %1946 = vmatpush1.bf16.xpose.msra.mxu0 0
      %1947 = vmatprep.subr.bf16.mxu0 0
      %1948 = vmatpush1.bf16.xpose.msra.mxu0 0
      %1949 = vmatprep.subr.bf16.mxu0 0
      %1950 = vmatpush1.bf16.xpose.msra.mxu0 0
      %1951 = vmatprep.subr.bf16.mxu0 0
      %1952 = vmatpush1.bf16.xpose.msra.mxu0 0
      %1953 = vmatprep.subr.bf16.mxu0 0
      %1954 = vmatpush1.bf16.xpose.msra.mxu0 0
      %1955 = vmatprep.subr.bf16.mxu0 0
      %1956 = vmatpush1.bf16.xpose.msra.mxu0 0
      %1957 = vmatprep.subr.bf16.mxu0 0
      %1958 = vmatpush1.bf16.xpose.msra.mxu0 0
      %1959 = vmatprep.subr.bf16.mxu0 0
      %1960 = vmatpush1.bf16.xpose.msra.mxu0 0
      %1961 = vmatprep.subr.bf16.mxu0 0
      %1962 = vmatpush1.bf16.xpose.msra.mxu0 0
      %1963 = vmatprep.subr.bf16.mxu0 0
      %1964 = vmatpush1.bf16.xpose.msra.mxu0 0
      %1965 = vmatprep.subr.bf16.mxu0 0
      %1966 = vmatpush1.bf16.xpose.msra.mxu0 0
      %1967 = vmatprep.subr.bf16.mxu0 0
      %1968 = vmatpush1.bf16.xpose.msra.mxu0 0
      %1969 = vmatprep.subr.bf16.mxu0 0
      %1970 = vmatpush1.bf16.xpose.msra.mxu0 0
      %1971 = vmatprep.subr.bf16.mxu0 0
      %1972 = vmatpush1.bf16.xpose.msra.mxu0 0
      %1973 = vmatprep.mubr.bf16.mxu0 0
      %1974 = vmatmul.mubr.bf16.gmra.mrb[0].mxu0 %v1936
      %v1975 = vpop.f32.mrb[0].mxu0
      %v1976 = vadd.f32 0.0, %v1975
      %v1977 = vpop.f32.mrb[0].mxu0
      %v1978 = vpop.f32.mrb[0].mxu0
      %v1979 = vpop.f32.mrb[0].mxu0
      %1980 = vdwg.mxu0
      %v1982 = vsel %vm1382, %v1025, 0
      %v1985 = vsel %vm1382, %v1183, 0
      %1987 = vmatprep.subr.bf16.mxu0 0
      %1988 = vmatpush1.bf16.xpose.msra.mxu0 %v1985
      %1989 = vmatprep.subr.bf16.mxu0 0
      %1990 = vmatpush1.bf16.xpose.msra.mxu0 0
      %1991 = vmatprep.subr.bf16.mxu0 0
      %1992 = vmatpush1.bf16.xpose.msra.mxu0 0
      %1993 = vmatprep.subr.bf16.mxu0 0
      %1994 = vmatpush1.bf16.xpose.msra.mxu0 0
      %1995 = vmatprep.subr.bf16.mxu0 0
      %1996 = vmatpush1.bf16.xpose.msra.mxu0 0
      %1997 = vmatprep.subr.bf16.mxu0 0
      %1998 = vmatpush1.bf16.xpose.msra.mxu0 0
      %1999 = vmatprep.subr.bf16.mxu0 0
      %2000 = vmatpush1.bf16.xpose.msra.mxu0 0
      %2001 = vmatprep.subr.bf16.mxu0 0
      %2002 = vmatpush1.bf16.xpose.msra.mxu0 0
      %2003 = vmatprep.subr.bf16.mxu0 0
      %2004 = vmatpush1.bf16.xpose.msra.mxu0 0
      %2005 = vmatprep.subr.bf16.mxu0 0
      %2006 = vmatpush1.bf16.xpose.msra.mxu0 0
      %2007 = vmatprep.subr.bf16.mxu0 0
      %2008 = vmatpush1.bf16.xpose.msra.mxu0 0
      %2009 = vmatprep.subr.bf16.mxu0 0
      %2010 = vmatpush1.bf16.xpose.msra.mxu0 0
      %2011 = vmatprep.subr.bf16.mxu0 0
      %2012 = vmatpush1.bf16.xpose.msra.mxu0 0
      %2013 = vmatprep.subr.bf16.mxu0 0
      %2014 = vmatpush1.bf16.xpose.msra.mxu0 0
      %2015 = vmatprep.subr.bf16.mxu0 0
      %2016 = vmatpush1.bf16.xpose.msra.mxu0 0
      %2017 = vmatprep.subr.bf16.mxu0 0
      %2018 = vmatpush1.bf16.xpose.msra.mxu0 0
      %2019 = vmatprep.mubr.bf16.mxu0 0
      %2020 = vmatmul.mubr.bf16.gmra.mrb[0].mxu0 %v1982
      %v2021 = vpop.f32.mrb[0].mxu0
      %v2022 = vadd.f32 0.0, %v2021
      %v2023 = vpop.f32.mrb[0].mxu0
      %v2024 = vpop.f32.mrb[0].mxu0
      %v2025 = vpop.f32.mrb[0].mxu0
      %2026 = vdwg.mxu0
      %v2028 = vsel %vm1382, %v1041, 0
      %v2031 = vsel %vm1382, %v1199, 0
      %2033 = vmatprep.subr.bf16.mxu0 0
      %2034 = vmatpush1.bf16.xpose.msra.mxu0 %v2031
      %2035 = vmatprep.subr.bf16.mxu0 0
      %2036 = vmatpush1.bf16.xpose.msra.mxu0 0
      %2037 = vmatprep.subr.bf16.mxu0 0
      %2038 = vmatpush1.bf16.xpose.msra.mxu0 0
      %2039 = vmatprep.subr.bf16.mxu0 0
      %2040 = vmatpush1.bf16.xpose.msra.mxu0 0
      %2041 = vmatprep.subr.bf16.mxu0 0
      %2042 = vmatpush1.bf16.xpose.msra.mxu0 0
      %2043 = vmatprep.subr.bf16.mxu0 0
      %2044 = vmatpush1.bf16.xpose.msra.mxu0 0
      %2045 = vmatprep.subr.bf16.mxu0 0
      %2046 = vmatpush1.bf16.xpose.msra.mxu0 0
      %2047 = vmatprep.subr.bf16.mxu0 0
      %2048 = vmatpush1.bf16.xpose.msra.mxu0 0
      %2049 = vmatprep.subr.bf16.mxu0 0
      %2050 = vmatpush1.bf16.xpose.msra.mxu0 0
      %2051 = vmatprep.subr.bf16.mxu0 0
      %2052 = vmatpush1.bf16.xpose.msra.mxu0 0
      %2053 = vmatprep.subr.bf16.mxu0 0
      %2054 = vmatpush1.bf16.xpose.msra.mxu0 0
      %2055 = vmatprep.subr.bf16.mxu0 0
      %2056 = vmatpush1.bf16.xpose.msra.mxu0 0
      %2057 = vmatprep.subr.bf16.mxu0 0
      %2058 = vmatpush1.bf16.xpose.msra.mxu0 0
      %2059 = vmatprep.subr.bf16.mxu0 0
      %2060 = vmatpush1.bf16.xpose.msra.mxu0 0
      %2061 = vmatprep.subr.bf16.mxu0 0
      %2062 = vmatpush1.bf16.xpose.msra.mxu0 0
      %2063 = vmatprep.subr.bf16.mxu0 0
      %2064 = vmatpush1.bf16.xpose.msra.mxu0 0
      %2065 = vmatprep.mubr.bf16.mxu0 0
      %2066 = vmatmul.mubr.bf16.gmra.mrb[0].mxu0 %v2028
      %v2067 = vpop.f32.mrb[0].mxu0
      %v2068 = vadd.f32 0.0, %v2067
      %v2069 = vpop.f32.mrb[0].mxu0
      %v2070 = vpop.f32.mrb[0].mxu0
      %v2071 = vpop.f32.mrb[0].mxu0
      %2072 = vdwg.mxu0
      %v2074 = vsel %vm1382, %v1057, 0
      %v2077 = vsel %vm1382, %v1215, 0
      %2079 = vmatprep.subr.bf16.mxu0 0
      %2080 = vmatpush1.bf16.xpose.msra.mxu0 %v2077
      %2081 = vmatprep.subr.bf16.mxu0 0
      %2082 = vmatpush1.bf16.xpose.msra.mxu0 0
      %2083 = vmatprep.subr.bf16.mxu0 0
      %2084 = vmatpush1.bf16.xpose.msra.mxu0 0
      %2085 = vmatprep.subr.bf16.mxu0 0
      %2086 = vmatpush1.bf16.xpose.msra.mxu0 0
      %2087 = vmatprep.subr.bf16.mxu0 0
      %2088 = vmatpush1.bf16.xpose.msra.mxu0 0
      %2089 = vmatprep.subr.bf16.mxu0 0
      %2090 = vmatpush1.bf16.xpose.msra.mxu0 0
      %2091 = vmatprep.subr.bf16.mxu0 0
      %2092 = vmatpush1.bf16.xpose.msra.mxu0 0
      %2093 = vmatprep.subr.bf16.mxu0 0
      %2094 = vmatpush1.bf16.xpose.msra.mxu0 0
      %2095 = vmatprep.subr.bf16.mxu0 0
      %2096 = vmatpush1.bf16.xpose.msra.mxu0 0
      %2097 = vmatprep.subr.bf16.mxu0 0
      %2098 = vmatpush1.bf16.xpose.msra.mxu0 0
      %2099 = vmatprep.subr.bf16.mxu0 0
      %2100 = vmatpush1.bf16.xpose.msra.mxu0 0
      %2101 = vmatprep.subr.bf16.mxu0 0
      %2102 = vmatpush1.bf16.xpose.msra.mxu0 0
      %2103 = vmatprep.subr.bf16.mxu0 0
      %2104 = vmatpush1.bf16.xpose.msra.mxu0 0
      %2105 = vmatprep.subr.bf16.mxu0 0
      %2106 = vmatpush1.bf16.xpose.msra.mxu0 0
      %2107 = vmatprep.subr.bf16.mxu0 0
      %2108 = vmatpush1.bf16.xpose.msra.mxu0 0
      %2109 = vmatprep.subr.bf16.mxu0 0
      %2110 = vmatpush1.bf16.xpose.msra.mxu0 0
      %2111 = vmatprep.mubr.bf16.mxu0 0
      %2112 = vmatmul.mubr.bf16.gmra.mrb[0].mxu0 %v2074
      %v2113 = vpop.f32.mrb[0].mxu0
      %v2114 = vadd.f32 0.0, %v2113
      %v2115 = vpop.f32.mrb[0].mxu0
      %v2116 = vpop.f32.mrb[0].mxu0
      %v2117 = vpop.f32.mrb[0].mxu0
      %2118 = vdwg.mxu0
      %v2120 = vsel %vm1382, %v1008, 0
      %v2123 = vsel %vm1382, %v1166, 0
      %2125 = vmatprep.subr.bf16.mxu0 0
      %2126 = vmatpush1.bf16.xpose.msra.mxu0 %v2123
      %2127 = vmatprep.subr.bf16.mxu0 0
      %2128 = vmatpush1.bf16.xpose.msra.mxu0 0
      %2129 = vmatprep.subr.bf16.mxu0 0
      %2130 = vmatpush1.bf16.xpose.msra.mxu0 0
      %2131 = vmatprep.subr.bf16.mxu0 0
      %2132 = vmatpush1.bf16.xpose.msra.mxu0 0
      %2133 = vmatprep.subr.bf16.mxu0 0
      %2134 = vmatpush1.bf16.xpose.msra.mxu0 0
      %2135 = vmatprep.subr.bf16.mxu0 0
      %2136 = vmatpush1.bf16.xpose.msra.mxu0 0
      %2137 = vmatprep.subr.bf16.mxu0 0
      %2138 = vmatpush1.bf16.xpose.msra.mxu0 0
      %2139 = vmatprep.subr.bf16.mxu0 0
      %2140 = vmatpush1.bf16.xpose.msra.mxu0 0
      %2141 = vmatprep.subr.bf16.mxu0 0
      %2142 = vmatpush1.bf16.xpose.msra.mxu0 0
      %2143 = vmatprep.subr.bf16.mxu0 0
      %2144 = vmatpush1.bf16.xpose.msra.mxu0 0
      %2145 = vmatprep.subr.bf16.mxu0 0
      %2146 = vmatpush1.bf16.xpose.msra.mxu0 0
      %2147 = vmatprep.subr.bf16.mxu0 0
      %2148 = vmatpush1.bf16.xpose.msra.mxu0 0
      %2149 = vmatprep.subr.bf16.mxu0 0
      %2150 = vmatpush1.bf16.xpose.msra.mxu0 0
      %2151 = vmatprep.subr.bf16.mxu0 0
      %2152 = vmatpush1.bf16.xpose.msra.mxu0 0
      %2153 = vmatprep.subr.bf16.mxu0 0
      %2154 = vmatpush1.bf16.xpose.msra.mxu0 0
      %2155 = vmatprep.subr.bf16.mxu0 0
      %2156 = vmatpush1.bf16.xpose.msra.mxu0 0
      %2157 = vmatprep.mubr.bf16.mxu0 0
      %2158 = vmatmul.mubr.bf16.gmra.mrb[0].mxu0 %v2120
      %v2159 = vpop.f32.mrb[0].mxu0
      %v2160 = vadd.f32 0.0, %v2159
      %v2161 = vpop.f32.mrb[0].mxu0
      %v2162 = vpop.f32.mrb[0].mxu0
      %v2163 = vpop.f32.mrb[0].mxu0
      %2164 = vdwg.mxu0
      %v2166 = vsel %vm1382, %v1027, 0
      %v2169 = vsel %vm1382, %v1185, 0
      %2171 = vmatprep.subr.bf16.mxu0 0
      %2172 = vmatpush1.bf16.xpose.msra.mxu0 %v2169
      %2173 = vmatprep.subr.bf16.mxu0 0
      %2174 = vmatpush1.bf16.xpose.msra.mxu0 0
      %2175 = vmatprep.subr.bf16.mxu0 0
      %2176 = vmatpush1.bf16.xpose.msra.mxu0 0
      %2177 = vmatprep.subr.bf16.mxu0 0
      %2178 = vmatpush1.bf16.xpose.msra.mxu0 0
      %2179 = vmatprep.subr.bf16.mxu0 0
      %2180 = vmatpush1.bf16.xpose.msra.mxu0 0
      %2181 = vmatprep.subr.bf16.mxu0 0
      %2182 = vmatpush1.bf16.xpose.msra.mxu0 0
      %2183 = vmatprep.subr.bf16.mxu0 0
      %2184 = vmatpush1.bf16.xpose.msra.mxu0 0
      %2185 = vmatprep.subr.bf16.mxu0 0
      %2186 = vmatpush1.bf16.xpose.msra.mxu0 0
      %2187 = vmatprep.subr.bf16.mxu0 0
      %2188 = vmatpush1.bf16.xpose.msra.mxu0 0
      %2189 = vmatprep.subr.bf16.mxu0 0
      %2190 = vmatpush1.bf16.xpose.msra.mxu0 0
      %2191 = vmatprep.subr.bf16.mxu0 0
      %2192 = vmatpush1.bf16.xpose.msra.mxu0 0
      %2193 = vmatprep.subr.bf16.mxu0 0
      %2194 = vmatpush1.bf16.xpose.msra.mxu0 0
      %2195 = vmatprep.subr.bf16.mxu0 0
      %2196 = vmatpush1.bf16.xpose.msra.mxu0 0
      %2197 = vmatprep.subr.bf16.mxu0 0
      %2198 = vmatpush1.bf16.xpose.msra.mxu0 0
      %2199 = vmatprep.subr.bf16.mxu0 0
      %2200 = vmatpush1.bf16.xpose.msra.mxu0 0
      %2201 = vmatprep.subr.bf16.mxu0 0
      %2202 = vmatpush1.bf16.xpose.msra.mxu0 0
      %2203 = vmatprep.mubr.bf16.mxu0 0
      %2204 = vmatmul.mubr.bf16.gmra.mrb[0].mxu0 %v2166
      %v2205 = vpop.f32.mrb[0].mxu0
      %v2206 = vadd.f32 0.0, %v2205
      %v2207 = vpop.f32.mrb[0].mxu0
      %v2208 = vpop.f32.mrb[0].mxu0
      %v2209 = vpop.f32.mrb[0].mxu0
      %2210 = vdwg.mxu0
      %v2212 = vsel %vm1382, %v1043, 0
      %v2215 = vsel %vm1382, %v1201, 0
      %2217 = vmatprep.subr.bf16.mxu0 0
      %2218 = vmatpush1.bf16.xpose.msra.mxu0 %v2215
      %2219 = vmatprep.subr.bf16.mxu0 0
      %2220 = vmatpush1.bf16.xpose.msra.mxu0 0
      %2221 = vmatprep.subr.bf16.mxu0 0
      %2222 = vmatpush1.bf16.xpose.msra.mxu0 0
      %2223 = vmatprep.subr.bf16.mxu0 0
      %2224 = vmatpush1.bf16.xpose.msra.mxu0 0
      %2225 = vmatprep.subr.bf16.mxu0 0
      %2226 = vmatpush1.bf16.xpose.msra.mxu0 0
      %2227 = vmatprep.subr.bf16.mxu0 0
      %2228 = vmatpush1.bf16.xpose.msra.mxu0 0
      %2229 = vmatprep.subr.bf16.mxu0 0
      %2230 = vmatpush1.bf16.xpose.msra.mxu0 0
      %2231 = vmatprep.subr.bf16.mxu0 0
      %2232 = vmatpush1.bf16.xpose.msra.mxu0 0
      %2233 = vmatprep.subr.bf16.mxu0 0
      %2234 = vmatpush1.bf16.xpose.msra.mxu0 0
      %2235 = vmatprep.subr.bf16.mxu0 0
      %2236 = vmatpush1.bf16.xpose.msra.mxu0 0
      %2237 = vmatprep.subr.bf16.mxu0 0
      %2238 = vmatpush1.bf16.xpose.msra.mxu0 0
      %2239 = vmatprep.subr.bf16.mxu0 0
      %2240 = vmatpush1.bf16.xpose.msra.mxu0 0
      %2241 = vmatprep.subr.bf16.mxu0 0
      %2242 = vmatpush1.bf16.xpose.msra.mxu0 0
      %2243 = vmatprep.subr.bf16.mxu0 0
      %2244 = vmatpush1.bf16.xpose.msra.mxu0 0
      %2245 = vmatprep.subr.bf16.mxu0 0
      %2246 = vmatpush1.bf16.xpose.msra.mxu0 0
      %2247 = vmatprep.subr.bf16.mxu0 0
      %2248 = vmatpush1.bf16.xpose.msra.mxu0 0
      %2249 = vmatprep.mubr.bf16.mxu0 0
      %2250 = vmatmul.mubr.bf16.gmra.mrb[0].mxu0 %v2212
      %v2251 = vpop.f32.mrb[0].mxu0
      %v2252 = vadd.f32 0.0, %v2251
      %v2253 = vpop.f32.mrb[0].mxu0
      %v2254 = vpop.f32.mrb[0].mxu0
      %v2255 = vpop.f32.mrb[0].mxu0
      %2256 = vdwg.mxu0
      %v2258 = vsel %vm1382, %v1059, 0
      %v2261 = vsel %vm1382, %v1217, 0
      %2263 = vmatprep.subr.bf16.mxu0 0
      %2264 = vmatpush1.bf16.xpose.msra.mxu0 %v2261
      %2265 = vmatprep.subr.bf16.mxu0 0
      %2266 = vmatpush1.bf16.xpose.msra.mxu0 0
      %2267 = vmatprep.subr.bf16.mxu0 0
      %2268 = vmatpush1.bf16.xpose.msra.mxu0 0
      %2269 = vmatprep.subr.bf16.mxu0 0
      %2270 = vmatpush1.bf16.xpose.msra.mxu0 0
      %2271 = vmatprep.subr.bf16.mxu0 0
      %2272 = vmatpush1.bf16.xpose.msra.mxu0 0
      %2273 = vmatprep.subr.bf16.mxu0 0
      %2274 = vmatpush1.bf16.xpose.msra.mxu0 0
      %2275 = vmatprep.subr.bf16.mxu0 0
      %2276 = vmatpush1.bf16.xpose.msra.mxu0 0
      %2277 = vmatprep.subr.bf16.mxu0 0
      %2278 = vmatpush1.bf16.xpose.msra.mxu0 0
      %2279 = vmatprep.subr.bf16.mxu0 0
      %2280 = vmatpush1.bf16.xpose.msra.mxu0 0
      %2281 = vmatprep.subr.bf16.mxu0 0
      %2282 = vmatpush1.bf16.xpose.msra.mxu0 0
      %2283 = vmatprep.subr.bf16.mxu0 0
      %2284 = vmatpush1.bf16.xpose.msra.mxu0 0
      %2285 = vmatprep.subr.bf16.mxu0 0
      %2286 = vmatpush1.bf16.xpose.msra.mxu0 0
      %2287 = vmatprep.subr.bf16.mxu0 0
      %2288 = vmatpush1.bf16.xpose.msra.mxu0 0
      %2289 = vmatprep.subr.bf16.mxu0 0
      %2290 = vmatpush1.bf16.xpose.msra.mxu0 0
      %2291 = vmatprep.subr.bf16.mxu0 0
      %2292 = vmatpush1.bf16.xpose.msra.mxu0 0
      %2293 = vmatprep.subr.bf16.mxu0 0
      %2294 = vmatpush1.bf16.xpose.msra.mxu0 0
      %2295 = vmatprep.mubr.bf16.mxu0 0
      %2296 = vmatmul.mubr.bf16.gmra.mrb[0].mxu0 %v2258
      %v2297 = vpop.f32.mrb[0].mxu0
      %v2298 = vadd.f32 0.0, %v2297
      %v2299 = vpop.f32.mrb[0].mxu0
      %v2300 = vpop.f32.mrb[0].mxu0
      %v2301 = vpop.f32.mrb[0].mxu0
      %2302 = vdwg.mxu0
      %v2304 = vsel %vm1382, %v1016, 0
      %v2307 = vsel %vm1382, %v1174, 0
      %2309 = vmatprep.subr.bf16.mxu0 0
      %2310 = vmatpush1.bf16.xpose.msra.mxu0 %v2307
      %2311 = vmatprep.subr.bf16.mxu0 0
      %2312 = vmatpush1.bf16.xpose.msra.mxu0 0
      %2313 = vmatprep.subr.bf16.mxu0 0
      %2314 = vmatpush1.bf16.xpose.msra.mxu0 0
      %2315 = vmatprep.subr.bf16.mxu0 0
      %2316 = vmatpush1.bf16.xpose.msra.mxu0 0
      %2317 = vmatprep.subr.bf16.mxu0 0
      %2318 = vmatpush1.bf16.xpose.msra.mxu0 0
      %2319 = vmatprep.subr.bf16.mxu0 0
      %2320 = vmatpush1.bf16.xpose.msra.mxu0 0
      %2321 = vmatprep.subr.bf16.mxu0 0
      %2322 = vmatpush1.bf16.xpose.msra.mxu0 0
      %2323 = vmatprep.subr.bf16.mxu0 0
      %2324 = vmatpush1.bf16.xpose.msra.mxu0 0
      %2325 = vmatprep.subr.bf16.mxu0 0
      %2326 = vmatpush1.bf16.xpose.msra.mxu0 0
      %2327 = vmatprep.subr.bf16.mxu0 0
      %2328 = vmatpush1.bf16.xpose.msra.mxu0 0
      %2329 = vmatprep.subr.bf16.mxu0 0
      %2330 = vmatpush1.bf16.xpose.msra.mxu0 0
      %2331 = vmatprep.subr.bf16.mxu0 0
      %2332 = vmatpush1.bf16.xpose.msra.mxu0 0
      %2333 = vmatprep.subr.bf16.mxu0 0
      %2334 = vmatpush1.bf16.xpose.msra.mxu0 0
      %2335 = vmatprep.subr.bf16.mxu0 0
      %2336 = vmatpush1.bf16.xpose.msra.mxu0 0
      %2337 = vmatprep.subr.bf16.mxu0 0
      %2338 = vmatpush1.bf16.xpose.msra.mxu0 0
      %2339 = vmatprep.subr.bf16.mxu0 0
      %2340 = vmatpush1.bf16.xpose.msra.mxu0 0
      %2341 = vmatprep.mubr.bf16.mxu0 0
      %2342 = vmatmul.mubr.bf16.gmra.mrb[0].mxu0 %v2304
      %v2343 = vpop.f32.mrb[0].mxu0
      %v2344 = vadd.f32 0.0, %v2343
      %v2345 = vpop.f32.mrb[0].mxu0
      %v2346 = vpop.f32.mrb[0].mxu0
      %v2347 = vpop.f32.mrb[0].mxu0
      %2348 = vdwg.mxu0
      %v2350 = vsel %vm1382, %v1029, 0
      %v2353 = vsel %vm1382, %v1187, 0
      %2355 = vmatprep.subr.bf16.mxu0 0
      %2356 = vmatpush1.bf16.xpose.msra.mxu0 %v2353
      %2357 = vmatprep.subr.bf16.mxu0 0
      %2358 = vmatpush1.bf16.xpose.msra.mxu0 0
      %2359 = vmatprep.subr.bf16.mxu0 0
      %2360 = vmatpush1.bf16.xpose.msra.mxu0 0
      %2361 = vmatprep.subr.bf16.mxu0 0
      %2362 = vmatpush1.bf16.xpose.msra.mxu0 0
      %2363 = vmatprep.subr.bf16.mxu0 0
      %2364 = vmatpush1.bf16.xpose.msra.mxu0 0
      %2365 = vmatprep.subr.bf16.mxu0 0
      %2366 = vmatpush1.bf16.xpose.msra.mxu0 0
      %2367 = vmatprep.subr.bf16.mxu0 0
      %2368 = vmatpush1.bf16.xpose.msra.mxu0 0
      %2369 = vmatprep.subr.bf16.mxu0 0
      %2370 = vmatpush1.bf16.xpose.msra.mxu0 0
      %2371 = vmatprep.subr.bf16.mxu0 0
      %2372 = vmatpush1.bf16.xpose.msra.mxu0 0
      %2373 = vmatprep.subr.bf16.mxu0 0
      %2374 = vmatpush1.bf16.xpose.msra.mxu0 0
      %2375 = vmatprep.subr.bf16.mxu0 0
      %2376 = vmatpush1.bf16.xpose.msra.mxu0 0
      %2377 = vmatprep.subr.bf16.mxu0 0
      %2378 = vmatpush1.bf16.xpose.msra.mxu0 0
      %2379 = vmatprep.subr.bf16.mxu0 0
      %2380 = vmatpush1.bf16.xpose.msra.mxu0 0
      %2381 = vmatprep.subr.bf16.mxu0 0
      %2382 = vmatpush1.bf16.xpose.msra.mxu0 0
      %2383 = vmatprep.subr.bf16.mxu0 0
      %2384 = vmatpush1.bf16.xpose.msra.mxu0 0
      %2385 = vmatprep.subr.bf16.mxu0 0
      %2386 = vmatpush1.bf16.xpose.msra.mxu0 0
      %2387 = vmatprep.mubr.bf16.mxu0 0
      %2388 = vmatmul.mubr.bf16.gmra.mrb[0].mxu0 %v2350
      %v2389 = vpop.f32.mrb[0].mxu0
      %v2390 = vadd.f32 0.0, %v2389
      %v2391 = vpop.f32.mrb[0].mxu0
      %v2392 = vpop.f32.mrb[0].mxu0
      %v2393 = vpop.f32.mrb[0].mxu0
      %2394 = vdwg.mxu0
      %v2396 = vsel %vm1382, %v1045, 0
      %v2399 = vsel %vm1382, %v1203, 0
      %2401 = vmatprep.subr.bf16.mxu0 0
      %2402 = vmatpush1.bf16.xpose.msra.mxu0 %v2399
      %2403 = vmatprep.subr.bf16.mxu0 0
      %2404 = vmatpush1.bf16.xpose.msra.mxu0 0
      %2405 = vmatprep.subr.bf16.mxu0 0
      %2406 = vmatpush1.bf16.xpose.msra.mxu0 0
      %2407 = vmatprep.subr.bf16.mxu0 0
      %2408 = vmatpush1.bf16.xpose.msra.mxu0 0
      %2409 = vmatprep.subr.bf16.mxu0 0
      %2410 = vmatpush1.bf16.xpose.msra.mxu0 0
      %2411 = vmatprep.subr.bf16.mxu0 0
      %2412 = vmatpush1.bf16.xpose.msra.mxu0 0
      %2413 = vmatprep.subr.bf16.mxu0 0
      %2414 = vmatpush1.bf16.xpose.msra.mxu0 0
      %2415 = vmatprep.subr.bf16.mxu0 0
      %2416 = vmatpush1.bf16.xpose.msra.mxu0 0
      %2417 = vmatprep.subr.bf16.mxu0 0
      %2418 = vmatpush1.bf16.xpose.msra.mxu0 0
      %2419 = vmatprep.subr.bf16.mxu0 0
      %2420 = vmatpush1.bf16.xpose.msra.mxu0 0
      %2421 = vmatprep.subr.bf16.mxu0 0
      %2422 = vmatpush1.bf16.xpose.msra.mxu0 0
      %2423 = vmatprep.subr.bf16.mxu0 0
      %2424 = vmatpush1.bf16.xpose.msra.mxu0 0
      %2425 = vmatprep.subr.bf16.mxu0 0
      %2426 = vmatpush1.bf16.xpose.msra.mxu0 0
      %2427 = vmatprep.subr.bf16.mxu0 0
      %2428 = vmatpush1.bf16.xpose.msra.mxu0 0
      %2429 = vmatprep.subr.bf16.mxu0 0
      %2430 = vmatpush1.bf16.xpose.msra.mxu0 0
      %2431 = vmatprep.subr.bf16.mxu0 0
      %2432 = vmatpush1.bf16.xpose.msra.mxu0 0
      %2433 = vmatprep.mubr.bf16.mxu0 0
      %2434 = vmatmul.mubr.bf16.gmra.mrb[0].mxu0 %v2396
      %v2435 = vpop.f32.mrb[0].mxu0
      %v2436 = vadd.f32 0.0, %v2435
      %v2437 = vpop.f32.mrb[0].mxu0
      %v2438 = vpop.f32.mrb[0].mxu0
      %v2439 = vpop.f32.mrb[0].mxu0
      %2440 = vdwg.mxu0
      %v2442 = vsel %vm1382, %v1061, 0
      %v2445 = vsel %vm1382, %v1219, 0
      %2447 = vmatprep.subr.bf16.mxu0 0
      %2448 = vmatpush1.bf16.xpose.msra.mxu0 %v2445
      %2449 = vmatprep.subr.bf16.mxu0 0
      %2450 = vmatpush1.bf16.xpose.msra.mxu0 0
      %2451 = vmatprep.subr.bf16.mxu0 0
      %2452 = vmatpush1.bf16.xpose.msra.mxu0 0
      %2453 = vmatprep.subr.bf16.mxu0 0
      %2454 = vmatpush1.bf16.xpose.msra.mxu0 0
      %2455 = vmatprep.subr.bf16.mxu0 0
      %2456 = vmatpush1.bf16.xpose.msra.mxu0 0
      %2457 = vmatprep.subr.bf16.mxu0 0
      %2458 = vmatpush1.bf16.xpose.msra.mxu0 0
      %2459 = vmatprep.subr.bf16.mxu0 0
      %2460 = vmatpush1.bf16.xpose.msra.mxu0 0
      %2461 = vmatprep.subr.bf16.mxu0 0
      %2462 = vmatpush1.bf16.xpose.msra.mxu0 0
      %2463 = vmatprep.subr.bf16.mxu0 0
      %2464 = vmatpush1.bf16.xpose.msra.mxu0 0
      %2465 = vmatprep.subr.bf16.mxu0 0
      %2466 = vmatpush1.bf16.xpose.msra.mxu0 0
      %2467 = vmatprep.subr.bf16.mxu0 0
      %2468 = vmatpush1.bf16.xpose.msra.mxu0 0
      %2469 = vmatprep.subr.bf16.mxu0 0
      %2470 = vmatpush1.bf16.xpose.msra.mxu0 0
      %2471 = vmatprep.subr.bf16.mxu0 0
      %2472 = vmatpush1.bf16.xpose.msra.mxu0 0
      %2473 = vmatprep.subr.bf16.mxu0 0
      %2474 = vmatpush1.bf16.xpose.msra.mxu0 0
      %2475 = vmatprep.subr.bf16.mxu0 0
      %2476 = vmatpush1.bf16.xpose.msra.mxu0 0
      %2477 = vmatprep.subr.bf16.mxu0 0
      %2478 = vmatpush1.bf16.xpose.msra.mxu0 0
      %2479 = vmatprep.mubr.bf16.mxu0 0
      %2480 = vmatmul.mubr.bf16.gmra.mrb[0].mxu0 %v2442
      %v2481 = vpop.f32.mrb[0].mxu0
      %v2482 = vadd.f32 0.0, %v2481
      %v2483 = vpop.f32.mrb[0].mxu0
      %v2484 = vpop.f32.mrb[0].mxu0
      %v2485 = vpop.f32.mrb[0].mxu0
      %2486 = vdwg.mxu0
      %v2488 = vsel %vm1382, %v1015, 0
      %v2491 = vsel %vm1382, %v1173, 0
      %2493 = vmatprep.subr.bf16.mxu0 0
      %2494 = vmatpush1.bf16.xpose.msra.mxu0 %v2491
      %2495 = vmatprep.subr.bf16.mxu0 0
      %2496 = vmatpush1.bf16.xpose.msra.mxu0 0
      %2497 = vmatprep.subr.bf16.mxu0 0
      %2498 = vmatpush1.bf16.xpose.msra.mxu0 0
      %2499 = vmatprep.subr.bf16.mxu0 0
      %2500 = vmatpush1.bf16.xpose.msra.mxu0 0
      %2501 = vmatprep.subr.bf16.mxu0 0
      %2502 = vmatpush1.bf16.xpose.msra.mxu0 0
      %2503 = vmatprep.subr.bf16.mxu0 0
      %2504 = vmatpush1.bf16.xpose.msra.mxu0 0
      %2505 = vmatprep.subr.bf16.mxu0 0
      %2506 = vmatpush1.bf16.xpose.msra.mxu0 0
      %2507 = vmatprep.subr.bf16.mxu0 0
      %2508 = vmatpush1.bf16.xpose.msra.mxu0 0
      %2509 = vmatprep.subr.bf16.mxu0 0
      %2510 = vmatpush1.bf16.xpose.msra.mxu0 0
      %2511 = vmatprep.subr.bf16.mxu0 0
      %2512 = vmatpush1.bf16.xpose.msra.mxu0 0
      %2513 = vmatprep.subr.bf16.mxu0 0
      %2514 = vmatpush1.bf16.xpose.msra.mxu0 0
      %2515 = vmatprep.subr.bf16.mxu0 0
      %2516 = vmatpush1.bf16.xpose.msra.mxu0 0
      %2517 = vmatprep.subr.bf16.mxu0 0
      %2518 = vmatpush1.bf16.xpose.msra.mxu0 0
      %2519 = vmatprep.subr.bf16.mxu0 0
      %2520 = vmatpush1.bf16.xpose.msra.mxu0 0
      %2521 = vmatprep.subr.bf16.mxu0 0
      %2522 = vmatpush1.bf16.xpose.msra.mxu0 0
      %2523 = vmatprep.subr.bf16.mxu0 0
      %2524 = vmatpush1.bf16.xpose.msra.mxu0 0
      %2525 = vmatprep.mubr.bf16.mxu0 0
      %2526 = vmatmul.mubr.bf16.gmra.mrb[0].mxu0 %v2488
      %v2527 = vpop.f32.mrb[0].mxu0
      %v2528 = vadd.f32 0.0, %v2527
      %v2529 = vpop.f32.mrb[0].mxu0
      %v2530 = vpop.f32.mrb[0].mxu0
      %v2531 = vpop.f32.mrb[0].mxu0
      %2532 = vdwg.mxu0
      %v2534 = vsel %vm1382, %v1031, 0
      %v2537 = vsel %vm1382, %v1189, 0
      %2539 = vmatprep.subr.bf16.mxu0 0
      %2540 = vmatpush1.bf16.xpose.msra.mxu0 %v2537
      %2541 = vmatprep.subr.bf16.mxu0 0
      %2542 = vmatpush1.bf16.xpose.msra.mxu0 0
      %2543 = vmatprep.subr.bf16.mxu0 0
      %2544 = vmatpush1.bf16.xpose.msra.mxu0 0
      %2545 = vmatprep.subr.bf16.mxu0 0
      %2546 = vmatpush1.bf16.xpose.msra.mxu0 0
      %2547 = vmatprep.subr.bf16.mxu0 0
      %2548 = vmatpush1.bf16.xpose.msra.mxu0 0
      %2549 = vmatprep.subr.bf16.mxu0 0
      %2550 = vmatpush1.bf16.xpose.msra.mxu0 0
      %2551 = vmatprep.subr.bf16.mxu0 0
      %2552 = vmatpush1.bf16.xpose.msra.mxu0 0
      %2553 = vmatprep.subr.bf16.mxu0 0
      %2554 = vmatpush1.bf16.xpose.msra.mxu0 0
      %2555 = vmatprep.subr.bf16.mxu0 0
      %2556 = vmatpush1.bf16.xpose.msra.mxu0 0
      %2557 = vmatprep.subr.bf16.mxu0 0
      %2558 = vmatpush1.bf16.xpose.msra.mxu0 0
      %2559 = vmatprep.subr.bf16.mxu0 0
      %2560 = vmatpush1.bf16.xpose.msra.mxu0 0
      %2561 = vmatprep.subr.bf16.mxu0 0
      %2562 = vmatpush1.bf16.xpose.msra.mxu0 0
      %2563 = vmatprep.subr.bf16.mxu0 0
      %2564 = vmatpush1.bf16.xpose.msra.mxu0 0
      %2565 = vmatprep.subr.bf16.mxu0 0
      %2566 = vmatpush1.bf16.xpose.msra.mxu0 0
      %2567 = vmatprep.subr.bf16.mxu0 0
      %2568 = vmatpush1.bf16.xpose.msra.mxu0 0
      %2569 = vmatprep.subr.bf16.mxu0 0
      %2570 = vmatpush1.bf16.xpose.msra.mxu0 0
      %2571 = vmatprep.mubr.bf16.mxu0 0
      %2572 = vmatmul.mubr.bf16.gmra.mrb[0].mxu0 %v2534
      %v2573 = vpop.f32.mrb[0].mxu0
      %v2574 = vadd.f32 0.0, %v2573
      %v2575 = vpop.f32.mrb[0].mxu0
      %v2576 = vpop.f32.mrb[0].mxu0
      %v2577 = vpop.f32.mrb[0].mxu0
      %2578 = vdwg.mxu0
      %v2580 = vsel %vm1382, %v1047, 0
      %v2583 = vsel %vm1382, %v1205, 0
      %2585 = vmatprep.subr.bf16.mxu0 0
      %2586 = vmatpush1.bf16.xpose.msra.mxu0 %v2583
      %2587 = vmatprep.subr.bf16.mxu0 0
      %2588 = vmatpush1.bf16.xpose.msra.mxu0 0
      %2589 = vmatprep.subr.bf16.mxu0 0
      %2590 = vmatpush1.bf16.xpose.msra.mxu0 0
      %2591 = vmatprep.subr.bf16.mxu0 0
      %2592 = vmatpush1.bf16.xpose.msra.mxu0 0
      %2593 = vmatprep.subr.bf16.mxu0 0
      %2594 = vmatpush1.bf16.xpose.msra.mxu0 0
      %2595 = vmatprep.subr.bf16.mxu0 0
      %2596 = vmatpush1.bf16.xpose.msra.mxu0 0
      %2597 = vmatprep.subr.bf16.mxu0 0
      %2598 = vmatpush1.bf16.xpose.msra.mxu0 0
      %2599 = vmatprep.subr.bf16.mxu0 0
      %2600 = vmatpush1.bf16.xpose.msra.mxu0 0
      %2601 = vmatprep.subr.bf16.mxu0 0
      %2602 = vmatpush1.bf16.xpose.msra.mxu0 0
      %2603 = vmatprep.subr.bf16.mxu0 0
      %2604 = vmatpush1.bf16.xpose.msra.mxu0 0
      %2605 = vmatprep.subr.bf16.mxu0 0
      %2606 = vmatpush1.bf16.xpose.msra.mxu0 0
      %2607 = vmatprep.subr.bf16.mxu0 0
      %2608 = vmatpush1.bf16.xpose.msra.mxu0 0
      %2609 = vmatprep.subr.bf16.mxu0 0
      %2610 = vmatpush1.bf16.xpose.msra.mxu0 0
      %2611 = vmatprep.subr.bf16.mxu0 0
      %2612 = vmatpush1.bf16.xpose.msra.mxu0 0
      %2613 = vmatprep.subr.bf16.mxu0 0
      %2614 = vmatpush1.bf16.xpose.msra.mxu0 0
      %2615 = vmatprep.subr.bf16.mxu0 0
      %2616 = vmatpush1.bf16.xpose.msra.mxu0 0
      %2617 = vmatprep.mubr.bf16.mxu0 0
      %2618 = vmatmul.mubr.bf16.gmra.mrb[0].mxu0 %v2580
      %v2619 = vpop.f32.mrb[0].mxu0
      %v2620 = vadd.f32 0.0, %v2619
      %v2621 = vpop.f32.mrb[0].mxu0
      %v2622 = vpop.f32.mrb[0].mxu0
      %v2623 = vpop.f32.mrb[0].mxu0
      %2624 = vdwg.mxu0
      %v2626 = vsel %vm1382, %v1063, 0
      %v2629 = vsel %vm1382, %v1221, 0
      %2631 = vmatprep.subr.bf16.mxu0 0
      %2632 = vmatpush1.bf16.xpose.msra.mxu0 %v2629
      %2633 = vmatprep.subr.bf16.mxu0 0
      %2634 = vmatpush1.bf16.xpose.msra.mxu0 0
      %2635 = vmatprep.subr.bf16.mxu0 0
      %2636 = vmatpush1.bf16.xpose.msra.mxu0 0
      %2637 = vmatprep.subr.bf16.mxu0 0
      %2638 = vmatpush1.bf16.xpose.msra.mxu0 0
      %2639 = vmatprep.subr.bf16.mxu0 0
      %2640 = vmatpush1.bf16.xpose.msra.mxu0 0
      %2641 = vmatprep.subr.bf16.mxu0 0
      %2642 = vmatpush1.bf16.xpose.msra.mxu0 0
      %2643 = vmatprep.subr.bf16.mxu0 0
      %2644 = vmatpush1.bf16.xpose.msra.mxu0 0
      %2645 = vmatprep.subr.bf16.mxu0 0
      %2646 = vmatpush1.bf16.xpose.msra.mxu0 0
      %2647 = vmatprep.subr.bf16.mxu0 0
      %2648 = vmatpush1.bf16.xpose.msra.mxu0 0
      %2649 = vmatprep.subr.bf16.mxu0 0
      %2650 = vmatpush1.bf16.xpose.msra.mxu0 0
      %2651 = vmatprep.subr.bf16.mxu0 0
      %2652 = vmatpush1.bf16.xpose.msra.mxu0 0
      %2653 = vmatprep.subr.bf16.mxu0 0
      %2654 = vmatpush1.bf16.xpose.msra.mxu0 0
      %2655 = vmatprep.subr.bf16.mxu0 0
      %2656 = vmatpush1.bf16.xpose.msra.mxu0 0
      %2657 = vmatprep.subr.bf16.mxu0 0
      %2658 = vmatpush1.bf16.xpose.msra.mxu0 0
      %2659 = vmatprep.subr.bf16.mxu0 0
      %2660 = vmatpush1.bf16.xpose.msra.mxu0 0
      %2661 = vmatprep.subr.bf16.mxu0 0
      %2662 = vmatpush1.bf16.xpose.msra.mxu0 0
      %2663 = vmatprep.mubr.bf16.mxu0 0
      %2664 = vmatmul.mubr.bf16.gmra.mrb[0].mxu0 %v2626
      %v2665 = vpop.f32.mrb[0].mxu0
      %v2666 = vadd.f32 0.0, %v2665
      %v2667 = vpop.f32.mrb[0].mxu0
      %v2668 = vpop.f32.mrb[0].mxu0
      %v2669 = vpop.f32.mrb[0].mxu0
      %2670 = vdwg.mxu0
      %v2672 = vsel %vm1382, %v1017, 0
      %v2675 = vsel %vm1382, %v1175, 0
      %2677 = vmatprep.subr.bf16.mxu0 0
      %2678 = vmatpush1.bf16.xpose.msra.mxu0 %v2675
      %2679 = vmatprep.subr.bf16.mxu0 0
      %2680 = vmatpush1.bf16.xpose.msra.mxu0 0
      %2681 = vmatprep.subr.bf16.mxu0 0
      %2682 = vmatpush1.bf16.xpose.msra.mxu0 0
      %2683 = vmatprep.subr.bf16.mxu0 0
      %2684 = vmatpush1.bf16.xpose.msra.mxu0 0
      %2685 = vmatprep.subr.bf16.mxu0 0
      %2686 = vmatpush1.bf16.xpose.msra.mxu0 0
      %2687 = vmatprep.subr.bf16.mxu0 0
      %2688 = vmatpush1.bf16.xpose.msra.mxu0 0
      %2689 = vmatprep.subr.bf16.mxu0 0
      %2690 = vmatpush1.bf16.xpose.msra.mxu0 0
      %2691 = vmatprep.subr.bf16.mxu0 0
      %2692 = vmatpush1.bf16.xpose.msra.mxu0 0
      %2693 = vmatprep.subr.bf16.mxu0 0
      %2694 = vmatpush1.bf16.xpose.msra.mxu0 0
      %2695 = vmatprep.subr.bf16.mxu0 0
      %2696 = vmatpush1.bf16.xpose.msra.mxu0 0
      %2697 = vmatprep.subr.bf16.mxu0 0
      %2698 = vmatpush1.bf16.xpose.msra.mxu0 0
      %2699 = vmatprep.subr.bf16.mxu0 0
      %2700 = vmatpush1.bf16.xpose.msra.mxu0 0
      %2701 = vmatprep.subr.bf16.mxu0 0
      %2702 = vmatpush1.bf16.xpose.msra.mxu0 0
      %2703 = vmatprep.subr.bf16.mxu0 0
      %2704 = vmatpush1.bf16.xpose.msra.mxu0 0
      %2705 = vmatprep.subr.bf16.mxu0 0
      %2706 = vmatpush1.bf16.xpose.msra.mxu0 0
      %2707 = vmatprep.subr.bf16.mxu0 0
      %2708 = vmatpush1.bf16.xpose.msra.mxu0 0
      %2709 = vmatprep.mubr.bf16.mxu0 0
      %2710 = vmatmul.mubr.bf16.gmra.mrb[0].mxu0 %v2672
      %v2711 = vpop.f32.mrb[0].mxu0
      %v2712 = vadd.f32 0.0, %v2711
      %v2713 = vpop.f32.mrb[0].mxu0
      %v2714 = vpop.f32.mrb[0].mxu0
      %v2715 = vpop.f32.mrb[0].mxu0
      %2716 = vdwg.mxu0
      %v2718 = vsel %vm1382, %v1033, 0
      %v2721 = vsel %vm1382, %v1191, 0
      %2723 = vmatprep.subr.bf16.mxu0 0
      %2724 = vmatpush1.bf16.xpose.msra.mxu0 %v2721
      %2725 = vmatprep.subr.bf16.mxu0 0
      %2726 = vmatpush1.bf16.xpose.msra.mxu0 0
      %2727 = vmatprep.subr.bf16.mxu0 0
      %2728 = vmatpush1.bf16.xpose.msra.mxu0 0
      %2729 = vmatprep.subr.bf16.mxu0 0
      %2730 = vmatpush1.bf16.xpose.msra.mxu0 0
      %2731 = vmatprep.subr.bf16.mxu0 0
      %2732 = vmatpush1.bf16.xpose.msra.mxu0 0
      %2733 = vmatprep.subr.bf16.mxu0 0
      %2734 = vmatpush1.bf16.xpose.msra.mxu0 0
      %2735 = vmatprep.subr.bf16.mxu0 0
      %2736 = vmatpush1.bf16.xpose.msra.mxu0 0
      %2737 = vmatprep.subr.bf16.mxu0 0
      %2738 = vmatpush1.bf16.xpose.msra.mxu0 0
      %2739 = vmatprep.subr.bf16.mxu0 0
      %2740 = vmatpush1.bf16.xpose.msra.mxu0 0
      %2741 = vmatprep.subr.bf16.mxu0 0
      %2742 = vmatpush1.bf16.xpose.msra.mxu0 0
      %2743 = vmatprep.subr.bf16.mxu0 0
      %2744 = vmatpush1.bf16.xpose.msra.mxu0 0
      %2745 = vmatprep.subr.bf16.mxu0 0
      %2746 = vmatpush1.bf16.xpose.msra.mxu0 0
      %2747 = vmatprep.subr.bf16.mxu0 0
      %2748 = vmatpush1.bf16.xpose.msra.mxu0 0
      %2749 = vmatprep.subr.bf16.mxu0 0
      %2750 = vmatpush1.bf16.xpose.msra.mxu0 0
      %2751 = vmatprep.subr.bf16.mxu0 0
      %2752 = vmatpush1.bf16.xpose.msra.mxu0 0
      %2753 = vmatprep.subr.bf16.mxu0 0
      %2754 = vmatpush1.bf16.xpose.msra.mxu0 0
      %2755 = vmatprep.mubr.bf16.mxu0 0
      %2756 = vmatmul.mubr.bf16.gmra.mrb[0].mxu0 %v2718
      %v2757 = vpop.f32.mrb[0].mxu0
      %v2758 = vadd.f32 0.0, %v2757
      %v2759 = vpop.f32.mrb[0].mxu0
      %v2760 = vpop.f32.mrb[0].mxu0
      %v2761 = vpop.f32.mrb[0].mxu0
      %2762 = vdwg.mxu0
      %v2764 = vsel %vm1382, %v1049, 0
      %v2767 = vsel %vm1382, %v1207, 0
      %2769 = vmatprep.subr.bf16.mxu0 0
      %2770 = vmatpush1.bf16.xpose.msra.mxu0 %v2767
      %2771 = vmatprep.subr.bf16.mxu0 0
      %2772 = vmatpush1.bf16.xpose.msra.mxu0 0
      %2773 = vmatprep.subr.bf16.mxu0 0
      %2774 = vmatpush1.bf16.xpose.msra.mxu0 0
      %2775 = vmatprep.subr.bf16.mxu0 0
      %2776 = vmatpush1.bf16.xpose.msra.mxu0 0
      %2777 = vmatprep.subr.bf16.mxu0 0
      %2778 = vmatpush1.bf16.xpose.msra.mxu0 0
      %2779 = vmatprep.subr.bf16.mxu0 0
      %2780 = vmatpush1.bf16.xpose.msra.mxu0 0
      %2781 = vmatprep.subr.bf16.mxu0 0
      %2782 = vmatpush1.bf16.xpose.msra.mxu0 0
      %2783 = vmatprep.subr.bf16.mxu0 0
      %2784 = vmatpush1.bf16.xpose.msra.mxu0 0
      %2785 = vmatprep.subr.bf16.mxu0 0
      %2786 = vmatpush1.bf16.xpose.msra.mxu0 0
      %2787 = vmatprep.subr.bf16.mxu0 0
      %2788 = vmatpush1.bf16.xpose.msra.mxu0 0
      %2789 = vmatprep.subr.bf16.mxu0 0
      %2790 = vmatpush1.bf16.xpose.msra.mxu0 0
      %2791 = vmatprep.subr.bf16.mxu0 0
      %2792 = vmatpush1.bf16.xpose.msra.mxu0 0
      %2793 = vmatprep.subr.bf16.mxu0 0
      %2794 = vmatpush1.bf16.xpose.msra.mxu0 0
      %2795 = vmatprep.subr.bf16.mxu0 0
      %2796 = vmatpush1.bf16.xpose.msra.mxu0 0
      %2797 = vmatprep.subr.bf16.mxu0 0
      %2798 = vmatpush1.bf16.xpose.msra.mxu0 0
      %2799 = vmatprep.subr.bf16.mxu0 0
      %2800 = vmatpush1.bf16.xpose.msra.mxu0 0
      %2801 = vmatprep.mubr.bf16.mxu0 0
      %2802 = vmatmul.mubr.bf16.gmra.mrb[0].mxu0 %v2764
      %v2803 = vpop.f32.mrb[0].mxu0
      %v2804 = vadd.f32 0.0, %v2803
      %v2805 = vpop.f32.mrb[0].mxu0
      %v2806 = vpop.f32.mrb[0].mxu0
      %v2807 = vpop.f32.mrb[0].mxu0
      %2808 = vdwg.mxu0
      %v2810 = vsel %vm1382, %v1065, 0
      %v2813 = vsel %vm1382, %v1223, 0
      %2815 = vmatprep.subr.bf16.mxu0 0
      %2816 = vmatpush1.bf16.xpose.msra.mxu0 %v2813
      %2817 = vmatprep.subr.bf16.mxu0 0
      %2818 = vmatpush1.bf16.xpose.msra.mxu0 0
      %2819 = vmatprep.subr.bf16.mxu0 0
      %2820 = vmatpush1.bf16.xpose.msra.mxu0 0
      %2821 = vmatprep.subr.bf16.mxu0 0
      %2822 = vmatpush1.bf16.xpose.msra.mxu0 0
      %2823 = vmatprep.subr.bf16.mxu0 0
      %2824 = vmatpush1.bf16.xpose.msra.mxu0 0
      %2825 = vmatprep.subr.bf16.mxu0 0
      %2826 = vmatpush1.bf16.xpose.msra.mxu0 0
      %2827 = vmatprep.subr.bf16.mxu0 0
      %2828 = vmatpush1.bf16.xpose.msra.mxu0 0
      %2829 = vmatprep.subr.bf16.mxu0 0
      %2830 = vmatpush1.bf16.xpose.msra.mxu0 0
      %2831 = vmatprep.subr.bf16.mxu0 0
      %2832 = vmatpush1.bf16.xpose.msra.mxu0 0
      %2833 = vmatprep.subr.bf16.mxu0 0
      %2834 = vmatpush1.bf16.xpose.msra.mxu0 0
      %2835 = vmatprep.subr.bf16.mxu0 0
      %2836 = vmatpush1.bf16.xpose.msra.mxu0 0
      %2837 = vmatprep.subr.bf16.mxu0 0
      %2838 = vmatpush1.bf16.xpose.msra.mxu0 0
      %2839 = vmatprep.subr.bf16.mxu0 0
      %2840 = vmatpush1.bf16.xpose.msra.mxu0 0
      %2841 = vmatprep.subr.bf16.mxu0 0
      %2842 = vmatpush1.bf16.xpose.msra.mxu0 0
      %2843 = vmatprep.subr.bf16.mxu0 0
      %2844 = vmatpush1.bf16.xpose.msra.mxu0 0
      %2845 = vmatprep.subr.bf16.mxu0 0
      %2846 = vmatpush1.bf16.xpose.msra.mxu0 0
      %2847 = vmatprep.mubr.bf16.mxu0 0
      %2848 = vmatmul.mubr.bf16.gmra.mrb[0].mxu0 %v2810
      %v2849 = vpop.f32.mrb[0].mxu0
      %v2850 = vadd.f32 0.0, %v2849
      %v2851 = vpop.f32.mrb[0].mxu0
      %v2852 = vpop.f32.mrb[0].mxu0
      %v2853 = vpop.f32.mrb[0].mxu0
      %2854 = vdwg.mxu0
      %v2855 = vlaneseq
      %v2856 = vshrl.u32 %v2855, 7
      %v2857 = vsub.s32 0, %v2856
      %v2858 = vrot.slane %v604, %v2857
      %2860 = vbcast.lane.b32.xlu0 %v2858, 256
      %v2861 = vpop.permute.xlu0 %2860
      %v2862 = vlaneseq
      %v2863 = vshrl.u32 %v2862, 7
      %v2864 = vsub.s32 0, %v2863
      %v2865 = vrot.slane %v605, %v2864
      %2867 = vbcast.lane.b32.xlu0 %v2865, 256
      %v2868 = vpop.permute.xlu0 %2867
      %v2869 = vlaneseq
      %v2870 = vshrl.u32 %v2869, 7
      %v2871 = vsub.s32 0, %v2870
      %v2872 = vrot.slane %v606, %v2871
      %2874 = vbcast.lane.b32.xlu0 %v2872, 256
      %v2875 = vpop.permute.xlu0 %2874
      %v2876 = vlaneseq
      %v2877 = vshrl.u32 %v2876, 7
      %v2878 = vsub.s32 0, %v2877
      %v2879 = vrot.slane %v607, %v2878
      %2881 = vbcast.lane.b32.xlu0 %v2879, 256
      %v2882 = vpop.permute.xlu0 %2881
      %v2883 = vlaneseq
      %v2884 = vshrl.u32 %v2883, 7
      %v2885 = vsub.s32 0, %v2884
      %v2886 = vrot.slane %v608, %v2885
      %2888 = vbcast.lane.b32.xlu0 %v2886, 256
      %v2889 = vpop.permute.xlu0 %2888
      %v2890 = vlaneseq
      %v2891 = vshrl.u32 %v2890, 7
      %v2892 = vsub.s32 0, %v2891
      %v2893 = vrot.slane %v609, %v2892
      %2895 = vbcast.lane.b32.xlu0 %v2893, 256
      %v2896 = vpop.permute.xlu0 %2895
      %v2897 = vlaneseq
      %v2898 = vshrl.u32 %v2897, 7
      %v2899 = vsub.s32 0, %v2898
      %v2900 = vrot.slane %v610, %v2899
      %2902 = vbcast.lane.b32.xlu0 %v2900, 256
      %v2903 = vpop.permute.xlu0 %2902
      %v2904 = vlaneseq
      %v2905 = vshrl.u32 %v2904, 7
      %v2906 = vsub.s32 0, %v2905
      %v2907 = vrot.slane %v611, %v2906
      %2909 = vbcast.lane.b32.xlu0 %v2907, 256
      %v2910 = vpop.permute.xlu0 %2909
      %v2919 = vlaneseq
      %v2920 = vshrl.u32 %v2919, 7
      %v2921 = vsub.s32 0, %v2920
      %v2922 = vrot.slane %v604, %v2921
      %v2923 = vlaneseq
      %v2924 = vshrl.u32 %v2923, 7
      %v2925 = vsub.s32 0, %v2924
      %v2926 = vrot.slane %v605, %v2925
      %v2927 = vlaneseq
      %v2928 = vshrl.u32 %v2927, 7
      %v2929 = vsub.s32 0, %v2928
      %v2930 = vrot.slane %v606, %v2929
      %v2931 = vlaneseq
      %v2932 = vshrl.u32 %v2931, 7
      %v2933 = vsub.s32 0, %v2932
      %v2934 = vrot.slane %v607, %v2933
      %v2935 = vlaneseq
      %v2936 = vshrl.u32 %v2935, 7
      %v2937 = vsub.s32 0, %v2936
      %v2938 = vrot.slane %v608, %v2937
      %v2939 = vlaneseq
      %v2940 = vshrl.u32 %v2939, 7
      %v2941 = vsub.s32 0, %v2940
      %v2942 = vrot.slane %v609, %v2941
      %v2943 = vlaneseq
      %v2944 = vshrl.u32 %v2943, 7
      %v2945 = vsub.s32 0, %v2944
      %v2946 = vrot.slane %v610, %v2945
      %v2947 = vlaneseq
      %v2948 = vshrl.u32 %v2947, 7
      %v2949 = vsub.s32 0, %v2948
      %v2950 = vrot.slane %v611, %v2949
      %v2959 = vmul.f32 %v2861, %v2922
      %v2960 = vmul.f32 %v2868, %v2926
      %v2961 = vmul.f32 %v2875, %v2930
      %v2962 = vmul.f32 %v2882, %v2934
      %v2963 = vmul.f32 %v2889, %v2938
      %v2964 = vmul.f32 %v2896, %v2942
      %v2965 = vmul.f32 %v2903, %v2946
      %v2966 = vmul.f32 %v2910, %v2950
      %vm2967 = vcmp.eq.f32.partialorder %v2959, 0.0
      %vm2968 = vcmp.eq.f32.partialorder %v2960, 0.0
      %vm2969 = vcmp.eq.f32.partialorder %v2961, 0.0
      %vm2970 = vcmp.eq.f32.partialorder %v2962, 0.0
      %vm2971 = vcmp.eq.f32.partialorder %v2963, 0.0
      %vm2972 = vcmp.eq.f32.partialorder %v2964, 0.0
      %vm2973 = vcmp.eq.f32.partialorder %v2965, 0.0
      %vm2974 = vcmp.eq.f32.partialorder %v2966, 0.0
      %v2975 = vsel %vm2967, 1, 0
      %v2976 = vsel %vm2968, 1, 0
      %v2977 = vsel %vm2969, 1, 0
      %v2978 = vsel %vm2970, 1, 0
      %v2979 = vsel %vm2971, 1, 0
      %v2980 = vsel %vm2972, 1, 0
      %v2981 = vsel %vm2973, 1, 0
      %v2982 = vsel %vm2974, 1, 0
      %vm2983 = vcmp.eq.s32.totalorder %v2975, 1
      %vm2984 = vcmp.eq.s32.totalorder %v2976, 1
      %vm2985 = vcmp.eq.s32.totalorder %v2977, 1
      %vm2986 = vcmp.eq.s32.totalorder %v2978, 1
      %vm2987 = vcmp.eq.s32.totalorder %v2979, 1
      %vm2988 = vcmp.eq.s32.totalorder %v2980, 1
      %vm2989 = vcmp.eq.s32.totalorder %v2981, 1
      %vm2990 = vcmp.eq.s32.totalorder %v2982, 1
      %v2991 = vsel %vm2983, -1e+09, %v1424
      %v2992 = vsel %vm2983, -1e+09, %v1470
      %v2993 = vsel %vm2983, -1e+09, %v1516
      %v2994 = vsel %vm2983, -1e+09, %v1562
      %v2995 = vsel %vm2984, -1e+09, %v1608
      %v2996 = vsel %vm2984, -1e+09, %v1654
      %v2997 = vsel %vm2984, -1e+09, %v1700
      %v2998 = vsel %vm2984, -1e+09, %v1746
      %v2999 = vsel %vm2985, -1e+09, %v1792
      %v3000 = vsel %vm2985, -1e+09, %v1838
      %v3001 = vsel %vm2985, -1e+09, %v1884
      %v3002 = vsel %vm2985, -1e+09, %v1930
      %v3003 = vsel %vm2986, -1e+09, %v1976
      %v3004 = vsel %vm2986, -1e+09, %v2022
      %v3005 = vsel %vm2986, -1e+09, %v2068
      %v3006 = vsel %vm2986, -1e+09, %v2114
      %v3007 = vsel %vm2987, -1e+09, %v2160
      %v3008 = vsel %vm2987, -1e+09, %v2206
      %v3009 = vsel %vm2987, -1e+09, %v2252
      %v3010 = vsel %vm2987, -1e+09, %v2298
      %v3011 = vsel %vm2988, -1e+09, %v2344
      %v3012 = vsel %vm2988, -1e+09, %v2390
      %v3013 = vsel %vm2988, -1e+09, %v2436
      %v3014 = vsel %vm2988, -1e+09, %v2482
      %v3015 = vsel %vm2989, -1e+09, %v2528
      %v3016 = vsel %vm2989, -1e+09, %v2574
      %v3017 = vsel %vm2989, -1e+09, %v2620
      %v3018 = vsel %vm2989, -1e+09, %v2666
      %v3019 = vsel %vm2990, -1e+09, %v2712
      %v3020 = vsel %vm2990, -1e+09, %v2758
      %v3021 = vsel %vm2990, -1e+09, %v2804
      %v3022 = vsel %vm2990, -1e+09, %v2850
      %vm3023 = vcmask 27648
      %v3024 = vsel %vm3023, %v2991, -inf
      %3025 = vmax.xlane.f32.xlu0 %v3024
      %v3026 = vpop.xlane.xlu0 %3025
      %v3027 = vsel %vm3023, %v2992, -inf
      %3028 = vmax.xlane.f32.xlu0 %v3027
      %v3029 = vpop.xlane.xlu0 %3028
      %v3030 = vsel %vm3023, %v2993, -inf
      %3031 = vmax.xlane.f32.xlu0 %v3030
      %v3032 = vpop.xlane.xlu0 %3031
      %v3033 = vsel %vm3023, %v2994, -inf
      %3034 = vmax.xlane.f32.xlu0 %v3033
      %v3035 = vpop.xlane.xlu0 %3034
      %v3036 = vsel %vm3023, %v2995, -inf
      %3037 = vmax.xlane.f32.xlu0 %v3036
      %v3038 = vpop.xlane.xlu0 %3037
      %v3039 = vsel %vm3023, %v2996, -inf
      %3040 = vmax.xlane.f32.xlu0 %v3039
      %v3041 = vpop.xlane.xlu0 %3040
      %v3042 = vsel %vm3023, %v2997, -inf
      %3043 = vmax.xlane.f32.xlu0 %v3042
      %v3044 = vpop.xlane.xlu0 %3043
      %v3045 = vsel %vm3023, %v2998, -inf
      %3046 = vmax.xlane.f32.xlu0 %v3045
      %v3047 = vpop.xlane.xlu0 %3046
      %v3048 = vsel %vm3023, %v2999, -inf
      %3049 = vmax.xlane.f32.xlu0 %v3048
      %v3050 = vpop.xlane.xlu0 %3049
      %v3051 = vsel %vm3023, %v3000, -inf
      %3052 = vmax.xlane.f32.xlu0 %v3051
      %v3053 = vpop.xlane.xlu0 %3052
      %v3054 = vsel %vm3023, %v3001, -inf
      %3055 = vmax.xlane.f32.xlu0 %v3054
      %v3056 = vpop.xlane.xlu0 %3055
      %v3057 = vsel %vm3023, %v3002, -inf
      %3058 = vmax.xlane.f32.xlu0 %v3057
      %v3059 = vpop.xlane.xlu0 %3058
      %v3060 = vsel %vm3023, %v3003, -inf
      %3061 = vmax.xlane.f32.xlu0 %v3060
      %v3062 = vpop.xlane.xlu0 %3061
      %v3063 = vsel %vm3023, %v3004, -inf
      %3064 = vmax.xlane.f32.xlu0 %v3063
      %v3065 = vpop.xlane.xlu0 %3064
      %v3066 = vsel %vm3023, %v3005, -inf
      %3067 = vmax.xlane.f32.xlu0 %v3066
      %v3068 = vpop.xlane.xlu0 %3067
      %v3069 = vsel %vm3023, %v3006, -inf
      %3070 = vmax.xlane.f32.xlu0 %v3069
      %v3071 = vpop.xlane.xlu0 %3070
      %v3072 = vsel %vm3023, %v3007, -inf
      %3073 = vmax.xlane.f32.xlu0 %v3072
      %v3074 = vpop.xlane.xlu0 %3073
      %v3075 = vsel %vm3023, %v3008, -inf
      %3076 = vmax.xlane.f32.xlu0 %v3075
      %v3077 = vpop.xlane.xlu0 %3076
      %v3078 = vsel %vm3023, %v3009, -inf
      %3079 = vmax.xlane.f32.xlu0 %v3078
      %v3080 = vpop.xlane.xlu0 %3079
      %v3081 = vsel %vm3023, %v3010, -inf
      %3082 = vmax.xlane.f32.xlu0 %v3081
      %v3083 = vpop.xlane.xlu0 %3082
      %v3084 = vsel %vm3023, %v3011, -inf
      %3085 = vmax.xlane.f32.xlu0 %v3084
      %v3086 = vpop.xlane.xlu0 %3085
      %v3087 = vsel %vm3023, %v3012, -inf
      %3088 = vmax.xlane.f32.xlu0 %v3087
      %v3089 = vpop.xlane.xlu0 %3088
      %v3090 = vsel %vm3023, %v3013, -inf
      %3091 = vmax.xlane.f32.xlu0 %v3090
      %v3092 = vpop.xlane.xlu0 %3091
      %v3093 = vsel %vm3023, %v3014, -inf
      %3094 = vmax.xlane.f32.xlu0 %v3093
      %v3095 = vpop.xlane.xlu0 %3094
      %v3096 = vsel %vm3023, %v3015, -inf
      %3097 = vmax.xlane.f32.xlu0 %v3096
      %v3098 = vpop.xlane.xlu0 %3097
      %v3099 = vsel %vm3023, %v3016, -inf
      %3100 = vmax.xlane.f32.xlu0 %v3099
      %v3101 = vpop.xlane.xlu0 %3100
      %v3102 = vsel %vm3023, %v3017, -inf
      %3103 = vmax.xlane.f32.xlu0 %v3102
      %v3104 = vpop.xlane.xlu0 %3103
      %v3105 = vsel %vm3023, %v3018, -inf
      %3106 = vmax.xlane.f32.xlu0 %v3105
      %v3107 = vpop.xlane.xlu0 %3106
      %v3108 = vsel %vm3023, %v3019, -inf
      %3109 = vmax.xlane.f32.xlu0 %v3108
      %v3110 = vpop.xlane.xlu0 %3109
      %v3111 = vsel %vm3023, %v3020, -inf
      %3112 = vmax.xlane.f32.xlu0 %v3111
      %v3113 = vpop.xlane.xlu0 %3112
      %v3114 = vsel %vm3023, %v3021, -inf
      %3115 = vmax.xlane.f32.xlu0 %v3114
      %v3116 = vpop.xlane.xlu0 %3115
      %v3117 = vsel %vm3023, %v3022, -inf
      %3118 = vmax.xlane.f32.xlu0 %v3117
      %v3119 = vpop.xlane.xlu0 %3118
      %v3120 = vsub.f32 %v2991, %v3026
      %v3121 = vsub.f32 %v2992, %v3029
      %v3122 = vsub.f32 %v2993, %v3032
      %v3123 = vsub.f32 %v2994, %v3035
      %v3124 = vsub.f32 %v2995, %v3038
      %v3125 = vsub.f32 %v2996, %v3041
      %v3126 = vsub.f32 %v2997, %v3044
      %v3127 = vsub.f32 %v2998, %v3047
      %v3128 = vsub.f32 %v2999, %v3050
      %v3129 = vsub.f32 %v3000, %v3053
      %v3130 = vsub.f32 %v3001, %v3056
      %v3131 = vsub.f32 %v3002, %v3059
      %v3132 = vsub.f32 %v3003, %v3062
      %v3133 = vsub.f32 %v3004, %v3065
      %v3134 = vsub.f32 %v3005, %v3068
      %v3135 = vsub.f32 %v3006, %v3071
      %v3136 = vsub.f32 %v3007, %v3074
      %v3137 = vsub.f32 %v3008, %v3077
      %v3138 = vsub.f32 %v3009, %v3080
      %v3139 = vsub.f32 %v3010, %v3083
      %v3140 = vsub.f32 %v3011, %v3086
      %v3141 = vsub.f32 %v3012, %v3089
      %v3142 = vsub.f32 %v3013, %v3092
      %v3143 = vsub.f32 %v3014, %v3095
      %v3144 = vsub.f32 %v3015, %v3098
      %v3145 = vsub.f32 %v3016, %v3101
      %v3146 = vsub.f32 %v3017, %v3104
      %v3147 = vsub.f32 %v3018, %v3107
      %v3148 = vsub.f32 %v3019, %v3110
      %v3149 = vsub.f32 %v3020, %v3113
      %v3150 = vsub.f32 %v3021, %v3116
      %v3151 = vsub.f32 %v3022, %v3119
      %v3152 = vmul.f32 %v3120, 1.442695
      %v3153 = vpow.pop %v3152
      %v3154 = vmul.f32 %v3121, 1.442695
      %v3155 = vpow.pop %v3154
      %v3156 = vmul.f32 %v3122, 1.442695
      %v3157 = vpow.pop %v3156
      %v3158 = vmul.f32 %v3123, 1.442695
      %v3159 = vpow.pop %v3158
      %v3160 = vmul.f32 %v3124, 1.442695
      %v3161 = vpow.pop %v3160
      %v3162 = vmul.f32 %v3125, 1.442695
      %v3163 = vpow.pop %v3162
      %v3164 = vmul.f32 %v3126, 1.442695
      %v3165 = vpow.pop %v3164
      %v3166 = vmul.f32 %v3127, 1.442695
      %v3167 = vpow.pop %v3166
      %v3168 = vmul.f32 %v3128, 1.442695
      %v3169 = vpow.pop %v3168
      %v3170 = vmul.f32 %v3129, 1.442695
      %v3171 = vpow.pop %v3170
      %v3172 = vmul.f32 %v3130, 1.442695
      %v3173 = vpow.pop %v3172
      %v3174 = vmul.f32 %v3131, 1.442695
      %v3175 = vpow.pop %v3174
      %v3176 = vmul.f32 %v3132, 1.442695
      %v3177 = vpow.pop %v3176
      %v3178 = vmul.f32 %v3133, 1.442695
      %v3179 = vpow.pop %v3178
      %v3180 = vmul.f32 %v3134, 1.442695
      %v3181 = vpow.pop %v3180
      %v3182 = vmul.f32 %v3135, 1.442695
      %v3183 = vpow.pop %v3182
      %v3184 = vmul.f32 %v3136, 1.442695
      %v3185 = vpow.pop %v3184
      %v3186 = vmul.f32 %v3137, 1.442695
      %v3187 = vpow.pop %v3186
      %v3188 = vmul.f32 %v3138, 1.442695
      %v3189 = vpow.pop %v3188
      %v3190 = vmul.f32 %v3139, 1.442695
      %v3191 = vpow.pop %v3190
      %v3192 = vmul.f32 %v3140, 1.442695
      %v3193 = vpow.pop %v3192
      %v3194 = vmul.f32 %v3141, 1.442695
      %v3195 = vpow.pop %v3194
      %v3196 = vmul.f32 %v3142, 1.442695
      %v3197 = vpow.pop %v3196
      %v3198 = vmul.f32 %v3143, 1.442695
      %v3199 = vpow.pop %v3198
      %v3200 = vmul.f32 %v3144, 1.442695
      %v3201 = vpow.pop %v3200
      %v3202 = vmul.f32 %v3145, 1.442695
      %v3203 = vpow.pop %v3202
      %v3204 = vmul.f32 %v3146, 1.442695
      %v3205 = vpow.pop %v3204
      %v3206 = vmul.f32 %v3147, 1.442695
      %v3207 = vpow.pop %v3206
      %v3208 = vmul.f32 %v3148, 1.442695
      %v3209 = vpow.pop %v3208
      %v3210 = vmul.f32 %v3149, 1.442695
      %v3211 = vpow.pop %v3210
      %v3212 = vmul.f32 %v3150, 1.442695
      %v3213 = vpow.pop %v3212
      %v3214 = vmul.f32 %v3151, 1.442695
      %v3215 = vpow.pop %v3214
      %v3216 = vsel %vm3023, %v3153, 0.0
      %3217 = vadd.xlane.f32.xlu0 %v3216
      %v3218 = vpop.xlane.xlu0 %3217
      %v3219 = vsel %vm3023, %v3155, 0.0
      %3220 = vadd.xlane.f32.xlu0 %v3219
      %v3221 = vpop.xlane.xlu0 %3220
      %v3222 = vsel %vm3023, %v3157, 0.0
      %3223 = vadd.xlane.f32.xlu0 %v3222
      %v3224 = vpop.xlane.xlu0 %3223
      %v3225 = vsel %vm3023, %v3159, 0.0
      %3226 = vadd.xlane.f32.xlu0 %v3225
      %v3227 = vpop.xlane.xlu0 %3226
      %v3228 = vsel %vm3023, %v3161, 0.0
      %3229 = vadd.xlane.f32.xlu0 %v3228
      %v3230 = vpop.xlane.xlu0 %3229
      %v3231 = vsel %vm3023, %v3163, 0.0
      %3232 = vadd.xlane.f32.xlu0 %v3231
      %v3233 = vpop.xlane.xlu0 %3232
      %v3234 = vsel %vm3023, %v3165, 0.0
      %3235 = vadd.xlane.f32.xlu0 %v3234
      %v3236 = vpop.xlane.xlu0 %3235
      %v3237 = vsel %vm3023, %v3167, 0.0
      %3238 = vadd.xlane.f32.xlu0 %v3237
      %v3239 = vpop.xlane.xlu0 %3238
      %v3240 = vsel %vm3023, %v3169, 0.0
      %3241 = vadd.xlane.f32.xlu0 %v3240
      %v3242 = vpop.xlane.xlu0 %3241
      %v3243 = vsel %vm3023, %v3171, 0.0
      %3244 = vadd.xlane.f32.xlu0 %v3243
      %v3245 = vpop.xlane.xlu0 %3244
      %v3246 = vsel %vm3023, %v3173, 0.0
      %3247 = vadd.xlane.f32.xlu0 %v3246
      %v3248 = vpop.xlane.xlu0 %3247
      %v3249 = vsel %vm3023, %v3175, 0.0
      %3250 = vadd.xlane.f32.xlu0 %v3249
      %v3251 = vpop.xlane.xlu0 %3250
      %v3252 = vsel %vm3023, %v3177, 0.0
      %3253 = vadd.xlane.f32.xlu0 %v3252
      %v3254 = vpop.xlane.xlu0 %3253
      %v3255 = vsel %vm3023, %v3179, 0.0
      %3256 = vadd.xlane.f32.xlu0 %v3255
      %v3257 = vpop.xlane.xlu0 %3256
      %v3258 = vsel %vm3023, %v3181, 0.0
      %3259 = vadd.xlane.f32.xlu0 %v3258
      %v3260 = vpop.xlane.xlu0 %3259
      %v3261 = vsel %vm3023, %v3183, 0.0
      %3262 = vadd.xlane.f32.xlu0 %v3261
      %v3263 = vpop.xlane.xlu0 %3262
      %v3264 = vsel %vm3023, %v3185, 0.0
      %3265 = vadd.xlane.f32.xlu0 %v3264
      %v3266 = vpop.xlane.xlu0 %3265
      %v3267 = vsel %vm3023, %v3187, 0.0
      %3268 = vadd.xlane.f32.xlu0 %v3267
      %v3269 = vpop.xlane.xlu0 %3268
      %v3270 = vsel %vm3023, %v3189, 0.0
      %3271 = vadd.xlane.f32.xlu0 %v3270
      %v3272 = vpop.xlane.xlu0 %3271
      %v3273 = vsel %vm3023, %v3191, 0.0
      %3274 = vadd.xlane.f32.xlu0 %v3273
      %v3275 = vpop.xlane.xlu0 %3274
      %v3276 = vsel %vm3023, %v3193, 0.0
      %3277 = vadd.xlane.f32.xlu0 %v3276
      %v3278 = vpop.xlane.xlu0 %3277
      %v3279 = vsel %vm3023, %v3195, 0.0
      %3280 = vadd.xlane.f32.xlu0 %v3279
      %v3281 = vpop.xlane.xlu0 %3280
      %v3282 = vsel %vm3023, %v3197, 0.0
      %3283 = vadd.xlane.f32.xlu0 %v3282
      %v3284 = vpop.xlane.xlu0 %3283
      %v3285 = vsel %vm3023, %v3199, 0.0
      %3286 = vadd.xlane.f32.xlu0 %v3285
      %v3287 = vpop.xlane.xlu0 %3286
      %v3288 = vsel %vm3023, %v3201, 0.0
      %3289 = vadd.xlane.f32.xlu0 %v3288
      %v3290 = vpop.xlane.xlu0 %3289
      %v3291 = vsel %vm3023, %v3203, 0.0
      %3292 = vadd.xlane.f32.xlu0 %v3291
      %v3293 = vpop.xlane.xlu0 %3292
      %v3294 = vsel %vm3023, %v3205, 0.0
      %3295 = vadd.xlane.f32.xlu0 %v3294
      %v3296 = vpop.xlane.xlu0 %3295
      %v3297 = vsel %vm3023, %v3207, 0.0
      %3298 = vadd.xlane.f32.xlu0 %v3297
      %v3299 = vpop.xlane.xlu0 %3298
      %v3300 = vsel %vm3023, %v3209, 0.0
      %3301 = vadd.xlane.f32.xlu0 %v3300
      %v3302 = vpop.xlane.xlu0 %3301
      %v3303 = vsel %vm3023, %v3211, 0.0
      %3304 = vadd.xlane.f32.xlu0 %v3303
      %v3305 = vpop.xlane.xlu0 %3304
      %v3306 = vsel %vm3023, %v3213, 0.0
      %3307 = vadd.xlane.f32.xlu0 %v3306
      %v3308 = vpop.xlane.xlu0 %3307
      %v3309 = vsel %vm3023, %v3215, 0.0
      %3310 = vadd.xlane.f32.xlu0 %v3309
      %v3311 = vpop.xlane.xlu0 %3310
      %v3312 = vrcp.pop %v3218
      %v3313 = vmul.f32 %v3153, %v3312
      %v3314 = vrcp.pop %v3221
      %v3315 = vmul.f32 %v3155, %v3314
      %v3316 = vrcp.pop %v3224
      %v3317 = vmul.f32 %v3157, %v3316
      %v3318 = vrcp.pop %v3227
      %v3319 = vmul.f32 %v3159, %v3318
      %v3320 = vrcp.pop %v3230
      %v3321 = vmul.f32 %v3161, %v3320
      %v3322 = vrcp.pop %v3233
      %v3323 = vmul.f32 %v3163, %v3322
      %v3324 = vrcp.pop %v3236
      %v3325 = vmul.f32 %v3165, %v3324
      %v3326 = vrcp.pop %v3239
      %v3327 = vmul.f32 %v3167, %v3326
      %v3328 = vrcp.pop %v3242
      %v3329 = vmul.f32 %v3169, %v3328
      %v3330 = vrcp.pop %v3245
      %v3331 = vmul.f32 %v3171, %v3330
      %v3332 = vrcp.pop %v3248
      %v3333 = vmul.f32 %v3173, %v3332
      %v3334 = vrcp.pop %v3251
      %v3335 = vmul.f32 %v3175, %v3334
      %v3336 = vrcp.pop %v3254
      %v3337 = vmul.f32 %v3177, %v3336
      %v3338 = vrcp.pop %v3257
      %v3339 = vmul.f32 %v3179, %v3338
      %v3340 = vrcp.pop %v3260
      %v3341 = vmul.f32 %v3181, %v3340
      %v3342 = vrcp.pop %v3263
      %v3343 = vmul.f32 %v3183, %v3342
      %v3344 = vrcp.pop %v3266
      %v3345 = vmul.f32 %v3185, %v3344
      %v3346 = vrcp.pop %v3269
      %v3347 = vmul.f32 %v3187, %v3346
      %v3348 = vrcp.pop %v3272
      %v3349 = vmul.f32 %v3189, %v3348
      %v3350 = vrcp.pop %v3275
      %v3351 = vmul.f32 %v3191, %v3350
      %v3352 = vrcp.pop %v3278
      %v3353 = vmul.f32 %v3193, %v3352
      %v3354 = vrcp.pop %v3281
      %v3355 = vmul.f32 %v3195, %v3354
      %v3356 = vrcp.pop %v3284
      %v3357 = vmul.f32 %v3197, %v3356
      %v3358 = vrcp.pop %v3287
      %v3359 = vmul.f32 %v3199, %v3358
      %v3360 = vrcp.pop %v3290
      %v3361 = vmul.f32 %v3201, %v3360
      %v3362 = vrcp.pop %v3293
      %v3363 = vmul.f32 %v3203, %v3362
      %v3364 = vrcp.pop %v3296
      %v3365 = vmul.f32 %v3205, %v3364
      %v3366 = vrcp.pop %v3299
      %v3367 = vmul.f32 %v3207, %v3366
      %v3368 = vrcp.pop %v3302
      %v3369 = vmul.f32 %v3209, %v3368
      %v3370 = vrcp.pop %v3305
      %v3371 = vmul.f32 %v3211, %v3370
      %v3372 = vrcp.pop %v3308
      %v3373 = vmul.f32 %v3213, %v3372
      %v3374 = vrcp.pop %v3311
      %v3375 = vmul.f32 %v3215, %v3374
      %v3376 = vpack.c.bf16 %v3313, %v3313
      %v3377 = vpack.c.bf16 %v3315, %v3315
      %v3378 = vpack.c.bf16 %v3317, %v3317
      %v3379 = vpack.c.bf16 %v3319, %v3319
      %v3380 = vpack.c.bf16 %v3321, %v3321
      %v3381 = vpack.c.bf16 %v3323, %v3323
      %v3382 = vpack.c.bf16 %v3325, %v3325
      %v3383 = vpack.c.bf16 %v3327, %v3327
      %v3384 = vpack.c.bf16 %v3329, %v3329
      %v3385 = vpack.c.bf16 %v3331, %v3331
      %v3386 = vpack.c.bf16 %v3333, %v3333
      %v3387 = vpack.c.bf16 %v3335, %v3335
      %v3388 = vpack.c.bf16 %v3337, %v3337
      %v3389 = vpack.c.bf16 %v3339, %v3339
      %v3390 = vpack.c.bf16 %v3341, %v3341
      %v3391 = vpack.c.bf16 %v3343, %v3343
      %v3392 = vpack.c.bf16 %v3345, %v3345
      %v3393 = vpack.c.bf16 %v3347, %v3347
      %v3394 = vpack.c.bf16 %v3349, %v3349
      %v3395 = vpack.c.bf16 %v3351, %v3351
      %v3396 = vpack.c.bf16 %v3353, %v3353
      %v3397 = vpack.c.bf16 %v3355, %v3355
      %v3398 = vpack.c.bf16 %v3357, %v3357
      %v3399 = vpack.c.bf16 %v3359, %v3359
      %v3400 = vpack.c.bf16 %v3361, %v3361
      %v3401 = vpack.c.bf16 %v3363, %v3363
      %v3402 = vpack.c.bf16 %v3365, %v3365
      %v3403 = vpack.c.bf16 %v3367, %v3367
      %v3404 = vpack.c.bf16 %v3369, %v3369
      %v3405 = vpack.c.bf16 %v3371, %v3371
      %v3406 = vpack.c.bf16 %v3373, %v3373
      %v3407 = vpack.c.bf16 %v3375, %v3375
      %vm3408 = vcmask 25600
      %3409 = vst.msk [vmem:[%s529] sm:$0x3] %vm3408, %v3376
      %3410 = vst.msk [vmem:[%s529 + $0x2] sm:$0x3] %vm3408, %v3377
      %3411 = vst.msk [vmem:[%s529 + $0x4] sm:$0x3] %vm3408, %v3378
      %3412 = vst.msk [vmem:[%s529 + $0x6] sm:$0x3] %vm3408, %v3379
      %3413 = vst.msk [vmem:[%s529 + $0x8] sm:$0x3] %vm3408, %v3380
      %3414 = vst.msk [vmem:[%s529 + $0xa] sm:$0x3] %vm3408, %v3381
      %3415 = vst.msk [vmem:[%s529 + $0xc] sm:$0x3] %vm3408, %v3382
      %3416 = vst.msk [vmem:[%s529 + $0xe] sm:$0x3] %vm3408, %v3383
      %3417 = vst.msk [vmem:[%s529 + $0x10] sm:$0x3] %vm3408, %v3384
      %3418 = vst.msk [vmem:[%s529 + $0x12] sm:$0x3] %vm3408, %v3385
      %3419 = vst.msk [vmem:[%s529 + $0x14] sm:$0x3] %vm3408, %v3386
      %3420 = vst.msk [vmem:[%s529 + $0x16] sm:$0x3] %vm3408, %v3387
      %3421 = vst.msk [vmem:[%s529 + $0x18] sm:$0x3] %vm3408, %v3388
      %3422 = vst.msk [vmem:[%s529 + $0x1a] sm:$0x3] %vm3408, %v3389
      %3423 = vst.msk [vmem:[%s529 + $0x1c] sm:$0x3] %vm3408, %v3390
      %3424 = vst.msk [vmem:[%s529 + $0x1e] sm:$0x3] %vm3408, %v3391
      %3425 = vst.msk [vmem:[%s529 + $0x20] sm:$0x3] %vm3408, %v3392
      %3426 = vst.msk [vmem:[%s529 + $0x22] sm:$0x3] %vm3408, %v3393
      %3427 = vst.msk [vmem:[%s529 + $0x24] sm:$0x3] %vm3408, %v3394
      %3428 = vst.msk [vmem:[%s529 + $0x26] sm:$0x3] %vm3408, %v3395
      %3429 = vst.msk [vmem:[%s529 + $0x28] sm:$0x3] %vm3408, %v3396
      %3430 = vst.msk [vmem:[%s529 + $0x2a] sm:$0x3] %vm3408, %v3397
      %3431 = vst.msk [vmem:[%s529 + $0x2c] sm:$0x3] %vm3408, %v3398
      %3432 = vst.msk [vmem:[%s529 + $0x2e] sm:$0x3] %vm3408, %v3399
      %3433 = vst.msk [vmem:[%s529 + $0x30] sm:$0x3] %vm3408, %v3400
      %3434 = vst.msk [vmem:[%s529 + $0x32] sm:$0x3] %vm3408, %v3401
      %3435 = vst.msk [vmem:[%s529 + $0x34] sm:$0x3] %vm3408, %v3402
      %3436 = vst.msk [vmem:[%s529 + $0x36] sm:$0x3] %vm3408, %v3403
      %3437 = vst.msk [vmem:[%s529 + $0x38] sm:$0x3] %vm3408, %v3404
      %3438 = vst.msk [vmem:[%s529 + $0x3a] sm:$0x3] %vm3408, %v3405
      %3439 = vst.msk [vmem:[%s529 + $0x3c] sm:$0x3] %vm3408, %v3406
      %3440 = vst.msk [vmem:[%s529 + $0x3e] sm:$0x3] %vm3408, %v3407
      %vm3441 = vcmask 31744
      %v3443 = vsel %vm3441, %v3376, 0
      %vm3445 = vcmask 1041408
      %v3447 = vsel %vm3445, %v1307, 0
      %3449 = vmatprep.subr.bf16.mxu0 0
      %3450 = vmatpush1.bf16.msra.mxu0 %v3447
      %3451 = vmatprep.subr.bf16.mxu0 0
      %3452 = vmatpush1.bf16.msra.mxu0 0
      %3453 = vmatprep.subr.bf16.mxu0 0
      %3454 = vmatpush1.bf16.msra.mxu0 0
      %3455 = vmatprep.subr.bf16.mxu0 0
      %3456 = vmatpush1.bf16.msra.mxu0 0
      %3457 = vmatprep.subr.bf16.mxu0 0
      %3458 = vmatpush1.bf16.msra.mxu0 0
      %3459 = vmatprep.subr.bf16.mxu0 0
      %3460 = vmatpush1.bf16.msra.mxu0 0
      %3461 = vmatprep.subr.bf16.mxu0 0
      %3462 = vmatpush1.bf16.msra.mxu0 0
      %3463 = vmatprep.subr.bf16.mxu0 0
      %3464 = vmatpush1.bf16.msra.mxu0 0
      %3465 = vmatprep.subr.bf16.mxu0 0
      %3466 = vmatpush1.bf16.msra.mxu0 0
      %3467 = vmatprep.subr.bf16.mxu0 0
      %3468 = vmatpush1.bf16.msra.mxu0 0
      %3469 = vmatprep.subr.bf16.mxu0 0
      %3470 = vmatpush1.bf16.msra.mxu0 0
      %3471 = vmatprep.subr.bf16.mxu0 0
      %3472 = vmatpush1.bf16.msra.mxu0 0
      %3473 = vmatprep.subr.bf16.mxu0 0
      %3474 = vmatpush1.bf16.msra.mxu0 0
      %3475 = vmatprep.subr.bf16.mxu0 0
      %3476 = vmatpush1.bf16.msra.mxu0 0
      %3477 = vmatprep.subr.bf16.mxu0 0
      %3478 = vmatpush1.bf16.msra.mxu0 0
      %3479 = vmatprep.subr.bf16.mxu0 0
      %3480 = vmatpush1.bf16.msra.mxu0 0
      %3481 = vmatprep.mubr.bf16.mxu0 0
      %3482 = vmatmul.mubr.bf16.gmra.mrb[0].mxu0 %v3443
      %v3483 = vpop.f32.mrb[0].mxu0
      %v3484 = vadd.f32 0.0, %v3483
      %v3485 = vpop.f32.mrb[0].mxu0
      %v3486 = vpop.f32.mrb[0].mxu0
      %v3487 = vpop.f32.mrb[0].mxu0
      %3488 = vdwg.mxu0
      %v3490 = vsel %vm3441, %v3377, 0
      %v3493 = vsel %vm3445, %v1335, 0
      %3495 = vmatprep.subr.bf16.mxu0 0
      %3496 = vmatpush1.bf16.msra.mxu0 %v3493
      %3497 = vmatprep.subr.bf16.mxu0 0
      %3498 = vmatpush1.bf16.msra.mxu0 0
      %3499 = vmatprep.subr.bf16.mxu0 0
      %3500 = vmatpush1.bf16.msra.mxu0 0
      %3501 = vmatprep.subr.bf16.mxu0 0
      %3502 = vmatpush1.bf16.msra.mxu0 0
      %3503 = vmatprep.subr.bf16.mxu0 0
      %3504 = vmatpush1.bf16.msra.mxu0 0
      %3505 = vmatprep.subr.bf16.mxu0 0
      %3506 = vmatpush1.bf16.msra.mxu0 0
      %3507 = vmatprep.subr.bf16.mxu0 0
      %3508 = vmatpush1.bf16.msra.mxu0 0
      %3509 = vmatprep.subr.bf16.mxu0 0
      %3510 = vmatpush1.bf16.msra.mxu0 0
      %3511 = vmatprep.subr.bf16.mxu0 0
      %3512 = vmatpush1.bf16.msra.mxu0 0
      %3513 = vmatprep.subr.bf16.mxu0 0
      %3514 = vmatpush1.bf16.msra.mxu0 0
      %3515 = vmatprep.subr.bf16.mxu0 0
      %3516 = vmatpush1.bf16.msra.mxu0 0
      %3517 = vmatprep.subr.bf16.mxu0 0
      %3518 = vmatpush1.bf16.msra.mxu0 0
      %3519 = vmatprep.subr.bf16.mxu0 0
      %3520 = vmatpush1.bf16.msra.mxu0 0
      %3521 = vmatprep.subr.bf16.mxu0 0
      %3522 = vmatpush1.bf16.msra.mxu0 0
      %3523 = vmatprep.subr.bf16.mxu0 0
      %3524 = vmatpush1.bf16.msra.mxu0 0
      %3525 = vmatprep.subr.bf16.mxu0 0
      %3526 = vmatpush1.bf16.msra.mxu0 0
      %3527 = vmatprep.mubr.bf16.mxu0 0
      %3528 = vmatmul.mubr.bf16.gmra.mrb[0].mxu0 %v3490
      %v3529 = vpop.f32.mrb[0].mxu0
      %v3530 = vadd.f32 0.0, %v3529
      %v3531 = vpop.f32.mrb[0].mxu0
      %v3532 = vpop.f32.mrb[0].mxu0
      %v3533 = vpop.f32.mrb[0].mxu0
      %3534 = vdwg.mxu0
      %v3536 = vsel %vm3441, %v3378, 0
      %v3539 = vsel %vm3445, %v1351, 0
      %3541 = vmatprep.subr.bf16.mxu0 0
      %3542 = vmatpush1.bf16.msra.mxu0 %v3539
      %3543 = vmatprep.subr.bf16.mxu0 0
      %3544 = vmatpush1.bf16.msra.mxu0 0
      %3545 = vmatprep.subr.bf16.mxu0 0
      %3546 = vmatpush1.bf16.msra.mxu0 0
      %3547 = vmatprep.subr.bf16.mxu0 0
      %3548 = vmatpush1.bf16.msra.mxu0 0
      %3549 = vmatprep.subr.bf16.mxu0 0
      %3550 = vmatpush1.bf16.msra.mxu0 0
      %3551 = vmatprep.subr.bf16.mxu0 0
      %3552 = vmatpush1.bf16.msra.mxu0 0
      %3553 = vmatprep.subr.bf16.mxu0 0
      %3554 = vmatpush1.bf16.msra.mxu0 0
      %3555 = vmatprep.subr.bf16.mxu0 0
      %3556 = vmatpush1.bf16.msra.mxu0 0
      %3557 = vmatprep.subr.bf16.mxu0 0
      %3558 = vmatpush1.bf16.msra.mxu0 0
      %3559 = vmatprep.subr.bf16.mxu0 0
      %3560 = vmatpush1.bf16.msra.mxu0 0
      %3561 = vmatprep.subr.bf16.mxu0 0
      %3562 = vmatpush1.bf16.msra.mxu0 0
      %3563 = vmatprep.subr.bf16.mxu0 0
      %3564 = vmatpush1.bf16.msra.mxu0 0
      %3565 = vmatprep.subr.bf16.mxu0 0
      %3566 = vmatpush1.bf16.msra.mxu0 0
      %3567 = vmatprep.subr.bf16.mxu0 0
      %3568 = vmatpush1.bf16.msra.mxu0 0
      %3569 = vmatprep.subr.bf16.mxu0 0
      %3570 = vmatpush1.bf16.msra.mxu0 0
      %3571 = vmatprep.subr.bf16.mxu0 0
      %3572 = vmatpush1.bf16.msra.mxu0 0
      %3573 = vmatprep.mubr.bf16.mxu0 0
      %3574 = vmatmul.mubr.bf16.gmra.mrb[0].mxu0 %v3536
      %v3575 = vpop.f32.mrb[0].mxu0
      %v3576 = vadd.f32 0.0, %v3575
      %v3577 = vpop.f32.mrb[0].mxu0
      %v3578 = vpop.f32.mrb[0].mxu0
      %v3579 = vpop.f32.mrb[0].mxu0
      %3580 = vdwg.mxu0
      %v3582 = vsel %vm3441, %v3379, 0
      %v3585 = vsel %vm3445, %v1367, 0
      %3587 = vmatprep.subr.bf16.mxu0 0
      %3588 = vmatpush1.bf16.msra.mxu0 %v3585
      %3589 = vmatprep.subr.bf16.mxu0 0
      %3590 = vmatpush1.bf16.msra.mxu0 0
      %3591 = vmatprep.subr.bf16.mxu0 0
      %3592 = vmatpush1.bf16.msra.mxu0 0
      %3593 = vmatprep.subr.bf16.mxu0 0
      %3594 = vmatpush1.bf16.msra.mxu0 0
      %3595 = vmatprep.subr.bf16.mxu0 0
      %3596 = vmatpush1.bf16.msra.mxu0 0
      %3597 = vmatprep.subr.bf16.mxu0 0
      %3598 = vmatpush1.bf16.msra.mxu0 0
      %3599 = vmatprep.subr.bf16.mxu0 0
      %3600 = vmatpush1.bf16.msra.mxu0 0
      %3601 = vmatprep.subr.bf16.mxu0 0
      %3602 = vmatpush1.bf16.msra.mxu0 0
      %3603 = vmatprep.subr.bf16.mxu0 0
      %3604 = vmatpush1.bf16.msra.mxu0 0
      %3605 = vmatprep.subr.bf16.mxu0 0
      %3606 = vmatpush1.bf16.msra.mxu0 0
      %3607 = vmatprep.subr.bf16.mxu0 0
      %3608 = vmatpush1.bf16.msra.mxu0 0
      %3609 = vmatprep.subr.bf16.mxu0 0
      %3610 = vmatpush1.bf16.msra.mxu0 0
      %3611 = vmatprep.subr.bf16.mxu0 0
      %3612 = vmatpush1.bf16.msra.mxu0 0
      %3613 = vmatprep.subr.bf16.mxu0 0
      %3614 = vmatpush1.bf16.msra.mxu0 0
      %3615 = vmatprep.subr.bf16.mxu0 0
      %3616 = vmatpush1.bf16.msra.mxu0 0
      %3617 = vmatprep.subr.bf16.mxu0 0
      %3618 = vmatpush1.bf16.msra.mxu0 0
      %3619 = vmatprep.mubr.bf16.mxu0 0
      %3620 = vmatmul.mubr.bf16.gmra.mrb[0].mxu0 %v3582
      %v3621 = vpop.f32.mrb[0].mxu0
      %v3622 = vadd.f32 0.0, %v3621
      %v3623 = vpop.f32.mrb[0].mxu0
      %v3624 = vpop.f32.mrb[0].mxu0
      %v3625 = vpop.f32.mrb[0].mxu0
      %3626 = vdwg.mxu0
      %v3628 = vsel %vm3441, %v3380, 0
      %v3631 = vsel %vm3445, %v1315, 0
      %3633 = vmatprep.subr.bf16.mxu0 0
      %3634 = vmatpush1.bf16.msra.mxu0 %v3631
      %3635 = vmatprep.subr.bf16.mxu0 0
      %3636 = vmatpush1.bf16.msra.mxu0 0
      %3637 = vmatprep.subr.bf16.mxu0 0
      %3638 = vmatpush1.bf16.msra.mxu0 0
      %3639 = vmatprep.subr.bf16.mxu0 0
      %3640 = vmatpush1.bf16.msra.mxu0 0
      %3641 = vmatprep.subr.bf16.mxu0 0
      %3642 = vmatpush1.bf16.msra.mxu0 0
      %3643 = vmatprep.subr.bf16.mxu0 0
      %3644 = vmatpush1.bf16.msra.mxu0 0
      %3645 = vmatprep.subr.bf16.mxu0 0
      %3646 = vmatpush1.bf16.msra.mxu0 0
      %3647 = vmatprep.subr.bf16.mxu0 0
      %3648 = vmatpush1.bf16.msra.mxu0 0
      %3649 = vmatprep.subr.bf16.mxu0 0
      %3650 = vmatpush1.bf16.msra.mxu0 0
      %3651 = vmatprep.subr.bf16.mxu0 0
      %3652 = vmatpush1.bf16.msra.mxu0 0
      %3653 = vmatprep.subr.bf16.mxu0 0
      %3654 = vmatpush1.bf16.msra.mxu0 0
      %3655 = vmatprep.subr.bf16.mxu0 0
      %3656 = vmatpush1.bf16.msra.mxu0 0
      %3657 = vmatprep.subr.bf16.mxu0 0
      %3658 = vmatpush1.bf16.msra.mxu0 0
      %3659 = vmatprep.subr.bf16.mxu0 0
      %3660 = vmatpush1.bf16.msra.mxu0 0
      %3661 = vmatprep.subr.bf16.mxu0 0
      %3662 = vmatpush1.bf16.msra.mxu0 0
      %3663 = vmatprep.subr.bf16.mxu0 0
      %3664 = vmatpush1.bf16.msra.mxu0 0
      %3665 = vmatprep.mubr.bf16.mxu0 0
      %3666 = vmatmul.mubr.bf16.gmra.mrb[0].mxu0 %v3628
      %v3667 = vpop.f32.mrb[0].mxu0
      %v3668 = vadd.f32 0.0, %v3667
      %v3669 = vpop.f32.mrb[0].mxu0
      %v3670 = vpop.f32.mrb[0].mxu0
      %v3671 = vpop.f32.mrb[0].mxu0
      %3672 = vdwg.mxu0
      %v3674 = vsel %vm3441, %v3381, 0
      %v3677 = vsel %vm3445, %v1337, 0
      %3679 = vmatprep.subr.bf16.mxu0 0
      %3680 = vmatpush1.bf16.msra.mxu0 %v3677
      %3681 = vmatprep.subr.bf16.mxu0 0
      %3682 = vmatpush1.bf16.msra.mxu0 0
      %3683 = vmatprep.subr.bf16.mxu0 0
      %3684 = vmatpush1.bf16.msra.mxu0 0
      %3685 = vmatprep.subr.bf16.mxu0 0
      %3686 = vmatpush1.bf16.msra.mxu0 0
      %3687 = vmatprep.subr.bf16.mxu0 0
      %3688 = vmatpush1.bf16.msra.mxu0 0
      %3689 = vmatprep.subr.bf16.mxu0 0
      %3690 = vmatpush1.bf16.msra.mxu0 0
      %3691 = vmatprep.subr.bf16.mxu0 0
      %3692 = vmatpush1.bf16.msra.mxu0 0
      %3693 = vmatprep.subr.bf16.mxu0 0
      %3694 = vmatpush1.bf16.msra.mxu0 0
      %3695 = vmatprep.subr.bf16.mxu0 0
      %3696 = vmatpush1.bf16.msra.mxu0 0
      %3697 = vmatprep.subr.bf16.mxu0 0
      %3698 = vmatpush1.bf16.msra.mxu0 0
      %3699 = vmatprep.subr.bf16.mxu0 0
      %3700 = vmatpush1.bf16.msra.mxu0 0
      %3701 = vmatprep.subr.bf16.mxu0 0
      %3702 = vmatpush1.bf16.msra.mxu0 0
      %3703 = vmatprep.subr.bf16.mxu0 0
      %3704 = vmatpush1.bf16.msra.mxu0 0
      %3705 = vmatprep.subr.bf16.mxu0 0
      %3706 = vmatpush1.bf16.msra.mxu0 0
      %3707 = vmatprep.subr.bf16.mxu0 0
      %3708 = vmatpush1.bf16.msra.mxu0 0
      %3709 = vmatprep.subr.bf16.mxu0 0
      %3710 = vmatpush1.bf16.msra.mxu0 0
      %3711 = vmatprep.mubr.bf16.mxu0 0
      %3712 = vmatmul.mubr.bf16.gmra.mrb[0].mxu0 %v3674
      %v3713 = vpop.f32.mrb[0].mxu0
      %v3714 = vadd.f32 0.0, %v3713
      %v3715 = vpop.f32.mrb[0].mxu0
      %v3716 = vpop.f32.mrb[0].mxu0
      %v3717 = vpop.f32.mrb[0].mxu0
      %3718 = vdwg.mxu0
      %v3720 = vsel %vm3441, %v3382, 0
      %v3723 = vsel %vm3445, %v1353, 0
      %3725 = vmatprep.subr.bf16.mxu0 0
      %3726 = vmatpush1.bf16.msra.mxu0 %v3723
      %3727 = vmatprep.subr.bf16.mxu0 0
      %3728 = vmatpush1.bf16.msra.mxu0 0
      %3729 = vmatprep.subr.bf16.mxu0 0
      %3730 = vmatpush1.bf16.msra.mxu0 0
      %3731 = vmatprep.subr.bf16.mxu0 0
      %3732 = vmatpush1.bf16.msra.mxu0 0
      %3733 = vmatprep.subr.bf16.mxu0 0
      %3734 = vmatpush1.bf16.msra.mxu0 0
      %3735 = vmatprep.subr.bf16.mxu0 0
      %3736 = vmatpush1.bf16.msra.mxu0 0
      %3737 = vmatprep.subr.bf16.mxu0 0
      %3738 = vmatpush1.bf16.msra.mxu0 0
      %3739 = vmatprep.subr.bf16.mxu0 0
      %3740 = vmatpush1.bf16.msra.mxu0 0
      %3741 = vmatprep.subr.bf16.mxu0 0
      %3742 = vmatpush1.bf16.msra.mxu0 0
      %3743 = vmatprep.subr.bf16.mxu0 0
      %3744 = vmatpush1.bf16.msra.mxu0 0
      %3745 = vmatprep.subr.bf16.mxu0 0
      %3746 = vmatpush1.bf16.msra.mxu0 0
      %3747 = vmatprep.subr.bf16.mxu0 0
      %3748 = vmatpush1.bf16.msra.mxu0 0
      %3749 = vmatprep.subr.bf16.mxu0 0
      %3750 = vmatpush1.bf16.msra.mxu0 0
      %3751 = vmatprep.subr.bf16.mxu0 0
      %3752 = vmatpush1.bf16.msra.mxu0 0
      %3753 = vmatprep.subr.bf16.mxu0 0
      %3754 = vmatpush1.bf16.msra.mxu0 0
      %3755 = vmatprep.subr.bf16.mxu0 0
      %3756 = vmatpush1.bf16.msra.mxu0 0
      %3757 = vmatprep.mubr.bf16.mxu0 0
      %3758 = vmatmul.mubr.bf16.gmra.mrb[0].mxu0 %v3720
      %v3759 = vpop.f32.mrb[0].mxu0
      %v3760 = vadd.f32 0.0, %v3759
      %v3761 = vpop.f32.mrb[0].mxu0
      %v3762 = vpop.f32.mrb[0].mxu0
      %v3763 = vpop.f32.mrb[0].mxu0
      %3764 = vdwg.mxu0
      %v3766 = vsel %vm3441, %v3383, 0
      %v3769 = vsel %vm3445, %v1369, 0
      %3771 = vmatprep.subr.bf16.mxu0 0
      %3772 = vmatpush1.bf16.msra.mxu0 %v3769
      %3773 = vmatprep.subr.bf16.mxu0 0
      %3774 = vmatpush1.bf16.msra.mxu0 0
      %3775 = vmatprep.subr.bf16.mxu0 0
      %3776 = vmatpush1.bf16.msra.mxu0 0
      %3777 = vmatprep.subr.bf16.mxu0 0
      %3778 = vmatpush1.bf16.msra.mxu0 0
      %3779 = vmatprep.subr.bf16.mxu0 0
      %3780 = vmatpush1.bf16.msra.mxu0 0
      %3781 = vmatprep.subr.bf16.mxu0 0
      %3782 = vmatpush1.bf16.msra.mxu0 0
      %3783 = vmatprep.subr.bf16.mxu0 0
      %3784 = vmatpush1.bf16.msra.mxu0 0
      %3785 = vmatprep.subr.bf16.mxu0 0
      %3786 = vmatpush1.bf16.msra.mxu0 0
      %3787 = vmatprep.subr.bf16.mxu0 0
      %3788 = vmatpush1.bf16.msra.mxu0 0
      %3789 = vmatprep.subr.bf16.mxu0 0
      %3790 = vmatpush1.bf16.msra.mxu0 0
      %3791 = vmatprep.subr.bf16.mxu0 0
      %3792 = vmatpush1.bf16.msra.mxu0 0
      %3793 = vmatprep.subr.bf16.mxu0 0
      %3794 = vmatpush1.bf16.msra.mxu0 0
      %3795 = vmatprep.subr.bf16.mxu0 0
      %3796 = vmatpush1.bf16.msra.mxu0 0
      %3797 = vmatprep.subr.bf16.mxu0 0
      %3798 = vmatpush1.bf16.msra.mxu0 0
      %3799 = vmatprep.subr.bf16.mxu0 0
      %3800 = vmatpush1.bf16.msra.mxu0 0
      %3801 = vmatprep.subr.bf16.mxu0 0
      %3802 = vmatpush1.bf16.msra.mxu0 0
      %3803 = vmatprep.mubr.bf16.mxu0 0
      %3804 = vmatmul.mubr.bf16.gmra.mrb[0].mxu0 %v3766
      %v3805 = vpop.f32.mrb[0].mxu0
      %v3806 = vadd.f32 0.0, %v3805
      %v3807 = vpop.f32.mrb[0].mxu0
      %v3808 = vpop.f32.mrb[0].mxu0
      %v3809 = vpop.f32.mrb[0].mxu0
      %3810 = vdwg.mxu0
      %v3812 = vsel %vm3441, %v3384, 0
      %v3815 = vsel %vm3445, %v1314, 0
      %3817 = vmatprep.subr.bf16.mxu0 0
      %3818 = vmatpush1.bf16.msra.mxu0 %v3815
      %3819 = vmatprep.subr.bf16.mxu0 0
      %3820 = vmatpush1.bf16.msra.mxu0 0
      %3821 = vmatprep.subr.bf16.mxu0 0
      %3822 = vmatpush1.bf16.msra.mxu0 0
      %3823 = vmatprep.subr.bf16.mxu0 0
      %3824 = vmatpush1.bf16.msra.mxu0 0
      %3825 = vmatprep.subr.bf16.mxu0 0
      %3826 = vmatpush1.bf16.msra.mxu0 0
      %3827 = vmatprep.subr.bf16.mxu0 0
      %3828 = vmatpush1.bf16.msra.mxu0 0
      %3829 = vmatprep.subr.bf16.mxu0 0
      %3830 = vmatpush1.bf16.msra.mxu0 0
      %3831 = vmatprep.subr.bf16.mxu0 0
      %3832 = vmatpush1.bf16.msra.mxu0 0
      %3833 = vmatprep.subr.bf16.mxu0 0
      %3834 = vmatpush1.bf16.msra.mxu0 0
      %3835 = vmatprep.subr.bf16.mxu0 0
      %3836 = vmatpush1.bf16.msra.mxu0 0
      %3837 = vmatprep.subr.bf16.mxu0 0
      %3838 = vmatpush1.bf16.msra.mxu0 0
      %3839 = vmatprep.subr.bf16.mxu0 0
      %3840 = vmatpush1.bf16.msra.mxu0 0
      %3841 = vmatprep.subr.bf16.mxu0 0
      %3842 = vmatpush1.bf16.msra.mxu0 0
      %3843 = vmatprep.subr.bf16.mxu0 0
      %3844 = vmatpush1.bf16.msra.mxu0 0
      %3845 = vmatprep.subr.bf16.mxu0 0
      %3846 = vmatpush1.bf16.msra.mxu0 0
      %3847 = vmatprep.subr.bf16.mxu0 0
      %3848 = vmatpush1.bf16.msra.mxu0 0
      %3849 = vmatprep.mubr.bf16.mxu0 0
      %3850 = vmatmul.mubr.bf16.gmra.mrb[0].mxu0 %v3812
      %v3851 = vpop.f32.mrb[0].mxu0
      %v3852 = vadd.f32 0.0, %v3851
      %v3853 = vpop.f32.mrb[0].mxu0
      %v3854 = vpop.f32.mrb[0].mxu0
      %v3855 = vpop.f32.mrb[0].mxu0
      %3856 = vdwg.mxu0
      %v3858 = vsel %vm3441, %v3385, 0
      %v3861 = vsel %vm3445, %v1339, 0
      %3863 = vmatprep.subr.bf16.mxu0 0
      %3864 = vmatpush1.bf16.msra.mxu0 %v3861
      %3865 = vmatprep.subr.bf16.mxu0 0
      %3866 = vmatpush1.bf16.msra.mxu0 0
      %3867 = vmatprep.subr.bf16.mxu0 0
      %3868 = vmatpush1.bf16.msra.mxu0 0
      %3869 = vmatprep.subr.bf16.mxu0 0
      %3870 = vmatpush1.bf16.msra.mxu0 0
      %3871 = vmatprep.subr.bf16.mxu0 0
      %3872 = vmatpush1.bf16.msra.mxu0 0
      %3873 = vmatprep.subr.bf16.mxu0 0
      %3874 = vmatpush1.bf16.msra.mxu0 0
      %3875 = vmatprep.subr.bf16.mxu0 0
      %3876 = vmatpush1.bf16.msra.mxu0 0
      %3877 = vmatprep.subr.bf16.mxu0 0
      %3878 = vmatpush1.bf16.msra.mxu0 0
      %3879 = vmatprep.subr.bf16.mxu0 0
      %3880 = vmatpush1.bf16.msra.mxu0 0
      %3881 = vmatprep.subr.bf16.mxu0 0
      %3882 = vmatpush1.bf16.msra.mxu0 0
      %3883 = vmatprep.subr.bf16.mxu0 0
      %3884 = vmatpush1.bf16.msra.mxu0 0
      %3885 = vmatprep.subr.bf16.mxu0 0
      %3886 = vmatpush1.bf16.msra.mxu0 0
      %3887 = vmatprep.subr.bf16.mxu0 0
      %3888 = vmatpush1.bf16.msra.mxu0 0
      %3889 = vmatprep.subr.bf16.mxu0 0
      %3890 = vmatpush1.bf16.msra.mxu0 0
      %3891 = vmatprep.subr.bf16.mxu0 0
      %3892 = vmatpush1.bf16.msra.mxu0 0
      %3893 = vmatprep.subr.bf16.mxu0 0
      %3894 = vmatpush1.bf16.msra.mxu0 0
      %3895 = vmatprep.mubr.bf16.mxu0 0
      %3896 = vmatmul.mubr.bf16.gmra.mrb[0].mxu0 %v3858
      %v3897 = vpop.f32.mrb[0].mxu0
      %v3898 = vadd.f32 0.0, %v3897
      %v3899 = vpop.f32.mrb[0].mxu0
      %v3900 = vpop.f32.mrb[0].mxu0
      %v3901 = vpop.f32.mrb[0].mxu0
      %3902 = vdwg.mxu0
      %v3904 = vsel %vm3441, %v3386, 0
      %v3907 = vsel %vm3445, %v1355, 0
      %3909 = vmatprep.subr.bf16.mxu0 0
      %3910 = vmatpush1.bf16.msra.mxu0 %v3907
      %3911 = vmatprep.subr.bf16.mxu0 0
      %3912 = vmatpush1.bf16.msra.mxu0 0
      %3913 = vmatprep.subr.bf16.mxu0 0
      %3914 = vmatpush1.bf16.msra.mxu0 0
      %3915 = vmatprep.subr.bf16.mxu0 0
      %3916 = vmatpush1.bf16.msra.mxu0 0
      %3917 = vmatprep.subr.bf16.mxu0 0
      %3918 = vmatpush1.bf16.msra.mxu0 0
      %3919 = vmatprep.subr.bf16.mxu0 0
      %3920 = vmatpush1.bf16.msra.mxu0 0
      %3921 = vmatprep.subr.bf16.mxu0 0
      %3922 = vmatpush1.bf16.msra.mxu0 0
      %3923 = vmatprep.subr.bf16.mxu0 0
      %3924 = vmatpush1.bf16.msra.mxu0 0
      %3925 = vmatprep.subr.bf16.mxu0 0
      %3926 = vmatpush1.bf16.msra.mxu0 0
      %3927 = vmatprep.subr.bf16.mxu0 0
      %3928 = vmatpush1.bf16.msra.mxu0 0
      %3929 = vmatprep.subr.bf16.mxu0 0
      %3930 = vmatpush1.bf16.msra.mxu0 0
      %3931 = vmatprep.subr.bf16.mxu0 0
      %3932 = vmatpush1.bf16.msra.mxu0 0
      %3933 = vmatprep.subr.bf16.mxu0 0
      %3934 = vmatpush1.bf16.msra.mxu0 0
      %3935 = vmatprep.subr.bf16.mxu0 0
      %3936 = vmatpush1.bf16.msra.mxu0 0
      %3937 = vmatprep.subr.bf16.mxu0 0
      %3938 = vmatpush1.bf16.msra.mxu0 0
      %3939 = vmatprep.subr.bf16.mxu0 0
      %3940 = vmatpush1.bf16.msra.mxu0 0
      %3941 = vmatprep.mubr.bf16.mxu0 0
      %3942 = vmatmul.mubr.bf16.gmra.mrb[0].mxu0 %v3904
      %v3943 = vpop.f32.mrb[0].mxu0
      %v3944 = vadd.f32 0.0, %v3943
      %v3945 = vpop.f32.mrb[0].mxu0
      %v3946 = vpop.f32.mrb[0].mxu0
      %v3947 = vpop.f32.mrb[0].mxu0
      %3948 = vdwg.mxu0
      %v3950 = vsel %vm3441, %v3387, 0
      %v3953 = vsel %vm3445, %v1371, 0
      %3955 = vmatprep.subr.bf16.mxu0 0
      %3956 = vmatpush1.bf16.msra.mxu0 %v3953
      %3957 = vmatprep.subr.bf16.mxu0 0
      %3958 = vmatpush1.bf16.msra.mxu0 0
      %3959 = vmatprep.subr.bf16.mxu0 0
      %3960 = vmatpush1.bf16.msra.mxu0 0
      %3961 = vmatprep.subr.bf16.mxu0 0
      %3962 = vmatpush1.bf16.msra.mxu0 0
      %3963 = vmatprep.subr.bf16.mxu0 0
      %3964 = vmatpush1.bf16.msra.mxu0 0
      %3965 = vmatprep.subr.bf16.mxu0 0
      %3966 = vmatpush1.bf16.msra.mxu0 0
      %3967 = vmatprep.subr.bf16.mxu0 0
      %3968 = vmatpush1.bf16.msra.mxu0 0
      %3969 = vmatprep.subr.bf16.mxu0 0
      %3970 = vmatpush1.bf16.msra.mxu0 0
      %3971 = vmatprep.subr.bf16.mxu0 0
      %3972 = vmatpush1.bf16.msra.mxu0 0
      %3973 = vmatprep.subr.bf16.mxu0 0
      %3974 = vmatpush1.bf16.msra.mxu0 0
      %3975 = vmatprep.subr.bf16.mxu0 0
      %3976 = vmatpush1.bf16.msra.mxu0 0
      %3977 = vmatprep.subr.bf16.mxu0 0
      %3978 = vmatpush1.bf16.msra.mxu0 0
      %3979 = vmatprep.subr.bf16.mxu0 0
      %3980 = vmatpush1.bf16.msra.mxu0 0
      %3981 = vmatprep.subr.bf16.mxu0 0
      %3982 = vmatpush1.bf16.msra.mxu0 0
      %3983 = vmatprep.subr.bf16.mxu0 0
      %3984 = vmatpush1.bf16.msra.mxu0 0
      %3985 = vmatprep.subr.bf16.mxu0 0
      %3986 = vmatpush1.bf16.msra.mxu0 0
      %3987 = vmatprep.mubr.bf16.mxu0 0
      %3988 = vmatmul.mubr.bf16.gmra.mrb[0].mxu0 %v3950
      %v3989 = vpop.f32.mrb[0].mxu0
      %v3990 = vadd.f32 0.0, %v3989
      %v3991 = vpop.f32.mrb[0].mxu0
      %v3992 = vpop.f32.mrb[0].mxu0
      %v3993 = vpop.f32.mrb[0].mxu0
      %3994 = vdwg.mxu0
      %v3996 = vsel %vm3441, %v3388, 0
      %v3999 = vsel %vm3445, %v1316, 0
      %4001 = vmatprep.subr.bf16.mxu0 0
      %4002 = vmatpush1.bf16.msra.mxu0 %v3999
      %4003 = vmatprep.subr.bf16.mxu0 0
      %4004 = vmatpush1.bf16.msra.mxu0 0
      %4005 = vmatprep.subr.bf16.mxu0 0
      %4006 = vmatpush1.bf16.msra.mxu0 0
      %4007 = vmatprep.subr.bf16.mxu0 0
      %4008 = vmatpush1.bf16.msra.mxu0 0
      %4009 = vmatprep.subr.bf16.mxu0 0
      %4010 = vmatpush1.bf16.msra.mxu0 0
      %4011 = vmatprep.subr.bf16.mxu0 0
      %4012 = vmatpush1.bf16.msra.mxu0 0
      %4013 = vmatprep.subr.bf16.mxu0 0
      %4014 = vmatpush1.bf16.msra.mxu0 0
      %4015 = vmatprep.subr.bf16.mxu0 0
      %4016 = vmatpush1.bf16.msra.mxu0 0
      %4017 = vmatprep.subr.bf16.mxu0 0
      %4018 = vmatpush1.bf16.msra.mxu0 0
      %4019 = vmatprep.subr.bf16.mxu0 0
      %4020 = vmatpush1.bf16.msra.mxu0 0
      %4021 = vmatprep.subr.bf16.mxu0 0
      %4022 = vmatpush1.bf16.msra.mxu0 0
      %4023 = vmatprep.subr.bf16.mxu0 0
      %4024 = vmatpush1.bf16.msra.mxu0 0
      %4025 = vmatprep.subr.bf16.mxu0 0
      %4026 = vmatpush1.bf16.msra.mxu0 0
      %4027 = vmatprep.subr.bf16.mxu0 0
      %4028 = vmatpush1.bf16.msra.mxu0 0
      %4029 = vmatprep.subr.bf16.mxu0 0
      %4030 = vmatpush1.bf16.msra.mxu0 0
      %4031 = vmatprep.subr.bf16.mxu0 0
      %4032 = vmatpush1.bf16.msra.mxu0 0
      %4033 = vmatprep.mubr.bf16.mxu0 0
      %4034 = vmatmul.mubr.bf16.gmra.mrb[0].mxu0 %v3996
      %v4035 = vpop.f32.mrb[0].mxu0
      %v4036 = vadd.f32 0.0, %v4035
      %v4037 = vpop.f32.mrb[0].mxu0
      %v4038 = vpop.f32.mrb[0].mxu0
      %v4039 = vpop.f32.mrb[0].mxu0
      %4040 = vdwg.mxu0
      %v4042 = vsel %vm3441, %v3389, 0
      %v4045 = vsel %vm3445, %v1341, 0
      %4047 = vmatprep.subr.bf16.mxu0 0
      %4048 = vmatpush1.bf16.msra.mxu0 %v4045
      %4049 = vmatprep.subr.bf16.mxu0 0
      %4050 = vmatpush1.bf16.msra.mxu0 0
      %4051 = vmatprep.subr.bf16.mxu0 0
      %4052 = vmatpush1.bf16.msra.mxu0 0
      %4053 = vmatprep.subr.bf16.mxu0 0
      %4054 = vmatpush1.bf16.msra.mxu0 0
      %4055 = vmatprep.subr.bf16.mxu0 0
      %4056 = vmatpush1.bf16.msra.mxu0 0
      %4057 = vmatprep.subr.bf16.mxu0 0
      %4058 = vmatpush1.bf16.msra.mxu0 0
      %4059 = vmatprep.subr.bf16.mxu0 0
      %4060 = vmatpush1.bf16.msra.mxu0 0
      %4061 = vmatprep.subr.bf16.mxu0 0
      %4062 = vmatpush1.bf16.msra.mxu0 0
      %4063 = vmatprep.subr.bf16.mxu0 0
      %4064 = vmatpush1.bf16.msra.mxu0 0
      %4065 = vmatprep.subr.bf16.mxu0 0
      %4066 = vmatpush1.bf16.msra.mxu0 0
      %4067 = vmatprep.subr.bf16.mxu0 0
      %4068 = vmatpush1.bf16.msra.mxu0 0
      %4069 = vmatprep.subr.bf16.mxu0 0
      %4070 = vmatpush1.bf16.msra.mxu0 0
      %4071 = vmatprep.subr.bf16.mxu0 0
      %4072 = vmatpush1.bf16.msra.mxu0 0
      %4073 = vmatprep.subr.bf16.mxu0 0
      %4074 = vmatpush1.bf16.msra.mxu0 0
      %4075 = vmatprep.subr.bf16.mxu0 0
      %4076 = vmatpush1.bf16.msra.mxu0 0
      %4077 = vmatprep.subr.bf16.mxu0 0
      %4078 = vmatpush1.bf16.msra.mxu0 0
      %4079 = vmatprep.mubr.bf16.mxu0 0
      %4080 = vmatmul.mubr.bf16.gmra.mrb[0].mxu0 %v4042
      %v4081 = vpop.f32.mrb[0].mxu0
      %v4082 = vadd.f32 0.0, %v4081
      %v4083 = vpop.f32.mrb[0].mxu0
      %v4084 = vpop.f32.mrb[0].mxu0
      %v4085 = vpop.f32.mrb[0].mxu0
      %4086 = vdwg.mxu0
      %v4088 = vsel %vm3441, %v3390, 0
      %v4091 = vsel %vm3445, %v1357, 0
      %4093 = vmatprep.subr.bf16.mxu0 0
      %4094 = vmatpush1.bf16.msra.mxu0 %v4091
      %4095 = vmatprep.subr.bf16.mxu0 0
      %4096 = vmatpush1.bf16.msra.mxu0 0
      %4097 = vmatprep.subr.bf16.mxu0 0
      %4098 = vmatpush1.bf16.msra.mxu0 0
      %4099 = vmatprep.subr.bf16.mxu0 0
      %4100 = vmatpush1.bf16.msra.mxu0 0
      %4101 = vmatprep.subr.bf16.mxu0 0
      %4102 = vmatpush1.bf16.msra.mxu0 0
      %4103 = vmatprep.subr.bf16.mxu0 0
      %4104 = vmatpush1.bf16.msra.mxu0 0
      %4105 = vmatprep.subr.bf16.mxu0 0
      %4106 = vmatpush1.bf16.msra.mxu0 0
      %4107 = vmatprep.subr.bf16.mxu0 0
      %4108 = vmatpush1.bf16.msra.mxu0 0
      %4109 = vmatprep.subr.bf16.mxu0 0
      %4110 = vmatpush1.bf16.msra.mxu0 0
      %4111 = vmatprep.subr.bf16.mxu0 0
      %4112 = vmatpush1.bf16.msra.mxu0 0
      %4113 = vmatprep.subr.bf16.mxu0 0
      %4114 = vmatpush1.bf16.msra.mxu0 0
      %4115 = vmatprep.subr.bf16.mxu0 0
      %4116 = vmatpush1.bf16.msra.mxu0 0
      %4117 = vmatprep.subr.bf16.mxu0 0
      %4118 = vmatpush1.bf16.msra.mxu0 0
      %4119 = vmatprep.subr.bf16.mxu0 0
      %4120 = vmatpush1.bf16.msra.mxu0 0
      %4121 = vmatprep.subr.bf16.mxu0 0
      %4122 = vmatpush1.bf16.msra.mxu0 0
      %4123 = vmatprep.subr.bf16.mxu0 0
      %4124 = vmatpush1.bf16.msra.mxu0 0
      %4125 = vmatprep.mubr.bf16.mxu0 0
      %4126 = vmatmul.mubr.bf16.gmra.mrb[0].mxu0 %v4088
      %v4127 = vpop.f32.mrb[0].mxu0
      %v4128 = vadd.f32 0.0, %v4127
      %v4129 = vpop.f32.mrb[0].mxu0
      %v4130 = vpop.f32.mrb[0].mxu0
      %v4131 = vpop.f32.mrb[0].mxu0
      %4132 = vdwg.mxu0
      %v4134 = vsel %vm3441, %v3391, 0
      %v4137 = vsel %vm3445, %v1373, 0
      %4139 = vmatprep.subr.bf16.mxu0 0
      %4140 = vmatpush1.bf16.msra.mxu0 %v4137
      %4141 = vmatprep.subr.bf16.mxu0 0
      %4142 = vmatpush1.bf16.msra.mxu0 0
      %4143 = vmatprep.subr.bf16.mxu0 0
      %4144 = vmatpush1.bf16.msra.mxu0 0
      %4145 = vmatprep.subr.bf16.mxu0 0
      %4146 = vmatpush1.bf16.msra.mxu0 0
      %4147 = vmatprep.subr.bf16.mxu0 0
      %4148 = vmatpush1.bf16.msra.mxu0 0
      %4149 = vmatprep.subr.bf16.mxu0 0
      %4150 = vmatpush1.bf16.msra.mxu0 0
      %4151 = vmatprep.subr.bf16.mxu0 0
      %4152 = vmatpush1.bf16.msra.mxu0 0
      %4153 = vmatprep.subr.bf16.mxu0 0
      %4154 = vmatpush1.bf16.msra.mxu0 0
      %4155 = vmatprep.subr.bf16.mxu0 0
      %4156 = vmatpush1.bf16.msra.mxu0 0
      %4157 = vmatprep.subr.bf16.mxu0 0
      %4158 = vmatpush1.bf16.msra.mxu0 0
      %4159 = vmatprep.subr.bf16.mxu0 0
      %4160 = vmatpush1.bf16.msra.mxu0 0
      %4161 = vmatprep.subr.bf16.mxu0 0
      %4162 = vmatpush1.bf16.msra.mxu0 0
      %4163 = vmatprep.subr.bf16.mxu0 0
      %4164 = vmatpush1.bf16.msra.mxu0 0
      %4165 = vmatprep.subr.bf16.mxu0 0
      %4166 = vmatpush1.bf16.msra.mxu0 0
      %4167 = vmatprep.subr.bf16.mxu0 0
      %4168 = vmatpush1.bf16.msra.mxu0 0
      %4169 = vmatprep.subr.bf16.mxu0 0
      %4170 = vmatpush1.bf16.msra.mxu0 0
      %4171 = vmatprep.mubr.bf16.mxu0 0
      %4172 = vmatmul.mubr.bf16.gmra.mrb[0].mxu0 %v4134
      %v4173 = vpop.f32.mrb[0].mxu0
      %v4174 = vadd.f32 0.0, %v4173
      %v4175 = vpop.f32.mrb[0].mxu0
      %v4176 = vpop.f32.mrb[0].mxu0
      %v4177 = vpop.f32.mrb[0].mxu0
      %4178 = vdwg.mxu0
      %v4180 = vsel %vm3441, %v3392, 0
      %v4183 = vsel %vm3445, %v1324, 0
      %4185 = vmatprep.subr.bf16.mxu0 0
      %4186 = vmatpush1.bf16.msra.mxu0 %v4183
      %4187 = vmatprep.subr.bf16.mxu0 0
      %4188 = vmatpush1.bf16.msra.mxu0 0
      %4189 = vmatprep.subr.bf16.mxu0 0
      %4190 = vmatpush1.bf16.msra.mxu0 0
      %4191 = vmatprep.subr.bf16.mxu0 0
      %4192 = vmatpush1.bf16.msra.mxu0 0
      %4193 = vmatprep.subr.bf16.mxu0 0
      %4194 = vmatpush1.bf16.msra.mxu0 0
      %4195 = vmatprep.subr.bf16.mxu0 0
      %4196 = vmatpush1.bf16.msra.mxu0 0
      %4197 = vmatprep.subr.bf16.mxu0 0
      %4198 = vmatpush1.bf16.msra.mxu0 0
      %4199 = vmatprep.subr.bf16.mxu0 0
      %4200 = vmatpush1.bf16.msra.mxu0 0
      %4201 = vmatprep.subr.bf16.mxu0 0
      %4202 = vmatpush1.bf16.msra.mxu0 0
      %4203 = vmatprep.subr.bf16.mxu0 0
      %4204 = vmatpush1.bf16.msra.mxu0 0
      %4205 = vmatprep.subr.bf16.mxu0 0
      %4206 = vmatpush1.bf16.msra.mxu0 0
      %4207 = vmatprep.subr.bf16.mxu0 0
      %4208 = vmatpush1.bf16.msra.mxu0 0
      %4209 = vmatprep.subr.bf16.mxu0 0
      %4210 = vmatpush1.bf16.msra.mxu0 0
      %4211 = vmatprep.subr.bf16.mxu0 0
      %4212 = vmatpush1.bf16.msra.mxu0 0
      %4213 = vmatprep.subr.bf16.mxu0 0
      %4214 = vmatpush1.bf16.msra.mxu0 0
      %4215 = vmatprep.subr.bf16.mxu0 0
      %4216 = vmatpush1.bf16.msra.mxu0 0
      %4217 = vmatprep.mubr.bf16.mxu0 0
      %4218 = vmatmul.mubr.bf16.gmra.mrb[0].mxu0 %v4180
      %v4219 = vpop.f32.mrb[0].mxu0
      %v4220 = vadd.f32 0.0, %v4219
      %v4221 = vpop.f32.mrb[0].mxu0
      %v4222 = vpop.f32.mrb[0].mxu0
      %v4223 = vpop.f32.mrb[0].mxu0
      %4224 = vdwg.mxu0
      %v4226 = vsel %vm3441, %v3393, 0
      %v4229 = vsel %vm3445, %v1343, 0
      %4231 = vmatprep.subr.bf16.mxu0 0
      %4232 = vmatpush1.bf16.msra.mxu0 %v4229
      %4233 = vmatprep.subr.bf16.mxu0 0
      %4234 = vmatpush1.bf16.msra.mxu0 0
      %4235 = vmatprep.subr.bf16.mxu0 0
      %4236 = vmatpush1.bf16.msra.mxu0 0
      %4237 = vmatprep.subr.bf16.mxu0 0
      %4238 = vmatpush1.bf16.msra.mxu0 0
      %4239 = vmatprep.subr.bf16.mxu0 0
      %4240 = vmatpush1.bf16.msra.mxu0 0
      %4241 = vmatprep.subr.bf16.mxu0 0
      %4242 = vmatpush1.bf16.msra.mxu0 0
      %4243 = vmatprep.subr.bf16.mxu0 0
      %4244 = vmatpush1.bf16.msra.mxu0 0
      %4245 = vmatprep.subr.bf16.mxu0 0
      %4246 = vmatpush1.bf16.msra.mxu0 0
      %4247 = vmatprep.subr.bf16.mxu0 0
      %4248 = vmatpush1.bf16.msra.mxu0 0
      %4249 = vmatprep.subr.bf16.mxu0 0
      %4250 = vmatpush1.bf16.msra.mxu0 0
      %4251 = vmatprep.subr.bf16.mxu0 0
      %4252 = vmatpush1.bf16.msra.mxu0 0
      %4253 = vmatprep.subr.bf16.mxu0 0
      %4254 = vmatpush1.bf16.msra.mxu0 0
      %4255 = vmatprep.subr.bf16.mxu0 0
      %4256 = vmatpush1.bf16.msra.mxu0 0
      %4257 = vmatprep.subr.bf16.mxu0 0
      %4258 = vmatpush1.bf16.msra.mxu0 0
      %4259 = vmatprep.subr.bf16.mxu0 0
      %4260 = vmatpush1.bf16.msra.mxu0 0
      %4261 = vmatprep.subr.bf16.mxu0 0
      %4262 = vmatpush1.bf16.msra.mxu0 0
      %4263 = vmatprep.mubr.bf16.mxu0 0
      %4264 = vmatmul.mubr.bf16.gmra.mrb[0].mxu0 %v4226
      %v4265 = vpop.f32.mrb[0].mxu0
      %v4266 = vadd.f32 0.0, %v4265
      %v4267 = vpop.f32.mrb[0].mxu0
      %v4268 = vpop.f32.mrb[0].mxu0
      %v4269 = vpop.f32.mrb[0].mxu0
      %4270 = vdwg.mxu0
      %v4272 = vsel %vm3441, %v3394, 0
      %v4275 = vsel %vm3445, %v1359, 0
      %4277 = vmatprep.subr.bf16.mxu0 0
      %4278 = vmatpush1.bf16.msra.mxu0 %v4275
      %4279 = vmatprep.subr.bf16.mxu0 0
      %4280 = vmatpush1.bf16.msra.mxu0 0
      %4281 = vmatprep.subr.bf16.mxu0 0
      %4282 = vmatpush1.bf16.msra.mxu0 0
      %4283 = vmatprep.subr.bf16.mxu0 0
      %4284 = vmatpush1.bf16.msra.mxu0 0
      %4285 = vmatprep.subr.bf16.mxu0 0
      %4286 = vmatpush1.bf16.msra.mxu0 0
      %4287 = vmatprep.subr.bf16.mxu0 0
      %4288 = vmatpush1.bf16.msra.mxu0 0
      %4289 = vmatprep.subr.bf16.mxu0 0
      %4290 = vmatpush1.bf16.msra.mxu0 0
      %4291 = vmatprep.subr.bf16.mxu0 0
      %4292 = vmatpush1.bf16.msra.mxu0 0
      %4293 = vmatprep.subr.bf16.mxu0 0
      %4294 = vmatpush1.bf16.msra.mxu0 0
      %4295 = vmatprep.subr.bf16.mxu0 0
      %4296 = vmatpush1.bf16.msra.mxu0 0
      %4297 = vmatprep.subr.bf16.mxu0 0
      %4298 = vmatpush1.bf16.msra.mxu0 0
      %4299 = vmatprep.subr.bf16.mxu0 0
      %4300 = vmatpush1.bf16.msra.mxu0 0
      %4301 = vmatprep.subr.bf16.mxu0 0
      %4302 = vmatpush1.bf16.msra.mxu0 0
      %4303 = vmatprep.subr.bf16.mxu0 0
      %4304 = vmatpush1.bf16.msra.mxu0 0
      %4305 = vmatprep.subr.bf16.mxu0 0
      %4306 = vmatpush1.bf16.msra.mxu0 0
      %4307 = vmatprep.subr.bf16.mxu0 0
      %4308 = vmatpush1.bf16.msra.mxu0 0
      %4309 = vmatprep.mubr.bf16.mxu0 0
      %4310 = vmatmul.mubr.bf16.gmra.mrb[0].mxu0 %v4272
      %v4311 = vpop.f32.mrb[0].mxu0
      %v4312 = vadd.f32 0.0, %v4311
      %v4313 = vpop.f32.mrb[0].mxu0
      %v4314 = vpop.f32.mrb[0].mxu0
      %v4315 = vpop.f32.mrb[0].mxu0
      %4316 = vdwg.mxu0
      %v4318 = vsel %vm3441, %v3395, 0
      %v4321 = vsel %vm3445, %v1375, 0
      %4323 = vmatprep.subr.bf16.mxu0 0
      %4324 = vmatpush1.bf16.msra.mxu0 %v4321
      %4325 = vmatprep.subr.bf16.mxu0 0
      %4326 = vmatpush1.bf16.msra.mxu0 0
      %4327 = vmatprep.subr.bf16.mxu0 0
      %4328 = vmatpush1.bf16.msra.mxu0 0
      %4329 = vmatprep.subr.bf16.mxu0 0
      %4330 = vmatpush1.bf16.msra.mxu0 0
      %4331 = vmatprep.subr.bf16.mxu0 0
      %4332 = vmatpush1.bf16.msra.mxu0 0
      %4333 = vmatprep.subr.bf16.mxu0 0
      %4334 = vmatpush1.bf16.msra.mxu0 0
      %4335 = vmatprep.subr.bf16.mxu0 0
      %4336 = vmatpush1.bf16.msra.mxu0 0
      %4337 = vmatprep.subr.bf16.mxu0 0
      %4338 = vmatpush1.bf16.msra.mxu0 0
      %4339 = vmatprep.subr.bf16.mxu0 0
      %4340 = vmatpush1.bf16.msra.mxu0 0
      %4341 = vmatprep.subr.bf16.mxu0 0
      %4342 = vmatpush1.bf16.msra.mxu0 0
      %4343 = vmatprep.subr.bf16.mxu0 0
      %4344 = vmatpush1.bf16.msra.mxu0 0
      %4345 = vmatprep.subr.bf16.mxu0 0
      %4346 = vmatpush1.bf16.msra.mxu0 0
      %4347 = vmatprep.subr.bf16.mxu0 0
      %4348 = vmatpush1.bf16.msra.mxu0 0
      %4349 = vmatprep.subr.bf16.mxu0 0
      %4350 = vmatpush1.bf16.msra.mxu0 0
      %4351 = vmatprep.subr.bf16.mxu0 0
      %4352 = vmatpush1.bf16.msra.mxu0 0
      %4353 = vmatprep.subr.bf16.mxu0 0
      %4354 = vmatpush1.bf16.msra.mxu0 0
      %4355 = vmatprep.mubr.bf16.mxu0 0
      %4356 = vmatmul.mubr.bf16.gmra.mrb[0].mxu0 %v4318
      %v4357 = vpop.f32.mrb[0].mxu0
      %v4358 = vadd.f32 0.0, %v4357
      %v4359 = vpop.f32.mrb[0].mxu0
      %v4360 = vpop.f32.mrb[0].mxu0
      %v4361 = vpop.f32.mrb[0].mxu0
      %4362 = vdwg.mxu0
      %v4364 = vsel %vm3441, %v3396, 0
      %v4367 = vsel %vm3445, %v1332, 0
      %4369 = vmatprep.subr.bf16.mxu0 0
      %4370 = vmatpush1.bf16.msra.mxu0 %v4367
      %4371 = vmatprep.subr.bf16.mxu0 0
      %4372 = vmatpush1.bf16.msra.mxu0 0
      %4373 = vmatprep.subr.bf16.mxu0 0
      %4374 = vmatpush1.bf16.msra.mxu0 0
      %4375 = vmatprep.subr.bf16.mxu0 0
      %4376 = vmatpush1.bf16.msra.mxu0 0
      %4377 = vmatprep.subr.bf16.mxu0 0
      %4378 = vmatpush1.bf16.msra.mxu0 0
      %4379 = vmatprep.subr.bf16.mxu0 0
      %4380 = vmatpush1.bf16.msra.mxu0 0
      %4381 = vmatprep.subr.bf16.mxu0 0
      %4382 = vmatpush1.bf16.msra.mxu0 0
      %4383 = vmatprep.subr.bf16.mxu0 0
      %4384 = vmatpush1.bf16.msra.mxu0 0
      %4385 = vmatprep.subr.bf16.mxu0 0
      %4386 = vmatpush1.bf16.msra.mxu0 0
      %4387 = vmatprep.subr.bf16.mxu0 0
      %4388 = vmatpush1.bf16.msra.mxu0 0
      %4389 = vmatprep.subr.bf16.mxu0 0
      %4390 = vmatpush1.bf16.msra.mxu0 0
      %4391 = vmatprep.subr.bf16.mxu0 0
      %4392 = vmatpush1.bf16.msra.mxu0 0
      %4393 = vmatprep.subr.bf16.mxu0 0
      %4394 = vmatpush1.bf16.msra.mxu0 0
      %4395 = vmatprep.subr.bf16.mxu0 0
      %4396 = vmatpush1.bf16.msra.mxu0 0
      %4397 = vmatprep.subr.bf16.mxu0 0
      %4398 = vmatpush1.bf16.msra.mxu0 0
      %4399 = vmatprep.subr.bf16.mxu0 0
      %4400 = vmatpush1.bf16.msra.mxu0 0
      %4401 = vmatprep.mubr.bf16.mxu0 0
      %4402 = vmatmul.mubr.bf16.gmra.mrb[0].mxu0 %v4364
      %v4403 = vpop.f32.mrb[0].mxu0
      %v4404 = vadd.f32 0.0, %v4403
      %v4405 = vpop.f32.mrb[0].mxu0
      %v4406 = vpop.f32.mrb[0].mxu0
      %v4407 = vpop.f32.mrb[0].mxu0
      %4408 = vdwg.mxu0
      %v4410 = vsel %vm3441, %v3397, 0
      %v4413 = vsel %vm3445, %v1345, 0
      %4415 = vmatprep.subr.bf16.mxu0 0
      %4416 = vmatpush1.bf16.msra.mxu0 %v4413
      %4417 = vmatprep.subr.bf16.mxu0 0
      %4418 = vmatpush1.bf16.msra.mxu0 0
      %4419 = vmatprep.subr.bf16.mxu0 0
      %4420 = vmatpush1.bf16.msra.mxu0 0
      %4421 = vmatprep.subr.bf16.mxu0 0
      %4422 = vmatpush1.bf16.msra.mxu0 0
      %4423 = vmatprep.subr.bf16.mxu0 0
      %4424 = vmatpush1.bf16.msra.mxu0 0
      %4425 = vmatprep.subr.bf16.mxu0 0
      %4426 = vmatpush1.bf16.msra.mxu0 0
      %4427 = vmatprep.subr.bf16.mxu0 0
      %4428 = vmatpush1.bf16.msra.mxu0 0
      %4429 = vmatprep.subr.bf16.mxu0 0
      %4430 = vmatpush1.bf16.msra.mxu0 0
      %4431 = vmatprep.subr.bf16.mxu0 0
      %4432 = vmatpush1.bf16.msra.mxu0 0
      %4433 = vmatprep.subr.bf16.mxu0 0
      %4434 = vmatpush1.bf16.msra.mxu0 0
      %4435 = vmatprep.subr.bf16.mxu0 0
      %4436 = vmatpush1.bf16.msra.mxu0 0
      %4437 = vmatprep.subr.bf16.mxu0 0
      %4438 = vmatpush1.bf16.msra.mxu0 0
      %4439 = vmatprep.subr.bf16.mxu0 0
      %4440 = vmatpush1.bf16.msra.mxu0 0
      %4441 = vmatprep.subr.bf16.mxu0 0
      %4442 = vmatpush1.bf16.msra.mxu0 0
      %4443 = vmatprep.subr.bf16.mxu0 0
      %4444 = vmatpush1.bf16.msra.mxu0 0
      %4445 = vmatprep.subr.bf16.mxu0 0
      %4446 = vmatpush1.bf16.msra.mxu0 0
      %4447 = vmatprep.mubr.bf16.mxu0 0
      %4448 = vmatmul.mubr.bf16.gmra.mrb[0].mxu0 %v4410
      %v4449 = vpop.f32.mrb[0].mxu0
      %v4450 = vadd.f32 0.0, %v4449
      %v4451 = vpop.f32.mrb[0].mxu0
      %v4452 = vpop.f32.mrb[0].mxu0
      %v4453 = vpop.f32.mrb[0].mxu0
      %4454 = vdwg.mxu0
      %v4456 = vsel %vm3441, %v3398, 0
      %v4459 = vsel %vm3445, %v1361, 0
      %4461 = vmatprep.subr.bf16.mxu0 0
      %4462 = vmatpush1.bf16.msra.mxu0 %v4459
      %4463 = vmatprep.subr.bf16.mxu0 0
      %4464 = vmatpush1.bf16.msra.mxu0 0
      %4465 = vmatprep.subr.bf16.mxu0 0
      %4466 = vmatpush1.bf16.msra.mxu0 0
      %4467 = vmatprep.subr.bf16.mxu0 0
      %4468 = vmatpush1.bf16.msra.mxu0 0
      %4469 = vmatprep.subr.bf16.mxu0 0
      %4470 = vmatpush1.bf16.msra.mxu0 0
      %4471 = vmatprep.subr.bf16.mxu0 0
      %4472 = vmatpush1.bf16.msra.mxu0 0
      %4473 = vmatprep.subr.bf16.mxu0 0
      %4474 = vmatpush1.bf16.msra.mxu0 0
      %4475 = vmatprep.subr.bf16.mxu0 0
      %4476 = vmatpush1.bf16.msra.mxu0 0
      %4477 = vmatprep.subr.bf16.mxu0 0
      %4478 = vmatpush1.bf16.msra.mxu0 0
      %4479 = vmatprep.subr.bf16.mxu0 0
      %4480 = vmatpush1.bf16.msra.mxu0 0
      %4481 = vmatprep.subr.bf16.mxu0 0
      %4482 = vmatpush1.bf16.msra.mxu0 0
      %4483 = vmatprep.subr.bf16.mxu0 0
      %4484 = vmatpush1.bf16.msra.mxu0 0
      %4485 = vmatprep.subr.bf16.mxu0 0
      %4486 = vmatpush1.bf16.msra.mxu0 0
      %4487 = vmatprep.subr.bf16.mxu0 0
      %4488 = vmatpush1.bf16.msra.mxu0 0
      %4489 = vmatprep.subr.bf16.mxu0 0
      %4490 = vmatpush1.bf16.msra.mxu0 0
      %4491 = vmatprep.subr.bf16.mxu0 0
      %4492 = vmatpush1.bf16.msra.mxu0 0
      %4493 = vmatprep.mubr.bf16.mxu0 0
      %4494 = vmatmul.mubr.bf16.gmra.mrb[0].mxu0 %v4456
      %v4495 = vpop.f32.mrb[0].mxu0
      %v4496 = vadd.f32 0.0, %v4495
      %v4497 = vpop.f32.mrb[0].mxu0
      %v4498 = vpop.f32.mrb[0].mxu0
      %v4499 = vpop.f32.mrb[0].mxu0
      %4500 = vdwg.mxu0
      %v4502 = vsel %vm3441, %v3399, 0
      %v4505 = vsel %vm3445, %v1377, 0
      %4507 = vmatprep.subr.bf16.mxu0 0
      %4508 = vmatpush1.bf16.msra.mxu0 %v4505
      %4509 = vmatprep.subr.bf16.mxu0 0
      %4510 = vmatpush1.bf16.msra.mxu0 0
      %4511 = vmatprep.subr.bf16.mxu0 0
      %4512 = vmatpush1.bf16.msra.mxu0 0
      %4513 = vmatprep.subr.bf16.mxu0 0
      %4514 = vmatpush1.bf16.msra.mxu0 0
      %4515 = vmatprep.subr.bf16.mxu0 0
      %4516 = vmatpush1.bf16.msra.mxu0 0
      %4517 = vmatprep.subr.bf16.mxu0 0
      %4518 = vmatpush1.bf16.msra.mxu0 0
      %4519 = vmatprep.subr.bf16.mxu0 0
      %4520 = vmatpush1.bf16.msra.mxu0 0
      %4521 = vmatprep.subr.bf16.mxu0 0
      %4522 = vmatpush1.bf16.msra.mxu0 0
      %4523 = vmatprep.subr.bf16.mxu0 0
      %4524 = vmatpush1.bf16.msra.mxu0 0
      %4525 = vmatprep.subr.bf16.mxu0 0
      %4526 = vmatpush1.bf16.msra.mxu0 0
      %4527 = vmatprep.subr.bf16.mxu0 0
      %4528 = vmatpush1.bf16.msra.mxu0 0
      %4529 = vmatprep.subr.bf16.mxu0 0
      %4530 = vmatpush1.bf16.msra.mxu0 0
      %4531 = vmatprep.subr.bf16.mxu0 0
      %4532 = vmatpush1.bf16.msra.mxu0 0
      %4533 = vmatprep.subr.bf16.mxu0 0
      %4534 = vmatpush1.bf16.msra.mxu0 0
      %4535 = vmatprep.subr.bf16.mxu0 0
      %4536 = vmatpush1.bf16.msra.mxu0 0
      %4537 = vmatprep.subr.bf16.mxu0 0
      %4538 = vmatpush1.bf16.msra.mxu0 0
      %4539 = vmatprep.mubr.bf16.mxu0 0
      %4540 = vmatmul.mubr.bf16.gmra.mrb[0].mxu0 %v4502
      %v4541 = vpop.f32.mrb[0].mxu0
      %v4542 = vadd.f32 0.0, %v4541
      %v4543 = vpop.f32.mrb[0].mxu0
      %v4544 = vpop.f32.mrb[0].mxu0
      %v4545 = vpop.f32.mrb[0].mxu0
      %4546 = vdwg.mxu0
      %v4548 = vsel %vm3441, %v3400, 0
      %v4551 = vsel %vm3445, %v1331, 0
      %4553 = vmatprep.subr.bf16.mxu0 0
      %4554 = vmatpush1.bf16.msra.mxu0 %v4551
      %4555 = vmatprep.subr.bf16.mxu0 0
      %4556 = vmatpush1.bf16.msra.mxu0 0
      %4557 = vmatprep.subr.bf16.mxu0 0
      %4558 = vmatpush1.bf16.msra.mxu0 0
      %4559 = vmatprep.subr.bf16.mxu0 0
      %4560 = vmatpush1.bf16.msra.mxu0 0
      %4561 = vmatprep.subr.bf16.mxu0 0
      %4562 = vmatpush1.bf16.msra.mxu0 0
      %4563 = vmatprep.subr.bf16.mxu0 0
      %4564 = vmatpush1.bf16.msra.mxu0 0
      %4565 = vmatprep.subr.bf16.mxu0 0
      %4566 = vmatpush1.bf16.msra.mxu0 0
      %4567 = vmatprep.subr.bf16.mxu0 0
      %4568 = vmatpush1.bf16.msra.mxu0 0
      %4569 = vmatprep.subr.bf16.mxu0 0
      %4570 = vmatpush1.bf16.msra.mxu0 0
      %4571 = vmatprep.subr.bf16.mxu0 0
      %4572 = vmatpush1.bf16.msra.mxu0 0
      %4573 = vmatprep.subr.bf16.mxu0 0
      %4574 = vmatpush1.bf16.msra.mxu0 0
      %4575 = vmatprep.subr.bf16.mxu0 0
      %4576 = vmatpush1.bf16.msra.mxu0 0
      %4577 = vmatprep.subr.bf16.mxu0 0
      %4578 = vmatpush1.bf16.msra.mxu0 0
      %4579 = vmatprep.subr.bf16.mxu0 0
      %4580 = vmatpush1.bf16.msra.mxu0 0
      %4581 = vmatprep.subr.bf16.mxu0 0
      %4582 = vmatpush1.bf16.msra.mxu0 0
      %4583 = vmatprep.subr.bf16.mxu0 0
      %4584 = vmatpush1.bf16.msra.mxu0 0
      %4585 = vmatprep.mubr.bf16.mxu0 0
      %4586 = vmatmul.mubr.bf16.gmra.mrb[0].mxu0 %v4548
      %v4587 = vpop.f32.mrb[0].mxu0
      %v4588 = vadd.f32 0.0, %v4587
      %v4589 = vpop.f32.mrb[0].mxu0
      %v4590 = vpop.f32.mrb[0].mxu0
      %v4591 = vpop.f32.mrb[0].mxu0
      %4592 = vdwg.mxu0
      %v4594 = vsel %vm3441, %v3401, 0
      %v4597 = vsel %vm3445, %v1347, 0
      %4599 = vmatprep.subr.bf16.mxu0 0
      %4600 = vmatpush1.bf16.msra.mxu0 %v4597
      %4601 = vmatprep.subr.bf16.mxu0 0
      %4602 = vmatpush1.bf16.msra.mxu0 0
      %4603 = vmatprep.subr.bf16.mxu0 0
      %4604 = vmatpush1.bf16.msra.mxu0 0
      %4605 = vmatprep.subr.bf16.mxu0 0
      %4606 = vmatpush1.bf16.msra.mxu0 0
      %4607 = vmatprep.subr.bf16.mxu0 0
      %4608 = vmatpush1.bf16.msra.mxu0 0
      %4609 = vmatprep.subr.bf16.mxu0 0
      %4610 = vmatpush1.bf16.msra.mxu0 0
      %4611 = vmatprep.subr.bf16.mxu0 0
      %4612 = vmatpush1.bf16.msra.mxu0 0
      %4613 = vmatprep.subr.bf16.mxu0 0
      %4614 = vmatpush1.bf16.msra.mxu0 0
      %4615 = vmatprep.subr.bf16.mxu0 0
      %4616 = vmatpush1.bf16.msra.mxu0 0
      %4617 = vmatprep.subr.bf16.mxu0 0
      %4618 = vmatpush1.bf16.msra.mxu0 0
      %4619 = vmatprep.subr.bf16.mxu0 0
      %4620 = vmatpush1.bf16.msra.mxu0 0
      %4621 = vmatprep.subr.bf16.mxu0 0
      %4622 = vmatpush1.bf16.msra.mxu0 0
      %4623 = vmatprep.subr.bf16.mxu0 0
      %4624 = vmatpush1.bf16.msra.mxu0 0
      %4625 = vmatprep.subr.bf16.mxu0 0
      %4626 = vmatpush1.bf16.msra.mxu0 0
      %4627 = vmatprep.subr.bf16.mxu0 0
      %4628 = vmatpush1.bf16.msra.mxu0 0
      %4629 = vmatprep.subr.bf16.mxu0 0
      %4630 = vmatpush1.bf16.msra.mxu0 0
      %4631 = vmatprep.mubr.bf16.mxu0 0
      %4632 = vmatmul.mubr.bf16.gmra.mrb[0].mxu0 %v4594
      %v4633 = vpop.f32.mrb[0].mxu0
      %v4634 = vadd.f32 0.0, %v4633
      %v4635 = vpop.f32.mrb[0].mxu0
      %v4636 = vpop.f32.mrb[0].mxu0
      %v4637 = vpop.f32.mrb[0].mxu0
      %4638 = vdwg.mxu0
      %v4640 = vsel %vm3441, %v3402, 0
      %v4643 = vsel %vm3445, %v1363, 0
      %4645 = vmatprep.subr.bf16.mxu0 0
      %4646 = vmatpush1.bf16.msra.mxu0 %v4643
      %4647 = vmatprep.subr.bf16.mxu0 0
      %4648 = vmatpush1.bf16.msra.mxu0 0
      %4649 = vmatprep.subr.bf16.mxu0 0
      %4650 = vmatpush1.bf16.msra.mxu0 0
      %4651 = vmatprep.subr.bf16.mxu0 0
      %4652 = vmatpush1.bf16.msra.mxu0 0
      %4653 = vmatprep.subr.bf16.mxu0 0
      %4654 = vmatpush1.bf16.msra.mxu0 0
      %4655 = vmatprep.subr.bf16.mxu0 0
      %4656 = vmatpush1.bf16.msra.mxu0 0
      %4657 = vmatprep.subr.bf16.mxu0 0
      %4658 = vmatpush1.bf16.msra.mxu0 0
      %4659 = vmatprep.subr.bf16.mxu0 0
      %4660 = vmatpush1.bf16.msra.mxu0 0
      %4661 = vmatprep.subr.bf16.mxu0 0
      %4662 = vmatpush1.bf16.msra.mxu0 0
      %4663 = vmatprep.subr.bf16.mxu0 0
      %4664 = vmatpush1.bf16.msra.mxu0 0
      %4665 = vmatprep.subr.bf16.mxu0 0
      %4666 = vmatpush1.bf16.msra.mxu0 0
      %4667 = vmatprep.subr.bf16.mxu0 0
      %4668 = vmatpush1.bf16.msra.mxu0 0
      %4669 = vmatprep.subr.bf16.mxu0 0
      %4670 = vmatpush1.bf16.msra.mxu0 0
      %4671 = vmatprep.subr.bf16.mxu0 0
      %4672 = vmatpush1.bf16.msra.mxu0 0
      %4673 = vmatprep.subr.bf16.mxu0 0
      %4674 = vmatpush1.bf16.msra.mxu0 0
      %4675 = vmatprep.subr.bf16.mxu0 0
      %4676 = vmatpush1.bf16.msra.mxu0 0
      %4677 = vmatprep.mubr.bf16.mxu0 0
      %4678 = vmatmul.mubr.bf16.gmra.mrb[0].mxu0 %v4640
      %v4679 = vpop.f32.mrb[0].mxu0
      %v4680 = vadd.f32 0.0, %v4679
      %v4681 = vpop.f32.mrb[0].mxu0
      %v4682 = vpop.f32.mrb[0].mxu0
      %v4683 = vpop.f32.mrb[0].mxu0
      %4684 = vdwg.mxu0
      %v4686 = vsel %vm3441, %v3403, 0
      %v4689 = vsel %vm3445, %v1379, 0
      %4691 = vmatprep.subr.bf16.mxu0 0
      %4692 = vmatpush1.bf16.msra.mxu0 %v4689
      %4693 = vmatprep.subr.bf16.mxu0 0
      %4694 = vmatpush1.bf16.msra.mxu0 0
      %4695 = vmatprep.subr.bf16.mxu0 0
      %4696 = vmatpush1.bf16.msra.mxu0 0
      %4697 = vmatprep.subr.bf16.mxu0 0
      %4698 = vmatpush1.bf16.msra.mxu0 0
      %4699 = vmatprep.subr.bf16.mxu0 0
      %4700 = vmatpush1.bf16.msra.mxu0 0
      %4701 = vmatprep.subr.bf16.mxu0 0
      %4702 = vmatpush1.bf16.msra.mxu0 0
      %4703 = vmatprep.subr.bf16.mxu0 0
      %4704 = vmatpush1.bf16.msra.mxu0 0
      %4705 = vmatprep.subr.bf16.mxu0 0
      %4706 = vmatpush1.bf16.msra.mxu0 0
      %4707 = vmatprep.subr.bf16.mxu0 0
      %4708 = vmatpush1.bf16.msra.mxu0 0
      %4709 = vmatprep.subr.bf16.mxu0 0
      %4710 = vmatpush1.bf16.msra.mxu0 0
      %4711 = vmatprep.subr.bf16.mxu0 0
      %4712 = vmatpush1.bf16.msra.mxu0 0
      %4713 = vmatprep.subr.bf16.mxu0 0
      %4714 = vmatpush1.bf16.msra.mxu0 0
      %4715 = vmatprep.subr.bf16.mxu0 0
      %4716 = vmatpush1.bf16.msra.mxu0 0
      %4717 = vmatprep.subr.bf16.mxu0 0
      %4718 = vmatpush1.bf16.msra.mxu0 0
      %4719 = vmatprep.subr.bf16.mxu0 0
      %4720 = vmatpush1.bf16.msra.mxu0 0
      %4721 = vmatprep.subr.bf16.mxu0 0
      %4722 = vmatpush1.bf16.msra.mxu0 0
      %4723 = vmatprep.mubr.bf16.mxu0 0
      %4724 = vmatmul.mubr.bf16.gmra.mrb[0].mxu0 %v4686
      %v4725 = vpop.f32.mrb[0].mxu0
      %v4726 = vadd.f32 0.0, %v4725
      %v4727 = vpop.f32.mrb[0].mxu0
      %v4728 = vpop.f32.mrb[0].mxu0
      %v4729 = vpop.f32.mrb[0].mxu0
      %4730 = vdwg.mxu0
      %v4732 = vsel %vm3441, %v3404, 0
      %v4735 = vsel %vm3445, %v1333, 0
      %4737 = vmatprep.subr.bf16.mxu0 0
      %4738 = vmatpush1.bf16.msra.mxu0 %v4735
      %4739 = vmatprep.subr.bf16.mxu0 0
      %4740 = vmatpush1.bf16.msra.mxu0 0
      %4741 = vmatprep.subr.bf16.mxu0 0
      %4742 = vmatpush1.bf16.msra.mxu0 0
      %4743 = vmatprep.subr.bf16.mxu0 0
      %4744 = vmatpush1.bf16.msra.mxu0 0
      %4745 = vmatprep.subr.bf16.mxu0 0
      %4746 = vmatpush1.bf16.msra.mxu0 0
      %4747 = vmatprep.subr.bf16.mxu0 0
      %4748 = vmatpush1.bf16.msra.mxu0 0
      %4749 = vmatprep.subr.bf16.mxu0 0
      %4750 = vmatpush1.bf16.msra.mxu0 0
      %4751 = vmatprep.subr.bf16.mxu0 0
      %4752 = vmatpush1.bf16.msra.mxu0 0
      %4753 = vmatprep.subr.bf16.mxu0 0
      %4754 = vmatpush1.bf16.msra.mxu0 0
      %4755 = vmatprep.subr.bf16.mxu0 0
      %4756 = vmatpush1.bf16.msra.mxu0 0
      %4757 = vmatprep.subr.bf16.mxu0 0
      %4758 = vmatpush1.bf16.msra.mxu0 0
      %4759 = vmatprep.subr.bf16.mxu0 0
      %4760 = vmatpush1.bf16.msra.mxu0 0
      %4761 = vmatprep.subr.bf16.mxu0 0
      %4762 = vmatpush1.bf16.msra.mxu0 0
      %4763 = vmatprep.subr.bf16.mxu0 0
      %4764 = vmatpush1.bf16.msra.mxu0 0
      %4765 = vmatprep.subr.bf16.mxu0 0
      %4766 = vmatpush1.bf16.msra.mxu0 0
      %4767 = vmatprep.subr.bf16.mxu0 0
      %4768 = vmatpush1.bf16.msra.mxu0 0
      %4769 = vmatprep.mubr.bf16.mxu0 0
      %4770 = vmatmul.mubr.bf16.gmra.mrb[0].mxu0 %v4732
      %v4771 = vpop.f32.mrb[0].mxu0
      %v4772 = vadd.f32 0.0, %v4771
      %v4773 = vpop.f32.mrb[0].mxu0
      %v4774 = vpop.f32.mrb[0].mxu0
      %v4775 = vpop.f32.mrb[0].mxu0
      %4776 = vdwg.mxu0
      %v4778 = vsel %vm3441, %v3405, 0
      %v4781 = vsel %vm3445, %v1349, 0
      %4783 = vmatprep.subr.bf16.mxu0 0
      %4784 = vmatpush1.bf16.msra.mxu0 %v4781
      %4785 = vmatprep.subr.bf16.mxu0 0
      %4786 = vmatpush1.bf16.msra.mxu0 0
      %4787 = vmatprep.subr.bf16.mxu0 0
      %4788 = vmatpush1.bf16.msra.mxu0 0
      %4789 = vmatprep.subr.bf16.mxu0 0
      %4790 = vmatpush1.bf16.msra.mxu0 0
      %4791 = vmatprep.subr.bf16.mxu0 0
      %4792 = vmatpush1.bf16.msra.mxu0 0
      %4793 = vmatprep.subr.bf16.mxu0 0
      %4794 = vmatpush1.bf16.msra.mxu0 0
      %4795 = vmatprep.subr.bf16.mxu0 0
      %4796 = vmatpush1.bf16.msra.mxu0 0
      %4797 = vmatprep.subr.bf16.mxu0 0
      %4798 = vmatpush1.bf16.msra.mxu0 0
      %4799 = vmatprep.subr.bf16.mxu0 0
      %4800 = vmatpush1.bf16.msra.mxu0 0
      %4801 = vmatprep.subr.bf16.mxu0 0
      %4802 = vmatpush1.bf16.msra.mxu0 0
      %4803 = vmatprep.subr.bf16.mxu0 0
      %4804 = vmatpush1.bf16.msra.mxu0 0
      %4805 = vmatprep.subr.bf16.mxu0 0
      %4806 = vmatpush1.bf16.msra.mxu0 0
      %4807 = vmatprep.subr.bf16.mxu0 0
      %4808 = vmatpush1.bf16.msra.mxu0 0
      %4809 = vmatprep.subr.bf16.mxu0 0
      %4810 = vmatpush1.bf16.msra.mxu0 0
      %4811 = vmatprep.subr.bf16.mxu0 0
      %4812 = vmatpush1.bf16.msra.mxu0 0
      %4813 = vmatprep.subr.bf16.mxu0 0
      %4814 = vmatpush1.bf16.msra.mxu0 0
      %4815 = vmatprep.mubr.bf16.mxu0 0
      %4816 = vmatmul.mubr.bf16.gmra.mrb[0].mxu0 %v4778
      %v4817 = vpop.f32.mrb[0].mxu0
      %v4818 = vadd.f32 0.0, %v4817
      %v4819 = vpop.f32.mrb[0].mxu0
      %v4820 = vpop.f32.mrb[0].mxu0
      %v4821 = vpop.f32.mrb[0].mxu0
      %4822 = vdwg.mxu0
      %v4824 = vsel %vm3441, %v3406, 0
      %v4827 = vsel %vm3445, %v1365, 0
      %4829 = vmatprep.subr.bf16.mxu0 0
      %4830 = vmatpush1.bf16.msra.mxu0 %v4827
      %4831 = vmatprep.subr.bf16.mxu0 0
      %4832 = vmatpush1.bf16.msra.mxu0 0
      %4833 = vmatprep.subr.bf16.mxu0 0
      %4834 = vmatpush1.bf16.msra.mxu0 0
      %4835 = vmatprep.subr.bf16.mxu0 0
      %4836 = vmatpush1.bf16.msra.mxu0 0
      %4837 = vmatprep.subr.bf16.mxu0 0
      %4838 = vmatpush1.bf16.msra.mxu0 0
      %4839 = vmatprep.subr.bf16.mxu0 0
      %4840 = vmatpush1.bf16.msra.mxu0 0
      %4841 = vmatprep.subr.bf16.mxu0 0
      %4842 = vmatpush1.bf16.msra.mxu0 0
      %4843 = vmatprep.subr.bf16.mxu0 0
      %4844 = vmatpush1.bf16.msra.mxu0 0
      %4845 = vmatprep.subr.bf16.mxu0 0
      %4846 = vmatpush1.bf16.msra.mxu0 0
      %4847 = vmatprep.subr.bf16.mxu0 0
      %4848 = vmatpush1.bf16.msra.mxu0 0
      %4849 = vmatprep.subr.bf16.mxu0 0
      %4850 = vmatpush1.bf16.msra.mxu0 0
      %4851 = vmatprep.subr.bf16.mxu0 0
      %4852 = vmatpush1.bf16.msra.mxu0 0
      %4853 = vmatprep.subr.bf16.mxu0 0
      %4854 = vmatpush1.bf16.msra.mxu0 0
      %4855 = vmatprep.subr.bf16.mxu0 0
      %4856 = vmatpush1.bf16.msra.mxu0 0
      %4857 = vmatprep.subr.bf16.mxu0 0
      %4858 = vmatpush1.bf16.msra.mxu0 0
      %4859 = vmatprep.subr.bf16.mxu0 0
      %4860 = vmatpush1.bf16.msra.mxu0 0
      %4861 = vmatprep.mubr.bf16.mxu0 0
      %4862 = vmatmul.mubr.bf16.gmra.mrb[0].mxu0 %v4824
      %v4863 = vpop.f32.mrb[0].mxu0
      %v4864 = vadd.f32 0.0, %v4863
      %v4865 = vpop.f32.mrb[0].mxu0
      %v4866 = vpop.f32.mrb[0].mxu0
      %v4867 = vpop.f32.mrb[0].mxu0
      %4868 = vdwg.mxu0
      %v4870 = vsel %vm3441, %v3407, 0
      %v4873 = vsel %vm3445, %v1381, 0
      %4875 = vmatprep.subr.bf16.mxu0 0
      %4876 = vmatpush1.bf16.msra.mxu0 %v4873
      %4877 = vmatprep.subr.bf16.mxu0 0
      %4878 = vmatpush1.bf16.msra.mxu0 0
      %4879 = vmatprep.subr.bf16.mxu0 0
      %4880 = vmatpush1.bf16.msra.mxu0 0
      %4881 = vmatprep.subr.bf16.mxu0 0
      %4882 = vmatpush1.bf16.msra.mxu0 0
      %4883 = vmatprep.subr.bf16.mxu0 0
      %4884 = vmatpush1.bf16.msra.mxu0 0
      %4885 = vmatprep.subr.bf16.mxu0 0
      %4886 = vmatpush1.bf16.msra.mxu0 0
      %4887 = vmatprep.subr.bf16.mxu0 0
      %4888 = vmatpush1.bf16.msra.mxu0 0
      %4889 = vmatprep.subr.bf16.mxu0 0
      %4890 = vmatpush1.bf16.msra.mxu0 0
      %4891 = vmatprep.subr.bf16.mxu0 0
      %4892 = vmatpush1.bf16.msra.mxu0 0
      %4893 = vmatprep.subr.bf16.mxu0 0
      %4894 = vmatpush1.bf16.msra.mxu0 0
      %4895 = vmatprep.subr.bf16.mxu0 0
      %4896 = vmatpush1.bf16.msra.mxu0 0
      %4897 = vmatprep.subr.bf16.mxu0 0
      %4898 = vmatpush1.bf16.msra.mxu0 0
      %4899 = vmatprep.subr.bf16.mxu0 0
      %4900 = vmatpush1.bf16.msra.mxu0 0
      %4901 = vmatprep.subr.bf16.mxu0 0
      %4902 = vmatpush1.bf16.msra.mxu0 0
      %4903 = vmatprep.subr.bf16.mxu0 0
      %4904 = vmatpush1.bf16.msra.mxu0 0
      %4905 = vmatprep.subr.bf16.mxu0 0
      %4906 = vmatpush1.bf16.msra.mxu0 0
      %4907 = vmatprep.mubr.bf16.mxu0 0
      %4908 = vmatmul.mubr.bf16.gmra.mrb[0].mxu0 %v4870
      %v4909 = vpop.f32.mrb[0].mxu0
      %v4910 = vadd.f32 0.0, %v4909
      %v4911 = vpop.f32.mrb[0].mxu0
      %v4912 = vpop.f32.mrb[0].mxu0
      %v4913 = vpop.f32.mrb[0].mxu0
      %4914 = vdwg.mxu0
      %4923 = vrot.lane.b32.xlu0 %v3530, 8
      %v4924 = vpop.permute.xlu0 %4923
      %4925 = vrot.lane.b32.xlu0 %v3714, 8
      %v4926 = vpop.permute.xlu0 %4925
      %4927 = vrot.lane.b32.xlu0 %v3898, 8
      %v4928 = vpop.permute.xlu0 %4927
      %4929 = vrot.lane.b32.xlu0 %v4082, 8
      %v4930 = vpop.permute.xlu0 %4929
      %4931 = vrot.lane.b32.xlu0 %v4266, 8
      %v4932 = vpop.permute.xlu0 %4931
      %4933 = vrot.lane.b32.xlu0 %v4450, 8
      %v4934 = vpop.permute.xlu0 %4933
      %4935 = vrot.lane.b32.xlu0 %v4634, 8
      %v4936 = vpop.permute.xlu0 %4935
      %4937 = vrot.lane.b32.xlu0 %v4818, 8
      %v4938 = vpop.permute.xlu0 %4937
      %4955 = vrot.lane.b32.xlu0 %v3576, 16
      %v4956 = vpop.permute.xlu0 %4955
      %4957 = vrot.lane.b32.xlu0 %v3760, 16
      %v4958 = vpop.permute.xlu0 %4957
      %4959 = vrot.lane.b32.xlu0 %v3944, 16
      %v4960 = vpop.permute.xlu0 %4959
      %4961 = vrot.lane.b32.xlu0 %v4128, 16
      %v4962 = vpop.permute.xlu0 %4961
      %4963 = vrot.lane.b32.xlu0 %v4312, 16
      %v4964 = vpop.permute.xlu0 %4963
      %4965 = vrot.lane.b32.xlu0 %v4496, 16
      %v4966 = vpop.permute.xlu0 %4965
      %4967 = vrot.lane.b32.xlu0 %v4680, 16
      %v4968 = vpop.permute.xlu0 %4967
      %4969 = vrot.lane.b32.xlu0 %v4864, 16
      %v4970 = vpop.permute.xlu0 %4969
      %4987 = vrot.lane.b32.xlu0 %v3622, 24
      %v4988 = vpop.permute.xlu0 %4987
      %4989 = vrot.lane.b32.xlu0 %v3806, 24
      %v4990 = vpop.permute.xlu0 %4989
      %4991 = vrot.lane.b32.xlu0 %v3990, 24
      %v4992 = vpop.permute.xlu0 %4991
      %4993 = vrot.lane.b32.xlu0 %v4174, 24
      %v4994 = vpop.permute.xlu0 %4993
      %4995 = vrot.lane.b32.xlu0 %v4358, 24
      %v4996 = vpop.permute.xlu0 %4995
      %4997 = vrot.lane.b32.xlu0 %v4542, 24
      %v4998 = vpop.permute.xlu0 %4997
      %4999 = vrot.lane.b32.xlu0 %v4726, 24
      %v5000 = vpop.permute.xlu0 %4999
      %5001 = vrot.lane.b32.xlu0 %v4910, 24
      %v5002 = vpop.permute.xlu0 %5001
      %v5011 = vsel %vm1382, %v3484, %v4924
      %v5012 = vsel %vm1382, %v3668, %v4926
      %v5013 = vsel %vm1382, %v3852, %v4928
      %v5014 = vsel %vm1382, %v4036, %v4930
      %v5015 = vsel %vm1382, %v4220, %v4932
      %v5016 = vsel %vm1382, %v4404, %v4934
      %v5017 = vsel %vm1382, %v4588, %v4936
      %v5018 = vsel %vm1382, %v4772, %v4938
      %vm5019 = vcmask 130048
      %v5020 = vsel %vm5019, %v5011, %v4956
      %v5021 = vsel %vm5019, %v5012, %v4958
      %v5022 = vsel %vm5019, %v5013, %v4960
      %v5023 = vsel %vm5019, %v5014, %v4962
      %v5024 = vsel %vm5019, %v5015, %v4964
      %v5025 = vsel %vm5019, %v5016, %v4966
      %v5026 = vsel %vm5019, %v5017, %v4968
      %v5027 = vsel %vm5019, %v5018, %v4970
      %vm5028 = vcmask 195584
      %v5029 = vsel %vm5028, %v5020, %v4988
      %v5030 = vsel %vm5028, %v5021, %v4990
      %v5031 = vsel %vm5028, %v5022, %v4992
      %v5032 = vsel %vm5028, %v5023, %v4994
      %v5033 = vsel %vm5028, %v5024, %v4996
      %v5034 = vsel %vm5028, %v5025, %v4998
      %v5035 = vsel %vm5028, %v5026, %v5000
      %v5036 = vsel %vm5028, %v5027, %v5002
      %v5045 = vcombine.low %v5029, %v5030
      %v5046 = vcombine.low %v5031, %v5032
      %v5047 = vcombine.low %v5033, %v5034
      %v5048 = vcombine.low %v5035, %v5036
      %v5053 = vpack.c.bf16 %v5046, %v5045
      %v5054 = vpack.c.bf16 %v5048, %v5047
      %v5055 = vld [vmem:[%s10] sm:$0xf]
      %v5056 = vld [vmem:[%s10 + $0x4] sm:$0xf]
      %v5057 = vld [vmem:[%s10 + $0x8] sm:$0xf]
      %v5058 = vld [vmem:[%s10 + $0xc] sm:$0xf]
      %v5059 = vld [vmem:[%s11] sm:$0x1]
      %v5061 = vlaneseq
      %v5062 = vshrl.u32 %v5061, 7
      %v5063 = vsub.s32 0, %v5062
      %v5064 = vrot.slane %v5059, %v5063
      %v5070 = vunpack.c.l.b16 %v5055
      %v5071 = vunpack.c.l.b16 %v5056
      %v5072 = vunpack.c.l.b16 %v5057
      %v5073 = vunpack.c.l.b16 %v5058
      %v5074 = vpack.c.b16 %v5071, %v5070
      %v5075 = vpack.c.b16 %v5073, %v5072
      %v5079 = vsel %vm630, %v5053, 0
      %v5082 = vsel %vm630, %v5054, 0
      %5084 = vmatprep.subr.bf16.mxu0 0
      %5085 = vmatpush1.bf16.msra.mxu0 %v5074
      %5086 = vmatprep.subr.bf16.mxu0 0
      %5087 = vmatpush1.bf16.msra.mxu0 %v5075
      %5088 = vmatprep.subr.bf16.mxu0 0
      %5089 = vmatpush1.bf16.msra.mxu0 0
      %5090 = vmatprep.subr.bf16.mxu0 0
      %5091 = vmatpush1.bf16.msra.mxu0 0
      %5092 = vmatprep.subr.bf16.mxu0 0
      %5093 = vmatpush1.bf16.msra.mxu0 0
      %5094 = vmatprep.subr.bf16.mxu0 0
      %5095 = vmatpush1.bf16.msra.mxu0 0
      %5096 = vmatprep.subr.bf16.mxu0 0
      %5097 = vmatpush1.bf16.msra.mxu0 0
      %5098 = vmatprep.subr.bf16.mxu0 0
      %5099 = vmatpush1.bf16.msra.mxu0 0
      %5100 = vmatprep.subr.bf16.mxu0 0
      %5101 = vmatpush1.bf16.msra.mxu0 0
      %5102 = vmatprep.subr.bf16.mxu0 0
      %5103 = vmatpush1.bf16.msra.mxu0 0
      %5104 = vmatprep.subr.bf16.mxu0 0
      %5105 = vmatpush1.bf16.msra.mxu0 0
      %5106 = vmatprep.subr.bf16.mxu0 0
      %5107 = vmatpush1.bf16.msra.mxu0 0
      %5108 = vmatprep.subr.bf16.mxu0 0
      %5109 = vmatpush1.bf16.msra.mxu0 0
      %5110 = vmatprep.subr.bf16.mxu0 0
      %5111 = vmatpush1.bf16.msra.mxu0 0
      %5112 = vmatprep.subr.bf16.mxu0 0
      %5113 = vmatpush1.bf16.msra.mxu0 0
      %5114 = vmatprep.subr.bf16.mxu0 0
      %5115 = vmatpush1.bf16.msra.mxu0 0
      %5116 = vmatprep.mubr.bf16.mxu0 0
      %5117 = vmatmul.mubr.bf16.gmra.mrb[0].mxu0 %v5079
      %v5118 = vpop.f32.mrb[0].mxu0
      %v5119 = vadd.f32 %v5064, %v5118
      %v5120 = vpop.f32.mrb[0].mxu0
      %v5121 = vpop.f32.mrb[0].mxu0
      %v5122 = vadd.f32 %v5064, %v5121
      %v5123 = vpop.f32.mrb[0].mxu0
      %5124 = vmatprep.mubr.bf16.mxu0 0
      %5125 = vmatmul.mubr.bf16.gmra.mrb[0].mxu0 %v5082
      %v5126 = vpop.f32.mrb[0].mxu0
      %v5127 = vadd.f32 %v5064, %v5126
      %v5128 = vpop.f32.mrb[0].mxu0
      %v5129 = vpop.f32.mrb[0].mxu0
      %v5130 = vadd.f32 %v5064, %v5129
      %v5131 = vpop.f32.mrb[0].mxu0
      %5132 = vdwg.mxu0
      %v5133 = vadd.f32 %v5119, %v622
      %v5134 = vadd.f32 %v5122, %v623
      %v5135 = vadd.f32 %v5127, %v624
      %v5136 = vadd.f32 %v5130, %v625
      %v5141 = vcombine.high %v5133, %v5133
      %v5142 = vcombine.high %v5134, %v5134
      %v5143 = vcombine.high %v5135, %v5135
      %v5144 = vcombine.high %v5136, %v5136
      %v5149 = vcombine.low %v5133, %v5134
      %v5151 = vunpack.c.l.s4 1983009808
      %v5152 = vunpack.c.0.s8 %v5151
      %v5153 = vlaneseq
      %v5154 = vshrl.u32 %v5153, 7
      %v5155 = vsub.s32 %v5152, %v5154
      %v5156 = vrot.slane %v5149, %v5155
      %v5157 = vcombine.low %v5141, %v5142
      %v5159 = vunpack.c.l.s4 1983009808
      %v5160 = vunpack.c.0.s8 %v5159
      %v5161 = vlaneseq
      %v5162 = vshrl.u32 %v5161, 7
      %v5163 = vsub.s32 %v5160, %v5162
      %v5164 = vrot.slane %v5157, %v5163
      %v5165 = vcombine.low %v5156, %v5164
      %v5166 = vcombine.high %v5156, %v5164
      %v5168 = vunpack.c.l.s4 1934713408
      %v5169 = vunpack.c.0.s8 %v5168
      %v5170 = vlaneseq
      %v5171 = vshrl.u32 %v5170, 7
      %v5172 = vsub.s32 %v5169, %v5171
      %v5173 = vrot.slane %v5165, %v5172
      %v5175 = vunpack.c.l.s4 1934713408
      %v5176 = vunpack.c.0.s8 %v5175
      %v5177 = vlaneseq
      %v5178 = vshrl.u32 %v5177, 7
      %v5179 = vsub.s32 %v5176, %v5178
      %v5180 = vrot.slane %v5166, %v5179
      %v5181 = vcombine.high %v5173, 0.0
      %v5182 = vcombine.high %v5180, 0.0
      %v5183 = vcombine.low %v5135, %v5136
      %v5185 = vunpack.c.l.s4 1983009808
      %v5186 = vunpack.c.0.s8 %v5185
      %v5187 = vlaneseq
      %v5188 = vshrl.u32 %v5187, 7
      %v5189 = vsub.s32 %v5186, %v5188
      %v5190 = vrot.slane %v5183, %v5189
      %v5191 = vcombine.low %v5143, %v5144
      %v5193 = vunpack.c.l.s4 1983009808
      %v5194 = vunpack.c.0.s8 %v5193
      %v5195 = vlaneseq
      %v5196 = vshrl.u32 %v5195, 7
      %v5197 = vsub.s32 %v5194, %v5196
      %v5198 = vrot.slane %v5191, %v5197
      %v5199 = vcombine.low %v5190, %v5198
      %v5200 = vcombine.high %v5190, %v5198
      %v5202 = vunpack.c.l.s4 1934713408
      %v5203 = vunpack.c.0.s8 %v5202
      %v5204 = vlaneseq
      %v5205 = vshrl.u32 %v5204, 7
      %v5206 = vsub.s32 %v5203, %v5205
      %v5207 = vrot.slane %v5199, %v5206
      %v5209 = vunpack.c.l.s4 1934713408
      %v5210 = vunpack.c.0.s8 %v5209
      %v5211 = vlaneseq
      %v5212 = vshrl.u32 %v5211, 7
      %v5213 = vsub.s32 %v5210, %v5212
      %v5214 = vrot.slane %v5200, %v5213
      %v5215 = vcombine.high %v5207, 0.0
      %v5216 = vcombine.high %v5214, 0.0
      %v5225 = vcombine.low %v5173, %v5207
      %v5226 = vcombine.low %v5181, %v5215
      %v5227 = vcombine.low %v5180, %v5214
      %v5228 = vcombine.low %v5182, %v5216
      %5233 = vst.msk [vmem:[%s519] sm:$0xff] %vm630, %v5225
      %5234 = vst.msk [vmem:[%s519 + $0x8] sm:$0xff] %vm630, %v5226
      %5235 = vst.msk [vmem:[%s519 + $0x10] sm:$0xff] %vm630, %v5227
      %5236 = vst.msk [vmem:[%s519 + $0x18] sm:$0xff] %vm630, %v5228
      %p5237 = scmp.lt.s32.totalorder %s29, 1
      %s5238 = scalar_select %p5237, %s29, 1
      %p5239 = scmp.lt.s32.totalorder %s30, 0
      %s5240 = scalar_select %p5239, %s30, 0
      %s5241 = smul.addr %s5238, 4
      %s5242 = sadd.s32 %s5240, %s5241
      %s5243 = smul.addr %s5242, 8
      %s5244 = scalar_lea.vmem %s12, %s5243
      %s5245 = smul.u32 8, %s30
      %p5246 = scmp.lt.s32.totalorder %s29, 1
      %s5247 = scalar_select %p5246, %s29, 1
      %p5248 = scmp.lt.s32.totalorder %s5245, 7
      %s5249 = scalar_select %p5248, %s5245, 7
      %s5250 = smul.addr %s5249, 4
      %s5251 = smul.addr %s5247, 32
      %s5252 = sadd.s32 %s5250, %s5251
      %s5253 = smul.addr %s5252, 2
      %s5254 = scalar_lea.vmem %s13, %s5253
      // Predicated region
      $region69: #{encoder_layer_forward.4} parent=67 // pred_check
        %p5255 = pneg %p323
      $region70: #{encoder_layer_forward.4} parent=67 // pred_check_branch
        %5257 = sbr.rel (%p5255) target = $region72
      $region71: #{encoder_layer_forward.4} parent=67 // pred_region
        _
      $region72: #{encoder_layer_forward.4} parent=67 // pred_fallthru
        _
      // Predicated region
      $region73: #{encoder_layer_forward.4} parent=67 // pred_check
        %p5258 = pneg %p351
      $region74: #{encoder_layer_forward.4} parent=67 // pred_check_branch
        %5260 = sbr.rel (%p5258) target = $region76
      $region75: #{encoder_layer_forward.4} parent=67 // pred_region
        %s5261 = smul.u32 8, %s30
      $region76: #{encoder_layer_forward.4} parent=67 // pred_fallthru
        _
    $region68: #{encoder_layer_forward.4} parent=5 // pred_fallthru
      _
    %p5262 = scmp.le.s32.totalorder 2, %s20
    // Predicated region
    $region77: #{encoder_layer_forward.4} parent=5 // pred_check
      %p5263 = pneg %p5262
    $region78: #{encoder_layer_forward.4} parent=5 // pred_check_branch
      %5265 = sbr.rel (%p5263) target = $region80
    $region79: #{encoder_layer_forward.4} parent=5 // pred_region
      %s5266 = ssub.s32 %s20, 2
      // Predicated region
      $region81: #{encoder_layer_forward.4} parent=79 // pred_check
        %p5267 = pneg %p329
      $region82: #{encoder_layer_forward.4} parent=79 // pred_check_branch
        %5269 = sbr.rel (%p5267) target = $region84
      $region83: #{encoder_layer_forward.4} parent=79 // pred_region
        %p5270 = scmp.lt.s32.totalorder %s31, 1
        %s5271 = scalar_select %p5270, %s31, 1
        %p5272 = scmp.lt.s32.totalorder %s32, 0
        %s5273 = scalar_select %p5272, %s32, 0
        %s5274 = smul.addr %s5271, 4
        %s5275 = sadd.s32 %s5273, %s5274
        %s5276 = smul.addr %s5275, 8
        %s5277 = scalar_lea.vmem %s12, %s5276
      $region84: #{encoder_layer_forward.4} parent=79 // pred_fallthru
        _
      // Predicated region
      $region85: #{encoder_layer_forward.4} parent=79 // pred_check
        %p5278 = pneg %p357
      $region86: #{encoder_layer_forward.4} parent=79 // pred_check_branch
        %5280 = sbr.rel (%p5278) target = $region88
      $region87: #{encoder_layer_forward.4} parent=79 // pred_region
        %s5281 = smul.u32 8, %s32
        %p5282 = scmp.lt.s32.totalorder %s31, 1
        %s5283 = scalar_select %p5282, %s31, 1
        %p5284 = scmp.lt.s32.totalorder %s5281, 7
        %s5285 = scalar_select %p5284, %s5281, 7
        %s5286 = smul.addr %s5285, 4
        %s5287 = smul.addr %s5283, 32
        %s5288 = sadd.s32 %s5286, %s5287
        %s5289 = smul.addr %s5288, 2
        %s5290 = scalar_lea.vmem %s13, %s5289
      $region88: #{encoder_layer_forward.4} parent=79 // pred_fallthru
        _
    $region80: #{encoder_layer_forward.4} parent=5 // pred_fallthru
      _
  $region6: #{encoder_layer_forward.4} parent=0 // loop_footer
    %s24 = sadd.s32 1, %s20
  $region7: #{encoder_layer_forward.4} parent=0 // loop_footer_branch
    %19 = sbr.rel target = $region3
  $region8: #{encoder_layer_forward.4} parent=0 // loop_exit
    _

</llo_original>
